<compile_context>
chip_gen: v6e
topology: v6e:2x2x1
jax: 0.10.0
libtpu: 0.0.40
codegen_flags: <defaults>
</compile_context>

<pallas_src>
import numpy as np
import jax
import jax.numpy as jnp
from jax import lax
from jax.experimental import pallas as pl
from jax.experimental.pallas import tpu as pltpu

C = 1152            # channels (fixed by the module)
H = W = 7
K = 5               # depthwise kernel size
PAD = 2
EPS = 1e-5
HW = H * W          # 49 pixels
PW = W + 2 * PAD    # 11 padded row width
PH = H + 2 * PAD    # 11 padded rows
KK = K * K          # 25 taps
LANES = 128
CB = 384            # channels per grid step (3 lane tiles) -> grid=(3,)
NSUB = CB // LANES  # 3 sub-slices of 128 channels inside each step
CDIM = 128          # padded contraction width (49 pixels + 25 taps + zeros)

# ---- constant 0/1 selection matrices (host-side, baked into the executable) ----
_s_np = np.zeros((128, 128), np.float32)      # padded-position <- pixel scatter
for _r in range(H):
    for _c in range(W):
        _s_np[(_r + PAD) * PW + (_c + PAD), _r * W + _c] = 1.0
_wsel_np = np.zeros((32, 128), np.float32)    # tap <- packed-column selector
for _k in range(KK):
    _wsel_np[_k, HW + _k] = 1.0
_vmask_np = _s_np.sum(axis=1, keepdims=True)  # (128,1): 1.0 at interior positions


def fused_bn_relu_dwconv_bn_kernel(x_ref, w_ref, g1_ref, b1_ref, g2_ref, b2_ref,
                                   s_ref, wsel_ref, vm_ref, o_ref):
    """x_ref:(CB,49) w_ref:(CB,25) g/b:(1,CB) s:(128,128)bf16 wsel:(32,128)bf16
    vm:(128,1)f32  o_ref:(CB,49).  Everything per grid step handled in 3x 128-lane
    sub-slices to keep live vregs well under 64."""
    s_mat = s_ref[...]          # (128,128) bf16, exact 0/1
    wsel = wsel_ref[...]        # (32,128)  bf16, exact 0/1
    vmask = vm_ref[...]         # (128,1)   f32
    inv_n = jnp.float32(1.0 / HW)
    nt = (((1,), (1,)), ((), ()))   # contract minor dims (q @ k.T style)

    for j in range(NSUB):
        lo, hi = j * LANES, (j + 1) * LANES
        x_sub = x_ref[lo:hi, :]                 # (128, 49) f32, channel-major
        w_sub = w_ref[lo:hi, :]                 # (128, 25) f32, channel-major
        g1 = g1_ref[0:1, lo:hi]
        b1 = b1_ref[0:1, lo:hi]
        g2 = g2_ref[0:1, lo:hi]
        b2 = b2_ref[0:1, lo:hi]

        # pack pixels+taps into one 128-wide contraction, exact hi/lo f32 split
        rhs = jnp.concatenate(
            [x_sub, w_sub, jnp.zeros((LANES, CDIM - HW - KK), jnp.float32)], axis=1)
        rhs_hi = rhs.astype(jnp.bfloat16)
        rhs_lo = (rhs - rhs_hi.astype(jnp.float32)).astype(jnp.bfloat16)

        # one MXU matmul pair = transpose + zero-pad scatter of the image,
        # one tiny pair = transpose of the depthwise taps (all exact selections)
        xpad = (lax.dot_general(s_mat, rhs_hi, nt, preferred_element_type=jnp.float32)
                + lax.dot_general(s_mat, rhs_lo, nt, preferred_element_type=jnp.float32))
        w_t = (lax.dot_general(wsel, rhs_hi, nt, preferred_element_type=jnp.float32)
               + lax.dot_general(wsel, rhs_lo, nt, preferred_element_type=jnp.float32))
        # xpad: (128 padded flat positions, 128 channels); w_t: (32 taps, 128 channels)

        # ---- BatchNorm2d #45 (batch stats, two-pass variance) + ReLU ----
        mean1 = jnp.sum(xpad, axis=0, keepdims=True) * inv_n          # (1,128)
        d1 = (xpad - mean1) * vmask
        var1 = jnp.sum(d1 * d1, axis=0, keepdims=True) * inv_n
        scale1 = g1 * lax.rsqrt(var1 + EPS)
        shift1 = b1 - mean1 * scale1
        xb = jnp.maximum(xpad * scale1 + shift1, 0.0) * vmask         # pads stay 0

        # ---- depthwise 5x5 conv, stride 1: pure VPU multiply-adds ----
        acc = [None] * H                        # one (7,128) piece per output row
        for pr in range(PH):                    # padded input row
            for dw in range(K):                 # kernel column
                seg = xb[PW * pr + dw: PW * pr + dw + W, :]           # (7,128)
                for dh in range(K):             # kernel row
                    r = pr - dh                 # output row fed by this (pr, dh)
                    if 0 <= r < H:
                        tap = w_t[dh * K + dw: dh * K + dw + 1, :]    # (1,128)
                        contrib = seg * tap
                        acc[r] = contrib if acc[r] is None else acc[r] + contrib

        # ---- BatchNorm2d #46 (batch stats, two-pass variance) ----
        tot = acc[0]
        for r in range(1, H):
            tot = tot + acc[r]
        mean2 = jnp.sum(tot, axis=0, keepdims=True) * inv_n
        dsq = None
        for r in range(H):
            d2 = acc[r] - mean2
            dsq = d2 * d2 if dsq is None else dsq + d2 * d2
        var2 = jnp.sum(dsq, axis=0, keepdims=True) * inv_n
        scale2 = g2 * lax.rsqrt(var2 + EPS)
        shift2 = b2 - mean2 * scale2

        # back to channel-major via one exact aligned 128x128 register transpose
        pieces = [acc[r] * scale2 + shift2 for r in range(H)]
        pieces.append(jnp.zeros((LANES - HW, LANES), jnp.float32))
        out_pix = jnp.concatenate(pieces, axis=0)        # (128 pixels, 128 channels)
        out_cm = jnp.transpose(out_pix)                  # (128 channels, 128 pixels)
        o_ref[lo:hi, :] = out_cm[:, :HW]


@jax.jit
def module_forward(x_nchw, gamma1, beta1, conv_w, gamma2, beta2):
    """x_nchw: (1, C, H, W); conv_w: (C, 1, K, K); gammas/betas: (C,).
    Only free reshapes around the pallas_call - no external transposes."""
    x2d = x_nchw.reshape(C, HW).astype(jnp.float32)          # (C, 49)  free reshape
    w2d = conv_w.reshape(C, KK).astype(jnp.float32)          # (C, 25)  free reshape
    g1 = gamma1.astype(jnp.float32).reshape(1, C)
    b1 = beta1.astype(jnp.float32).reshape(1, C)
    g2 = gamma2.astype(jnp.float32).reshape(1, C)
    b2 = beta2.astype(jnp.float32).reshape(1, C)
    s_mat = jnp.asarray(_s_np, dtype=jnp.bfloat16)
    wsel = jnp.asarray(_wsel_np, dtype=jnp.bfloat16)
    vmask = jnp.asarray(_vmask_np, dtype=jnp.float32)

    out2d = pl.pallas_call(
        fused_bn_relu_dwconv_bn_kernel,
        out_shape=jax.ShapeDtypeStruct((C, HW), jnp.float32),
        grid=(C // CB,),
        in_specs=[
            pl.BlockSpec((CB, HW), lambda i: (i, 0)),        # x  (channel-major)
            pl.BlockSpec((CB, KK), lambda i: (i, 0)),        # depthwise weights
            pl.BlockSpec((1, CB), lambda i: (0, i)),         # gamma1
            pl.BlockSpec((1, CB), lambda i: (0, i)),         # beta1
            pl.BlockSpec((1, CB), lambda i: (0, i)),         # gamma2
            pl.BlockSpec((1, CB), lambda i: (0, i)),         # beta2
            pl.BlockSpec((128, 128), lambda i: (0, 0)),      # S  pixel->padded scatter
            pl.BlockSpec((32, 128), lambda i: (0, 0)),       # tap selector
            pl.BlockSpec((128, 1), lambda i: (0, 0)),        # interior mask
        ],
        out_specs=pl.BlockSpec((CB, HW), lambda i: (i, 0)),
        compiler_params=pltpu.CompilerParams(
            dimension_semantics=("parallel",)),
    )(x2d, w2d, g1, b1, g2, b2, s_mat, wsel, vmask)

    return out2d.reshape(1, C, H, W)                         # free reshape


def reference_forward(x, gamma1, beta1, conv_w, gamma2, beta2):
    """Pure-JAX reference (same training-mode BN semantics)."""
    def bn(v, g, b):
        m = jnp.mean(v, axis=(0, 2, 3), keepdims=True)
        va = jnp.mean((v - m) ** 2, axis=(0, 2, 3), keepdims=True)
        return (v - m) * lax.rsqrt(va + EPS) * g.reshape(1, -1, 1, 1) \
               + b.reshape(1, -1, 1, 1)

    v = bn(x, gamma1, beta1)
    v = jnp.maximum(v, 0.0)
    v = lax.conv_general_dilated(
        v, conv_w, window_strides=(1, 1), padding=((PAD, PAD), (PAD, PAD)),
        dimension_numbers=("NCHW", "OIHW", "NCHW"), feature_group_count=C,
        precision=lax.Precision.HIGHEST)
    return bn(v, gamma2, beta2)


if __name__ == "__main__":
    key = jax.random.PRNGKey(0)
    kx, kw, kg1, kb1, kg2, kb2 = jax.random.split(key, 6)

    # deterministic synthetic input / parameters at the module's shapes
    x = jax.random.normal(kx, (1, C, H, W), dtype=jnp.float32)
    conv_w = jax.random.normal(kw, (C, 1, K, K), dtype=jnp.float32) * 0.1
    gamma1 = 1.0 + 0.1 * jax.random.normal(kg1, (C,), dtype=jnp.float32)
    beta1 = 0.1 * jax.random.normal(kb1, (C,), dtype=jnp.float32)
    gamma2 = 1.0 + 0.1 * jax.random.normal(kg2, (C,), dtype=jnp.float32)
    beta2 = 0.1 * jax.random.normal(kb2, (C,), dtype=jnp.float32)

    out = module_forward(x, gamma1, beta1, conv_w, gamma2, beta2)
    out = jax.block_until_ready(out)
    assert out.shape == (1, C, H, W), out.shape

    ref = jax.block_until_ready(
        reference_forward(x, gamma1, beta1, conv_w, gamma2, beta2))
    assert jnp.allclose(out, ref, atol=1e-2, rtol=1e-2), \
        float(jnp.max(jnp.abs(out - ref)))

    print("KERNEL_OK")
</pallas_src>

<mosaic_0001>
module attributes {stable_mosaic.version = 11 : i64} {
  func.func @fused_bn_relu_dwconv_bn_kernel(%arg0: i32, %arg1: memref<384x49xf32, #tpu.memory_space<vmem>>, %arg2: memref<384x25xf32, #tpu.memory_space<vmem>>, %arg3: memref<1x384xf32, #tpu.memory_space<vmem>>, %arg4: memref<1x384xf32, #tpu.memory_space<vmem>>, %arg5: memref<1x384xf32, #tpu.memory_space<vmem>>, %arg6: memref<1x384xf32, #tpu.memory_space<vmem>>, %arg7: memref<128x128xbf16, #tpu.memory_space<vmem>>, %arg8: memref<32x128xbf16, #tpu.memory_space<vmem>>, %arg9: memref<128x1xf32, #tpu.memory_space<vmem>>, %arg10: memref<384x49xf32, #tpu.memory_space<vmem>>) attributes {dimension_semantics = [#tpu.dimension_semantics<parallel>], iteration_bounds = array<i64: 3>, scalar_prefetch = 0 : i64, scratch_operands = 0 : i64, tpu.core_type = #tpu.core_type<tc>, window_params = [{transform_indices = @transform_0, window_bounds = array<i64: 384, 49>}, {transform_indices = @transform_1, window_bounds = array<i64: 384, 25>}, {transform_indices = @transform_2, window_bounds = array<i64: 1, 384>}, {transform_indices = @transform_3, window_bounds = array<i64: 1, 384>}, {transform_indices = @transform_4, window_bounds = array<i64: 1, 384>}, {transform_indices = @transform_5, window_bounds = array<i64: 1, 384>}, {pipeline_mode = #tpu.pipeline_mode<synchronous>, transform_indices = @transform_6, window_bounds = array<i64: 128, 128>}, {pipeline_mode = #tpu.pipeline_mode<synchronous>, transform_indices = @transform_7, window_bounds = array<i64: 32, 128>}, {pipeline_mode = #tpu.pipeline_mode<synchronous>, transform_indices = @transform_8, window_bounds = array<i64: 128, 1>}, {transform_indices = @transform_9, window_bounds = array<i64: 384, 49>}]} {
    %c0 = arith.constant 0 : index
    %c0_0 = arith.constant 0 : index
    %0 = vector.load %arg7[%c0, %c0_0] : memref<128x128xbf16, #tpu.memory_space<vmem>>, vector<128x128xbf16>
    %c0_1 = arith.constant 0 : index
    %c0_2 = arith.constant 0 : index
    %1 = vector.load %arg8[%c0_1, %c0_2] : memref<32x128xbf16, #tpu.memory_space<vmem>>, vector<32x128xbf16>
    %c0_3 = arith.constant 0 : index
    %c0_4 = arith.constant 0 : index
    %2 = vector.load %arg9[%c0_3, %c0_4] : memref<128x1xf32, #tpu.memory_space<vmem>>, vector<128x1xf32>
    %c0_5 = arith.constant 0 : index
    %c0_6 = arith.constant 0 : index
    %3 = vector.load %arg1[%c0_5, %c0_6] : memref<384x49xf32, #tpu.memory_space<vmem>>, vector<128x49xf32>
    %c0_7 = arith.constant 0 : index
    %c0_8 = arith.constant 0 : index
    %4 = vector.load %arg2[%c0_7, %c0_8] : memref<384x25xf32, #tpu.memory_space<vmem>>, vector<128x25xf32>
    %c0_9 = arith.constant 0 : index
    %c0_10 = arith.constant 0 : index
    %5 = vector.load %arg3[%c0_9, %c0_10] : memref<1x384xf32, #tpu.memory_space<vmem>>, vector<1x128xf32>
    %c0_11 = arith.constant 0 : index
    %c0_12 = arith.constant 0 : index
    %6 = vector.load %arg4[%c0_11, %c0_12] : memref<1x384xf32, #tpu.memory_space<vmem>>, vector<1x128xf32>
    %c0_13 = arith.constant 0 : index
    %c0_14 = arith.constant 0 : index
    %7 = vector.load %arg5[%c0_13, %c0_14] : memref<1x384xf32, #tpu.memory_space<vmem>>, vector<1x128xf32>
    %c0_15 = arith.constant 0 : index
    %c0_16 = arith.constant 0 : index
    %8 = vector.load %arg6[%c0_15, %c0_16] : memref<1x384xf32, #tpu.memory_space<vmem>>, vector<1x128xf32>
    %cst = arith.constant 0.000000e+00 : f32
    %9 = vector.broadcast %cst : f32 to vector<128x54xf32>
    %10 = tpu.concatenate %3, %4, %9 in 1 : vector<128x49xf32>, vector<128x25xf32>, vector<128x54xf32> -> vector<128x128xf32>
    %11 = arith.truncf %10 : vector<128x128xf32> to vector<128x128xbf16>
    %12 = arith.extf %11 : vector<128x128xbf16> to vector<128x128xf32>
    %13 = arith.subf %10, %12 : vector<128x128xf32>
    %14 = arith.truncf %13 : vector<128x128xf32> to vector<128x128xbf16>
    %cst_17 = arith.constant dense<0.000000e+00> : vector<128x128xf32>
    %15 = tpu.matmul %0, %11, %cst_17 {dimension_numbers = #tpu.dot_dimension_numbers<[1], [1], [0], [0], [0, 0, 1, 0], [], []>} : vector<128x128xbf16>, vector<128x128xbf16>, vector<128x128xf32> -> vector<128x128xf32>
    %cst_18 = arith.constant dense<0.000000e+00> : vector<128x128xf32>
    %16 = tpu.matmul %0, %14, %cst_18 {dimension_numbers = #tpu.dot_dimension_numbers<[1], [1], [0], [0], [0, 0, 1, 0], [], []>} : vector<128x128xbf16>, vector<128x128xbf16>, vector<128x128xf32> -> vector<128x128xf32>
    %17 = arith.addf %15, %16 : vector<128x128xf32>
    %cst_19 = arith.constant dense<0.000000e+00> : vector<32x128xf32>
    %18 = tpu.matmul %1, %11, %cst_19 {dimension_numbers = #tpu.dot_dimension_numbers<[1], [1], [0], [0], [0, 0, 1, 0], [], []>} : vector<32x128xbf16>, vector<128x128xbf16>, vector<32x128xf32> -> vector<32x128xf32>
    %cst_20 = arith.constant dense<0.000000e+00> : vector<32x128xf32>
    %19 = tpu.matmul %1, %14, %cst_20 {dimension_numbers = #tpu.dot_dimension_numbers<[1], [1], [0], [0], [0, 0, 1, 0], [], []>} : vector<32x128xbf16>, vector<128x128xbf16>, vector<32x128xf32> -> vector<32x128xf32>
    %20 = arith.addf %18, %19 : vector<32x128xf32>
    %cst_21 = arith.constant dense<0.000000e+00> : vector<128xf32>
    %21 = vector.multi_reduction <add>, %17, %cst_21 [0] : vector<128x128xf32> to vector<128xf32>
    %22 = vector.shape_cast %21 : vector<128xf32> to vector<1x128xf32>
    %cst_22 = arith.constant 0.0204081628 : f32
    %23 = vector.broadcast %cst_22 : f32 to vector<1x128xf32>
    %24 = arith.mulf %22, %23 : vector<1x128xf32>
    %25 = vector.broadcast %24 : vector<1x128xf32> to vector<128x128xf32>
    %26 = arith.subf %17, %25 : vector<128x128xf32>
    %27 = vector.broadcast %2 : vector<128x1xf32> to vector<128x128xf32>
    %28 = arith.mulf %26, %27 : vector<128x128xf32>
    %29 = arith.mulf %28, %28 : vector<128x128xf32>
    %cst_23 = arith.constant dense<0.000000e+00> : vector<128xf32>
    %30 = vector.multi_reduction <add>, %29, %cst_23 [0] : vector<128x128xf32> to vector<128xf32>
    %31 = vector.shape_cast %30 : vector<128xf32> to vector<1x128xf32>
    %cst_24 = arith.constant 0.0204081628 : f32
    %32 = vector.broadcast %cst_24 : f32 to vector<1x128xf32>
    %33 = arith.mulf %31, %32 : vector<1x128xf32>
    %cst_25 = arith.constant 9.99999974E-6 : f32
    %34 = vector.broadcast %cst_25 : f32 to vector<1x128xf32>
    %35 = arith.addf %33, %34 : vector<1x128xf32>
    %36 = math.rsqrt %35 : vector<1x128xf32>
    %37 = arith.mulf %5, %36 : vector<1x128xf32>
    %38 = arith.mulf %24, %37 : vector<1x128xf32>
    %39 = arith.subf %6, %38 : vector<1x128xf32>
    %40 = vector.broadcast %37 : vector<1x128xf32> to vector<128x128xf32>
    %41 = arith.mulf %17, %40 : vector<128x128xf32>
    %42 = vector.broadcast %39 : vector<1x128xf32> to vector<128x128xf32>
    %43 = arith.addf %41, %42 : vector<128x128xf32>
    %cst_26 = arith.constant 0.000000e+00 : f32
    %44 = vector.broadcast %cst_26 : f32 to vector<128x128xf32>
    %45 = arith.maximumf %43, %44 : vector<128x128xf32>
    %46 = vector.broadcast %2 : vector<128x1xf32> to vector<128x128xf32>
    %47 = arith.mulf %45, %46 : vector<128x128xf32>
    %48 = vector.extract_strided_slice %47 {offsets = [0, 0], sizes = [7, 128], strides = [1, 1]} : vector<128x128xf32> to vector<7x128xf32>
    %49 = vector.extract_strided_slice %20 {offsets = [0, 0], sizes = [1, 128], strides = [1, 1]} : vector<32x128xf32> to vector<1x128xf32>
    %50 = vector.broadcast %49 : vector<1x128xf32> to vector<7x128xf32>
    %51 = arith.mulf %48, %50 : vector<7x128xf32>
    %52 = vector.extract_strided_slice %47 {offsets = [1, 0], sizes = [7, 128], strides = [1, 1]} : vector<128x128xf32> to vector<7x128xf32>
    %53 = vector.extract_strided_slice %20 {offsets = [1, 0], sizes = [1, 128], strides = [1, 1]} : vector<32x128xf32> to vector<1x128xf32>
    %54 = vector.broadcast %53 : vector<1x128xf32> to vector<7x128xf32>
    %55 = arith.mulf %52, %54 : vector<7x128xf32>
    %56 = arith.addf %51, %55 : vector<7x128xf32>
    %57 = vector.extract_strided_slice %47 {offsets = [2, 0], sizes = [7, 128], strides = [1, 1]} : vector<128x128xf32> to vector<7x128xf32>
    %58 = vector.extract_strided_slice %20 {offsets = [2, 0], sizes = [1, 128], strides = [1, 1]} : vector<32x128xf32> to vector<1x128xf32>
    %59 = vector.broadcast %58 : vector<1x128xf32> to vector<7x128xf32>
    %60 = arith.mulf %57, %59 : vector<7x128xf32>
    %61 = arith.addf %56, %60 : vector<7x128xf32>
    %62 = vector.extract_strided_slice %47 {offsets = [3, 0], sizes = [7, 128], strides = [1, 1]} : vector<128x128xf32> to vector<7x128xf32>
    %63 = vector.extract_strided_slice %20 {offsets = [3, 0], sizes = [1, 128], strides = [1, 1]} : vector<32x128xf32> to vector<1x128xf32>
    %64 = vector.broadcast %63 : vector<1x128xf32> to vector<7x128xf32>
    %65 = arith.mulf %62, %64 : vector<7x128xf32>
    %66 = arith.addf %61, %65 : vector<7x128xf32>
    %67 = vector.extract_strided_slice %47 {offsets = [4, 0], sizes = [7, 128], strides = [1, 1]} : vector<128x128xf32> to vector<7x128xf32>
    %68 = vector.extract_strided_slice %20 {offsets = [4, 0], sizes = [1, 128], strides = [1, 1]} : vector<32x128xf32> to vector<1x128xf32>
    %69 = vector.broadcast %68 : vector<1x128xf32> to vector<7x128xf32>
    %70 = arith.mulf %67, %69 : vector<7x128xf32>
    %71 = arith.addf %66, %70 : vector<7x128xf32>
    %72 = vector.extract_strided_slice %47 {offsets = [11, 0], sizes = [7, 128], strides = [1, 1]} : vector<128x128xf32> to vector<7x128xf32>
    %73 = vector.extract_strided_slice %20 {offsets = [0, 0], sizes = [1, 128], strides = [1, 1]} : vector<32x128xf32> to vector<1x128xf32>
    %74 = vector.broadcast %73 : vector<1x128xf32> to vector<7x128xf32>
    %75 = arith.mulf %72, %74 : vector<7x128xf32>
    %76 = vector.extract_strided_slice %20 {offsets = [5, 0], sizes = [1, 128], strides = [1, 1]} : vector<32x128xf32> to vector<1x128xf32>
    %77 = vector.broadcast %76 : vector<1x128xf32> to vector<7x128xf32>
    %78 = arith.mulf %72, %77 : vector<7x128xf32>
    %79 = arith.addf %71, %78 : vector<7x128xf32>
    %80 = vector.extract_strided_slice %47 {offsets = [12, 0], sizes = [7, 128], strides = [1, 1]} : vector<128x128xf32> to vector<7x128xf32>
    %81 = vector.extract_strided_slice %20 {offsets = [1, 0], sizes = [1, 128], strides = [1, 1]} : vector<32x128xf32> to vector<1x128xf32>
    %82 = vector.broadcast %81 : vector<1x128xf32> to vector<7x128xf32>
    %83 = arith.mulf %80, %82 : vector<7x128xf32>
    %84 = arith.addf %75, %83 : vector<7x128xf32>
    %85 = vector.extract_strided_slice %20 {offsets = [6, 0], sizes = [1, 128], strides = [1, 1]} : vector<32x128xf32> to vector<1x128xf32>
    %86 = vector.broadcast %85 : vector<1x128xf32> to vector<7x128xf32>
    %87 = arith.mulf %80, %86 : vector<7x128xf32>
    %88 = arith.addf %79, %87 : vector<7x128xf32>
    %89 = vector.extract_strided_slice %47 {offsets = [13, 0], sizes = [7, 128], strides = [1, 1]} : vector<128x128xf32> to vector<7x128xf32>
    %90 = vector.extract_strided_slice %20 {offsets = [2, 0], sizes = [1, 128], strides = [1, 1]} : vector<32x128xf32> to vector<1x128xf32>
    %91 = vector.broadcast %90 : vector<1x128xf32> to vector<7x128xf32>
    %92 = arith.mulf %89, %91 : vector<7x128xf32>
    %93 = arith.addf %84, %92 : vector<7x128xf32>
    %94 = vector.extract_strided_slice %20 {offsets = [7, 0], sizes = [1, 128], strides = [1, 1]} : vector<32x128xf32> to vector<1x128xf32>
    %95 = vector.broadcast %94 : vector<1x128xf32> to vector<7x128xf32>
    %96 = arith.mulf %89, %95 : vector<7x128xf32>
    %97 = arith.addf %88, %96 : vector<7x128xf32>
    %98 = vector.extract_strided_slice %47 {offsets = [14, 0], sizes = [7, 128], strides = [1, 1]} : vector<128x128xf32> to vector<7x128xf32>
    %99 = vector.extract_strided_slice %20 {offsets = [3, 0], sizes = [1, 128], strides = [1, 1]} : vector<32x128xf32> to vector<1x128xf32>
    %100 = vector.broadcast %99 : vector<1x128xf32> to vector<7x128xf32>
    %101 = arith.mulf %98, %100 : vector<7x128xf32>
    %102 = arith.addf %93, %101 : vector<7x128xf32>
    %103 = vector.extract_strided_slice %20 {offsets = [8, 0], sizes = [1, 128], strides = [1, 1]} : vector<32x128xf32> to vector<1x128xf32>
    %104 = vector.broadcast %103 : vector<1x128xf32> to vector<7x128xf32>
    %105 = arith.mulf %98, %104 : vector<7x128xf32>
    %106 = arith.addf %97, %105 : vector<7x128xf32>
    %107 = vector.extract_strided_slice %47 {offsets = [15, 0], sizes = [7, 128], strides = [1, 1]} : vector<128x128xf32> to vector<7x128xf32>
    %108 = vector.extract_strided_slice %20 {offsets = [4, 0], sizes = [1, 128], strides = [1, 1]} : vector<32x128xf32> to vector<1x128xf32>
    %109 = vector.broadcast %108 : vector<1x128xf32> to vector<7x128xf32>
    %110 = arith.mulf %107, %109 : vector<7x128xf32>
    %111 = arith.addf %102, %110 : vector<7x128xf32>
    %112 = vector.extract_strided_slice %20 {offsets = [9, 0], sizes = [1, 128], strides = [1, 1]} : vector<32x128xf32> to vector<1x128xf32>
    %113 = vector.broadcast %112 : vector<1x128xf32> to vector<7x128xf32>
    %114 = arith.mulf %107, %113 : vector<7x128xf32>
    %115 = arith.addf %106, %114 : vector<7x128xf32>
    %116 = vector.extract_strided_slice %47 {offsets = [22, 0], sizes = [7, 128], strides = [1, 1]} : vector<128x128xf32> to vector<7x128xf32>
    %117 = vector.extract_strided_slice %20 {offsets = [0, 0], sizes = [1, 128], strides = [1, 1]} : vector<32x128xf32> to vector<1x128xf32>
    %118 = vector.broadcast %117 : vector<1x128xf32> to vector<7x128xf32>
    %119 = arith.mulf %116, %118 : vector<7x128xf32>
    %120 = vector.extract_strided_slice %20 {offsets = [5, 0], sizes = [1, 128], strides = [1, 1]} : vector<32x128xf32> to vector<1x128xf32>
    %121 = vector.broadcast %120 : vector<1x128xf32> to vector<7x128xf32>
    %122 = arith.mulf %116, %121 : vector<7x128xf32>
    %123 = arith.addf %111, %122 : vector<7x128xf32>
    %124 = vector.extract_strided_slice %20 {offsets = [10, 0], sizes = [1, 128], strides = [1, 1]} : vector<32x128xf32> to vector<1x128xf32>
    %125 = vector.broadcast %124 : vector<1x128xf32> to vector<7x128xf32>
    %126 = arith.mulf %116, %125 : vector<7x128xf32>
    %127 = arith.addf %115, %126 : vector<7x128xf32>
    %128 = vector.extract_strided_slice %47 {offsets = [23, 0], sizes = [7, 128], strides = [1, 1]} : vector<128x128xf32> to vector<7x128xf32>
    %129 = vector.extract_strided_slice %20 {offsets = [1, 0], sizes = [1, 128], strides = [1, 1]} : vector<32x128xf32> to vector<1x128xf32>
    %130 = vector.broadcast %129 : vector<1x128xf32> to vector<7x128xf32>
    %131 = arith.mulf %128, %130 : vector<7x128xf32>
    %132 = arith.addf %119, %131 : vector<7x128xf32>
    %133 = vector.extract_strided_slice %20 {offsets = [6, 0], sizes = [1, 128], strides = [1, 1]} : vector<32x128xf32> to vector<1x128xf32>
    %134 = vector.broadcast %133 : vector<1x128xf32> to vector<7x128xf32>
    %135 = arith.mulf %128, %134 : vector<7x128xf32>
    %136 = arith.addf %123, %135 : vector<7x128xf32>
    %137 = vector.extract_strided_slice %20 {offsets = [11, 0], sizes = [1, 128], strides = [1, 1]} : vector<32x128xf32> to vector<1x128xf32>
    %138 = vector.broadcast %137 : vector<1x128xf32> to vector<7x128xf32>
    %139 = arith.mulf %128, %138 : vector<7x128xf32>
    %140 = arith.addf %127, %139 : vector<7x128xf32>
    %141 = vector.extract_strided_slice %47 {offsets = [24, 0], sizes = [7, 128], strides = [1, 1]} : vector<128x128xf32> to vector<7x128xf32>
    %142 = vector.extract_strided_slice %20 {offsets = [2, 0], sizes = [1, 128], strides = [1, 1]} : vector<32x128xf32> to vector<1x128xf32>
    %143 = vector.broadcast %142 : vector<1x128xf32> to vector<7x128xf32>
    %144 = arith.mulf %141, %143 : vector<7x128xf32>
    %145 = arith.addf %132, %144 : vector<7x128xf32>
    %146 = vector.extract_strided_slice %20 {offsets = [7, 0], sizes = [1, 128], strides = [1, 1]} : vector<32x128xf32> to vector<1x128xf32>
    %147 = vector.broadcast %146 : vector<1x128xf32> to vector<7x128xf32>
    %148 = arith.mulf %141, %147 : vector<7x128xf32>
    %149 = arith.addf %136, %148 : vector<7x128xf32>
    %150 = vector.extract_strided_slice %20 {offsets = [12, 0], sizes = [1, 128], strides = [1, 1]} : vector<32x128xf32> to vector<1x128xf32>
    %151 = vector.broadcast %150 : vector<1x128xf32> to vector<7x128xf32>
    %152 = arith.mulf %141, %151 : vector<7x128xf32>
    %153 = arith.addf %140, %152 : vector<7x128xf32>
    %154 = vector.extract_strided_slice %47 {offsets = [25, 0], sizes = [7, 128], strides = [1, 1]} : vector<128x128xf32> to vector<7x128xf32>
    %155 = vector.extract_strided_slice %20 {offsets = [3, 0], sizes = [1, 128], strides = [1, 1]} : vector<32x128xf32> to vector<1x128xf32>
    %156 = vector.broadcast %155 : vector<1x128xf32> to vector<7x128xf32>
    %157 = arith.mulf %154, %156 : vector<7x128xf32>
    %158 = arith.addf %145, %157 : vector<7x128xf32>
    %159 = vector.extract_strided_slice %20 {offsets = [8, 0], sizes = [1, 128], strides = [1, 1]} : vector<32x128xf32> to vector<1x128xf32>
    %160 = vector.broadcast %159 : vector<1x128xf32> to vector<7x128xf32>
    %161 = arith.mulf %154, %160 : vector<7x128xf32>
    %162 = arith.addf %149, %161 : vector<7x128xf32>
    %163 = vector.extract_strided_slice %20 {offsets = [13, 0], sizes = [1, 128], strides = [1, 1]} : vector<32x128xf32> to vector<1x128xf32>
    %164 = vector.broadcast %163 : vector<1x128xf32> to vector<7x128xf32>
    %165 = arith.mulf %154, %164 : vector<7x128xf32>
    %166 = arith.addf %153, %165 : vector<7x128xf32>
    %167 = vector.extract_strided_slice %47 {offsets = [26, 0], sizes = [7, 128], strides = [1, 1]} : vector<128x128xf32> to vector<7x128xf32>
    %168 = vector.extract_strided_slice %20 {offsets = [4, 0], sizes = [1, 128], strides = [1, 1]} : vector<32x128xf32> to vector<1x128xf32>
    %169 = vector.broadcast %168 : vector<1x128xf32> to vector<7x128xf32>
    %170 = arith.mulf %167, %169 : vector<7x128xf32>
    %171 = arith.addf %158, %170 : vector<7x128xf32>
    %172 = vector.extract_strided_slice %20 {offsets = [9, 0], sizes = [1, 128], strides = [1, 1]} : vector<32x128xf32> to vector<1x128xf32>
    %173 = vector.broadcast %172 : vector<1x128xf32> to vector<7x128xf32>
    %174 = arith.mulf %167, %173 : vector<7x128xf32>
    %175 = arith.addf %162, %174 : vector<7x128xf32>
    %176 = vector.extract_strided_slice %20 {offsets = [14, 0], sizes = [1, 128], strides = [1, 1]} : vector<32x128xf32> to vector<1x128xf32>
    %177 = vector.broadcast %176 : vector<1x128xf32> to vector<7x128xf32>
    %178 = arith.mulf %167, %177 : vector<7x128xf32>
    %179 = arith.addf %166, %178 : vector<7x128xf32>
    %180 = vector.extract_strided_slice %47 {offsets = [33, 0], sizes = [7, 128], strides = [1, 1]} : vector<128x128xf32> to vector<7x128xf32>
    %181 = vector.extract_strided_slice %20 {offsets = [0, 0], sizes = [1, 128], strides = [1, 1]} : vector<32x128xf32> to vector<1x128xf32>
    %182 = vector.broadcast %181 : vector<1x128xf32> to vector<7x128xf32>
    %183 = arith.mulf %180, %182 : vector<7x128xf32>
    %184 = vector.extract_strided_slice %20 {offsets = [5, 0], sizes = [1, 128], strides = [1, 1]} : vector<32x128xf32> to vector<1x128xf32>
    %185 = vector.broadcast %184 : vector<1x128xf32> to vector<7x128xf32>
    %186 = arith.mulf %180, %185 : vector<7x128xf32>
    %187 = arith.addf %171, %186 : vector<7x128xf32>
    %188 = vector.extract_strided_slice %20 {offsets = [10, 0], sizes = [1, 128], strides = [1, 1]} : vector<32x128xf32> to vector<1x128xf32>
    %189 = vector.broadcast %188 : vector<1x128xf32> to vector<7x128xf32>
    %190 = arith.mulf %180, %189 : vector<7x128xf32>
    %191 = arith.addf %175, %190 : vector<7x128xf32>
    %192 = vector.extract_strided_slice %20 {offsets = [15, 0], sizes = [1, 128], strides = [1, 1]} : vector<32x128xf32> to vector<1x128xf32>
    %193 = vector.broadcast %192 : vector<1x128xf32> to vector<7x128xf32>
    %194 = arith.mulf %180, %193 : vector<7x128xf32>
    %195 = arith.addf %179, %194 : vector<7x128xf32>
    %196 = vector.extract_strided_slice %47 {offsets = [34, 0], sizes = [7, 128], strides = [1, 1]} : vector<128x128xf32> to vector<7x128xf32>
    %197 = vector.extract_strided_slice %20 {offsets = [1, 0], sizes = [1, 128], strides = [1, 1]} : vector<32x128xf32> to vector<1x128xf32>
    %198 = vector.broadcast %197 : vector<1x128xf32> to vector<7x128xf32>
    %199 = arith.mulf %196, %198 : vector<7x128xf32>
    %200 = arith.addf %183, %199 : vector<7x128xf32>
    %201 = vector.extract_strided_slice %20 {offsets = [6, 0], sizes = [1, 128], strides = [1, 1]} : vector<32x128xf32> to vector<1x128xf32>
    %202 = vector.broadcast %201 : vector<1x128xf32> to vector<7x128xf32>
    %203 = arith.mulf %196, %202 : vector<7x128xf32>
    %204 = arith.addf %187, %203 : vector<7x128xf32>
    %205 = vector.extract_strided_slice %20 {offsets = [11, 0], sizes = [1, 128], strides = [1, 1]} : vector<32x128xf32> to vector<1x128xf32>
    %206 = vector.broadcast %205 : vector<1x128xf32> to vector<7x128xf32>
    %207 = arith.mulf %196, %206 : vector<7x128xf32>
    %208 = arith.addf %191, %207 : vector<7x128xf32>
    %209 = vector.extract_strided_slice %20 {offsets = [16, 0], sizes = [1, 128], strides = [1, 1]} : vector<32x128xf32> to vector<1x128xf32>
    %210 = vector.broadcast %209 : vector<1x128xf32> to vector<7x128xf32>
    %211 = arith.mulf %196, %210 : vector<7x128xf32>
    %212 = arith.addf %195, %211 : vector<7x128xf32>
    %213 = vector.extract_strided_slice %47 {offsets = [35, 0], sizes = [7, 128], strides = [1, 1]} : vector<128x128xf32> to vector<7x128xf32>
    %214 = vector.extract_strided_slice %20 {offsets = [2, 0], sizes = [1, 128], strides = [1, 1]} : vector<32x128xf32> to vector<1x128xf32>
    %215 = vector.broadcast %214 : vector<1x128xf32> to vector<7x128xf32>
    %216 = arith.mulf %213, %215 : vector<7x128xf32>
    %217 = arith.addf %200, %216 : vector<7x128xf32>
    %218 = vector.extract_strided_slice %20 {offsets = [7, 0], sizes = [1, 128], strides = [1, 1]} : vector<32x128xf32> to vector<1x128xf32>
    %219 = vector.broadcast %218 : vector<1x128xf32> to vector<7x128xf32>
    %220 = arith.mulf %213, %219 : vector<7x128xf32>
    %221 = arith.addf %204, %220 : vector<7x128xf32>
    %222 = vector.extract_strided_slice %20 {offsets = [12, 0], sizes = [1, 128], strides = [1, 1]} : vector<32x128xf32> to vector<1x128xf32>
    %223 = vector.broadcast %222 : vector<1x128xf32> to vector<7x128xf32>
    %224 = arith.mulf %213, %223 : vector<7x128xf32>
    %225 = arith.addf %208, %224 : vector<7x128xf32>
    %226 = vector.extract_strided_slice %20 {offsets = [17, 0], sizes = [1, 128], strides = [1, 1]} : vector<32x128xf32> to vector<1x128xf32>
    %227 = vector.broadcast %226 : vector<1x128xf32> to vector<7x128xf32>
    %228 = arith.mulf %213, %227 : vector<7x128xf32>
    %229 = arith.addf %212, %228 : vector<7x128xf32>
    %230 = vector.extract_strided_slice %47 {offsets = [36, 0], sizes = [7, 128], strides = [1, 1]} : vector<128x128xf32> to vector<7x128xf32>
    %231 = vector.extract_strided_slice %20 {offsets = [3, 0], sizes = [1, 128], strides = [1, 1]} : vector<32x128xf32> to vector<1x128xf32>
    %232 = vector.broadcast %231 : vector<1x128xf32> to vector<7x128xf32>
    %233 = arith.mulf %230, %232 : vector<7x128xf32>
    %234 = arith.addf %217, %233 : vector<7x128xf32>
    %235 = vector.extract_strided_slice %20 {offsets = [8, 0], sizes = [1, 128], strides = [1, 1]} : vector<32x128xf32> to vector<1x128xf32>
    %236 = vector.broadcast %235 : vector<1x128xf32> to vector<7x128xf32>
    %237 = arith.mulf %230, %236 : vector<7x128xf32>
    %238 = arith.addf %221, %237 : vector<7x128xf32>
    %239 = vector.extract_strided_slice %20 {offsets = [13, 0], sizes = [1, 128], strides = [1, 1]} : vector<32x128xf32> to vector<1x128xf32>
    %240 = vector.broadcast %239 : vector<1x128xf32> to vector<7x128xf32>
    %241 = arith.mulf %230, %240 : vector<7x128xf32>
    %242 = arith.addf %225, %241 : vector<7x128xf32>
    %243 = vector.extract_strided_slice %20 {offsets = [18, 0], sizes = [1, 128], strides = [1, 1]} : vector<32x128xf32> to vector<1x128xf32>
    %244 = vector.broadcast %243 : vector<1x128xf32> to vector<7x128xf32>
    %245 = arith.mulf %230, %244 : vector<7x128xf32>
    %246 = arith.addf %229, %245 : vector<7x128xf32>
    %247 = vector.extract_strided_slice %47 {offsets = [37, 0], sizes = [7, 128], strides = [1, 1]} : vector<128x128xf32> to vector<7x128xf32>
    %248 = vector.extract_strided_slice %20 {offsets = [4, 0], sizes = [1, 128], strides = [1, 1]} : vector<32x128xf32> to vector<1x128xf32>
    %249 = vector.broadcast %248 : vector<1x128xf32> to vector<7x128xf32>
    %250 = arith.mulf %247, %249 : vector<7x128xf32>
    %251 = arith.addf %234, %250 : vector<7x128xf32>
    %252 = vector.extract_strided_slice %20 {offsets = [9, 0], sizes = [1, 128], strides = [1, 1]} : vector<32x128xf32> to vector<1x128xf32>
    %253 = vector.broadcast %252 : vector<1x128xf32> to vector<7x128xf32>
    %254 = arith.mulf %247, %253 : vector<7x128xf32>
    %255 = arith.addf %238, %254 : vector<7x128xf32>
    %256 = vector.extract_strided_slice %20 {offsets = [14, 0], sizes = [1, 128], strides = [1, 1]} : vector<32x128xf32> to vector<1x128xf32>
    %257 = vector.broadcast %256 : vector<1x128xf32> to vector<7x128xf32>
    %258 = arith.mulf %247, %257 : vector<7x128xf32>
    %259 = arith.addf %242, %258 : vector<7x128xf32>
    %260 = vector.extract_strided_slice %20 {offsets = [19, 0], sizes = [1, 128], strides = [1, 1]} : vector<32x128xf32> to vector<1x128xf32>
    %261 = vector.broadcast %260 : vector<1x128xf32> to vector<7x128xf32>
    %262 = arith.mulf %247, %261 : vector<7x128xf32>
    %263 = arith.addf %246, %262 : vector<7x128xf32>
    %264 = vector.extract_strided_slice %47 {offsets = [44, 0], sizes = [7, 128], strides = [1, 1]} : vector<128x128xf32> to vector<7x128xf32>
    %265 = vector.extract_strided_slice %20 {offsets = [0, 0], sizes = [1, 128], strides = [1, 1]} : vector<32x128xf32> to vector<1x128xf32>
    %266 = vector.broadcast %265 : vector<1x128xf32> to vector<7x128xf32>
    %267 = arith.mulf %264, %266 : vector<7x128xf32>
    %268 = vector.extract_strided_slice %20 {offsets = [5, 0], sizes = [1, 128], strides = [1, 1]} : vector<32x128xf32> to vector<1x128xf32>
    %269 = vector.broadcast %268 : vector<1x128xf32> to vector<7x128xf32>
    %270 = arith.mulf %264, %269 : vector<7x128xf32>
    %271 = arith.addf %251, %270 : vector<7x128xf32>
    %272 = vector.extract_strided_slice %20 {offsets = [10, 0], sizes = [1, 128], strides = [1, 1]} : vector<32x128xf32> to vector<1x128xf32>
    %273 = vector.broadcast %272 : vector<1x128xf32> to vector<7x128xf32>
    %274 = arith.mulf %264, %273 : vector<7x128xf32>
    %275 = arith.addf %255, %274 : vector<7x128xf32>
    %276 = vector.extract_strided_slice %20 {offsets = [15, 0], sizes = [1, 128], strides = [1, 1]} : vector<32x128xf32> to vector<1x128xf32>
    %277 = vector.broadcast %276 : vector<1x128xf32> to vector<7x128xf32>
    %278 = arith.mulf %264, %277 : vector<7x128xf32>
    %279 = arith.addf %259, %278 : vector<7x128xf32>
    %280 = vector.extract_strided_slice %20 {offsets = [20, 0], sizes = [1, 128], strides = [1, 1]} : vector<32x128xf32> to vector<1x128xf32>
    %281 = vector.broadcast %280 : vector<1x128xf32> to vector<7x128xf32>
    %282 = arith.mulf %264, %281 : vector<7x128xf32>
    %283 = arith.addf %263, %282 : vector<7x128xf32>
    %284 = vector.extract_strided_slice %47 {offsets = [45, 0], sizes = [7, 128], strides = [1, 1]} : vector<128x128xf32> to vector<7x128xf32>
    %285 = vector.extract_strided_slice %20 {offsets = [1, 0], sizes = [1, 128], strides = [1, 1]} : vector<32x128xf32> to vector<1x128xf32>
    %286 = vector.broadcast %285 : vector<1x128xf32> to vector<7x128xf32>
    %287 = arith.mulf %284, %286 : vector<7x128xf32>
    %288 = arith.addf %267, %287 : vector<7x128xf32>
    %289 = vector.extract_strided_slice %20 {offsets = [6, 0], sizes = [1, 128], strides = [1, 1]} : vector<32x128xf32> to vector<1x128xf32>
    %290 = vector.broadcast %289 : vector<1x128xf32> to vector<7x128xf32>
    %291 = arith.mulf %284, %290 : vector<7x128xf32>
    %292 = arith.addf %271, %291 : vector<7x128xf32>
    %293 = vector.extract_strided_slice %20 {offsets = [11, 0], sizes = [1, 128], strides = [1, 1]} : vector<32x128xf32> to vector<1x128xf32>
    %294 = vector.broadcast %293 : vector<1x128xf32> to vector<7x128xf32>
    %295 = arith.mulf %284, %294 : vector<7x128xf32>
    %296 = arith.addf %275, %295 : vector<7x128xf32>
    %297 = vector.extract_strided_slice %20 {offsets = [16, 0], sizes = [1, 128], strides = [1, 1]} : vector<32x128xf32> to vector<1x128xf32>
    %298 = vector.broadcast %297 : vector<1x128xf32> to vector<7x128xf32>
    %299 = arith.mulf %284, %298 : vector<7x128xf32>
    %300 = arith.addf %279, %299 : vector<7x128xf32>
    %301 = vector.extract_strided_slice %20 {offsets = [21, 0], sizes = [1, 128], strides = [1, 1]} : vector<32x128xf32> to vector<1x128xf32>
    %302 = vector.broadcast %301 : vector<1x128xf32> to vector<7x128xf32>
    %303 = arith.mulf %284, %302 : vector<7x128xf32>
    %304 = arith.addf %283, %303 : vector<7x128xf32>
    %305 = vector.extract_strided_slice %47 {offsets = [46, 0], sizes = [7, 128], strides = [1, 1]} : vector<128x128xf32> to vector<7x128xf32>
    %306 = vector.extract_strided_slice %20 {offsets = [2, 0], sizes = [1, 128], strides = [1, 1]} : vector<32x128xf32> to vector<1x128xf32>
    %307 = vector.broadcast %306 : vector<1x128xf32> to vector<7x128xf32>
    %308 = arith.mulf %305, %307 : vector<7x128xf32>
    %309 = arith.addf %288, %308 : vector<7x128xf32>
    %310 = vector.extract_strided_slice %20 {offsets = [7, 0], sizes = [1, 128], strides = [1, 1]} : vector<32x128xf32> to vector<1x128xf32>
    %311 = vector.broadcast %310 : vector<1x128xf32> to vector<7x128xf32>
    %312 = arith.mulf %305, %311 : vector<7x128xf32>
    %313 = arith.addf %292, %312 : vector<7x128xf32>
    %314 = vector.extract_strided_slice %20 {offsets = [12, 0], sizes = [1, 128], strides = [1, 1]} : vector<32x128xf32> to vector<1x128xf32>
    %315 = vector.broadcast %314 : vector<1x128xf32> to vector<7x128xf32>
    %316 = arith.mulf %305, %315 : vector<7x128xf32>
    %317 = arith.addf %296, %316 : vector<7x128xf32>
    %318 = vector.extract_strided_slice %20 {offsets = [17, 0], sizes = [1, 128], strides = [1, 1]} : vector<32x128xf32> to vector<1x128xf32>
    %319 = vector.broadcast %318 : vector<1x128xf32> to vector<7x128xf32>
    %320 = arith.mulf %305, %319 : vector<7x128xf32>
    %321 = arith.addf %300, %320 : vector<7x128xf32>
    %322 = vector.extract_strided_slice %20 {offsets = [22, 0], sizes = [1, 128], strides = [1, 1]} : vector<32x128xf32> to vector<1x128xf32>
    %323 = vector.broadcast %322 : vector<1x128xf32> to vector<7x128xf32>
    %324 = arith.mulf %305, %323 : vector<7x128xf32>
    %325 = arith.addf %304, %324 : vector<7x128xf32>
    %326 = vector.extract_strided_slice %47 {offsets = [47, 0], sizes = [7, 128], strides = [1, 1]} : vector<128x128xf32> to vector<7x128xf32>
    %327 = vector.extract_strided_slice %20 {offsets = [3, 0], sizes = [1, 128], strides = [1, 1]} : vector<32x128xf32> to vector<1x128xf32>
    %328 = vector.broadcast %327 : vector<1x128xf32> to vector<7x128xf32>
    %329 = arith.mulf %326, %328 : vector<7x128xf32>
    %330 = arith.addf %309, %329 : vector<7x128xf32>
    %331 = vector.extract_strided_slice %20 {offsets = [8, 0], sizes = [1, 128], strides = [1, 1]} : vector<32x128xf32> to vector<1x128xf32>
    %332 = vector.broadcast %331 : vector<1x128xf32> to vector<7x128xf32>
    %333 = arith.mulf %326, %332 : vector<7x128xf32>
    %334 = arith.addf %313, %333 : vector<7x128xf32>
    %335 = vector.extract_strided_slice %20 {offsets = [13, 0], sizes = [1, 128], strides = [1, 1]} : vector<32x128xf32> to vector<1x128xf32>
    %336 = vector.broadcast %335 : vector<1x128xf32> to vector<7x128xf32>
    %337 = arith.mulf %326, %336 : vector<7x128xf32>
    %338 = arith.addf %317, %337 : vector<7x128xf32>
    %339 = vector.extract_strided_slice %20 {offsets = [18, 0], sizes = [1, 128], strides = [1, 1]} : vector<32x128xf32> to vector<1x128xf32>
    %340 = vector.broadcast %339 : vector<1x128xf32> to vector<7x128xf32>
    %341 = arith.mulf %326, %340 : vector<7x128xf32>
    %342 = arith.addf %321, %341 : vector<7x128xf32>
    %343 = vector.extract_strided_slice %20 {offsets = [23, 0], sizes = [1, 128], strides = [1, 1]} : vector<32x128xf32> to vector<1x128xf32>
    %344 = vector.broadcast %343 : vector<1x128xf32> to vector<7x128xf32>
    %345 = arith.mulf %326, %344 : vector<7x128xf32>
    %346 = arith.addf %325, %345 : vector<7x128xf32>
    %347 = vector.extract_strided_slice %47 {offsets = [48, 0], sizes = [7, 128], strides = [1, 1]} : vector<128x128xf32> to vector<7x128xf32>
    %348 = vector.extract_strided_slice %20 {offsets = [4, 0], sizes = [1, 128], strides = [1, 1]} : vector<32x128xf32> to vector<1x128xf32>
    %349 = vector.broadcast %348 : vector<1x128xf32> to vector<7x128xf32>
    %350 = arith.mulf %347, %349 : vector<7x128xf32>
    %351 = arith.addf %330, %350 : vector<7x128xf32>
    %352 = vector.extract_strided_slice %20 {offsets = [9, 0], sizes = [1, 128], strides = [1, 1]} : vector<32x128xf32> to vector<1x128xf32>
    %353 = vector.broadcast %352 : vector<1x128xf32> to vector<7x128xf32>
    %354 = arith.mulf %347, %353 : vector<7x128xf32>
    %355 = arith.addf %334, %354 : vector<7x128xf32>
    %356 = vector.extract_strided_slice %20 {offsets = [14, 0], sizes = [1, 128], strides = [1, 1]} : vector<32x128xf32> to vector<1x128xf32>
    %357 = vector.broadcast %356 : vector<1x128xf32> to vector<7x128xf32>
    %358 = arith.mulf %347, %357 : vector<7x128xf32>
    %359 = arith.addf %338, %358 : vector<7x128xf32>
    %360 = vector.extract_strided_slice %20 {offsets = [19, 0], sizes = [1, 128], strides = [1, 1]} : vector<32x128xf32> to vector<1x128xf32>
    %361 = vector.broadcast %360 : vector<1x128xf32> to vector<7x128xf32>
    %362 = arith.mulf %347, %361 : vector<7x128xf32>
    %363 = arith.addf %342, %362 : vector<7x128xf32>
    %364 = vector.extract_strided_slice %20 {offsets = [24, 0], sizes = [1, 128], strides = [1, 1]} : vector<32x128xf32> to vector<1x128xf32>
    %365 = vector.broadcast %364 : vector<1x128xf32> to vector<7x128xf32>
    %366 = arith.mulf %347, %365 : vector<7x128xf32>
    %367 = arith.addf %346, %366 : vector<7x128xf32>
    %368 = vector.extract_strided_slice %47 {offsets = [55, 0], sizes = [7, 128], strides = [1, 1]} : vector<128x128xf32> to vector<7x128xf32>
    %369 = vector.extract_strided_slice %20 {offsets = [0, 0], sizes = [1, 128], strides = [1, 1]} : vector<32x128xf32> to vector<1x128xf32>
    %370 = vector.broadcast %369 : vector<1x128xf32> to vector<7x128xf32>
    %371 = arith.mulf %368, %370 : vector<7x128xf32>
    %372 = vector.extract_strided_slice %20 {offsets = [5, 0], sizes = [1, 128], strides = [1, 1]} : vector<32x128xf32> to vector<1x128xf32>
    %373 = vector.broadcast %372 : vector<1x128xf32> to vector<7x128xf32>
    %374 = arith.mulf %368, %373 : vector<7x128xf32>
    %375 = arith.addf %351, %374 : vector<7x128xf32>
    %376 = vector.extract_strided_slice %20 {offsets = [10, 0], sizes = [1, 128], strides = [1, 1]} : vector<32x128xf32> to vector<1x128xf32>
    %377 = vector.broadcast %376 : vector<1x128xf32> to vector<7x128xf32>
    %378 = arith.mulf %368, %377 : vector<7x128xf32>
    %379 = arith.addf %355, %378 : vector<7x128xf32>
    %380 = vector.extract_strided_slice %20 {offsets = [15, 0], sizes = [1, 128], strides = [1, 1]} : vector<32x128xf32> to vector<1x128xf32>
    %381 = vector.broadcast %380 : vector<1x128xf32> to vector<7x128xf32>
    %382 = arith.mulf %368, %381 : vector<7x128xf32>
    %383 = arith.addf %359, %382 : vector<7x128xf32>
    %384 = vector.extract_strided_slice %20 {offsets = [20, 0], sizes = [1, 128], strides = [1, 1]} : vector<32x128xf32> to vector<1x128xf32>
    %385 = vector.broadcast %384 : vector<1x128xf32> to vector<7x128xf32>
    %386 = arith.mulf %368, %385 : vector<7x128xf32>
    %387 = arith.addf %363, %386 : vector<7x128xf32>
    %388 = vector.extract_strided_slice %47 {offsets = [56, 0], sizes = [7, 128], strides = [1, 1]} : vector<128x128xf32> to vector<7x128xf32>
    %389 = vector.extract_strided_slice %20 {offsets = [1, 0], sizes = [1, 128], strides = [1, 1]} : vector<32x128xf32> to vector<1x128xf32>
    %390 = vector.broadcast %389 : vector<1x128xf32> to vector<7x128xf32>
    %391 = arith.mulf %388, %390 : vector<7x128xf32>
    %392 = arith.addf %371, %391 : vector<7x128xf32>
    %393 = vector.extract_strided_slice %20 {offsets = [6, 0], sizes = [1, 128], strides = [1, 1]} : vector<32x128xf32> to vector<1x128xf32>
    %394 = vector.broadcast %393 : vector<1x128xf32> to vector<7x128xf32>
    %395 = arith.mulf %388, %394 : vector<7x128xf32>
    %396 = arith.addf %375, %395 : vector<7x128xf32>
    %397 = vector.extract_strided_slice %20 {offsets = [11, 0], sizes = [1, 128], strides = [1, 1]} : vector<32x128xf32> to vector<1x128xf32>
    %398 = vector.broadcast %397 : vector<1x128xf32> to vector<7x128xf32>
    %399 = arith.mulf %388, %398 : vector<7x128xf32>
    %400 = arith.addf %379, %399 : vector<7x128xf32>
    %401 = vector.extract_strided_slice %20 {offsets = [16, 0], sizes = [1, 128], strides = [1, 1]} : vector<32x128xf32> to vector<1x128xf32>
    %402 = vector.broadcast %401 : vector<1x128xf32> to vector<7x128xf32>
    %403 = arith.mulf %388, %402 : vector<7x128xf32>
    %404 = arith.addf %383, %403 : vector<7x128xf32>
    %405 = vector.extract_strided_slice %20 {offsets = [21, 0], sizes = [1, 128], strides = [1, 1]} : vector<32x128xf32> to vector<1x128xf32>
    %406 = vector.broadcast %405 : vector<1x128xf32> to vector<7x128xf32>
    %407 = arith.mulf %388, %406 : vector<7x128xf32>
    %408 = arith.addf %387, %407 : vector<7x128xf32>
    %409 = vector.extract_strided_slice %47 {offsets = [57, 0], sizes = [7, 128], strides = [1, 1]} : vector<128x128xf32> to vector<7x128xf32>
    %410 = vector.extract_strided_slice %20 {offsets = [2, 0], sizes = [1, 128], strides = [1, 1]} : vector<32x128xf32> to vector<1x128xf32>
    %411 = vector.broadcast %410 : vector<1x128xf32> to vector<7x128xf32>
    %412 = arith.mulf %409, %411 : vector<7x128xf32>
    %413 = arith.addf %392, %412 : vector<7x128xf32>
    %414 = vector.extract_strided_slice %20 {offsets = [7, 0], sizes = [1, 128], strides = [1, 1]} : vector<32x128xf32> to vector<1x128xf32>
    %415 = vector.broadcast %414 : vector<1x128xf32> to vector<7x128xf32>
    %416 = arith.mulf %409, %415 : vector<7x128xf32>
    %417 = arith.addf %396, %416 : vector<7x128xf32>
    %418 = vector.extract_strided_slice %20 {offsets = [12, 0], sizes = [1, 128], strides = [1, 1]} : vector<32x128xf32> to vector<1x128xf32>
    %419 = vector.broadcast %418 : vector<1x128xf32> to vector<7x128xf32>
    %420 = arith.mulf %409, %419 : vector<7x128xf32>
    %421 = arith.addf %400, %420 : vector<7x128xf32>
    %422 = vector.extract_strided_slice %20 {offsets = [17, 0], sizes = [1, 128], strides = [1, 1]} : vector<32x128xf32> to vector<1x128xf32>
    %423 = vector.broadcast %422 : vector<1x128xf32> to vector<7x128xf32>
    %424 = arith.mulf %409, %423 : vector<7x128xf32>
    %425 = arith.addf %404, %424 : vector<7x128xf32>
    %426 = vector.extract_strided_slice %20 {offsets = [22, 0], sizes = [1, 128], strides = [1, 1]} : vector<32x128xf32> to vector<1x128xf32>
    %427 = vector.broadcast %426 : vector<1x128xf32> to vector<7x128xf32>
    %428 = arith.mulf %409, %427 : vector<7x128xf32>
    %429 = arith.addf %408, %428 : vector<7x128xf32>
    %430 = vector.extract_strided_slice %47 {offsets = [58, 0], sizes = [7, 128], strides = [1, 1]} : vector<128x128xf32> to vector<7x128xf32>
    %431 = vector.extract_strided_slice %20 {offsets = [3, 0], sizes = [1, 128], strides = [1, 1]} : vector<32x128xf32> to vector<1x128xf32>
    %432 = vector.broadcast %431 : vector<1x128xf32> to vector<7x128xf32>
    %433 = arith.mulf %430, %432 : vector<7x128xf32>
    %434 = arith.addf %413, %433 : vector<7x128xf32>
    %435 = vector.extract_strided_slice %20 {offsets = [8, 0], sizes = [1, 128], strides = [1, 1]} : vector<32x128xf32> to vector<1x128xf32>
    %436 = vector.broadcast %435 : vector<1x128xf32> to vector<7x128xf32>
    %437 = arith.mulf %430, %436 : vector<7x128xf32>
    %438 = arith.addf %417, %437 : vector<7x128xf32>
    %439 = vector.extract_strided_slice %20 {offsets = [13, 0], sizes = [1, 128], strides = [1, 1]} : vector<32x128xf32> to vector<1x128xf32>
    %440 = vector.broadcast %439 : vector<1x128xf32> to vector<7x128xf32>
    %441 = arith.mulf %430, %440 : vector<7x128xf32>
    %442 = arith.addf %421, %441 : vector<7x128xf32>
    %443 = vector.extract_strided_slice %20 {offsets = [18, 0], sizes = [1, 128], strides = [1, 1]} : vector<32x128xf32> to vector<1x128xf32>
    %444 = vector.broadcast %443 : vector<1x128xf32> to vector<7x128xf32>
    %445 = arith.mulf %430, %444 : vector<7x128xf32>
    %446 = arith.addf %425, %445 : vector<7x128xf32>
    %447 = vector.extract_strided_slice %20 {offsets = [23, 0], sizes = [1, 128], strides = [1, 1]} : vector<32x128xf32> to vector<1x128xf32>
    %448 = vector.broadcast %447 : vector<1x128xf32> to vector<7x128xf32>
    %449 = arith.mulf %430, %448 : vector<7x128xf32>
    %450 = arith.addf %429, %449 : vector<7x128xf32>
    %451 = vector.extract_strided_slice %47 {offsets = [59, 0], sizes = [7, 128], strides = [1, 1]} : vector<128x128xf32> to vector<7x128xf32>
    %452 = vector.extract_strided_slice %20 {offsets = [4, 0], sizes = [1, 128], strides = [1, 1]} : vector<32x128xf32> to vector<1x128xf32>
    %453 = vector.broadcast %452 : vector<1x128xf32> to vector<7x128xf32>
    %454 = arith.mulf %451, %453 : vector<7x128xf32>
    %455 = arith.addf %434, %454 : vector<7x128xf32>
    %456 = vector.extract_strided_slice %20 {offsets = [9, 0], sizes = [1, 128], strides = [1, 1]} : vector<32x128xf32> to vector<1x128xf32>
    %457 = vector.broadcast %456 : vector<1x128xf32> to vector<7x128xf32>
    %458 = arith.mulf %451, %457 : vector<7x128xf32>
    %459 = arith.addf %438, %458 : vector<7x128xf32>
    %460 = vector.extract_strided_slice %20 {offsets = [14, 0], sizes = [1, 128], strides = [1, 1]} : vector<32x128xf32> to vector<1x128xf32>
    %461 = vector.broadcast %460 : vector<1x128xf32> to vector<7x128xf32>
    %462 = arith.mulf %451, %461 : vector<7x128xf32>
    %463 = arith.addf %442, %462 : vector<7x128xf32>
    %464 = vector.extract_strided_slice %20 {offsets = [19, 0], sizes = [1, 128], strides = [1, 1]} : vector<32x128xf32> to vector<1x128xf32>
    %465 = vector.broadcast %464 : vector<1x128xf32> to vector<7x128xf32>
    %466 = arith.mulf %451, %465 : vector<7x128xf32>
    %467 = arith.addf %446, %466 : vector<7x128xf32>
    %468 = vector.extract_strided_slice %20 {offsets = [24, 0], sizes = [1, 128], strides = [1, 1]} : vector<32x128xf32> to vector<1x128xf32>
    %469 = vector.broadcast %468 : vector<1x128xf32> to vector<7x128xf32>
    %470 = arith.mulf %451, %469 : vector<7x128xf32>
    %471 = arith.addf %450, %470 : vector<7x128xf32>
    %472 = vector.extract_strided_slice %47 {offsets = [66, 0], sizes = [7, 128], strides = [1, 1]} : vector<128x128xf32> to vector<7x128xf32>
    %473 = vector.extract_strided_slice %20 {offsets = [0, 0], sizes = [1, 128], strides = [1, 1]} : vector<32x128xf32> to vector<1x128xf32>
    %474 = vector.broadcast %473 : vector<1x128xf32> to vector<7x128xf32>
    %475 = arith.mulf %472, %474 : vector<7x128xf32>
    %476 = vector.extract_strided_slice %20 {offsets = [5, 0], sizes = [1, 128], strides = [1, 1]} : vector<32x128xf32> to vector<1x128xf32>
    %477 = vector.broadcast %476 : vector<1x128xf32> to vector<7x128xf32>
    %478 = arith.mulf %472, %477 : vector<7x128xf32>
    %479 = arith.addf %455, %478 : vector<7x128xf32>
    %480 = vector.extract_strided_slice %20 {offsets = [10, 0], sizes = [1, 128], strides = [1, 1]} : vector<32x128xf32> to vector<1x128xf32>
    %481 = vector.broadcast %480 : vector<1x128xf32> to vector<7x128xf32>
    %482 = arith.mulf %472, %481 : vector<7x128xf32>
    %483 = arith.addf %459, %482 : vector<7x128xf32>
    %484 = vector.extract_strided_slice %20 {offsets = [15, 0], sizes = [1, 128], strides = [1, 1]} : vector<32x128xf32> to vector<1x128xf32>
    %485 = vector.broadcast %484 : vector<1x128xf32> to vector<7x128xf32>
    %486 = arith.mulf %472, %485 : vector<7x128xf32>
    %487 = arith.addf %463, %486 : vector<7x128xf32>
    %488 = vector.extract_strided_slice %20 {offsets = [20, 0], sizes = [1, 128], strides = [1, 1]} : vector<32x128xf32> to vector<1x128xf32>
    %489 = vector.broadcast %488 : vector<1x128xf32> to vector<7x128xf32>
    %490 = arith.mulf %472, %489 : vector<7x128xf32>
    %491 = arith.addf %467, %490 : vector<7x128xf32>
    %492 = vector.extract_strided_slice %47 {offsets = [67, 0], sizes = [7, 128], strides = [1, 1]} : vector<128x128xf32> to vector<7x128xf32>
    %493 = vector.extract_strided_slice %20 {offsets = [1, 0], sizes = [1, 128], strides = [1, 1]} : vector<32x128xf32> to vector<1x128xf32>
    %494 = vector.broadcast %493 : vector<1x128xf32> to vector<7x128xf32>
    %495 = arith.mulf %492, %494 : vector<7x128xf32>
    %496 = arith.addf %475, %495 : vector<7x128xf32>
    %497 = vector.extract_strided_slice %20 {offsets = [6, 0], sizes = [1, 128], strides = [1, 1]} : vector<32x128xf32> to vector<1x128xf32>
    %498 = vector.broadcast %497 : vector<1x128xf32> to vector<7x128xf32>
    %499 = arith.mulf %492, %498 : vector<7x128xf32>
    %500 = arith.addf %479, %499 : vector<7x128xf32>
    %501 = vector.extract_strided_slice %20 {offsets = [11, 0], sizes = [1, 128], strides = [1, 1]} : vector<32x128xf32> to vector<1x128xf32>
    %502 = vector.broadcast %501 : vector<1x128xf32> to vector<7x128xf32>
    %503 = arith.mulf %492, %502 : vector<7x128xf32>
    %504 = arith.addf %483, %503 : vector<7x128xf32>
    %505 = vector.extract_strided_slice %20 {offsets = [16, 0], sizes = [1, 128], strides = [1, 1]} : vector<32x128xf32> to vector<1x128xf32>
    %506 = vector.broadcast %505 : vector<1x128xf32> to vector<7x128xf32>
    %507 = arith.mulf %492, %506 : vector<7x128xf32>
    %508 = arith.addf %487, %507 : vector<7x128xf32>
    %509 = vector.extract_strided_slice %20 {offsets = [21, 0], sizes = [1, 128], strides = [1, 1]} : vector<32x128xf32> to vector<1x128xf32>
    %510 = vector.broadcast %509 : vector<1x128xf32> to vector<7x128xf32>
    %511 = arith.mulf %492, %510 : vector<7x128xf32>
    %512 = arith.addf %491, %511 : vector<7x128xf32>
    %513 = vector.extract_strided_slice %47 {offsets = [68, 0], sizes = [7, 128], strides = [1, 1]} : vector<128x128xf32> to vector<7x128xf32>
    %514 = vector.extract_strided_slice %20 {offsets = [2, 0], sizes = [1, 128], strides = [1, 1]} : vector<32x128xf32> to vector<1x128xf32>
    %515 = vector.broadcast %514 : vector<1x128xf32> to vector<7x128xf32>
    %516 = arith.mulf %513, %515 : vector<7x128xf32>
    %517 = arith.addf %496, %516 : vector<7x128xf32>
    %518 = vector.extract_strided_slice %20 {offsets = [7, 0], sizes = [1, 128], strides = [1, 1]} : vector<32x128xf32> to vector<1x128xf32>
    %519 = vector.broadcast %518 : vector<1x128xf32> to vector<7x128xf32>
    %520 = arith.mulf %513, %519 : vector<7x128xf32>
    %521 = arith.addf %500, %520 : vector<7x128xf32>
    %522 = vector.extract_strided_slice %20 {offsets = [12, 0], sizes = [1, 128], strides = [1, 1]} : vector<32x128xf32> to vector<1x128xf32>
    %523 = vector.broadcast %522 : vector<1x128xf32> to vector<7x128xf32>
    %524 = arith.mulf %513, %523 : vector<7x128xf32>
    %525 = arith.addf %504, %524 : vector<7x128xf32>
    %526 = vector.extract_strided_slice %20 {offsets = [17, 0], sizes = [1, 128], strides = [1, 1]} : vector<32x128xf32> to vector<1x128xf32>
    %527 = vector.broadcast %526 : vector<1x128xf32> to vector<7x128xf32>
    %528 = arith.mulf %513, %527 : vector<7x128xf32>
    %529 = arith.addf %508, %528 : vector<7x128xf32>
    %530 = vector.extract_strided_slice %20 {offsets = [22, 0], sizes = [1, 128], strides = [1, 1]} : vector<32x128xf32> to vector<1x128xf32>
    %531 = vector.broadcast %530 : vector<1x128xf32> to vector<7x128xf32>
    %532 = arith.mulf %513, %531 : vector<7x128xf32>
    %533 = arith.addf %512, %532 : vector<7x128xf32>
    %534 = vector.extract_strided_slice %47 {offsets = [69, 0], sizes = [7, 128], strides = [1, 1]} : vector<128x128xf32> to vector<7x128xf32>
    %535 = vector.extract_strided_slice %20 {offsets = [3, 0], sizes = [1, 128], strides = [1, 1]} : vector<32x128xf32> to vector<1x128xf32>
    %536 = vector.broadcast %535 : vector<1x128xf32> to vector<7x128xf32>
    %537 = arith.mulf %534, %536 : vector<7x128xf32>
    %538 = arith.addf %517, %537 : vector<7x128xf32>
    %539 = vector.extract_strided_slice %20 {offsets = [8, 0], sizes = [1, 128], strides = [1, 1]} : vector<32x128xf32> to vector<1x128xf32>
    %540 = vector.broadcast %539 : vector<1x128xf32> to vector<7x128xf32>
    %541 = arith.mulf %534, %540 : vector<7x128xf32>
    %542 = arith.addf %521, %541 : vector<7x128xf32>
    %543 = vector.extract_strided_slice %20 {offsets = [13, 0], sizes = [1, 128], strides = [1, 1]} : vector<32x128xf32> to vector<1x128xf32>
    %544 = vector.broadcast %543 : vector<1x128xf32> to vector<7x128xf32>
    %545 = arith.mulf %534, %544 : vector<7x128xf32>
    %546 = arith.addf %525, %545 : vector<7x128xf32>
    %547 = vector.extract_strided_slice %20 {offsets = [18, 0], sizes = [1, 128], strides = [1, 1]} : vector<32x128xf32> to vector<1x128xf32>
    %548 = vector.broadcast %547 : vector<1x128xf32> to vector<7x128xf32>
    %549 = arith.mulf %534, %548 : vector<7x128xf32>
    %550 = arith.addf %529, %549 : vector<7x128xf32>
    %551 = vector.extract_strided_slice %20 {offsets = [23, 0], sizes = [1, 128], strides = [1, 1]} : vector<32x128xf32> to vector<1x128xf32>
    %552 = vector.broadcast %551 : vector<1x128xf32> to vector<7x128xf32>
    %553 = arith.mulf %534, %552 : vector<7x128xf32>
    %554 = arith.addf %533, %553 : vector<7x128xf32>
    %555 = vector.extract_strided_slice %47 {offsets = [70, 0], sizes = [7, 128], strides = [1, 1]} : vector<128x128xf32> to vector<7x128xf32>
    %556 = vector.extract_strided_slice %20 {offsets = [4, 0], sizes = [1, 128], strides = [1, 1]} : vector<32x128xf32> to vector<1x128xf32>
    %557 = vector.broadcast %556 : vector<1x128xf32> to vector<7x128xf32>
    %558 = arith.mulf %555, %557 : vector<7x128xf32>
    %559 = arith.addf %538, %558 : vector<7x128xf32>
    %560 = vector.extract_strided_slice %20 {offsets = [9, 0], sizes = [1, 128], strides = [1, 1]} : vector<32x128xf32> to vector<1x128xf32>
    %561 = vector.broadcast %560 : vector<1x128xf32> to vector<7x128xf32>
    %562 = arith.mulf %555, %561 : vector<7x128xf32>
    %563 = arith.addf %542, %562 : vector<7x128xf32>
    %564 = vector.extract_strided_slice %20 {offsets = [14, 0], sizes = [1, 128], strides = [1, 1]} : vector<32x128xf32> to vector<1x128xf32>
    %565 = vector.broadcast %564 : vector<1x128xf32> to vector<7x128xf32>
    %566 = arith.mulf %555, %565 : vector<7x128xf32>
    %567 = arith.addf %546, %566 : vector<7x128xf32>
    %568 = vector.extract_strided_slice %20 {offsets = [19, 0], sizes = [1, 128], strides = [1, 1]} : vector<32x128xf32> to vector<1x128xf32>
    %569 = vector.broadcast %568 : vector<1x128xf32> to vector<7x128xf32>
    %570 = arith.mulf %555, %569 : vector<7x128xf32>
    %571 = arith.addf %550, %570 : vector<7x128xf32>
    %572 = vector.extract_strided_slice %20 {offsets = [24, 0], sizes = [1, 128], strides = [1, 1]} : vector<32x128xf32> to vector<1x128xf32>
    %573 = vector.broadcast %572 : vector<1x128xf32> to vector<7x128xf32>
    %574 = arith.mulf %555, %573 : vector<7x128xf32>
    %575 = arith.addf %554, %574 : vector<7x128xf32>
    %576 = vector.extract_strided_slice %47 {offsets = [77, 0], sizes = [7, 128], strides = [1, 1]} : vector<128x128xf32> to vector<7x128xf32>
    %577 = vector.extract_strided_slice %20 {offsets = [5, 0], sizes = [1, 128], strides = [1, 1]} : vector<32x128xf32> to vector<1x128xf32>
    %578 = vector.broadcast %577 : vector<1x128xf32> to vector<7x128xf32>
    %579 = arith.mulf %576, %578 : vector<7x128xf32>
    %580 = arith.addf %559, %579 : vector<7x128xf32>
    %581 = vector.extract_strided_slice %20 {offsets = [10, 0], sizes = [1, 128], strides = [1, 1]} : vector<32x128xf32> to vector<1x128xf32>
    %582 = vector.broadcast %581 : vector<1x128xf32> to vector<7x128xf32>
    %583 = arith.mulf %576, %582 : vector<7x128xf32>
    %584 = arith.addf %563, %583 : vector<7x128xf32>
    %585 = vector.extract_strided_slice %20 {offsets = [15, 0], sizes = [1, 128], strides = [1, 1]} : vector<32x128xf32> to vector<1x128xf32>
    %586 = vector.broadcast %585 : vector<1x128xf32> to vector<7x128xf32>
    %587 = arith.mulf %576, %586 : vector<7x128xf32>
    %588 = arith.addf %567, %587 : vector<7x128xf32>
    %589 = vector.extract_strided_slice %20 {offsets = [20, 0], sizes = [1, 128], strides = [1, 1]} : vector<32x128xf32> to vector<1x128xf32>
    %590 = vector.broadcast %589 : vector<1x128xf32> to vector<7x128xf32>
    %591 = arith.mulf %576, %590 : vector<7x128xf32>
    %592 = arith.addf %571, %591 : vector<7x128xf32>
    %593 = vector.extract_strided_slice %47 {offsets = [78, 0], sizes = [7, 128], strides = [1, 1]} : vector<128x128xf32> to vector<7x128xf32>
    %594 = vector.extract_strided_slice %20 {offsets = [6, 0], sizes = [1, 128], strides = [1, 1]} : vector<32x128xf32> to vector<1x128xf32>
    %595 = vector.broadcast %594 : vector<1x128xf32> to vector<7x128xf32>
    %596 = arith.mulf %593, %595 : vector<7x128xf32>
    %597 = arith.addf %580, %596 : vector<7x128xf32>
    %598 = vector.extract_strided_slice %20 {offsets = [11, 0], sizes = [1, 128], strides = [1, 1]} : vector<32x128xf32> to vector<1x128xf32>
    %599 = vector.broadcast %598 : vector<1x128xf32> to vector<7x128xf32>
    %600 = arith.mulf %593, %599 : vector<7x128xf32>
    %601 = arith.addf %584, %600 : vector<7x128xf32>
    %602 = vector.extract_strided_slice %20 {offsets = [16, 0], sizes = [1, 128], strides = [1, 1]} : vector<32x128xf32> to vector<1x128xf32>
    %603 = vector.broadcast %602 : vector<1x128xf32> to vector<7x128xf32>
    %604 = arith.mulf %593, %603 : vector<7x128xf32>
    %605 = arith.addf %588, %604 : vector<7x128xf32>
    %606 = vector.extract_strided_slice %20 {offsets = [21, 0], sizes = [1, 128], strides = [1, 1]} : vector<32x128xf32> to vector<1x128xf32>
    %607 = vector.broadcast %606 : vector<1x128xf32> to vector<7x128xf32>
    %608 = arith.mulf %593, %607 : vector<7x128xf32>
    %609 = arith.addf %592, %608 : vector<7x128xf32>
    %610 = vector.extract_strided_slice %47 {offsets = [79, 0], sizes = [7, 128], strides = [1, 1]} : vector<128x128xf32> to vector<7x128xf32>
    %611 = vector.extract_strided_slice %20 {offsets = [7, 0], sizes = [1, 128], strides = [1, 1]} : vector<32x128xf32> to vector<1x128xf32>
    %612 = vector.broadcast %611 : vector<1x128xf32> to vector<7x128xf32>
    %613 = arith.mulf %610, %612 : vector<7x128xf32>
    %614 = arith.addf %597, %613 : vector<7x128xf32>
    %615 = vector.extract_strided_slice %20 {offsets = [12, 0], sizes = [1, 128], strides = [1, 1]} : vector<32x128xf32> to vector<1x128xf32>
    %616 = vector.broadcast %615 : vector<1x128xf32> to vector<7x128xf32>
    %617 = arith.mulf %610, %616 : vector<7x128xf32>
    %618 = arith.addf %601, %617 : vector<7x128xf32>
    %619 = vector.extract_strided_slice %20 {offsets = [17, 0], sizes = [1, 128], strides = [1, 1]} : vector<32x128xf32> to vector<1x128xf32>
    %620 = vector.broadcast %619 : vector<1x128xf32> to vector<7x128xf32>
    %621 = arith.mulf %610, %620 : vector<7x128xf32>
    %622 = arith.addf %605, %621 : vector<7x128xf32>
    %623 = vector.extract_strided_slice %20 {offsets = [22, 0], sizes = [1, 128], strides = [1, 1]} : vector<32x128xf32> to vector<1x128xf32>
    %624 = vector.broadcast %623 : vector<1x128xf32> to vector<7x128xf32>
    %625 = arith.mulf %610, %624 : vector<7x128xf32>
    %626 = arith.addf %609, %625 : vector<7x128xf32>
    %627 = vector.extract_strided_slice %47 {offsets = [80, 0], sizes = [7, 128], strides = [1, 1]} : vector<128x128xf32> to vector<7x128xf32>
    %628 = vector.extract_strided_slice %20 {offsets = [8, 0], sizes = [1, 128], strides = [1, 1]} : vector<32x128xf32> to vector<1x128xf32>
    %629 = vector.broadcast %628 : vector<1x128xf32> to vector<7x128xf32>
    %630 = arith.mulf %627, %629 : vector<7x128xf32>
    %631 = arith.addf %614, %630 : vector<7x128xf32>
    %632 = vector.extract_strided_slice %20 {offsets = [13, 0], sizes = [1, 128], strides = [1, 1]} : vector<32x128xf32> to vector<1x128xf32>
    %633 = vector.broadcast %632 : vector<1x128xf32> to vector<7x128xf32>
    %634 = arith.mulf %627, %633 : vector<7x128xf32>
    %635 = arith.addf %618, %634 : vector<7x128xf32>
    %636 = vector.extract_strided_slice %20 {offsets = [18, 0], sizes = [1, 128], strides = [1, 1]} : vector<32x128xf32> to vector<1x128xf32>
    %637 = vector.broadcast %636 : vector<1x128xf32> to vector<7x128xf32>
    %638 = arith.mulf %627, %637 : vector<7x128xf32>
    %639 = arith.addf %622, %638 : vector<7x128xf32>
    %640 = vector.extract_strided_slice %20 {offsets = [23, 0], sizes = [1, 128], strides = [1, 1]} : vector<32x128xf32> to vector<1x128xf32>
    %641 = vector.broadcast %640 : vector<1x128xf32> to vector<7x128xf32>
    %642 = arith.mulf %627, %641 : vector<7x128xf32>
    %643 = arith.addf %626, %642 : vector<7x128xf32>
    %644 = vector.extract_strided_slice %47 {offsets = [81, 0], sizes = [7, 128], strides = [1, 1]} : vector<128x128xf32> to vector<7x128xf32>
    %645 = vector.extract_strided_slice %20 {offsets = [9, 0], sizes = [1, 128], strides = [1, 1]} : vector<32x128xf32> to vector<1x128xf32>
    %646 = vector.broadcast %645 : vector<1x128xf32> to vector<7x128xf32>
    %647 = arith.mulf %644, %646 : vector<7x128xf32>
    %648 = arith.addf %631, %647 : vector<7x128xf32>
    %649 = vector.extract_strided_slice %20 {offsets = [14, 0], sizes = [1, 128], strides = [1, 1]} : vector<32x128xf32> to vector<1x128xf32>
    %650 = vector.broadcast %649 : vector<1x128xf32> to vector<7x128xf32>
    %651 = arith.mulf %644, %650 : vector<7x128xf32>
    %652 = arith.addf %635, %651 : vector<7x128xf32>
    %653 = vector.extract_strided_slice %20 {offsets = [19, 0], sizes = [1, 128], strides = [1, 1]} : vector<32x128xf32> to vector<1x128xf32>
    %654 = vector.broadcast %653 : vector<1x128xf32> to vector<7x128xf32>
    %655 = arith.mulf %644, %654 : vector<7x128xf32>
    %656 = arith.addf %639, %655 : vector<7x128xf32>
    %657 = vector.extract_strided_slice %20 {offsets = [24, 0], sizes = [1, 128], strides = [1, 1]} : vector<32x128xf32> to vector<1x128xf32>
    %658 = vector.broadcast %657 : vector<1x128xf32> to vector<7x128xf32>
    %659 = arith.mulf %644, %658 : vector<7x128xf32>
    %660 = arith.addf %643, %659 : vector<7x128xf32>
    %661 = vector.extract_strided_slice %47 {offsets = [88, 0], sizes = [7, 128], strides = [1, 1]} : vector<128x128xf32> to vector<7x128xf32>
    %662 = vector.extract_strided_slice %20 {offsets = [10, 0], sizes = [1, 128], strides = [1, 1]} : vector<32x128xf32> to vector<1x128xf32>
    %663 = vector.broadcast %662 : vector<1x128xf32> to vector<7x128xf32>
    %664 = arith.mulf %661, %663 : vector<7x128xf32>
    %665 = arith.addf %648, %664 : vector<7x128xf32>
    %666 = vector.extract_strided_slice %20 {offsets = [15, 0], sizes = [1, 128], strides = [1, 1]} : vector<32x128xf32> to vector<1x128xf32>
    %667 = vector.broadcast %666 : vector<1x128xf32> to vector<7x128xf32>
    %668 = arith.mulf %661, %667 : vector<7x128xf32>
    %669 = arith.addf %652, %668 : vector<7x128xf32>
    %670 = vector.extract_strided_slice %20 {offsets = [20, 0], sizes = [1, 128], strides = [1, 1]} : vector<32x128xf32> to vector<1x128xf32>
    %671 = vector.broadcast %670 : vector<1x128xf32> to vector<7x128xf32>
    %672 = arith.mulf %661, %671 : vector<7x128xf32>
    %673 = arith.addf %656, %672 : vector<7x128xf32>
    %674 = vector.extract_strided_slice %47 {offsets = [89, 0], sizes = [7, 128], strides = [1, 1]} : vector<128x128xf32> to vector<7x128xf32>
    %675 = vector.extract_strided_slice %20 {offsets = [11, 0], sizes = [1, 128], strides = [1, 1]} : vector<32x128xf32> to vector<1x128xf32>
    %676 = vector.broadcast %675 : vector<1x128xf32> to vector<7x128xf32>
    %677 = arith.mulf %674, %676 : vector<7x128xf32>
    %678 = arith.addf %665, %677 : vector<7x128xf32>
    %679 = vector.extract_strided_slice %20 {offsets = [16, 0], sizes = [1, 128], strides = [1, 1]} : vector<32x128xf32> to vector<1x128xf32>
    %680 = vector.broadcast %679 : vector<1x128xf32> to vector<7x128xf32>
    %681 = arith.mulf %674, %680 : vector<7x128xf32>
    %682 = arith.addf %669, %681 : vector<7x128xf32>
    %683 = vector.extract_strided_slice %20 {offsets = [21, 0], sizes = [1, 128], strides = [1, 1]} : vector<32x128xf32> to vector<1x128xf32>
    %684 = vector.broadcast %683 : vector<1x128xf32> to vector<7x128xf32>
    %685 = arith.mulf %674, %684 : vector<7x128xf32>
    %686 = arith.addf %673, %685 : vector<7x128xf32>
    %687 = vector.extract_strided_slice %47 {offsets = [90, 0], sizes = [7, 128], strides = [1, 1]} : vector<128x128xf32> to vector<7x128xf32>
    %688 = vector.extract_strided_slice %20 {offsets = [12, 0], sizes = [1, 128], strides = [1, 1]} : vector<32x128xf32> to vector<1x128xf32>
    %689 = vector.broadcast %688 : vector<1x128xf32> to vector<7x128xf32>
    %690 = arith.mulf %687, %689 : vector<7x128xf32>
    %691 = arith.addf %678, %690 : vector<7x128xf32>
    %692 = vector.extract_strided_slice %20 {offsets = [17, 0], sizes = [1, 128], strides = [1, 1]} : vector<32x128xf32> to vector<1x128xf32>
    %693 = vector.broadcast %692 : vector<1x128xf32> to vector<7x128xf32>
    %694 = arith.mulf %687, %693 : vector<7x128xf32>
    %695 = arith.addf %682, %694 : vector<7x128xf32>
    %696 = vector.extract_strided_slice %20 {offsets = [22, 0], sizes = [1, 128], strides = [1, 1]} : vector<32x128xf32> to vector<1x128xf32>
    %697 = vector.broadcast %696 : vector<1x128xf32> to vector<7x128xf32>
    %698 = arith.mulf %687, %697 : vector<7x128xf32>
    %699 = arith.addf %686, %698 : vector<7x128xf32>
    %700 = vector.extract_strided_slice %47 {offsets = [91, 0], sizes = [7, 128], strides = [1, 1]} : vector<128x128xf32> to vector<7x128xf32>
    %701 = vector.extract_strided_slice %20 {offsets = [13, 0], sizes = [1, 128], strides = [1, 1]} : vector<32x128xf32> to vector<1x128xf32>
    %702 = vector.broadcast %701 : vector<1x128xf32> to vector<7x128xf32>
    %703 = arith.mulf %700, %702 : vector<7x128xf32>
    %704 = arith.addf %691, %703 : vector<7x128xf32>
    %705 = vector.extract_strided_slice %20 {offsets = [18, 0], sizes = [1, 128], strides = [1, 1]} : vector<32x128xf32> to vector<1x128xf32>
    %706 = vector.broadcast %705 : vector<1x128xf32> to vector<7x128xf32>
    %707 = arith.mulf %700, %706 : vector<7x128xf32>
    %708 = arith.addf %695, %707 : vector<7x128xf32>
    %709 = vector.extract_strided_slice %20 {offsets = [23, 0], sizes = [1, 128], strides = [1, 1]} : vector<32x128xf32> to vector<1x128xf32>
    %710 = vector.broadcast %709 : vector<1x128xf32> to vector<7x128xf32>
    %711 = arith.mulf %700, %710 : vector<7x128xf32>
    %712 = arith.addf %699, %711 : vector<7x128xf32>
    %713 = vector.extract_strided_slice %47 {offsets = [92, 0], sizes = [7, 128], strides = [1, 1]} : vector<128x128xf32> to vector<7x128xf32>
    %714 = vector.extract_strided_slice %20 {offsets = [14, 0], sizes = [1, 128], strides = [1, 1]} : vector<32x128xf32> to vector<1x128xf32>
    %715 = vector.broadcast %714 : vector<1x128xf32> to vector<7x128xf32>
    %716 = arith.mulf %713, %715 : vector<7x128xf32>
    %717 = arith.addf %704, %716 : vector<7x128xf32>
    %718 = vector.extract_strided_slice %20 {offsets = [19, 0], sizes = [1, 128], strides = [1, 1]} : vector<32x128xf32> to vector<1x128xf32>
    %719 = vector.broadcast %718 : vector<1x128xf32> to vector<7x128xf32>
    %720 = arith.mulf %713, %719 : vector<7x128xf32>
    %721 = arith.addf %708, %720 : vector<7x128xf32>
    %722 = vector.extract_strided_slice %20 {offsets = [24, 0], sizes = [1, 128], strides = [1, 1]} : vector<32x128xf32> to vector<1x128xf32>
    %723 = vector.broadcast %722 : vector<1x128xf32> to vector<7x128xf32>
    %724 = arith.mulf %713, %723 : vector<7x128xf32>
    %725 = arith.addf %712, %724 : vector<7x128xf32>
    %726 = vector.extract_strided_slice %47 {offsets = [99, 0], sizes = [7, 128], strides = [1, 1]} : vector<128x128xf32> to vector<7x128xf32>
    %727 = vector.extract_strided_slice %20 {offsets = [15, 0], sizes = [1, 128], strides = [1, 1]} : vector<32x128xf32> to vector<1x128xf32>
    %728 = vector.broadcast %727 : vector<1x128xf32> to vector<7x128xf32>
    %729 = arith.mulf %726, %728 : vector<7x128xf32>
    %730 = arith.addf %717, %729 : vector<7x128xf32>
    %731 = vector.extract_strided_slice %20 {offsets = [20, 0], sizes = [1, 128], strides = [1, 1]} : vector<32x128xf32> to vector<1x128xf32>
    %732 = vector.broadcast %731 : vector<1x128xf32> to vector<7x128xf32>
    %733 = arith.mulf %726, %732 : vector<7x128xf32>
    %734 = arith.addf %721, %733 : vector<7x128xf32>
    %735 = vector.extract_strided_slice %47 {offsets = [100, 0], sizes = [7, 128], strides = [1, 1]} : vector<128x128xf32> to vector<7x128xf32>
    %736 = vector.extract_strided_slice %20 {offsets = [16, 0], sizes = [1, 128], strides = [1, 1]} : vector<32x128xf32> to vector<1x128xf32>
    %737 = vector.broadcast %736 : vector<1x128xf32> to vector<7x128xf32>
    %738 = arith.mulf %735, %737 : vector<7x128xf32>
    %739 = arith.addf %730, %738 : vector<7x128xf32>
    %740 = vector.extract_strided_slice %20 {offsets = [21, 0], sizes = [1, 128], strides = [1, 1]} : vector<32x128xf32> to vector<1x128xf32>
    %741 = vector.broadcast %740 : vector<1x128xf32> to vector<7x128xf32>
    %742 = arith.mulf %735, %741 : vector<7x128xf32>
    %743 = arith.addf %734, %742 : vector<7x128xf32>
    %744 = vector.extract_strided_slice %47 {offsets = [101, 0], sizes = [7, 128], strides = [1, 1]} : vector<128x128xf32> to vector<7x128xf32>
    %745 = vector.extract_strided_slice %20 {offsets = [17, 0], sizes = [1, 128], strides = [1, 1]} : vector<32x128xf32> to vector<1x128xf32>
    %746 = vector.broadcast %745 : vector<1x128xf32> to vector<7x128xf32>
    %747 = arith.mulf %744, %746 : vector<7x128xf32>
    %748 = arith.addf %739, %747 : vector<7x128xf32>
    %749 = vector.extract_strided_slice %20 {offsets = [22, 0], sizes = [1, 128], strides = [1, 1]} : vector<32x128xf32> to vector<1x128xf32>
    %750 = vector.broadcast %749 : vector<1x128xf32> to vector<7x128xf32>
    %751 = arith.mulf %744, %750 : vector<7x128xf32>
    %752 = arith.addf %743, %751 : vector<7x128xf32>
    %753 = vector.extract_strided_slice %47 {offsets = [102, 0], sizes = [7, 128], strides = [1, 1]} : vector<128x128xf32> to vector<7x128xf32>
    %754 = vector.extract_strided_slice %20 {offsets = [18, 0], sizes = [1, 128], strides = [1, 1]} : vector<32x128xf32> to vector<1x128xf32>
    %755 = vector.broadcast %754 : vector<1x128xf32> to vector<7x128xf32>
    %756 = arith.mulf %753, %755 : vector<7x128xf32>
    %757 = arith.addf %748, %756 : vector<7x128xf32>
    %758 = vector.extract_strided_slice %20 {offsets = [23, 0], sizes = [1, 128], strides = [1, 1]} : vector<32x128xf32> to vector<1x128xf32>
    %759 = vector.broadcast %758 : vector<1x128xf32> to vector<7x128xf32>
    %760 = arith.mulf %753, %759 : vector<7x128xf32>
    %761 = arith.addf %752, %760 : vector<7x128xf32>
    %762 = vector.extract_strided_slice %47 {offsets = [103, 0], sizes = [7, 128], strides = [1, 1]} : vector<128x128xf32> to vector<7x128xf32>
    %763 = vector.extract_strided_slice %20 {offsets = [19, 0], sizes = [1, 128], strides = [1, 1]} : vector<32x128xf32> to vector<1x128xf32>
    %764 = vector.broadcast %763 : vector<1x128xf32> to vector<7x128xf32>
    %765 = arith.mulf %762, %764 : vector<7x128xf32>
    %766 = arith.addf %757, %765 : vector<7x128xf32>
    %767 = vector.extract_strided_slice %20 {offsets = [24, 0], sizes = [1, 128], strides = [1, 1]} : vector<32x128xf32> to vector<1x128xf32>
    %768 = vector.broadcast %767 : vector<1x128xf32> to vector<7x128xf32>
    %769 = arith.mulf %762, %768 : vector<7x128xf32>
    %770 = arith.addf %761, %769 : vector<7x128xf32>
    %771 = vector.extract_strided_slice %47 {offsets = [110, 0], sizes = [7, 128], strides = [1, 1]} : vector<128x128xf32> to vector<7x128xf32>
    %772 = vector.extract_strided_slice %20 {offsets = [20, 0], sizes = [1, 128], strides = [1, 1]} : vector<32x128xf32> to vector<1x128xf32>
    %773 = vector.broadcast %772 : vector<1x128xf32> to vector<7x128xf32>
    %774 = arith.mulf %771, %773 : vector<7x128xf32>
    %775 = arith.addf %766, %774 : vector<7x128xf32>
    %776 = vector.extract_strided_slice %47 {offsets = [111, 0], sizes = [7, 128], strides = [1, 1]} : vector<128x128xf32> to vector<7x128xf32>
    %777 = vector.extract_strided_slice %20 {offsets = [21, 0], sizes = [1, 128], strides = [1, 1]} : vector<32x128xf32> to vector<1x128xf32>
    %778 = vector.broadcast %777 : vector<1x128xf32> to vector<7x128xf32>
    %779 = arith.mulf %776, %778 : vector<7x128xf32>
    %780 = arith.addf %775, %779 : vector<7x128xf32>
    %781 = vector.extract_strided_slice %47 {offsets = [112, 0], sizes = [7, 128], strides = [1, 1]} : vector<128x128xf32> to vector<7x128xf32>
    %782 = vector.extract_strided_slice %20 {offsets = [22, 0], sizes = [1, 128], strides = [1, 1]} : vector<32x128xf32> to vector<1x128xf32>
    %783 = vector.broadcast %782 : vector<1x128xf32> to vector<7x128xf32>
    %784 = arith.mulf %781, %783 : vector<7x128xf32>
    %785 = arith.addf %780, %784 : vector<7x128xf32>
    %786 = vector.extract_strided_slice %47 {offsets = [113, 0], sizes = [7, 128], strides = [1, 1]} : vector<128x128xf32> to vector<7x128xf32>
    %787 = vector.extract_strided_slice %20 {offsets = [23, 0], sizes = [1, 128], strides = [1, 1]} : vector<32x128xf32> to vector<1x128xf32>
    %788 = vector.broadcast %787 : vector<1x128xf32> to vector<7x128xf32>
    %789 = arith.mulf %786, %788 : vector<7x128xf32>
    %790 = arith.addf %785, %789 : vector<7x128xf32>
    %791 = vector.extract_strided_slice %47 {offsets = [114, 0], sizes = [7, 128], strides = [1, 1]} : vector<128x128xf32> to vector<7x128xf32>
    %792 = vector.extract_strided_slice %20 {offsets = [24, 0], sizes = [1, 128], strides = [1, 1]} : vector<32x128xf32> to vector<1x128xf32>
    %793 = vector.broadcast %792 : vector<1x128xf32> to vector<7x128xf32>
    %794 = arith.mulf %791, %793 : vector<7x128xf32>
    %795 = arith.addf %790, %794 : vector<7x128xf32>
    %796 = arith.addf %367, %471 : vector<7x128xf32>
    %797 = arith.addf %796, %575 : vector<7x128xf32>
    %798 = arith.addf %797, %660 : vector<7x128xf32>
    %799 = arith.addf %798, %725 : vector<7x128xf32>
    %800 = arith.addf %799, %770 : vector<7x128xf32>
    %801 = arith.addf %800, %795 : vector<7x128xf32>
    %cst_27 = arith.constant dense<0.000000e+00> : vector<128xf32>
    %802 = vector.multi_reduction <add>, %801, %cst_27 [0] : vector<7x128xf32> to vector<128xf32>
    %803 = vector.shape_cast %802 : vector<128xf32> to vector<1x128xf32>
    %cst_28 = arith.constant 0.0204081628 : f32
    %804 = vector.broadcast %cst_28 : f32 to vector<1x128xf32>
    %805 = arith.mulf %803, %804 : vector<1x128xf32>
    %806 = vector.broadcast %805 : vector<1x128xf32> to vector<7x128xf32>
    %807 = arith.subf %367, %806 : vector<7x128xf32>
    %808 = arith.mulf %807, %807 : vector<7x128xf32>
    %809 = vector.broadcast %805 : vector<1x128xf32> to vector<7x128xf32>
    %810 = arith.subf %471, %809 : vector<7x128xf32>
    %811 = arith.mulf %810, %810 : vector<7x128xf32>
    %812 = arith.addf %808, %811 : vector<7x128xf32>
    %813 = vector.broadcast %805 : vector<1x128xf32> to vector<7x128xf32>
    %814 = arith.subf %575, %813 : vector<7x128xf32>
    %815 = arith.mulf %814, %814 : vector<7x128xf32>
    %816 = arith.addf %812, %815 : vector<7x128xf32>
    %817 = vector.broadcast %805 : vector<1x128xf32> to vector<7x128xf32>
    %818 = arith.subf %660, %817 : vector<7x128xf32>
    %819 = arith.mulf %818, %818 : vector<7x128xf32>
    %820 = arith.addf %816, %819 : vector<7x128xf32>
    %821 = vector.broadcast %805 : vector<1x128xf32> to vector<7x128xf32>
    %822 = arith.subf %725, %821 : vector<7x128xf32>
    %823 = arith.mulf %822, %822 : vector<7x128xf32>
    %824 = arith.addf %820, %823 : vector<7x128xf32>
    %825 = vector.broadcast %805 : vector<1x128xf32> to vector<7x128xf32>
    %826 = arith.subf %770, %825 : vector<7x128xf32>
    %827 = arith.mulf %826, %826 : vector<7x128xf32>
    %828 = arith.addf %824, %827 : vector<7x128xf32>
    %829 = vector.broadcast %805 : vector<1x128xf32> to vector<7x128xf32>
    %830 = arith.subf %795, %829 : vector<7x128xf32>
    %831 = arith.mulf %830, %830 : vector<7x128xf32>
    %832 = arith.addf %828, %831 : vector<7x128xf32>
    %cst_29 = arith.constant dense<0.000000e+00> : vector<128xf32>
    %833 = vector.multi_reduction <add>, %832, %cst_29 [0] : vector<7x128xf32> to vector<128xf32>
    %834 = vector.shape_cast %833 : vector<128xf32> to vector<1x128xf32>
    %cst_30 = arith.constant 0.0204081628 : f32
    %835 = vector.broadcast %cst_30 : f32 to vector<1x128xf32>
    %836 = arith.mulf %834, %835 : vector<1x128xf32>
    %cst_31 = arith.constant 9.99999974E-6 : f32
    %837 = vector.broadcast %cst_31 : f32 to vector<1x128xf32>
    %838 = arith.addf %836, %837 : vector<1x128xf32>
    %839 = math.rsqrt %838 : vector<1x128xf32>
    %840 = arith.mulf %7, %839 : vector<1x128xf32>
    %841 = arith.mulf %805, %840 : vector<1x128xf32>
    %842 = arith.subf %8, %841 : vector<1x128xf32>
    %843 = vector.broadcast %840 : vector<1x128xf32> to vector<7x128xf32>
    %844 = arith.mulf %367, %843 : vector<7x128xf32>
    %845 = vector.broadcast %842 : vector<1x128xf32> to vector<7x128xf32>
    %846 = arith.addf %844, %845 : vector<7x128xf32>
    %847 = vector.broadcast %840 : vector<1x128xf32> to vector<7x128xf32>
    %848 = arith.mulf %471, %847 : vector<7x128xf32>
    %849 = vector.broadcast %842 : vector<1x128xf32> to vector<7x128xf32>
    %850 = arith.addf %848, %849 : vector<7x128xf32>
    %851 = vector.broadcast %840 : vector<1x128xf32> to vector<7x128xf32>
    %852 = arith.mulf %575, %851 : vector<7x128xf32>
    %853 = vector.broadcast %842 : vector<1x128xf32> to vector<7x128xf32>
    %854 = arith.addf %852, %853 : vector<7x128xf32>
    %855 = vector.broadcast %840 : vector<1x128xf32> to vector<7x128xf32>
    %856 = arith.mulf %660, %855 : vector<7x128xf32>
    %857 = vector.broadcast %842 : vector<1x128xf32> to vector<7x128xf32>
    %858 = arith.addf %856, %857 : vector<7x128xf32>
    %859 = vector.broadcast %840 : vector<1x128xf32> to vector<7x128xf32>
    %860 = arith.mulf %725, %859 : vector<7x128xf32>
    %861 = vector.broadcast %842 : vector<1x128xf32> to vector<7x128xf32>
    %862 = arith.addf %860, %861 : vector<7x128xf32>
    %863 = vector.broadcast %840 : vector<1x128xf32> to vector<7x128xf32>
    %864 = arith.mulf %770, %863 : vector<7x128xf32>
    %865 = vector.broadcast %842 : vector<1x128xf32> to vector<7x128xf32>
    %866 = arith.addf %864, %865 : vector<7x128xf32>
    %867 = vector.broadcast %840 : vector<1x128xf32> to vector<7x128xf32>
    %868 = arith.mulf %795, %867 : vector<7x128xf32>
    %869 = vector.broadcast %842 : vector<1x128xf32> to vector<7x128xf32>
    %870 = arith.addf %868, %869 : vector<7x128xf32>
    %cst_32 = arith.constant 0.000000e+00 : f32
    %871 = vector.broadcast %cst_32 : f32 to vector<79x128xf32>
    %872 = tpu.concatenate %846, %850, %854, %858, %862, %866, %870, %871 in 0 : vector<7x128xf32>, vector<7x128xf32>, vector<7x128xf32>, vector<7x128xf32>, vector<7x128xf32>, vector<7x128xf32>, vector<7x128xf32>, vector<79x128xf32> -> vector<128x128xf32>
    %873 = tpu.transpose %872, [1, 0] : vector<128x128xf32> -> vector<128x128xf32>
    %874 = vector.extract_strided_slice %873 {offsets = [0, 0], sizes = [128, 49], strides = [1, 1]} : vector<128x128xf32> to vector<128x49xf32>
    %c0_33 = arith.constant 0 : index
    %c0_34 = arith.constant 0 : index
    %875 = vector.load %arg10[%c0_33, %c0_34] : memref<384x49xf32, #tpu.memory_space<vmem>>, vector<128x49xf32>
    tpu.vector_store %arg10[%c0_33, %c0_34], %874 {strides = array<i32>} : memref<384x49xf32, #tpu.memory_space<vmem>>, vector<128x49xf32>,
    %c128 = arith.constant 128 : index
    %c0_35 = arith.constant 0 : index
    %876 = vector.load %arg1[%c128, %c0_35] : memref<384x49xf32, #tpu.memory_space<vmem>>, vector<128x49xf32>
    %c128_36 = arith.constant 128 : index
    %c0_37 = arith.constant 0 : index
    %877 = vector.load %arg2[%c128_36, %c0_37] : memref<384x25xf32, #tpu.memory_space<vmem>>, vector<128x25xf32>
    %c0_38 = arith.constant 0 : index
    %c128_39 = arith.constant 128 : index
    %878 = vector.load %arg3[%c0_38, %c128_39] : memref<1x384xf32, #tpu.memory_space<vmem>>, vector<1x128xf32>
    %c0_40 = arith.constant 0 : index
    %c128_41 = arith.constant 128 : index
    %879 = vector.load %arg4[%c0_40, %c128_41] : memref<1x384xf32, #tpu.memory_space<vmem>>, vector<1x128xf32>
    %c0_42 = arith.constant 0 : index
    %c128_43 = arith.constant 128 : index
    %880 = vector.load %arg5[%c0_42, %c128_43] : memref<1x384xf32, #tpu.memory_space<vmem>>, vector<1x128xf32>
    %c0_44 = arith.constant 0 : index
    %c128_45 = arith.constant 128 : index
    %881 = vector.load %arg6[%c0_44, %c128_45] : memref<1x384xf32, #tpu.memory_space<vmem>>, vector<1x128xf32>
    %cst_46 = arith.constant 0.000000e+00 : f32
    %882 = vector.broadcast %cst_46 : f32 to vector<128x54xf32>
    %883 = tpu.concatenate %876, %877, %882 in 1 : vector<128x49xf32>, vector<128x25xf32>, vector<128x54xf32> -> vector<128x128xf32>
    %884 = arith.truncf %883 : vector<128x128xf32> to vector<128x128xbf16>
    %885 = arith.extf %884 : vector<128x128xbf16> to vector<128x128xf32>
    %886 = arith.subf %883, %885 : vector<128x128xf32>
    %887 = arith.truncf %886 : vector<128x128xf32> to vector<128x128xbf16>
    %cst_47 = arith.constant dense<0.000000e+00> : vector<128x128xf32>
    %888 = tpu.matmul %0, %884, %cst_47 {dimension_numbers = #tpu.dot_dimension_numbers<[1], [1], [0], [0], [0, 0, 1, 0], [], []>} : vector<128x128xbf16>, vector<128x128xbf16>, vector<128x128xf32> -> vector<128x128xf32>
    %cst_48 = arith.constant dense<0.000000e+00> : vector<128x128xf32>
    %889 = tpu.matmul %0, %887, %cst_48 {dimension_numbers = #tpu.dot_dimension_numbers<[1], [1], [0], [0], [0, 0, 1, 0], [], []>} : vector<128x128xbf16>, vector<128x128xbf16>, vector<128x128xf32> -> vector<128x128xf32>
    %890 = arith.addf %888, %889 : vector<128x128xf32>
    %cst_49 = arith.constant dense<0.000000e+00> : vector<32x128xf32>
    %891 = tpu.matmul %1, %884, %cst_49 {dimension_numbers = #tpu.dot_dimension_numbers<[1], [1], [0], [0], [0, 0, 1, 0], [], []>} : vector<32x128xbf16>, vector<128x128xbf16>, vector<32x128xf32> -> vector<32x128xf32>
    %cst_50 = arith.constant dense<0.000000e+00> : vector<32x128xf32>
    %892 = tpu.matmul %1, %887, %cst_50 {dimension_numbers = #tpu.dot_dimension_numbers<[1], [1], [0], [0], [0, 0, 1, 0], [], []>} : vector<32x128xbf16>, vector<128x128xbf16>, vector<32x128xf32> -> vector<32x128xf32>
    %893 = arith.addf %891, %892 : vector<32x128xf32>
    %cst_51 = arith.constant dense<0.000000e+00> : vector<128xf32>
    %894 = vector.multi_reduction <add>, %890, %cst_51 [0] : vector<128x128xf32> to vector<128xf32>
    %895 = vector.shape_cast %894 : vector<128xf32> to vector<1x128xf32>
    %cst_52 = arith.constant 0.0204081628 : f32
    %896 = vector.broadcast %cst_52 : f32 to vector<1x128xf32>
    %897 = arith.mulf %895, %896 : vector<1x128xf32>
    %898 = vector.broadcast %897 : vector<1x128xf32> to vector<128x128xf32>
    %899 = arith.subf %890, %898 : vector<128x128xf32>
    %900 = vector.broadcast %2 : vector<128x1xf32> to vector<128x128xf32>
    %901 = arith.mulf %899, %900 : vector<128x128xf32>
    %902 = arith.mulf %901, %901 : vector<128x128xf32>
    %cst_53 = arith.constant dense<0.000000e+00> : vector<128xf32>
    %903 = vector.multi_reduction <add>, %902, %cst_53 [0] : vector<128x128xf32> to vector<128xf32>
    %904 = vector.shape_cast %903 : vector<128xf32> to vector<1x128xf32>
    %cst_54 = arith.constant 0.0204081628 : f32
    %905 = vector.broadcast %cst_54 : f32 to vector<1x128xf32>
    %906 = arith.mulf %904, %905 : vector<1x128xf32>
    %cst_55 = arith.constant 9.99999974E-6 : f32
    %907 = vector.broadcast %cst_55 : f32 to vector<1x128xf32>
    %908 = arith.addf %906, %907 : vector<1x128xf32>
    %909 = math.rsqrt %908 : vector<1x128xf32>
    %910 = arith.mulf %878, %909 : vector<1x128xf32>
    %911 = arith.mulf %897, %910 : vector<1x128xf32>
    %912 = arith.subf %879, %911 : vector<1x128xf32>
    %913 = vector.broadcast %910 : vector<1x128xf32> to vector<128x128xf32>
    %914 = arith.mulf %890, %913 : vector<128x128xf32>
    %915 = vector.broadcast %912 : vector<1x128xf32> to vector<128x128xf32>
    %916 = arith.addf %914, %915 : vector<128x128xf32>
    %cst_56 = arith.constant 0.000000e+00 : f32
    %917 = vector.broadcast %cst_56 : f32 to vector<128x128xf32>
    %918 = arith.maximumf %916, %917 : vector<128x128xf32>
    %919 = vector.broadcast %2 : vector<128x1xf32> to vector<128x128xf32>
    %920 = arith.mulf %918, %919 : vector<128x128xf32>
    %921 = vector.extract_strided_slice %920 {offsets = [0, 0], sizes = [7, 128], strides = [1, 1]} : vector<128x128xf32> to vector<7x128xf32>
    %922 = vector.extract_strided_slice %893 {offsets = [0, 0], sizes = [1, 128], strides = [1, 1]} : vector<32x128xf32> to vector<1x128xf32>
    %923 = vector.broadcast %922 : vector<1x128xf32> to vector<7x128xf32>
    %924 = arith.mulf %921, %923 : vector<7x128xf32>
    %925 = vector.extract_strided_slice %920 {offsets = [1, 0], sizes = [7, 128], strides = [1, 1]} : vector<128x128xf32> to vector<7x128xf32>
    %926 = vector.extract_strided_slice %893 {offsets = [1, 0], sizes = [1, 128], strides = [1, 1]} : vector<32x128xf32> to vector<1x128xf32>
    %927 = vector.broadcast %926 : vector<1x128xf32> to vector<7x128xf32>
    %928 = arith.mulf %925, %927 : vector<7x128xf32>
    %929 = arith.addf %924, %928 : vector<7x128xf32>
    %930 = vector.extract_strided_slice %920 {offsets = [2, 0], sizes = [7, 128], strides = [1, 1]} : vector<128x128xf32> to vector<7x128xf32>
    %931 = vector.extract_strided_slice %893 {offsets = [2, 0], sizes = [1, 128], strides = [1, 1]} : vector<32x128xf32> to vector<1x128xf32>
    %932 = vector.broadcast %931 : vector<1x128xf32> to vector<7x128xf32>
    %933 = arith.mulf %930, %932 : vector<7x128xf32>
    %934 = arith.addf %929, %933 : vector<7x128xf32>
    %935 = vector.extract_strided_slice %920 {offsets = [3, 0], sizes = [7, 128], strides = [1, 1]} : vector<128x128xf32> to vector<7x128xf32>
    %936 = vector.extract_strided_slice %893 {offsets = [3, 0], sizes = [1, 128], strides = [1, 1]} : vector<32x128xf32> to vector<1x128xf32>
    %937 = vector.broadcast %936 : vector<1x128xf32> to vector<7x128xf32>
    %938 = arith.mulf %935, %937 : vector<7x128xf32>
    %939 = arith.addf %934, %938 : vector<7x128xf32>
    %940 = vector.extract_strided_slice %920 {offsets = [4, 0], sizes = [7, 128], strides = [1, 1]} : vector<128x128xf32> to vector<7x128xf32>
    %941 = vector.extract_strided_slice %893 {offsets = [4, 0], sizes = [1, 128], strides = [1, 1]} : vector<32x128xf32> to vector<1x128xf32>
    %942 = vector.broadcast %941 : vector<1x128xf32> to vector<7x128xf32>
    %943 = arith.mulf %940, %942 : vector<7x128xf32>
    %944 = arith.addf %939, %943 : vector<7x128xf32>
    %945 = vector.extract_strided_slice %920 {offsets = [11, 0], sizes = [7, 128], strides = [1, 1]} : vector<128x128xf32> to vector<7x128xf32>
    %946 = vector.extract_strided_slice %893 {offsets = [0, 0], sizes = [1, 128], strides = [1, 1]} : vector<32x128xf32> to vector<1x128xf32>
    %947 = vector.broadcast %946 : vector<1x128xf32> to vector<7x128xf32>
    %948 = arith.mulf %945, %947 : vector<7x128xf32>
    %949 = vector.extract_strided_slice %893 {offsets = [5, 0], sizes = [1, 128], strides = [1, 1]} : vector<32x128xf32> to vector<1x128xf32>
    %950 = vector.broadcast %949 : vector<1x128xf32> to vector<7x128xf32>
    %951 = arith.mulf %945, %950 : vector<7x128xf32>
    %952 = arith.addf %944, %951 : vector<7x128xf32>
    %953 = vector.extract_strided_slice %920 {offsets = [12, 0], sizes = [7, 128], strides = [1, 1]} : vector<128x128xf32> to vector<7x128xf32>
    %954 = vector.extract_strided_slice %893 {offsets = [1, 0], sizes = [1, 128], strides = [1, 1]} : vector<32x128xf32> to vector<1x128xf32>
    %955 = vector.broadcast %954 : vector<1x128xf32> to vector<7x128xf32>
    %956 = arith.mulf %953, %955 : vector<7x128xf32>
    %957 = arith.addf %948, %956 : vector<7x128xf32>
    %958 = vector.extract_strided_slice %893 {offsets = [6, 0], sizes = [1, 128], strides = [1, 1]} : vector<32x128xf32> to vector<1x128xf32>
    %959 = vector.broadcast %958 : vector<1x128xf32> to vector<7x128xf32>
    %960 = arith.mulf %953, %959 : vector<7x128xf32>
    %961 = arith.addf %952, %960 : vector<7x128xf32>
    %962 = vector.extract_strided_slice %920 {offsets = [13, 0], sizes = [7, 128], strides = [1, 1]} : vector<128x128xf32> to vector<7x128xf32>
    %963 = vector.extract_strided_slice %893 {offsets = [2, 0], sizes = [1, 128], strides = [1, 1]} : vector<32x128xf32> to vector<1x128xf32>
    %964 = vector.broadcast %963 : vector<1x128xf32> to vector<7x128xf32>
    %965 = arith.mulf %962, %964 : vector<7x128xf32>
    %966 = arith.addf %957, %965 : vector<7x128xf32>
    %967 = vector.extract_strided_slice %893 {offsets = [7, 0], sizes = [1, 128], strides = [1, 1]} : vector<32x128xf32> to vector<1x128xf32>
    %968 = vector.broadcast %967 : vector<1x128xf32> to vector<7x128xf32>
    %969 = arith.mulf %962, %968 : vector<7x128xf32>
    %970 = arith.addf %961, %969 : vector<7x128xf32>
    %971 = vector.extract_strided_slice %920 {offsets = [14, 0], sizes = [7, 128], strides = [1, 1]} : vector<128x128xf32> to vector<7x128xf32>
    %972 = vector.extract_strided_slice %893 {offsets = [3, 0], sizes = [1, 128], strides = [1, 1]} : vector<32x128xf32> to vector<1x128xf32>
    %973 = vector.broadcast %972 : vector<1x128xf32> to vector<7x128xf32>
    %974 = arith.mulf %971, %973 : vector<7x128xf32>
    %975 = arith.addf %966, %974 : vector<7x128xf32>
    %976 = vector.extract_strided_slice %893 {offsets = [8, 0], sizes = [1, 128], strides = [1, 1]} : vector<32x128xf32> to vector<1x128xf32>
    %977 = vector.broadcast %976 : vector<1x128xf32> to vector<7x128xf32>
    %978 = arith.mulf %971, %977 : vector<7x128xf32>
    %979 = arith.addf %970, %978 : vector<7x128xf32>
    %980 = vector.extract_strided_slice %920 {offsets = [15, 0], sizes = [7, 128], strides = [1, 1]} : vector<128x128xf32> to vector<7x128xf32>
    %981 = vector.extract_strided_slice %893 {offsets = [4, 0], sizes = [1, 128], strides = [1, 1]} : vector<32x128xf32> to vector<1x128xf32>
    %982 = vector.broadcast %981 : vector<1x128xf32> to vector<7x128xf32>
    %983 = arith.mulf %980, %982 : vector<7x128xf32>
    %984 = arith.addf %975, %983 : vector<7x128xf32>
    %985 = vector.extract_strided_slice %893 {offsets = [9, 0], sizes = [1, 128], strides = [1, 1]} : vector<32x128xf32> to vector<1x128xf32>
    %986 = vector.broadcast %985 : vector<1x128xf32> to vector<7x128xf32>
    %987 = arith.mulf %980, %986 : vector<7x128xf32>
    %988 = arith.addf %979, %987 : vector<7x128xf32>
    %989 = vector.extract_strided_slice %920 {offsets = [22, 0], sizes = [7, 128], strides = [1, 1]} : vector<128x128xf32> to vector<7x128xf32>
    %990 = vector.extract_strided_slice %893 {offsets = [0, 0], sizes = [1, 128], strides = [1, 1]} : vector<32x128xf32> to vector<1x128xf32>
    %991 = vector.broadcast %990 : vector<1x128xf32> to vector<7x128xf32>
    %992 = arith.mulf %989, %991 : vector<7x128xf32>
    %993 = vector.extract_strided_slice %893 {offsets = [5, 0], sizes = [1, 128], strides = [1, 1]} : vector<32x128xf32> to vector<1x128xf32>
    %994 = vector.broadcast %993 : vector<1x128xf32> to vector<7x128xf32>
    %995 = arith.mulf %989, %994 : vector<7x128xf32>
    %996 = arith.addf %984, %995 : vector<7x128xf32>
    %997 = vector.extract_strided_slice %893 {offsets = [10, 0], sizes = [1, 128], strides = [1, 1]} : vector<32x128xf32> to vector<1x128xf32>
    %998 = vector.broadcast %997 : vector<1x128xf32> to vector<7x128xf32>
    %999 = arith.mulf %989, %998 : vector<7x128xf32>
    %1000 = arith.addf %988, %999 : vector<7x128xf32>
    %1001 = vector.extract_strided_slice %920 {offsets = [23, 0], sizes = [7, 128], strides = [1, 1]} : vector<128x128xf32> to vector<7x128xf32>
    %1002 = vector.extract_strided_slice %893 {offsets = [1, 0], sizes = [1, 128], strides = [1, 1]} : vector<32x128xf32> to vector<1x128xf32>
    %1003 = vector.broadcast %1002 : vector<1x128xf32> to vector<7x128xf32>
    %1004 = arith.mulf %1001, %1003 : vector<7x128xf32>
    %1005 = arith.addf %992, %1004 : vector<7x128xf32>
    %1006 = vector.extract_strided_slice %893 {offsets = [6, 0], sizes = [1, 128], strides = [1, 1]} : vector<32x128xf32> to vector<1x128xf32>
    %1007 = vector.broadcast %1006 : vector<1x128xf32> to vector<7x128xf32>
    %1008 = arith.mulf %1001, %1007 : vector<7x128xf32>
    %1009 = arith.addf %996, %1008 : vector<7x128xf32>
    %1010 = vector.extract_strided_slice %893 {offsets = [11, 0], sizes = [1, 128], strides = [1, 1]} : vector<32x128xf32> to vector<1x128xf32>
    %1011 = vector.broadcast %1010 : vector<1x128xf32> to vector<7x128xf32>
    %1012 = arith.mulf %1001, %1011 : vector<7x128xf32>
    %1013 = arith.addf %1000, %1012 : vector<7x128xf32>
    %1014 = vector.extract_strided_slice %920 {offsets = [24, 0], sizes = [7, 128], strides = [1, 1]} : vector<128x128xf32> to vector<7x128xf32>
    %1015 = vector.extract_strided_slice %893 {offsets = [2, 0], sizes = [1, 128], strides = [1, 1]} : vector<32x128xf32> to vector<1x128xf32>
    %1016 = vector.broadcast %1015 : vector<1x128xf32> to vector<7x128xf32>
    %1017 = arith.mulf %1014, %1016 : vector<7x128xf32>
    %1018 = arith.addf %1005, %1017 : vector<7x128xf32>
    %1019 = vector.extract_strided_slice %893 {offsets = [7, 0], sizes = [1, 128], strides = [1, 1]} : vector<32x128xf32> to vector<1x128xf32>
    %1020 = vector.broadcast %1019 : vector<1x128xf32> to vector<7x128xf32>
    %1021 = arith.mulf %1014, %1020 : vector<7x128xf32>
    %1022 = arith.addf %1009, %1021 : vector<7x128xf32>
    %1023 = vector.extract_strided_slice %893 {offsets = [12, 0], sizes = [1, 128], strides = [1, 1]} : vector<32x128xf32> to vector<1x128xf32>
    %1024 = vector.broadcast %1023 : vector<1x128xf32> to vector<7x128xf32>
    %1025 = arith.mulf %1014, %1024 : vector<7x128xf32>
    %1026 = arith.addf %1013, %1025 : vector<7x128xf32>
    %1027 = vector.extract_strided_slice %920 {offsets = [25, 0], sizes = [7, 128], strides = [1, 1]} : vector<128x128xf32> to vector<7x128xf32>
    %1028 = vector.extract_strided_slice %893 {offsets = [3, 0], sizes = [1, 128], strides = [1, 1]} : vector<32x128xf32> to vector<1x128xf32>
    %1029 = vector.broadcast %1028 : vector<1x128xf32> to vector<7x128xf32>
    %1030 = arith.mulf %1027, %1029 : vector<7x128xf32>
    %1031 = arith.addf %1018, %1030 : vector<7x128xf32>
    %1032 = vector.extract_strided_slice %893 {offsets = [8, 0], sizes = [1, 128], strides = [1, 1]} : vector<32x128xf32> to vector<1x128xf32>
    %1033 = vector.broadcast %1032 : vector<1x128xf32> to vector<7x128xf32>
    %1034 = arith.mulf %1027, %1033 : vector<7x128xf32>
    %1035 = arith.addf %1022, %1034 : vector<7x128xf32>
    %1036 = vector.extract_strided_slice %893 {offsets = [13, 0], sizes = [1, 128], strides = [1, 1]} : vector<32x128xf32> to vector<1x128xf32>
    %1037 = vector.broadcast %1036 : vector<1x128xf32> to vector<7x128xf32>
    %1038 = arith.mulf %1027, %1037 : vector<7x128xf32>
    %1039 = arith.addf %1026, %1038 : vector<7x128xf32>
    %1040 = vector.extract_strided_slice %920 {offsets = [26, 0], sizes = [7, 128], strides = [1, 1]} : vector<128x128xf32> to vector<7x128xf32>
    %1041 = vector.extract_strided_slice %893 {offsets = [4, 0], sizes = [1, 128], strides = [1, 1]} : vector<32x128xf32> to vector<1x128xf32>
    %1042 = vector.broadcast %1041 : vector<1x128xf32> to vector<7x128xf32>
    %1043 = arith.mulf %1040, %1042 : vector<7x128xf32>
    %1044 = arith.addf %1031, %1043 : vector<7x128xf32>
    %1045 = vector.extract_strided_slice %893 {offsets = [9, 0], sizes = [1, 128], strides = [1, 1]} : vector<32x128xf32> to vector<1x128xf32>
    %1046 = vector.broadcast %1045 : vector<1x128xf32> to vector<7x128xf32>
    %1047 = arith.mulf %1040, %1046 : vector<7x128xf32>
    %1048 = arith.addf %1035, %1047 : vector<7x128xf32>
    %1049 = vector.extract_strided_slice %893 {offsets = [14, 0], sizes = [1, 128], strides = [1, 1]} : vector<32x128xf32> to vector<1x128xf32>
    %1050 = vector.broadcast %1049 : vector<1x128xf32> to vector<7x128xf32>
    %1051 = arith.mulf %1040, %1050 : vector<7x128xf32>
    %1052 = arith.addf %1039, %1051 : vector<7x128xf32>
    %1053 = vector.extract_strided_slice %920 {offsets = [33, 0], sizes = [7, 128], strides = [1, 1]} : vector<128x128xf32> to vector<7x128xf32>
    %1054 = vector.extract_strided_slice %893 {offsets = [0, 0], sizes = [1, 128], strides = [1, 1]} : vector<32x128xf32> to vector<1x128xf32>
    %1055 = vector.broadcast %1054 : vector<1x128xf32> to vector<7x128xf32>
    %1056 = arith.mulf %1053, %1055 : vector<7x128xf32>
    %1057 = vector.extract_strided_slice %893 {offsets = [5, 0], sizes = [1, 128], strides = [1, 1]} : vector<32x128xf32> to vector<1x128xf32>
    %1058 = vector.broadcast %1057 : vector<1x128xf32> to vector<7x128xf32>
    %1059 = arith.mulf %1053, %1058 : vector<7x128xf32>
    %1060 = arith.addf %1044, %1059 : vector<7x128xf32>
    %1061 = vector.extract_strided_slice %893 {offsets = [10, 0], sizes = [1, 128], strides = [1, 1]} : vector<32x128xf32> to vector<1x128xf32>
    %1062 = vector.broadcast %1061 : vector<1x128xf32> to vector<7x128xf32>
    %1063 = arith.mulf %1053, %1062 : vector<7x128xf32>
    %1064 = arith.addf %1048, %1063 : vector<7x128xf32>
    %1065 = vector.extract_strided_slice %893 {offsets = [15, 0], sizes = [1, 128], strides = [1, 1]} : vector<32x128xf32> to vector<1x128xf32>
    %1066 = vector.broadcast %1065 : vector<1x128xf32> to vector<7x128xf32>
    %1067 = arith.mulf %1053, %1066 : vector<7x128xf32>
    %1068 = arith.addf %1052, %1067 : vector<7x128xf32>
    %1069 = vector.extract_strided_slice %920 {offsets = [34, 0], sizes = [7, 128], strides = [1, 1]} : vector<128x128xf32> to vector<7x128xf32>
    %1070 = vector.extract_strided_slice %893 {offsets = [1, 0], sizes = [1, 128], strides = [1, 1]} : vector<32x128xf32> to vector<1x128xf32>
    %1071 = vector.broadcast %1070 : vector<1x128xf32> to vector<7x128xf32>
    %1072 = arith.mulf %1069, %1071 : vector<7x128xf32>
    %1073 = arith.addf %1056, %1072 : vector<7x128xf32>
    %1074 = vector.extract_strided_slice %893 {offsets = [6, 0], sizes = [1, 128], strides = [1, 1]} : vector<32x128xf32> to vector<1x128xf32>
    %1075 = vector.broadcast %1074 : vector<1x128xf32> to vector<7x128xf32>
    %1076 = arith.mulf %1069, %1075 : vector<7x128xf32>
    %1077 = arith.addf %1060, %1076 : vector<7x128xf32>
    %1078 = vector.extract_strided_slice %893 {offsets = [11, 0], sizes = [1, 128], strides = [1, 1]} : vector<32x128xf32> to vector<1x128xf32>
    %1079 = vector.broadcast %1078 : vector<1x128xf32> to vector<7x128xf32>
    %1080 = arith.mulf %1069, %1079 : vector<7x128xf32>
    %1081 = arith.addf %1064, %1080 : vector<7x128xf32>
    %1082 = vector.extract_strided_slice %893 {offsets = [16, 0], sizes = [1, 128], strides = [1, 1]} : vector<32x128xf32> to vector<1x128xf32>
    %1083 = vector.broadcast %1082 : vector<1x128xf32> to vector<7x128xf32>
    %1084 = arith.mulf %1069, %1083 : vector<7x128xf32>
    %1085 = arith.addf %1068, %1084 : vector<7x128xf32>
    %1086 = vector.extract_strided_slice %920 {offsets = [35, 0], sizes = [7, 128], strides = [1, 1]} : vector<128x128xf32> to vector<7x128xf32>
    %1087 = vector.extract_strided_slice %893 {offsets = [2, 0], sizes = [1, 128], strides = [1, 1]} : vector<32x128xf32> to vector<1x128xf32>
    %1088 = vector.broadcast %1087 : vector<1x128xf32> to vector<7x128xf32>
    %1089 = arith.mulf %1086, %1088 : vector<7x128xf32>
    %1090 = arith.addf %1073, %1089 : vector<7x128xf32>
    %1091 = vector.extract_strided_slice %893 {offsets = [7, 0], sizes = [1, 128], strides = [1, 1]} : vector<32x128xf32> to vector<1x128xf32>
    %1092 = vector.broadcast %1091 : vector<1x128xf32> to vector<7x128xf32>
    %1093 = arith.mulf %1086, %1092 : vector<7x128xf32>
    %1094 = arith.addf %1077, %1093 : vector<7x128xf32>
    %1095 = vector.extract_strided_slice %893 {offsets = [12, 0], sizes = [1, 128], strides = [1, 1]} : vector<32x128xf32> to vector<1x128xf32>
    %1096 = vector.broadcast %1095 : vector<1x128xf32> to vector<7x128xf32>
    %1097 = arith.mulf %1086, %1096 : vector<7x128xf32>
    %1098 = arith.addf %1081, %1097 : vector<7x128xf32>
    %1099 = vector.extract_strided_slice %893 {offsets = [17, 0], sizes = [1, 128], strides = [1, 1]} : vector<32x128xf32> to vector<1x128xf32>
    %1100 = vector.broadcast %1099 : vector<1x128xf32> to vector<7x128xf32>
    %1101 = arith.mulf %1086, %1100 : vector<7x128xf32>
    %1102 = arith.addf %1085, %1101 : vector<7x128xf32>
    %1103 = vector.extract_strided_slice %920 {offsets = [36, 0], sizes = [7, 128], strides = [1, 1]} : vector<128x128xf32> to vector<7x128xf32>
    %1104 = vector.extract_strided_slice %893 {offsets = [3, 0], sizes = [1, 128], strides = [1, 1]} : vector<32x128xf32> to vector<1x128xf32>
    %1105 = vector.broadcast %1104 : vector<1x128xf32> to vector<7x128xf32>
    %1106 = arith.mulf %1103, %1105 : vector<7x128xf32>
    %1107 = arith.addf %1090, %1106 : vector<7x128xf32>
    %1108 = vector.extract_strided_slice %893 {offsets = [8, 0], sizes = [1, 128], strides = [1, 1]} : vector<32x128xf32> to vector<1x128xf32>
    %1109 = vector.broadcast %1108 : vector<1x128xf32> to vector<7x128xf32>
    %1110 = arith.mulf %1103, %1109 : vector<7x128xf32>
    %1111 = arith.addf %1094, %1110 : vector<7x128xf32>
    %1112 = vector.extract_strided_slice %893 {offsets = [13, 0], sizes = [1, 128], strides = [1, 1]} : vector<32x128xf32> to vector<1x128xf32>
    %1113 = vector.broadcast %1112 : vector<1x128xf32> to vector<7x128xf32>
    %1114 = arith.mulf %1103, %1113 : vector<7x128xf32>
    %1115 = arith.addf %1098, %1114 : vector<7x128xf32>
    %1116 = vector.extract_strided_slice %893 {offsets = [18, 0], sizes = [1, 128], strides = [1, 1]} : vector<32x128xf32> to vector<1x128xf32>
    %1117 = vector.broadcast %1116 : vector<1x128xf32> to vector<7x128xf32>
    %1118 = arith.mulf %1103, %1117 : vector<7x128xf32>
    %1119 = arith.addf %1102, %1118 : vector<7x128xf32>
    %1120 = vector.extract_strided_slice %920 {offsets = [37, 0], sizes = [7, 128], strides = [1, 1]} : vector<128x128xf32> to vector<7x128xf32>
    %1121 = vector.extract_strided_slice %893 {offsets = [4, 0], sizes = [1, 128], strides = [1, 1]} : vector<32x128xf32> to vector<1x128xf32>
    %1122 = vector.broadcast %1121 : vector<1x128xf32> to vector<7x128xf32>
    %1123 = arith.mulf %1120, %1122 : vector<7x128xf32>
    %1124 = arith.addf %1107, %1123 : vector<7x128xf32>
    %1125 = vector.extract_strided_slice %893 {offsets = [9, 0], sizes = [1, 128], strides = [1, 1]} : vector<32x128xf32> to vector<1x128xf32>
    %1126 = vector.broadcast %1125 : vector<1x128xf32> to vector<7x128xf32>
    %1127 = arith.mulf %1120, %1126 : vector<7x128xf32>
    %1128 = arith.addf %1111, %1127 : vector<7x128xf32>
    %1129 = vector.extract_strided_slice %893 {offsets = [14, 0], sizes = [1, 128], strides = [1, 1]} : vector<32x128xf32> to vector<1x128xf32>
    %1130 = vector.broadcast %1129 : vector<1x128xf32> to vector<7x128xf32>
    %1131 = arith.mulf %1120, %1130 : vector<7x128xf32>
    %1132 = arith.addf %1115, %1131 : vector<7x128xf32>
    %1133 = vector.extract_strided_slice %893 {offsets = [19, 0], sizes = [1, 128], strides = [1, 1]} : vector<32x128xf32> to vector<1x128xf32>
    %1134 = vector.broadcast %1133 : vector<1x128xf32> to vector<7x128xf32>
    %1135 = arith.mulf %1120, %1134 : vector<7x128xf32>
    %1136 = arith.addf %1119, %1135 : vector<7x128xf32>
    %1137 = vector.extract_strided_slice %920 {offsets = [44, 0], sizes = [7, 128], strides = [1, 1]} : vector<128x128xf32> to vector<7x128xf32>
    %1138 = vector.extract_strided_slice %893 {offsets = [0, 0], sizes = [1, 128], strides = [1, 1]} : vector<32x128xf32> to vector<1x128xf32>
    %1139 = vector.broadcast %1138 : vector<1x128xf32> to vector<7x128xf32>
    %1140 = arith.mulf %1137, %1139 : vector<7x128xf32>
    %1141 = vector.extract_strided_slice %893 {offsets = [5, 0], sizes = [1, 128], strides = [1, 1]} : vector<32x128xf32> to vector<1x128xf32>
    %1142 = vector.broadcast %1141 : vector<1x128xf32> to vector<7x128xf32>
    %1143 = arith.mulf %1137, %1142 : vector<7x128xf32>
    %1144 = arith.addf %1124, %1143 : vector<7x128xf32>
    %1145 = vector.extract_strided_slice %893 {offsets = [10, 0], sizes = [1, 128], strides = [1, 1]} : vector<32x128xf32> to vector<1x128xf32>
    %1146 = vector.broadcast %1145 : vector<1x128xf32> to vector<7x128xf32>
    %1147 = arith.mulf %1137, %1146 : vector<7x128xf32>
    %1148 = arith.addf %1128, %1147 : vector<7x128xf32>
    %1149 = vector.extract_strided_slice %893 {offsets = [15, 0], sizes = [1, 128], strides = [1, 1]} : vector<32x128xf32> to vector<1x128xf32>
    %1150 = vector.broadcast %1149 : vector<1x128xf32> to vector<7x128xf32>
    %1151 = arith.mulf %1137, %1150 : vector<7x128xf32>
    %1152 = arith.addf %1132, %1151 : vector<7x128xf32>
    %1153 = vector.extract_strided_slice %893 {offsets = [20, 0], sizes = [1, 128], strides = [1, 1]} : vector<32x128xf32> to vector<1x128xf32>
    %1154 = vector.broadcast %1153 : vector<1x128xf32> to vector<7x128xf32>
    %1155 = arith.mulf %1137, %1154 : vector<7x128xf32>
    %1156 = arith.addf %1136, %1155 : vector<7x128xf32>
    %1157 = vector.extract_strided_slice %920 {offsets = [45, 0], sizes = [7, 128], strides = [1, 1]} : vector<128x128xf32> to vector<7x128xf32>
    %1158 = vector.extract_strided_slice %893 {offsets = [1, 0], sizes = [1, 128], strides = [1, 1]} : vector<32x128xf32> to vector<1x128xf32>
    %1159 = vector.broadcast %1158 : vector<1x128xf32> to vector<7x128xf32>
    %1160 = arith.mulf %1157, %1159 : vector<7x128xf32>
    %1161 = arith.addf %1140, %1160 : vector<7x128xf32>
    %1162 = vector.extract_strided_slice %893 {offsets = [6, 0], sizes = [1, 128], strides = [1, 1]} : vector<32x128xf32> to vector<1x128xf32>
    %1163 = vector.broadcast %1162 : vector<1x128xf32> to vector<7x128xf32>
    %1164 = arith.mulf %1157, %1163 : vector<7x128xf32>
    %1165 = arith.addf %1144, %1164 : vector<7x128xf32>
    %1166 = vector.extract_strided_slice %893 {offsets = [11, 0], sizes = [1, 128], strides = [1, 1]} : vector<32x128xf32> to vector<1x128xf32>
    %1167 = vector.broadcast %1166 : vector<1x128xf32> to vector<7x128xf32>
    %1168 = arith.mulf %1157, %1167 : vector<7x128xf32>
    %1169 = arith.addf %1148, %1168 : vector<7x128xf32>
    %1170 = vector.extract_strided_slice %893 {offsets = [16, 0], sizes = [1, 128], strides = [1, 1]} : vector<32x128xf32> to vector<1x128xf32>
    %1171 = vector.broadcast %1170 : vector<1x128xf32> to vector<7x128xf32>
    %1172 = arith.mulf %1157, %1171 : vector<7x128xf32>
    %1173 = arith.addf %1152, %1172 : vector<7x128xf32>
    %1174 = vector.extract_strided_slice %893 {offsets = [21, 0], sizes = [1, 128], strides = [1, 1]} : vector<32x128xf32> to vector<1x128xf32>
    %1175 = vector.broadcast %1174 : vector<1x128xf32> to vector<7x128xf32>
    %1176 = arith.mulf %1157, %1175 : vector<7x128xf32>
    %1177 = arith.addf %1156, %1176 : vector<7x128xf32>
    %1178 = vector.extract_strided_slice %920 {offsets = [46, 0], sizes = [7, 128], strides = [1, 1]} : vector<128x128xf32> to vector<7x128xf32>
    %1179 = vector.extract_strided_slice %893 {offsets = [2, 0], sizes = [1, 128], strides = [1, 1]} : vector<32x128xf32> to vector<1x128xf32>
    %1180 = vector.broadcast %1179 : vector<1x128xf32> to vector<7x128xf32>
    %1181 = arith.mulf %1178, %1180 : vector<7x128xf32>
    %1182 = arith.addf %1161, %1181 : vector<7x128xf32>
    %1183 = vector.extract_strided_slice %893 {offsets = [7, 0], sizes = [1, 128], strides = [1, 1]} : vector<32x128xf32> to vector<1x128xf32>
    %1184 = vector.broadcast %1183 : vector<1x128xf32> to vector<7x128xf32>
    %1185 = arith.mulf %1178, %1184 : vector<7x128xf32>
    %1186 = arith.addf %1165, %1185 : vector<7x128xf32>
    %1187 = vector.extract_strided_slice %893 {offsets = [12, 0], sizes = [1, 128], strides = [1, 1]} : vector<32x128xf32> to vector<1x128xf32>
    %1188 = vector.broadcast %1187 : vector<1x128xf32> to vector<7x128xf32>
    %1189 = arith.mulf %1178, %1188 : vector<7x128xf32>
    %1190 = arith.addf %1169, %1189 : vector<7x128xf32>
    %1191 = vector.extract_strided_slice %893 {offsets = [17, 0], sizes = [1, 128], strides = [1, 1]} : vector<32x128xf32> to vector<1x128xf32>
    %1192 = vector.broadcast %1191 : vector<1x128xf32> to vector<7x128xf32>
    %1193 = arith.mulf %1178, %1192 : vector<7x128xf32>
    %1194 = arith.addf %1173, %1193 : vector<7x128xf32>
    %1195 = vector.extract_strided_slice %893 {offsets = [22, 0], sizes = [1, 128], strides = [1, 1]} : vector<32x128xf32> to vector<1x128xf32>
    %1196 = vector.broadcast %1195 : vector<1x128xf32> to vector<7x128xf32>
    %1197 = arith.mulf %1178, %1196 : vector<7x128xf32>
    %1198 = arith.addf %1177, %1197 : vector<7x128xf32>
    %1199 = vector.extract_strided_slice %920 {offsets = [47, 0], sizes = [7, 128], strides = [1, 1]} : vector<128x128xf32> to vector<7x128xf32>
    %1200 = vector.extract_strided_slice %893 {offsets = [3, 0], sizes = [1, 128], strides = [1, 1]} : vector<32x128xf32> to vector<1x128xf32>
    %1201 = vector.broadcast %1200 : vector<1x128xf32> to vector<7x128xf32>
    %1202 = arith.mulf %1199, %1201 : vector<7x128xf32>
    %1203 = arith.addf %1182, %1202 : vector<7x128xf32>
    %1204 = vector.extract_strided_slice %893 {offsets = [8, 0], sizes = [1, 128], strides = [1, 1]} : vector<32x128xf32> to vector<1x128xf32>
    %1205 = vector.broadcast %1204 : vector<1x128xf32> to vector<7x128xf32>
    %1206 = arith.mulf %1199, %1205 : vector<7x128xf32>
    %1207 = arith.addf %1186, %1206 : vector<7x128xf32>
    %1208 = vector.extract_strided_slice %893 {offsets = [13, 0], sizes = [1, 128], strides = [1, 1]} : vector<32x128xf32> to vector<1x128xf32>
    %1209 = vector.broadcast %1208 : vector<1x128xf32> to vector<7x128xf32>
    %1210 = arith.mulf %1199, %1209 : vector<7x128xf32>
    %1211 = arith.addf %1190, %1210 : vector<7x128xf32>
    %1212 = vector.extract_strided_slice %893 {offsets = [18, 0], sizes = [1, 128], strides = [1, 1]} : vector<32x128xf32> to vector<1x128xf32>
    %1213 = vector.broadcast %1212 : vector<1x128xf32> to vector<7x128xf32>
    %1214 = arith.mulf %1199, %1213 : vector<7x128xf32>
    %1215 = arith.addf %1194, %1214 : vector<7x128xf32>
    %1216 = vector.extract_strided_slice %893 {offsets = [23, 0], sizes = [1, 128], strides = [1, 1]} : vector<32x128xf32> to vector<1x128xf32>
    %1217 = vector.broadcast %1216 : vector<1x128xf32> to vector<7x128xf32>
    %1218 = arith.mulf %1199, %1217 : vector<7x128xf32>
    %1219 = arith.addf %1198, %1218 : vector<7x128xf32>
    %1220 = vector.extract_strided_slice %920 {offsets = [48, 0], sizes = [7, 128], strides = [1, 1]} : vector<128x128xf32> to vector<7x128xf32>
    %1221 = vector.extract_strided_slice %893 {offsets = [4, 0], sizes = [1, 128], strides = [1, 1]} : vector<32x128xf32> to vector<1x128xf32>
    %1222 = vector.broadcast %1221 : vector<1x128xf32> to vector<7x128xf32>
    %1223 = arith.mulf %1220, %1222 : vector<7x128xf32>
    %1224 = arith.addf %1203, %1223 : vector<7x128xf32>
    %1225 = vector.extract_strided_slice %893 {offsets = [9, 0], sizes = [1, 128], strides = [1, 1]} : vector<32x128xf32> to vector<1x128xf32>
    %1226 = vector.broadcast %1225 : vector<1x128xf32> to vector<7x128xf32>
    %1227 = arith.mulf %1220, %1226 : vector<7x128xf32>
    %1228 = arith.addf %1207, %1227 : vector<7x128xf32>
    %1229 = vector.extract_strided_slice %893 {offsets = [14, 0], sizes = [1, 128], strides = [1, 1]} : vector<32x128xf32> to vector<1x128xf32>
    %1230 = vector.broadcast %1229 : vector<1x128xf32> to vector<7x128xf32>
    %1231 = arith.mulf %1220, %1230 : vector<7x128xf32>
    %1232 = arith.addf %1211, %1231 : vector<7x128xf32>
    %1233 = vector.extract_strided_slice %893 {offsets = [19, 0], sizes = [1, 128], strides = [1, 1]} : vector<32x128xf32> to vector<1x128xf32>
    %1234 = vector.broadcast %1233 : vector<1x128xf32> to vector<7x128xf32>
    %1235 = arith.mulf %1220, %1234 : vector<7x128xf32>
    %1236 = arith.addf %1215, %1235 : vector<7x128xf32>
    %1237 = vector.extract_strided_slice %893 {offsets = [24, 0], sizes = [1, 128], strides = [1, 1]} : vector<32x128xf32> to vector<1x128xf32>
    %1238 = vector.broadcast %1237 : vector<1x128xf32> to vector<7x128xf32>
    %1239 = arith.mulf %1220, %1238 : vector<7x128xf32>
    %1240 = arith.addf %1219, %1239 : vector<7x128xf32>
    %1241 = vector.extract_strided_slice %920 {offsets = [55, 0], sizes = [7, 128], strides = [1, 1]} : vector<128x128xf32> to vector<7x128xf32>
    %1242 = vector.extract_strided_slice %893 {offsets = [0, 0], sizes = [1, 128], strides = [1, 1]} : vector<32x128xf32> to vector<1x128xf32>
    %1243 = vector.broadcast %1242 : vector<1x128xf32> to vector<7x128xf32>
    %1244 = arith.mulf %1241, %1243 : vector<7x128xf32>
    %1245 = vector.extract_strided_slice %893 {offsets = [5, 0], sizes = [1, 128], strides = [1, 1]} : vector<32x128xf32> to vector<1x128xf32>
    %1246 = vector.broadcast %1245 : vector<1x128xf32> to vector<7x128xf32>
    %1247 = arith.mulf %1241, %1246 : vector<7x128xf32>
    %1248 = arith.addf %1224, %1247 : vector<7x128xf32>
    %1249 = vector.extract_strided_slice %893 {offsets = [10, 0], sizes = [1, 128], strides = [1, 1]} : vector<32x128xf32> to vector<1x128xf32>
    %1250 = vector.broadcast %1249 : vector<1x128xf32> to vector<7x128xf32>
    %1251 = arith.mulf %1241, %1250 : vector<7x128xf32>
    %1252 = arith.addf %1228, %1251 : vector<7x128xf32>
    %1253 = vector.extract_strided_slice %893 {offsets = [15, 0], sizes = [1, 128], strides = [1, 1]} : vector<32x128xf32> to vector<1x128xf32>
    %1254 = vector.broadcast %1253 : vector<1x128xf32> to vector<7x128xf32>
    %1255 = arith.mulf %1241, %1254 : vector<7x128xf32>
    %1256 = arith.addf %1232, %1255 : vector<7x128xf32>
    %1257 = vector.extract_strided_slice %893 {offsets = [20, 0], sizes = [1, 128], strides = [1, 1]} : vector<32x128xf32> to vector<1x128xf32>
    %1258 = vector.broadcast %1257 : vector<1x128xf32> to vector<7x128xf32>
    %1259 = arith.mulf %1241, %1258 : vector<7x128xf32>
    %1260 = arith.addf %1236, %1259 : vector<7x128xf32>
    %1261 = vector.extract_strided_slice %920 {offsets = [56, 0], sizes = [7, 128], strides = [1, 1]} : vector<128x128xf32> to vector<7x128xf32>
    %1262 = vector.extract_strided_slice %893 {offsets = [1, 0], sizes = [1, 128], strides = [1, 1]} : vector<32x128xf32> to vector<1x128xf32>
    %1263 = vector.broadcast %1262 : vector<1x128xf32> to vector<7x128xf32>
    %1264 = arith.mulf %1261, %1263 : vector<7x128xf32>
    %1265 = arith.addf %1244, %1264 : vector<7x128xf32>
    %1266 = vector.extract_strided_slice %893 {offsets = [6, 0], sizes = [1, 128], strides = [1, 1]} : vector<32x128xf32> to vector<1x128xf32>
    %1267 = vector.broadcast %1266 : vector<1x128xf32> to vector<7x128xf32>
    %1268 = arith.mulf %1261, %1267 : vector<7x128xf32>
    %1269 = arith.addf %1248, %1268 : vector<7x128xf32>
    %1270 = vector.extract_strided_slice %893 {offsets = [11, 0], sizes = [1, 128], strides = [1, 1]} : vector<32x128xf32> to vector<1x128xf32>
    %1271 = vector.broadcast %1270 : vector<1x128xf32> to vector<7x128xf32>
    %1272 = arith.mulf %1261, %1271 : vector<7x128xf32>
    %1273 = arith.addf %1252, %1272 : vector<7x128xf32>
    %1274 = vector.extract_strided_slice %893 {offsets = [16, 0], sizes = [1, 128], strides = [1, 1]} : vector<32x128xf32> to vector<1x128xf32>
    %1275 = vector.broadcast %1274 : vector<1x128xf32> to vector<7x128xf32>
    %1276 = arith.mulf %1261, %1275 : vector<7x128xf32>
    %1277 = arith.addf %1256, %1276 : vector<7x128xf32>
    %1278 = vector.extract_strided_slice %893 {offsets = [21, 0], sizes = [1, 128], strides = [1, 1]} : vector<32x128xf32> to vector<1x128xf32>
    %1279 = vector.broadcast %1278 : vector<1x128xf32> to vector<7x128xf32>
    %1280 = arith.mulf %1261, %1279 : vector<7x128xf32>
    %1281 = arith.addf %1260, %1280 : vector<7x128xf32>
    %1282 = vector.extract_strided_slice %920 {offsets = [57, 0], sizes = [7, 128], strides = [1, 1]} : vector<128x128xf32> to vector<7x128xf32>
    %1283 = vector.extract_strided_slice %893 {offsets = [2, 0], sizes = [1, 128], strides = [1, 1]} : vector<32x128xf32> to vector<1x128xf32>
    %1284 = vector.broadcast %1283 : vector<1x128xf32> to vector<7x128xf32>
    %1285 = arith.mulf %1282, %1284 : vector<7x128xf32>
    %1286 = arith.addf %1265, %1285 : vector<7x128xf32>
    %1287 = vector.extract_strided_slice %893 {offsets = [7, 0], sizes = [1, 128], strides = [1, 1]} : vector<32x128xf32> to vector<1x128xf32>
    %1288 = vector.broadcast %1287 : vector<1x128xf32> to vector<7x128xf32>
    %1289 = arith.mulf %1282, %1288 : vector<7x128xf32>
    %1290 = arith.addf %1269, %1289 : vector<7x128xf32>
    %1291 = vector.extract_strided_slice %893 {offsets = [12, 0], sizes = [1, 128], strides = [1, 1]} : vector<32x128xf32> to vector<1x128xf32>
    %1292 = vector.broadcast %1291 : vector<1x128xf32> to vector<7x128xf32>
    %1293 = arith.mulf %1282, %1292 : vector<7x128xf32>
    %1294 = arith.addf %1273, %1293 : vector<7x128xf32>
    %1295 = vector.extract_strided_slice %893 {offsets = [17, 0], sizes = [1, 128], strides = [1, 1]} : vector<32x128xf32> to vector<1x128xf32>
    %1296 = vector.broadcast %1295 : vector<1x128xf32> to vector<7x128xf32>
    %1297 = arith.mulf %1282, %1296 : vector<7x128xf32>
    %1298 = arith.addf %1277, %1297 : vector<7x128xf32>
    %1299 = vector.extract_strided_slice %893 {offsets = [22, 0], sizes = [1, 128], strides = [1, 1]} : vector<32x128xf32> to vector<1x128xf32>
    %1300 = vector.broadcast %1299 : vector<1x128xf32> to vector<7x128xf32>
    %1301 = arith.mulf %1282, %1300 : vector<7x128xf32>
    %1302 = arith.addf %1281, %1301 : vector<7x128xf32>
    %1303 = vector.extract_strided_slice %920 {offsets = [58, 0], sizes = [7, 128], strides = [1, 1]} : vector<128x128xf32> to vector<7x128xf32>
    %1304 = vector.extract_strided_slice %893 {offsets = [3, 0], sizes = [1, 128], strides = [1, 1]} : vector<32x128xf32> to vector<1x128xf32>
    %1305 = vector.broadcast %1304 : vector<1x128xf32> to vector<7x128xf32>
    %1306 = arith.mulf %1303, %1305 : vector<7x128xf32>
    %1307 = arith.addf %1286, %1306 : vector<7x128xf32>
    %1308 = vector.extract_strided_slice %893 {offsets = [8, 0], sizes = [1, 128], strides = [1, 1]} : vector<32x128xf32> to vector<1x128xf32>
    %1309 = vector.broadcast %1308 : vector<1x128xf32> to vector<7x128xf32>
    %1310 = arith.mulf %1303, %1309 : vector<7x128xf32>
    %1311 = arith.addf %1290, %1310 : vector<7x128xf32>
    %1312 = vector.extract_strided_slice %893 {offsets = [13, 0], sizes = [1, 128], strides = [1, 1]} : vector<32x128xf32> to vector<1x128xf32>
    %1313 = vector.broadcast %1312 : vector<1x128xf32> to vector<7x128xf32>
    %1314 = arith.mulf %1303, %1313 : vector<7x128xf32>
    %1315 = arith.addf %1294, %1314 : vector<7x128xf32>
    %1316 = vector.extract_strided_slice %893 {offsets = [18, 0], sizes = [1, 128], strides = [1, 1]} : vector<32x128xf32> to vector<1x128xf32>
    %1317 = vector.broadcast %1316 : vector<1x128xf32> to vector<7x128xf32>
    %1318 = arith.mulf %1303, %1317 : vector<7x128xf32>
    %1319 = arith.addf %1298, %1318 : vector<7x128xf32>
    %1320 = vector.extract_strided_slice %893 {offsets = [23, 0], sizes = [1, 128], strides = [1, 1]} : vector<32x128xf32> to vector<1x128xf32>
    %1321 = vector.broadcast %1320 : vector<1x128xf32> to vector<7x128xf32>
    %1322 = arith.mulf %1303, %1321 : vector<7x128xf32>
    %1323 = arith.addf %1302, %1322 : vector<7x128xf32>
    %1324 = vector.extract_strided_slice %920 {offsets = [59, 0], sizes = [7, 128], strides = [1, 1]} : vector<128x128xf32> to vector<7x128xf32>
    %1325 = vector.extract_strided_slice %893 {offsets = [4, 0], sizes = [1, 128], strides = [1, 1]} : vector<32x128xf32> to vector<1x128xf32>
    %1326 = vector.broadcast %1325 : vector<1x128xf32> to vector<7x128xf32>
    %1327 = arith.mulf %1324, %1326 : vector<7x128xf32>
    %1328 = arith.addf %1307, %1327 : vector<7x128xf32>
    %1329 = vector.extract_strided_slice %893 {offsets = [9, 0], sizes = [1, 128], strides = [1, 1]} : vector<32x128xf32> to vector<1x128xf32>
    %1330 = vector.broadcast %1329 : vector<1x128xf32> to vector<7x128xf32>
    %1331 = arith.mulf %1324, %1330 : vector<7x128xf32>
    %1332 = arith.addf %1311, %1331 : vector<7x128xf32>
    %1333 = vector.extract_strided_slice %893 {offsets = [14, 0], sizes = [1, 128], strides = [1, 1]} : vector<32x128xf32> to vector<1x128xf32>
    %1334 = vector.broadcast %1333 : vector<1x128xf32> to vector<7x128xf32>
    %1335 = arith.mulf %1324, %1334 : vector<7x128xf32>
    %1336 = arith.addf %1315, %1335 : vector<7x128xf32>
    %1337 = vector.extract_strided_slice %893 {offsets = [19, 0], sizes = [1, 128], strides = [1, 1]} : vector<32x128xf32> to vector<1x128xf32>
    %1338 = vector.broadcast %1337 : vector<1x128xf32> to vector<7x128xf32>
    %1339 = arith.mulf %1324, %1338 : vector<7x128xf32>
    %1340 = arith.addf %1319, %1339 : vector<7x128xf32>
    %1341 = vector.extract_strided_slice %893 {offsets = [24, 0], sizes = [1, 128], strides = [1, 1]} : vector<32x128xf32> to vector<1x128xf32>
    %1342 = vector.broadcast %1341 : vector<1x128xf32> to vector<7x128xf32>
    %1343 = arith.mulf %1324, %1342 : vector<7x128xf32>
    %1344 = arith.addf %1323, %1343 : vector<7x128xf32>
    %1345 = vector.extract_strided_slice %920 {offsets = [66, 0], sizes = [7, 128], strides = [1, 1]} : vector<128x128xf32> to vector<7x128xf32>
    %1346 = vector.extract_strided_slice %893 {offsets = [0, 0], sizes = [1, 128], strides = [1, 1]} : vector<32x128xf32> to vector<1x128xf32>
    %1347 = vector.broadcast %1346 : vector<1x128xf32> to vector<7x128xf32>
    %1348 = arith.mulf %1345, %1347 : vector<7x128xf32>
    %1349 = vector.extract_strided_slice %893 {offsets = [5, 0], sizes = [1, 128], strides = [1, 1]} : vector<32x128xf32> to vector<1x128xf32>
    %1350 = vector.broadcast %1349 : vector<1x128xf32> to vector<7x128xf32>
    %1351 = arith.mulf %1345, %1350 : vector<7x128xf32>
    %1352 = arith.addf %1328, %1351 : vector<7x128xf32>
    %1353 = vector.extract_strided_slice %893 {offsets = [10, 0], sizes = [1, 128], strides = [1, 1]} : vector<32x128xf32> to vector<1x128xf32>
    %1354 = vector.broadcast %1353 : vector<1x128xf32> to vector<7x128xf32>
    %1355 = arith.mulf %1345, %1354 : vector<7x128xf32>
    %1356 = arith.addf %1332, %1355 : vector<7x128xf32>
    %1357 = vector.extract_strided_slice %893 {offsets = [15, 0], sizes = [1, 128], strides = [1, 1]} : vector<32x128xf32> to vector<1x128xf32>
    %1358 = vector.broadcast %1357 : vector<1x128xf32> to vector<7x128xf32>
    %1359 = arith.mulf %1345, %1358 : vector<7x128xf32>
    %1360 = arith.addf %1336, %1359 : vector<7x128xf32>
    %1361 = vector.extract_strided_slice %893 {offsets = [20, 0], sizes = [1, 128], strides = [1, 1]} : vector<32x128xf32> to vector<1x128xf32>
    %1362 = vector.broadcast %1361 : vector<1x128xf32> to vector<7x128xf32>
    %1363 = arith.mulf %1345, %1362 : vector<7x128xf32>
    %1364 = arith.addf %1340, %1363 : vector<7x128xf32>
    %1365 = vector.extract_strided_slice %920 {offsets = [67, 0], sizes = [7, 128], strides = [1, 1]} : vector<128x128xf32> to vector<7x128xf32>
    %1366 = vector.extract_strided_slice %893 {offsets = [1, 0], sizes = [1, 128], strides = [1, 1]} : vector<32x128xf32> to vector<1x128xf32>
    %1367 = vector.broadcast %1366 : vector<1x128xf32> to vector<7x128xf32>
    %1368 = arith.mulf %1365, %1367 : vector<7x128xf32>
    %1369 = arith.addf %1348, %1368 : vector<7x128xf32>
    %1370 = vector.extract_strided_slice %893 {offsets = [6, 0], sizes = [1, 128], strides = [1, 1]} : vector<32x128xf32> to vector<1x128xf32>
    %1371 = vector.broadcast %1370 : vector<1x128xf32> to vector<7x128xf32>
    %1372 = arith.mulf %1365, %1371 : vector<7x128xf32>
    %1373 = arith.addf %1352, %1372 : vector<7x128xf32>
    %1374 = vector.extract_strided_slice %893 {offsets = [11, 0], sizes = [1, 128], strides = [1, 1]} : vector<32x128xf32> to vector<1x128xf32>
    %1375 = vector.broadcast %1374 : vector<1x128xf32> to vector<7x128xf32>
    %1376 = arith.mulf %1365, %1375 : vector<7x128xf32>
    %1377 = arith.addf %1356, %1376 : vector<7x128xf32>
    %1378 = vector.extract_strided_slice %893 {offsets = [16, 0], sizes = [1, 128], strides = [1, 1]} : vector<32x128xf32> to vector<1x128xf32>
    %1379 = vector.broadcast %1378 : vector<1x128xf32> to vector<7x128xf32>
    %1380 = arith.mulf %1365, %1379 : vector<7x128xf32>
    %1381 = arith.addf %1360, %1380 : vector<7x128xf32>
    %1382 = vector.extract_strided_slice %893 {offsets = [21, 0], sizes = [1, 128], strides = [1, 1]} : vector<32x128xf32> to vector<1x128xf32>
    %1383 = vector.broadcast %1382 : vector<1x128xf32> to vector<7x128xf32>
    %1384 = arith.mulf %1365, %1383 : vector<7x128xf32>
    %1385 = arith.addf %1364, %1384 : vector<7x128xf32>
    %1386 = vector.extract_strided_slice %920 {offsets = [68, 0], sizes = [7, 128], strides = [1, 1]} : vector<128x128xf32> to vector<7x128xf32>
    %1387 = vector.extract_strided_slice %893 {offsets = [2, 0], sizes = [1, 128], strides = [1, 1]} : vector<32x128xf32> to vector<1x128xf32>
    %1388 = vector.broadcast %1387 : vector<1x128xf32> to vector<7x128xf32>
    %1389 = arith.mulf %1386, %1388 : vector<7x128xf32>
    %1390 = arith.addf %1369, %1389 : vector<7x128xf32>
    %1391 = vector.extract_strided_slice %893 {offsets = [7, 0], sizes = [1, 128], strides = [1, 1]} : vector<32x128xf32> to vector<1x128xf32>
    %1392 = vector.broadcast %1391 : vector<1x128xf32> to vector<7x128xf32>
    %1393 = arith.mulf %1386, %1392 : vector<7x128xf32>
    %1394 = arith.addf %1373, %1393 : vector<7x128xf32>
    %1395 = vector.extract_strided_slice %893 {offsets = [12, 0], sizes = [1, 128], strides = [1, 1]} : vector<32x128xf32> to vector<1x128xf32>
    %1396 = vector.broadcast %1395 : vector<1x128xf32> to vector<7x128xf32>
    %1397 = arith.mulf %1386, %1396 : vector<7x128xf32>
    %1398 = arith.addf %1377, %1397 : vector<7x128xf32>
    %1399 = vector.extract_strided_slice %893 {offsets = [17, 0], sizes = [1, 128], strides = [1, 1]} : vector<32x128xf32> to vector<1x128xf32>
    %1400 = vector.broadcast %1399 : vector<1x128xf32> to vector<7x128xf32>
    %1401 = arith.mulf %1386, %1400 : vector<7x128xf32>
    %1402 = arith.addf %1381, %1401 : vector<7x128xf32>
    %1403 = vector.extract_strided_slice %893 {offsets = [22, 0], sizes = [1, 128], strides = [1, 1]} : vector<32x128xf32> to vector<1x128xf32>
    %1404 = vector.broadcast %1403 : vector<1x128xf32> to vector<7x128xf32>
    %1405 = arith.mulf %1386, %1404 : vector<7x128xf32>
    %1406 = arith.addf %1385, %1405 : vector<7x128xf32>
    %1407 = vector.extract_strided_slice %920 {offsets = [69, 0], sizes = [7, 128], strides = [1, 1]} : vector<128x128xf32> to vector<7x128xf32>
    %1408 = vector.extract_strided_slice %893 {offsets = [3, 0], sizes = [1, 128], strides = [1, 1]} : vector<32x128xf32> to vector<1x128xf32>
    %1409 = vector.broadcast %1408 : vector<1x128xf32> to vector<7x128xf32>
    %1410 = arith.mulf %1407, %1409 : vector<7x128xf32>
    %1411 = arith.addf %1390, %1410 : vector<7x128xf32>
    %1412 = vector.extract_strided_slice %893 {offsets = [8, 0], sizes = [1, 128], strides = [1, 1]} : vector<32x128xf32> to vector<1x128xf32>
    %1413 = vector.broadcast %1412 : vector<1x128xf32> to vector<7x128xf32>
    %1414 = arith.mulf %1407, %1413 : vector<7x128xf32>
    %1415 = arith.addf %1394, %1414 : vector<7x128xf32>
    %1416 = vector.extract_strided_slice %893 {offsets = [13, 0], sizes = [1, 128], strides = [1, 1]} : vector<32x128xf32> to vector<1x128xf32>
    %1417 = vector.broadcast %1416 : vector<1x128xf32> to vector<7x128xf32>
    %1418 = arith.mulf %1407, %1417 : vector<7x128xf32>
    %1419 = arith.addf %1398, %1418 : vector<7x128xf32>
    %1420 = vector.extract_strided_slice %893 {offsets = [18, 0], sizes = [1, 128], strides = [1, 1]} : vector<32x128xf32> to vector<1x128xf32>
    %1421 = vector.broadcast %1420 : vector<1x128xf32> to vector<7x128xf32>
    %1422 = arith.mulf %1407, %1421 : vector<7x128xf32>
    %1423 = arith.addf %1402, %1422 : vector<7x128xf32>
    %1424 = vector.extract_strided_slice %893 {offsets = [23, 0], sizes = [1, 128], strides = [1, 1]} : vector<32x128xf32> to vector<1x128xf32>
    %1425 = vector.broadcast %1424 : vector<1x128xf32> to vector<7x128xf32>
    %1426 = arith.mulf %1407, %1425 : vector<7x128xf32>
    %1427 = arith.addf %1406, %1426 : vector<7x128xf32>
    %1428 = vector.extract_strided_slice %920 {offsets = [70, 0], sizes = [7, 128], strides = [1, 1]} : vector<128x128xf32> to vector<7x128xf32>
    %1429 = vector.extract_strided_slice %893 {offsets = [4, 0], sizes = [1, 128], strides = [1, 1]} : vector<32x128xf32> to vector<1x128xf32>
    %1430 = vector.broadcast %1429 : vector<1x128xf32> to vector<7x128xf32>
    %1431 = arith.mulf %1428, %1430 : vector<7x128xf32>
    %1432 = arith.addf %1411, %1431 : vector<7x128xf32>
    %1433 = vector.extract_strided_slice %893 {offsets = [9, 0], sizes = [1, 128], strides = [1, 1]} : vector<32x128xf32> to vector<1x128xf32>
    %1434 = vector.broadcast %1433 : vector<1x128xf32> to vector<7x128xf32>
    %1435 = arith.mulf %1428, %1434 : vector<7x128xf32>
    %1436 = arith.addf %1415, %1435 : vector<7x128xf32>
    %1437 = vector.extract_strided_slice %893 {offsets = [14, 0], sizes = [1, 128], strides = [1, 1]} : vector<32x128xf32> to vector<1x128xf32>
    %1438 = vector.broadcast %1437 : vector<1x128xf32> to vector<7x128xf32>
    %1439 = arith.mulf %1428, %1438 : vector<7x128xf32>
    %1440 = arith.addf %1419, %1439 : vector<7x128xf32>
    %1441 = vector.extract_strided_slice %893 {offsets = [19, 0], sizes = [1, 128], strides = [1, 1]} : vector<32x128xf32> to vector<1x128xf32>
    %1442 = vector.broadcast %1441 : vector<1x128xf32> to vector<7x128xf32>
    %1443 = arith.mulf %1428, %1442 : vector<7x128xf32>
    %1444 = arith.addf %1423, %1443 : vector<7x128xf32>
    %1445 = vector.extract_strided_slice %893 {offsets = [24, 0], sizes = [1, 128], strides = [1, 1]} : vector<32x128xf32> to vector<1x128xf32>
    %1446 = vector.broadcast %1445 : vector<1x128xf32> to vector<7x128xf32>
    %1447 = arith.mulf %1428, %1446 : vector<7x128xf32>
    %1448 = arith.addf %1427, %1447 : vector<7x128xf32>
    %1449 = vector.extract_strided_slice %920 {offsets = [77, 0], sizes = [7, 128], strides = [1, 1]} : vector<128x128xf32> to vector<7x128xf32>
    %1450 = vector.extract_strided_slice %893 {offsets = [5, 0], sizes = [1, 128], strides = [1, 1]} : vector<32x128xf32> to vector<1x128xf32>
    %1451 = vector.broadcast %1450 : vector<1x128xf32> to vector<7x128xf32>
    %1452 = arith.mulf %1449, %1451 : vector<7x128xf32>
    %1453 = arith.addf %1432, %1452 : vector<7x128xf32>
    %1454 = vector.extract_strided_slice %893 {offsets = [10, 0], sizes = [1, 128], strides = [1, 1]} : vector<32x128xf32> to vector<1x128xf32>
    %1455 = vector.broadcast %1454 : vector<1x128xf32> to vector<7x128xf32>
    %1456 = arith.mulf %1449, %1455 : vector<7x128xf32>
    %1457 = arith.addf %1436, %1456 : vector<7x128xf32>
    %1458 = vector.extract_strided_slice %893 {offsets = [15, 0], sizes = [1, 128], strides = [1, 1]} : vector<32x128xf32> to vector<1x128xf32>
    %1459 = vector.broadcast %1458 : vector<1x128xf32> to vector<7x128xf32>
    %1460 = arith.mulf %1449, %1459 : vector<7x128xf32>
    %1461 = arith.addf %1440, %1460 : vector<7x128xf32>
    %1462 = vector.extract_strided_slice %893 {offsets = [20, 0], sizes = [1, 128], strides = [1, 1]} : vector<32x128xf32> to vector<1x128xf32>
    %1463 = vector.broadcast %1462 : vector<1x128xf32> to vector<7x128xf32>
    %1464 = arith.mulf %1449, %1463 : vector<7x128xf32>
    %1465 = arith.addf %1444, %1464 : vector<7x128xf32>
    %1466 = vector.extract_strided_slice %920 {offsets = [78, 0], sizes = [7, 128], strides = [1, 1]} : vector<128x128xf32> to vector<7x128xf32>
    %1467 = vector.extract_strided_slice %893 {offsets = [6, 0], sizes = [1, 128], strides = [1, 1]} : vector<32x128xf32> to vector<1x128xf32>
    %1468 = vector.broadcast %1467 : vector<1x128xf32> to vector<7x128xf32>
    %1469 = arith.mulf %1466, %1468 : vector<7x128xf32>
    %1470 = arith.addf %1453, %1469 : vector<7x128xf32>
    %1471 = vector.extract_strided_slice %893 {offsets = [11, 0], sizes = [1, 128], strides = [1, 1]} : vector<32x128xf32> to vector<1x128xf32>
    %1472 = vector.broadcast %1471 : vector<1x128xf32> to vector<7x128xf32>
    %1473 = arith.mulf %1466, %1472 : vector<7x128xf32>
    %1474 = arith.addf %1457, %1473 : vector<7x128xf32>
    %1475 = vector.extract_strided_slice %893 {offsets = [16, 0], sizes = [1, 128], strides = [1, 1]} : vector<32x128xf32> to vector<1x128xf32>
    %1476 = vector.broadcast %1475 : vector<1x128xf32> to vector<7x128xf32>
    %1477 = arith.mulf %1466, %1476 : vector<7x128xf32>
    %1478 = arith.addf %1461, %1477 : vector<7x128xf32>
    %1479 = vector.extract_strided_slice %893 {offsets = [21, 0], sizes = [1, 128], strides = [1, 1]} : vector<32x128xf32> to vector<1x128xf32>
    %1480 = vector.broadcast %1479 : vector<1x128xf32> to vector<7x128xf32>
    %1481 = arith.mulf %1466, %1480 : vector<7x128xf32>
    %1482 = arith.addf %1465, %1481 : vector<7x128xf32>
    %1483 = vector.extract_strided_slice %920 {offsets = [79, 0], sizes = [7, 128], strides = [1, 1]} : vector<128x128xf32> to vector<7x128xf32>
    %1484 = vector.extract_strided_slice %893 {offsets = [7, 0], sizes = [1, 128], strides = [1, 1]} : vector<32x128xf32> to vector<1x128xf32>
    %1485 = vector.broadcast %1484 : vector<1x128xf32> to vector<7x128xf32>
    %1486 = arith.mulf %1483, %1485 : vector<7x128xf32>
    %1487 = arith.addf %1470, %1486 : vector<7x128xf32>
    %1488 = vector.extract_strided_slice %893 {offsets = [12, 0], sizes = [1, 128], strides = [1, 1]} : vector<32x128xf32> to vector<1x128xf32>
    %1489 = vector.broadcast %1488 : vector<1x128xf32> to vector<7x128xf32>
    %1490 = arith.mulf %1483, %1489 : vector<7x128xf32>
    %1491 = arith.addf %1474, %1490 : vector<7x128xf32>
    %1492 = vector.extract_strided_slice %893 {offsets = [17, 0], sizes = [1, 128], strides = [1, 1]} : vector<32x128xf32> to vector<1x128xf32>
    %1493 = vector.broadcast %1492 : vector<1x128xf32> to vector<7x128xf32>
    %1494 = arith.mulf %1483, %1493 : vector<7x128xf32>
    %1495 = arith.addf %1478, %1494 : vector<7x128xf32>
    %1496 = vector.extract_strided_slice %893 {offsets = [22, 0], sizes = [1, 128], strides = [1, 1]} : vector<32x128xf32> to vector<1x128xf32>
    %1497 = vector.broadcast %1496 : vector<1x128xf32> to vector<7x128xf32>
    %1498 = arith.mulf %1483, %1497 : vector<7x128xf32>
    %1499 = arith.addf %1482, %1498 : vector<7x128xf32>
    %1500 = vector.extract_strided_slice %920 {offsets = [80, 0], sizes = [7, 128], strides = [1, 1]} : vector<128x128xf32> to vector<7x128xf32>
    %1501 = vector.extract_strided_slice %893 {offsets = [8, 0], sizes = [1, 128], strides = [1, 1]} : vector<32x128xf32> to vector<1x128xf32>
    %1502 = vector.broadcast %1501 : vector<1x128xf32> to vector<7x128xf32>
    %1503 = arith.mulf %1500, %1502 : vector<7x128xf32>
    %1504 = arith.addf %1487, %1503 : vector<7x128xf32>
    %1505 = vector.extract_strided_slice %893 {offsets = [13, 0], sizes = [1, 128], strides = [1, 1]} : vector<32x128xf32> to vector<1x128xf32>
    %1506 = vector.broadcast %1505 : vector<1x128xf32> to vector<7x128xf32>
    %1507 = arith.mulf %1500, %1506 : vector<7x128xf32>
    %1508 = arith.addf %1491, %1507 : vector<7x128xf32>
    %1509 = vector.extract_strided_slice %893 {offsets = [18, 0], sizes = [1, 128], strides = [1, 1]} : vector<32x128xf32> to vector<1x128xf32>
    %1510 = vector.broadcast %1509 : vector<1x128xf32> to vector<7x128xf32>
    %1511 = arith.mulf %1500, %1510 : vector<7x128xf32>
    %1512 = arith.addf %1495, %1511 : vector<7x128xf32>
    %1513 = vector.extract_strided_slice %893 {offsets = [23, 0], sizes = [1, 128], strides = [1, 1]} : vector<32x128xf32> to vector<1x128xf32>
    %1514 = vector.broadcast %1513 : vector<1x128xf32> to vector<7x128xf32>
    %1515 = arith.mulf %1500, %1514 : vector<7x128xf32>
    %1516 = arith.addf %1499, %1515 : vector<7x128xf32>
    %1517 = vector.extract_strided_slice %920 {offsets = [81, 0], sizes = [7, 128], strides = [1, 1]} : vector<128x128xf32> to vector<7x128xf32>
    %1518 = vector.extract_strided_slice %893 {offsets = [9, 0], sizes = [1, 128], strides = [1, 1]} : vector<32x128xf32> to vector<1x128xf32>
    %1519 = vector.broadcast %1518 : vector<1x128xf32> to vector<7x128xf32>
    %1520 = arith.mulf %1517, %1519 : vector<7x128xf32>
    %1521 = arith.addf %1504, %1520 : vector<7x128xf32>
    %1522 = vector.extract_strided_slice %893 {offsets = [14, 0], sizes = [1, 128], strides = [1, 1]} : vector<32x128xf32> to vector<1x128xf32>
    %1523 = vector.broadcast %1522 : vector<1x128xf32> to vector<7x128xf32>
    %1524 = arith.mulf %1517, %1523 : vector<7x128xf32>
    %1525 = arith.addf %1508, %1524 : vector<7x128xf32>
    %1526 = vector.extract_strided_slice %893 {offsets = [19, 0], sizes = [1, 128], strides = [1, 1]} : vector<32x128xf32> to vector<1x128xf32>
    %1527 = vector.broadcast %1526 : vector<1x128xf32> to vector<7x128xf32>
    %1528 = arith.mulf %1517, %1527 : vector<7x128xf32>
    %1529 = arith.addf %1512, %1528 : vector<7x128xf32>
    %1530 = vector.extract_strided_slice %893 {offsets = [24, 0], sizes = [1, 128], strides = [1, 1]} : vector<32x128xf32> to vector<1x128xf32>
    %1531 = vector.broadcast %1530 : vector<1x128xf32> to vector<7x128xf32>
    %1532 = arith.mulf %1517, %1531 : vector<7x128xf32>
    %1533 = arith.addf %1516, %1532 : vector<7x128xf32>
    %1534 = vector.extract_strided_slice %920 {offsets = [88, 0], sizes = [7, 128], strides = [1, 1]} : vector<128x128xf32> to vector<7x128xf32>
    %1535 = vector.extract_strided_slice %893 {offsets = [10, 0], sizes = [1, 128], strides = [1, 1]} : vector<32x128xf32> to vector<1x128xf32>
    %1536 = vector.broadcast %1535 : vector<1x128xf32> to vector<7x128xf32>
    %1537 = arith.mulf %1534, %1536 : vector<7x128xf32>
    %1538 = arith.addf %1521, %1537 : vector<7x128xf32>
    %1539 = vector.extract_strided_slice %893 {offsets = [15, 0], sizes = [1, 128], strides = [1, 1]} : vector<32x128xf32> to vector<1x128xf32>
    %1540 = vector.broadcast %1539 : vector<1x128xf32> to vector<7x128xf32>
    %1541 = arith.mulf %1534, %1540 : vector<7x128xf32>
    %1542 = arith.addf %1525, %1541 : vector<7x128xf32>
    %1543 = vector.extract_strided_slice %893 {offsets = [20, 0], sizes = [1, 128], strides = [1, 1]} : vector<32x128xf32> to vector<1x128xf32>
    %1544 = vector.broadcast %1543 : vector<1x128xf32> to vector<7x128xf32>
    %1545 = arith.mulf %1534, %1544 : vector<7x128xf32>
    %1546 = arith.addf %1529, %1545 : vector<7x128xf32>
    %1547 = vector.extract_strided_slice %920 {offsets = [89, 0], sizes = [7, 128], strides = [1, 1]} : vector<128x128xf32> to vector<7x128xf32>
    %1548 = vector.extract_strided_slice %893 {offsets = [11, 0], sizes = [1, 128], strides = [1, 1]} : vector<32x128xf32> to vector<1x128xf32>
    %1549 = vector.broadcast %1548 : vector<1x128xf32> to vector<7x128xf32>
    %1550 = arith.mulf %1547, %1549 : vector<7x128xf32>
    %1551 = arith.addf %1538, %1550 : vector<7x128xf32>
    %1552 = vector.extract_strided_slice %893 {offsets = [16, 0], sizes = [1, 128], strides = [1, 1]} : vector<32x128xf32> to vector<1x128xf32>
    %1553 = vector.broadcast %1552 : vector<1x128xf32> to vector<7x128xf32>
    %1554 = arith.mulf %1547, %1553 : vector<7x128xf32>
    %1555 = arith.addf %1542, %1554 : vector<7x128xf32>
    %1556 = vector.extract_strided_slice %893 {offsets = [21, 0], sizes = [1, 128], strides = [1, 1]} : vector<32x128xf32> to vector<1x128xf32>
    %1557 = vector.broadcast %1556 : vector<1x128xf32> to vector<7x128xf32>
    %1558 = arith.mulf %1547, %1557 : vector<7x128xf32>
    %1559 = arith.addf %1546, %1558 : vector<7x128xf32>
    %1560 = vector.extract_strided_slice %920 {offsets = [90, 0], sizes = [7, 128], strides = [1, 1]} : vector<128x128xf32> to vector<7x128xf32>
    %1561 = vector.extract_strided_slice %893 {offsets = [12, 0], sizes = [1, 128], strides = [1, 1]} : vector<32x128xf32> to vector<1x128xf32>
    %1562 = vector.broadcast %1561 : vector<1x128xf32> to vector<7x128xf32>
    %1563 = arith.mulf %1560, %1562 : vector<7x128xf32>
    %1564 = arith.addf %1551, %1563 : vector<7x128xf32>
    %1565 = vector.extract_strided_slice %893 {offsets = [17, 0], sizes = [1, 128], strides = [1, 1]} : vector<32x128xf32> to vector<1x128xf32>
    %1566 = vector.broadcast %1565 : vector<1x128xf32> to vector<7x128xf32>
    %1567 = arith.mulf %1560, %1566 : vector<7x128xf32>
    %1568 = arith.addf %1555, %1567 : vector<7x128xf32>
    %1569 = vector.extract_strided_slice %893 {offsets = [22, 0], sizes = [1, 128], strides = [1, 1]} : vector<32x128xf32> to vector<1x128xf32>
    %1570 = vector.broadcast %1569 : vector<1x128xf32> to vector<7x128xf32>
    %1571 = arith.mulf %1560, %1570 : vector<7x128xf32>
    %1572 = arith.addf %1559, %1571 : vector<7x128xf32>
    %1573 = vector.extract_strided_slice %920 {offsets = [91, 0], sizes = [7, 128], strides = [1, 1]} : vector<128x128xf32> to vector<7x128xf32>
    %1574 = vector.extract_strided_slice %893 {offsets = [13, 0], sizes = [1, 128], strides = [1, 1]} : vector<32x128xf32> to vector<1x128xf32>
    %1575 = vector.broadcast %1574 : vector<1x128xf32> to vector<7x128xf32>
    %1576 = arith.mulf %1573, %1575 : vector<7x128xf32>
    %1577 = arith.addf %1564, %1576 : vector<7x128xf32>
    %1578 = vector.extract_strided_slice %893 {offsets = [18, 0], sizes = [1, 128], strides = [1, 1]} : vector<32x128xf32> to vector<1x128xf32>
    %1579 = vector.broadcast %1578 : vector<1x128xf32> to vector<7x128xf32>
    %1580 = arith.mulf %1573, %1579 : vector<7x128xf32>
    %1581 = arith.addf %1568, %1580 : vector<7x128xf32>
    %1582 = vector.extract_strided_slice %893 {offsets = [23, 0], sizes = [1, 128], strides = [1, 1]} : vector<32x128xf32> to vector<1x128xf32>
    %1583 = vector.broadcast %1582 : vector<1x128xf32> to vector<7x128xf32>
    %1584 = arith.mulf %1573, %1583 : vector<7x128xf32>
    %1585 = arith.addf %1572, %1584 : vector<7x128xf32>
    %1586 = vector.extract_strided_slice %920 {offsets = [92, 0], sizes = [7, 128], strides = [1, 1]} : vector<128x128xf32> to vector<7x128xf32>
    %1587 = vector.extract_strided_slice %893 {offsets = [14, 0], sizes = [1, 128], strides = [1, 1]} : vector<32x128xf32> to vector<1x128xf32>
    %1588 = vector.broadcast %1587 : vector<1x128xf32> to vector<7x128xf32>
    %1589 = arith.mulf %1586, %1588 : vector<7x128xf32>
    %1590 = arith.addf %1577, %1589 : vector<7x128xf32>
    %1591 = vector.extract_strided_slice %893 {offsets = [19, 0], sizes = [1, 128], strides = [1, 1]} : vector<32x128xf32> to vector<1x128xf32>
    %1592 = vector.broadcast %1591 : vector<1x128xf32> to vector<7x128xf32>
    %1593 = arith.mulf %1586, %1592 : vector<7x128xf32>
    %1594 = arith.addf %1581, %1593 : vector<7x128xf32>
    %1595 = vector.extract_strided_slice %893 {offsets = [24, 0], sizes = [1, 128], strides = [1, 1]} : vector<32x128xf32> to vector<1x128xf32>
    %1596 = vector.broadcast %1595 : vector<1x128xf32> to vector<7x128xf32>
    %1597 = arith.mulf %1586, %1596 : vector<7x128xf32>
    %1598 = arith.addf %1585, %1597 : vector<7x128xf32>
    %1599 = vector.extract_strided_slice %920 {offsets = [99, 0], sizes = [7, 128], strides = [1, 1]} : vector<128x128xf32> to vector<7x128xf32>
    %1600 = vector.extract_strided_slice %893 {offsets = [15, 0], sizes = [1, 128], strides = [1, 1]} : vector<32x128xf32> to vector<1x128xf32>
    %1601 = vector.broadcast %1600 : vector<1x128xf32> to vector<7x128xf32>
    %1602 = arith.mulf %1599, %1601 : vector<7x128xf32>
    %1603 = arith.addf %1590, %1602 : vector<7x128xf32>
    %1604 = vector.extract_strided_slice %893 {offsets = [20, 0], sizes = [1, 128], strides = [1, 1]} : vector<32x128xf32> to vector<1x128xf32>
    %1605 = vector.broadcast %1604 : vector<1x128xf32> to vector<7x128xf32>
    %1606 = arith.mulf %1599, %1605 : vector<7x128xf32>
    %1607 = arith.addf %1594, %1606 : vector<7x128xf32>
    %1608 = vector.extract_strided_slice %920 {offsets = [100, 0], sizes = [7, 128], strides = [1, 1]} : vector<128x128xf32> to vector<7x128xf32>
    %1609 = vector.extract_strided_slice %893 {offsets = [16, 0], sizes = [1, 128], strides = [1, 1]} : vector<32x128xf32> to vector<1x128xf32>
    %1610 = vector.broadcast %1609 : vector<1x128xf32> to vector<7x128xf32>
    %1611 = arith.mulf %1608, %1610 : vector<7x128xf32>
    %1612 = arith.addf %1603, %1611 : vector<7x128xf32>
    %1613 = vector.extract_strided_slice %893 {offsets = [21, 0], sizes = [1, 128], strides = [1, 1]} : vector<32x128xf32> to vector<1x128xf32>
    %1614 = vector.broadcast %1613 : vector<1x128xf32> to vector<7x128xf32>
    %1615 = arith.mulf %1608, %1614 : vector<7x128xf32>
    %1616 = arith.addf %1607, %1615 : vector<7x128xf32>
    %1617 = vector.extract_strided_slice %920 {offsets = [101, 0], sizes = [7, 128], strides = [1, 1]} : vector<128x128xf32> to vector<7x128xf32>
    %1618 = vector.extract_strided_slice %893 {offsets = [17, 0], sizes = [1, 128], strides = [1, 1]} : vector<32x128xf32> to vector<1x128xf32>
    %1619 = vector.broadcast %1618 : vector<1x128xf32> to vector<7x128xf32>
    %1620 = arith.mulf %1617, %1619 : vector<7x128xf32>
    %1621 = arith.addf %1612, %1620 : vector<7x128xf32>
    %1622 = vector.extract_strided_slice %893 {offsets = [22, 0], sizes = [1, 128], strides = [1, 1]} : vector<32x128xf32> to vector<1x128xf32>
    %1623 = vector.broadcast %1622 : vector<1x128xf32> to vector<7x128xf32>
    %1624 = arith.mulf %1617, %1623 : vector<7x128xf32>
    %1625 = arith.addf %1616, %1624 : vector<7x128xf32>
    %1626 = vector.extract_strided_slice %920 {offsets = [102, 0], sizes = [7, 128], strides = [1, 1]} : vector<128x128xf32> to vector<7x128xf32>
    %1627 = vector.extract_strided_slice %893 {offsets = [18, 0], sizes = [1, 128], strides = [1, 1]} : vector<32x128xf32> to vector<1x128xf32>
    %1628 = vector.broadcast %1627 : vector<1x128xf32> to vector<7x128xf32>
    %1629 = arith.mulf %1626, %1628 : vector<7x128xf32>
    %1630 = arith.addf %1621, %1629 : vector<7x128xf32>
    %1631 = vector.extract_strided_slice %893 {offsets = [23, 0], sizes = [1, 128], strides = [1, 1]} : vector<32x128xf32> to vector<1x128xf32>
    %1632 = vector.broadcast %1631 : vector<1x128xf32> to vector<7x128xf32>
    %1633 = arith.mulf %1626, %1632 : vector<7x128xf32>
    %1634 = arith.addf %1625, %1633 : vector<7x128xf32>
    %1635 = vector.extract_strided_slice %920 {offsets = [103, 0], sizes = [7, 128], strides = [1, 1]} : vector<128x128xf32> to vector<7x128xf32>
    %1636 = vector.extract_strided_slice %893 {offsets = [19, 0], sizes = [1, 128], strides = [1, 1]} : vector<32x128xf32> to vector<1x128xf32>
    %1637 = vector.broadcast %1636 : vector<1x128xf32> to vector<7x128xf32>
    %1638 = arith.mulf %1635, %1637 : vector<7x128xf32>
    %1639 = arith.addf %1630, %1638 : vector<7x128xf32>
    %1640 = vector.extract_strided_slice %893 {offsets = [24, 0], sizes = [1, 128], strides = [1, 1]} : vector<32x128xf32> to vector<1x128xf32>
    %1641 = vector.broadcast %1640 : vector<1x128xf32> to vector<7x128xf32>
    %1642 = arith.mulf %1635, %1641 : vector<7x128xf32>
    %1643 = arith.addf %1634, %1642 : vector<7x128xf32>
    %1644 = vector.extract_strided_slice %920 {offsets = [110, 0], sizes = [7, 128], strides = [1, 1]} : vector<128x128xf32> to vector<7x128xf32>
    %1645 = vector.extract_strided_slice %893 {offsets = [20, 0], sizes = [1, 128], strides = [1, 1]} : vector<32x128xf32> to vector<1x128xf32>
    %1646 = vector.broadcast %1645 : vector<1x128xf32> to vector<7x128xf32>
    %1647 = arith.mulf %1644, %1646 : vector<7x128xf32>
    %1648 = arith.addf %1639, %1647 : vector<7x128xf32>
    %1649 = vector.extract_strided_slice %920 {offsets = [111, 0], sizes = [7, 128], strides = [1, 1]} : vector<128x128xf32> to vector<7x128xf32>
    %1650 = vector.extract_strided_slice %893 {offsets = [21, 0], sizes = [1, 128], strides = [1, 1]} : vector<32x128xf32> to vector<1x128xf32>
    %1651 = vector.broadcast %1650 : vector<1x128xf32> to vector<7x128xf32>
    %1652 = arith.mulf %1649, %1651 : vector<7x128xf32>
    %1653 = arith.addf %1648, %1652 : vector<7x128xf32>
    %1654 = vector.extract_strided_slice %920 {offsets = [112, 0], sizes = [7, 128], strides = [1, 1]} : vector<128x128xf32> to vector<7x128xf32>
    %1655 = vector.extract_strided_slice %893 {offsets = [22, 0], sizes = [1, 128], strides = [1, 1]} : vector<32x128xf32> to vector<1x128xf32>
    %1656 = vector.broadcast %1655 : vector<1x128xf32> to vector<7x128xf32>
    %1657 = arith.mulf %1654, %1656 : vector<7x128xf32>
    %1658 = arith.addf %1653, %1657 : vector<7x128xf32>
    %1659 = vector.extract_strided_slice %920 {offsets = [113, 0], sizes = [7, 128], strides = [1, 1]} : vector<128x128xf32> to vector<7x128xf32>
    %1660 = vector.extract_strided_slice %893 {offsets = [23, 0], sizes = [1, 128], strides = [1, 1]} : vector<32x128xf32> to vector<1x128xf32>
    %1661 = vector.broadcast %1660 : vector<1x128xf32> to vector<7x128xf32>
    %1662 = arith.mulf %1659, %1661 : vector<7x128xf32>
    %1663 = arith.addf %1658, %1662 : vector<7x128xf32>
    %1664 = vector.extract_strided_slice %920 {offsets = [114, 0], sizes = [7, 128], strides = [1, 1]} : vector<128x128xf32> to vector<7x128xf32>
    %1665 = vector.extract_strided_slice %893 {offsets = [24, 0], sizes = [1, 128], strides = [1, 1]} : vector<32x128xf32> to vector<1x128xf32>
    %1666 = vector.broadcast %1665 : vector<1x128xf32> to vector<7x128xf32>
    %1667 = arith.mulf %1664, %1666 : vector<7x128xf32>
    %1668 = arith.addf %1663, %1667 : vector<7x128xf32>
    %1669 = arith.addf %1240, %1344 : vector<7x128xf32>
    %1670 = arith.addf %1669, %1448 : vector<7x128xf32>
    %1671 = arith.addf %1670, %1533 : vector<7x128xf32>
    %1672 = arith.addf %1671, %1598 : vector<7x128xf32>
    %1673 = arith.addf %1672, %1643 : vector<7x128xf32>
    %1674 = arith.addf %1673, %1668 : vector<7x128xf32>
    %cst_57 = arith.constant dense<0.000000e+00> : vector<128xf32>
    %1675 = vector.multi_reduction <add>, %1674, %cst_57 [0] : vector<7x128xf32> to vector<128xf32>
    %1676 = vector.shape_cast %1675 : vector<128xf32> to vector<1x128xf32>
    %cst_58 = arith.constant 0.0204081628 : f32
    %1677 = vector.broadcast %cst_58 : f32 to vector<1x128xf32>
    %1678 = arith.mulf %1676, %1677 : vector<1x128xf32>
    %1679 = vector.broadcast %1678 : vector<1x128xf32> to vector<7x128xf32>
    %1680 = arith.subf %1240, %1679 : vector<7x128xf32>
    %1681 = arith.mulf %1680, %1680 : vector<7x128xf32>
    %1682 = vector.broadcast %1678 : vector<1x128xf32> to vector<7x128xf32>
    %1683 = arith.subf %1344, %1682 : vector<7x128xf32>
    %1684 = arith.mulf %1683, %1683 : vector<7x128xf32>
    %1685 = arith.addf %1681, %1684 : vector<7x128xf32>
    %1686 = vector.broadcast %1678 : vector<1x128xf32> to vector<7x128xf32>
    %1687 = arith.subf %1448, %1686 : vector<7x128xf32>
    %1688 = arith.mulf %1687, %1687 : vector<7x128xf32>
    %1689 = arith.addf %1685, %1688 : vector<7x128xf32>
    %1690 = vector.broadcast %1678 : vector<1x128xf32> to vector<7x128xf32>
    %1691 = arith.subf %1533, %1690 : vector<7x128xf32>
    %1692 = arith.mulf %1691, %1691 : vector<7x128xf32>
    %1693 = arith.addf %1689, %1692 : vector<7x128xf32>
    %1694 = vector.broadcast %1678 : vector<1x128xf32> to vector<7x128xf32>
    %1695 = arith.subf %1598, %1694 : vector<7x128xf32>
    %1696 = arith.mulf %1695, %1695 : vector<7x128xf32>
    %1697 = arith.addf %1693, %1696 : vector<7x128xf32>
    %1698 = vector.broadcast %1678 : vector<1x128xf32> to vector<7x128xf32>
    %1699 = arith.subf %1643, %1698 : vector<7x128xf32>
    %1700 = arith.mulf %1699, %1699 : vector<7x128xf32>
    %1701 = arith.addf %1697, %1700 : vector<7x128xf32>
    %1702 = vector.broadcast %1678 : vector<1x128xf32> to vector<7x128xf32>
    %1703 = arith.subf %1668, %1702 : vector<7x128xf32>
    %1704 = arith.mulf %1703, %1703 : vector<7x128xf32>
    %1705 = arith.addf %1701, %1704 : vector<7x128xf32>
    %cst_59 = arith.constant dense<0.000000e+00> : vector<128xf32>
    %1706 = vector.multi_reduction <add>, %1705, %cst_59 [0] : vector<7x128xf32> to vector<128xf32>
    %1707 = vector.shape_cast %1706 : vector<128xf32> to vector<1x128xf32>
    %cst_60 = arith.constant 0.0204081628 : f32
    %1708 = vector.broadcast %cst_60 : f32 to vector<1x128xf32>
    %1709 = arith.mulf %1707, %1708 : vector<1x128xf32>
    %cst_61 = arith.constant 9.99999974E-6 : f32
    %1710 = vector.broadcast %cst_61 : f32 to vector<1x128xf32>
    %1711 = arith.addf %1709, %1710 : vector<1x128xf32>
    %1712 = math.rsqrt %1711 : vector<1x128xf32>
    %1713 = arith.mulf %880, %1712 : vector<1x128xf32>
    %1714 = arith.mulf %1678, %1713 : vector<1x128xf32>
    %1715 = arith.subf %881, %1714 : vector<1x128xf32>
    %1716 = vector.broadcast %1713 : vector<1x128xf32> to vector<7x128xf32>
    %1717 = arith.mulf %1240, %1716 : vector<7x128xf32>
    %1718 = vector.broadcast %1715 : vector<1x128xf32> to vector<7x128xf32>
    %1719 = arith.addf %1717, %1718 : vector<7x128xf32>
    %1720 = vector.broadcast %1713 : vector<1x128xf32> to vector<7x128xf32>
    %1721 = arith.mulf %1344, %1720 : vector<7x128xf32>
    %1722 = vector.broadcast %1715 : vector<1x128xf32> to vector<7x128xf32>
    %1723 = arith.addf %1721, %1722 : vector<7x128xf32>
    %1724 = vector.broadcast %1713 : vector<1x128xf32> to vector<7x128xf32>
    %1725 = arith.mulf %1448, %1724 : vector<7x128xf32>
    %1726 = vector.broadcast %1715 : vector<1x128xf32> to vector<7x128xf32>
    %1727 = arith.addf %1725, %1726 : vector<7x128xf32>
    %1728 = vector.broadcast %1713 : vector<1x128xf32> to vector<7x128xf32>
    %1729 = arith.mulf %1533, %1728 : vector<7x128xf32>
    %1730 = vector.broadcast %1715 : vector<1x128xf32> to vector<7x128xf32>
    %1731 = arith.addf %1729, %1730 : vector<7x128xf32>
    %1732 = vector.broadcast %1713 : vector<1x128xf32> to vector<7x128xf32>
    %1733 = arith.mulf %1598, %1732 : vector<7x128xf32>
    %1734 = vector.broadcast %1715 : vector<1x128xf32> to vector<7x128xf32>
    %1735 = arith.addf %1733, %1734 : vector<7x128xf32>
    %1736 = vector.broadcast %1713 : vector<1x128xf32> to vector<7x128xf32>
    %1737 = arith.mulf %1643, %1736 : vector<7x128xf32>
    %1738 = vector.broadcast %1715 : vector<1x128xf32> to vector<7x128xf32>
    %1739 = arith.addf %1737, %1738 : vector<7x128xf32>
    %1740 = vector.broadcast %1713 : vector<1x128xf32> to vector<7x128xf32>
    %1741 = arith.mulf %1668, %1740 : vector<7x128xf32>
    %1742 = vector.broadcast %1715 : vector<1x128xf32> to vector<7x128xf32>
    %1743 = arith.addf %1741, %1742 : vector<7x128xf32>
    %cst_62 = arith.constant 0.000000e+00 : f32
    %1744 = vector.broadcast %cst_62 : f32 to vector<79x128xf32>
    %1745 = tpu.concatenate %1719, %1723, %1727, %1731, %1735, %1739, %1743, %1744 in 0 : vector<7x128xf32>, vector<7x128xf32>, vector<7x128xf32>, vector<7x128xf32>, vector<7x128xf32>, vector<7x128xf32>, vector<7x128xf32>, vector<79x128xf32> -> vector<128x128xf32>
    %1746 = tpu.transpose %1745, [1, 0] : vector<128x128xf32> -> vector<128x128xf32>
    %1747 = vector.extract_strided_slice %1746 {offsets = [0, 0], sizes = [128, 49], strides = [1, 1]} : vector<128x128xf32> to vector<128x49xf32>
    %c128_63 = arith.constant 128 : index
    %c0_64 = arith.constant 0 : index
    %1748 = vector.load %arg10[%c128_63, %c0_64] : memref<384x49xf32, #tpu.memory_space<vmem>>, vector<128x49xf32>
    tpu.vector_store %arg10[%c128_63, %c0_64], %1747 {strides = array<i32>} : memref<384x49xf32, #tpu.memory_space<vmem>>, vector<128x49xf32>,
    %c256 = arith.constant 256 : index
    %c0_65 = arith.constant 0 : index
    %1749 = vector.load %arg1[%c256, %c0_65] : memref<384x49xf32, #tpu.memory_space<vmem>>, vector<128x49xf32>
    %c256_66 = arith.constant 256 : index
    %c0_67 = arith.constant 0 : index
    %1750 = vector.load %arg2[%c256_66, %c0_67] : memref<384x25xf32, #tpu.memory_space<vmem>>, vector<128x25xf32>
    %c0_68 = arith.constant 0 : index
    %c256_69 = arith.constant 256 : index
    %1751 = vector.load %arg3[%c0_68, %c256_69] : memref<1x384xf32, #tpu.memory_space<vmem>>, vector<1x128xf32>
    %c0_70 = arith.constant 0 : index
    %c256_71 = arith.constant 256 : index
    %1752 = vector.load %arg4[%c0_70, %c256_71] : memref<1x384xf32, #tpu.memory_space<vmem>>, vector<1x128xf32>
    %c0_72 = arith.constant 0 : index
    %c256_73 = arith.constant 256 : index
    %1753 = vector.load %arg5[%c0_72, %c256_73] : memref<1x384xf32, #tpu.memory_space<vmem>>, vector<1x128xf32>
    %c0_74 = arith.constant 0 : index
    %c256_75 = arith.constant 256 : index
    %1754 = vector.load %arg6[%c0_74, %c256_75] : memref<1x384xf32, #tpu.memory_space<vmem>>, vector<1x128xf32>
    %cst_76 = arith.constant 0.000000e+00 : f32
    %1755 = vector.broadcast %cst_76 : f32 to vector<128x54xf32>
    %1756 = tpu.concatenate %1749, %1750, %1755 in 1 : vector<128x49xf32>, vector<128x25xf32>, vector<128x54xf32> -> vector<128x128xf32>
    %1757 = arith.truncf %1756 : vector<128x128xf32> to vector<128x128xbf16>
    %1758 = arith.extf %1757 : vector<128x128xbf16> to vector<128x128xf32>
    %1759 = arith.subf %1756, %1758 : vector<128x128xf32>
    %1760 = arith.truncf %1759 : vector<128x128xf32> to vector<128x128xbf16>
    %cst_77 = arith.constant dense<0.000000e+00> : vector<128x128xf32>
    %1761 = tpu.matmul %0, %1757, %cst_77 {dimension_numbers = #tpu.dot_dimension_numbers<[1], [1], [0], [0], [0, 0, 1, 0], [], []>} : vector<128x128xbf16>, vector<128x128xbf16>, vector<128x128xf32> -> vector<128x128xf32>
    %cst_78 = arith.constant dense<0.000000e+00> : vector<128x128xf32>
    %1762 = tpu.matmul %0, %1760, %cst_78 {dimension_numbers = #tpu.dot_dimension_numbers<[1], [1], [0], [0], [0, 0, 1, 0], [], []>} : vector<128x128xbf16>, vector<128x128xbf16>, vector<128x128xf32> -> vector<128x128xf32>
    %1763 = arith.addf %1761, %1762 : vector<128x128xf32>
    %cst_79 = arith.constant dense<0.000000e+00> : vector<32x128xf32>
    %1764 = tpu.matmul %1, %1757, %cst_79 {dimension_numbers = #tpu.dot_dimension_numbers<[1], [1], [0], [0], [0, 0, 1, 0], [], []>} : vector<32x128xbf16>, vector<128x128xbf16>, vector<32x128xf32> -> vector<32x128xf32>
    %cst_80 = arith.constant dense<0.000000e+00> : vector<32x128xf32>
    %1765 = tpu.matmul %1, %1760, %cst_80 {dimension_numbers = #tpu.dot_dimension_numbers<[1], [1], [0], [0], [0, 0, 1, 0], [], []>} : vector<32x128xbf16>, vector<128x128xbf16>, vector<32x128xf32> -> vector<32x128xf32>
    %1766 = arith.addf %1764, %1765 : vector<32x128xf32>
    %cst_81 = arith.constant dense<0.000000e+00> : vector<128xf32>
    %1767 = vector.multi_reduction <add>, %1763, %cst_81 [0] : vector<128x128xf32> to vector<128xf32>
    %1768 = vector.shape_cast %1767 : vector<128xf32> to vector<1x128xf32>
    %cst_82 = arith.constant 0.0204081628 : f32
    %1769 = vector.broadcast %cst_82 : f32 to vector<1x128xf32>
    %1770 = arith.mulf %1768, %1769 : vector<1x128xf32>
    %1771 = vector.broadcast %1770 : vector<1x128xf32> to vector<128x128xf32>
    %1772 = arith.subf %1763, %1771 : vector<128x128xf32>
    %1773 = vector.broadcast %2 : vector<128x1xf32> to vector<128x128xf32>
    %1774 = arith.mulf %1772, %1773 : vector<128x128xf32>
    %1775 = arith.mulf %1774, %1774 : vector<128x128xf32>
    %cst_83 = arith.constant dense<0.000000e+00> : vector<128xf32>
    %1776 = vector.multi_reduction <add>, %1775, %cst_83 [0] : vector<128x128xf32> to vector<128xf32>
    %1777 = vector.shape_cast %1776 : vector<128xf32> to vector<1x128xf32>
    %cst_84 = arith.constant 0.0204081628 : f32
    %1778 = vector.broadcast %cst_84 : f32 to vector<1x128xf32>
    %1779 = arith.mulf %1777, %1778 : vector<1x128xf32>
    %cst_85 = arith.constant 9.99999974E-6 : f32
    %1780 = vector.broadcast %cst_85 : f32 to vector<1x128xf32>
    %1781 = arith.addf %1779, %1780 : vector<1x128xf32>
    %1782 = math.rsqrt %1781 : vector<1x128xf32>
    %1783 = arith.mulf %1751, %1782 : vector<1x128xf32>
    %1784 = arith.mulf %1770, %1783 : vector<1x128xf32>
    %1785 = arith.subf %1752, %1784 : vector<1x128xf32>
    %1786 = vector.broadcast %1783 : vector<1x128xf32> to vector<128x128xf32>
    %1787 = arith.mulf %1763, %1786 : vector<128x128xf32>
    %1788 = vector.broadcast %1785 : vector<1x128xf32> to vector<128x128xf32>
    %1789 = arith.addf %1787, %1788 : vector<128x128xf32>
    %cst_86 = arith.constant 0.000000e+00 : f32
    %1790 = vector.broadcast %cst_86 : f32 to vector<128x128xf32>
    %1791 = arith.maximumf %1789, %1790 : vector<128x128xf32>
    %1792 = vector.broadcast %2 : vector<128x1xf32> to vector<128x128xf32>
    %1793 = arith.mulf %1791, %1792 : vector<128x128xf32>
    %1794 = vector.extract_strided_slice %1793 {offsets = [0, 0], sizes = [7, 128], strides = [1, 1]} : vector<128x128xf32> to vector<7x128xf32>
    %1795 = vector.extract_strided_slice %1766 {offsets = [0, 0], sizes = [1, 128], strides = [1, 1]} : vector<32x128xf32> to vector<1x128xf32>
    %1796 = vector.broadcast %1795 : vector<1x128xf32> to vector<7x128xf32>
    %1797 = arith.mulf %1794, %1796 : vector<7x128xf32>
    %1798 = vector.extract_strided_slice %1793 {offsets = [1, 0], sizes = [7, 128], strides = [1, 1]} : vector<128x128xf32> to vector<7x128xf32>
    %1799 = vector.extract_strided_slice %1766 {offsets = [1, 0], sizes = [1, 128], strides = [1, 1]} : vector<32x128xf32> to vector<1x128xf32>
    %1800 = vector.broadcast %1799 : vector<1x128xf32> to vector<7x128xf32>
    %1801 = arith.mulf %1798, %1800 : vector<7x128xf32>
    %1802 = arith.addf %1797, %1801 : vector<7x128xf32>
    %1803 = vector.extract_strided_slice %1793 {offsets = [2, 0], sizes = [7, 128], strides = [1, 1]} : vector<128x128xf32> to vector<7x128xf32>
    %1804 = vector.extract_strided_slice %1766 {offsets = [2, 0], sizes = [1, 128], strides = [1, 1]} : vector<32x128xf32> to vector<1x128xf32>
    %1805 = vector.broadcast %1804 : vector<1x128xf32> to vector<7x128xf32>
    %1806 = arith.mulf %1803, %1805 : vector<7x128xf32>
    %1807 = arith.addf %1802, %1806 : vector<7x128xf32>
    %1808 = vector.extract_strided_slice %1793 {offsets = [3, 0], sizes = [7, 128], strides = [1, 1]} : vector<128x128xf32> to vector<7x128xf32>
    %1809 = vector.extract_strided_slice %1766 {offsets = [3, 0], sizes = [1, 128], strides = [1, 1]} : vector<32x128xf32> to vector<1x128xf32>
    %1810 = vector.broadcast %1809 : vector<1x128xf32> to vector<7x128xf32>
    %1811 = arith.mulf %1808, %1810 : vector<7x128xf32>
    %1812 = arith.addf %1807, %1811 : vector<7x128xf32>
    %1813 = vector.extract_strided_slice %1793 {offsets = [4, 0], sizes = [7, 128], strides = [1, 1]} : vector<128x128xf32> to vector<7x128xf32>
    %1814 = vector.extract_strided_slice %1766 {offsets = [4, 0], sizes = [1, 128], strides = [1, 1]} : vector<32x128xf32> to vector<1x128xf32>
    %1815 = vector.broadcast %1814 : vector<1x128xf32> to vector<7x128xf32>
    %1816 = arith.mulf %1813, %1815 : vector<7x128xf32>
    %1817 = arith.addf %1812, %1816 : vector<7x128xf32>
    %1818 = vector.extract_strided_slice %1793 {offsets = [11, 0], sizes = [7, 128], strides = [1, 1]} : vector<128x128xf32> to vector<7x128xf32>
    %1819 = vector.extract_strided_slice %1766 {offsets = [0, 0], sizes = [1, 128], strides = [1, 1]} : vector<32x128xf32> to vector<1x128xf32>
    %1820 = vector.broadcast %1819 : vector<1x128xf32> to vector<7x128xf32>
    %1821 = arith.mulf %1818, %1820 : vector<7x128xf32>
    %1822 = vector.extract_strided_slice %1766 {offsets = [5, 0], sizes = [1, 128], strides = [1, 1]} : vector<32x128xf32> to vector<1x128xf32>
    %1823 = vector.broadcast %1822 : vector<1x128xf32> to vector<7x128xf32>
    %1824 = arith.mulf %1818, %1823 : vector<7x128xf32>
    %1825 = arith.addf %1817, %1824 : vector<7x128xf32>
    %1826 = vector.extract_strided_slice %1793 {offsets = [12, 0], sizes = [7, 128], strides = [1, 1]} : vector<128x128xf32> to vector<7x128xf32>
    %1827 = vector.extract_strided_slice %1766 {offsets = [1, 0], sizes = [1, 128], strides = [1, 1]} : vector<32x128xf32> to vector<1x128xf32>
    %1828 = vector.broadcast %1827 : vector<1x128xf32> to vector<7x128xf32>
    %1829 = arith.mulf %1826, %1828 : vector<7x128xf32>
    %1830 = arith.addf %1821, %1829 : vector<7x128xf32>
    %1831 = vector.extract_strided_slice %1766 {offsets = [6, 0], sizes = [1, 128], strides = [1, 1]} : vector<32x128xf32> to vector<1x128xf32>
    %1832 = vector.broadcast %1831 : vector<1x128xf32> to vector<7x128xf32>
    %1833 = arith.mulf %1826, %1832 : vector<7x128xf32>
    %1834 = arith.addf %1825, %1833 : vector<7x128xf32>
    %1835 = vector.extract_strided_slice %1793 {offsets = [13, 0], sizes = [7, 128], strides = [1, 1]} : vector<128x128xf32> to vector<7x128xf32>
    %1836 = vector.extract_strided_slice %1766 {offsets = [2, 0], sizes = [1, 128], strides = [1, 1]} : vector<32x128xf32> to vector<1x128xf32>
    %1837 = vector.broadcast %1836 : vector<1x128xf32> to vector<7x128xf32>
    %1838 = arith.mulf %1835, %1837 : vector<7x128xf32>
    %1839 = arith.addf %1830, %1838 : vector<7x128xf32>
    %1840 = vector.extract_strided_slice %1766 {offsets = [7, 0], sizes = [1, 128], strides = [1, 1]} : vector<32x128xf32> to vector<1x128xf32>
    %1841 = vector.broadcast %1840 : vector<1x128xf32> to vector<7x128xf32>
    %1842 = arith.mulf %1835, %1841 : vector<7x128xf32>
    %1843 = arith.addf %1834, %1842 : vector<7x128xf32>
    %1844 = vector.extract_strided_slice %1793 {offsets = [14, 0], sizes = [7, 128], strides = [1, 1]} : vector<128x128xf32> to vector<7x128xf32>
    %1845 = vector.extract_strided_slice %1766 {offsets = [3, 0], sizes = [1, 128], strides = [1, 1]} : vector<32x128xf32> to vector<1x128xf32>
    %1846 = vector.broadcast %1845 : vector<1x128xf32> to vector<7x128xf32>
    %1847 = arith.mulf %1844, %1846 : vector<7x128xf32>
    %1848 = arith.addf %1839, %1847 : vector<7x128xf32>
    %1849 = vector.extract_strided_slice %1766 {offsets = [8, 0], sizes = [1, 128], strides = [1, 1]} : vector<32x128xf32> to vector<1x128xf32>
    %1850 = vector.broadcast %1849 : vector<1x128xf32> to vector<7x128xf32>
    %1851 = arith.mulf %1844, %1850 : vector<7x128xf32>
    %1852 = arith.addf %1843, %1851 : vector<7x128xf32>
    %1853 = vector.extract_strided_slice %1793 {offsets = [15, 0], sizes = [7, 128], strides = [1, 1]} : vector<128x128xf32> to vector<7x128xf32>
    %1854 = vector.extract_strided_slice %1766 {offsets = [4, 0], sizes = [1, 128], strides = [1, 1]} : vector<32x128xf32> to vector<1x128xf32>
    %1855 = vector.broadcast %1854 : vector<1x128xf32> to vector<7x128xf32>
    %1856 = arith.mulf %1853, %1855 : vector<7x128xf32>
    %1857 = arith.addf %1848, %1856 : vector<7x128xf32>
    %1858 = vector.extract_strided_slice %1766 {offsets = [9, 0], sizes = [1, 128], strides = [1, 1]} : vector<32x128xf32> to vector<1x128xf32>
    %1859 = vector.broadcast %1858 : vector<1x128xf32> to vector<7x128xf32>
    %1860 = arith.mulf %1853, %1859 : vector<7x128xf32>
    %1861 = arith.addf %1852, %1860 : vector<7x128xf32>
    %1862 = vector.extract_strided_slice %1793 {offsets = [22, 0], sizes = [7, 128], strides = [1, 1]} : vector<128x128xf32> to vector<7x128xf32>
    %1863 = vector.extract_strided_slice %1766 {offsets = [0, 0], sizes = [1, 128], strides = [1, 1]} : vector<32x128xf32> to vector<1x128xf32>
    %1864 = vector.broadcast %1863 : vector<1x128xf32> to vector<7x128xf32>
    %1865 = arith.mulf %1862, %1864 : vector<7x128xf32>
    %1866 = vector.extract_strided_slice %1766 {offsets = [5, 0], sizes = [1, 128], strides = [1, 1]} : vector<32x128xf32> to vector<1x128xf32>
    %1867 = vector.broadcast %1866 : vector<1x128xf32> to vector<7x128xf32>
    %1868 = arith.mulf %1862, %1867 : vector<7x128xf32>
    %1869 = arith.addf %1857, %1868 : vector<7x128xf32>
    %1870 = vector.extract_strided_slice %1766 {offsets = [10, 0], sizes = [1, 128], strides = [1, 1]} : vector<32x128xf32> to vector<1x128xf32>
    %1871 = vector.broadcast %1870 : vector<1x128xf32> to vector<7x128xf32>
    %1872 = arith.mulf %1862, %1871 : vector<7x128xf32>
    %1873 = arith.addf %1861, %1872 : vector<7x128xf32>
    %1874 = vector.extract_strided_slice %1793 {offsets = [23, 0], sizes = [7, 128], strides = [1, 1]} : vector<128x128xf32> to vector<7x128xf32>
    %1875 = vector.extract_strided_slice %1766 {offsets = [1, 0], sizes = [1, 128], strides = [1, 1]} : vector<32x128xf32> to vector<1x128xf32>
    %1876 = vector.broadcast %1875 : vector<1x128xf32> to vector<7x128xf32>
    %1877 = arith.mulf %1874, %1876 : vector<7x128xf32>
    %1878 = arith.addf %1865, %1877 : vector<7x128xf32>
    %1879 = vector.extract_strided_slice %1766 {offsets = [6, 0], sizes = [1, 128], strides = [1, 1]} : vector<32x128xf32> to vector<1x128xf32>
    %1880 = vector.broadcast %1879 : vector<1x128xf32> to vector<7x128xf32>
    %1881 = arith.mulf %1874, %1880 : vector<7x128xf32>
    %1882 = arith.addf %1869, %1881 : vector<7x128xf32>
    %1883 = vector.extract_strided_slice %1766 {offsets = [11, 0], sizes = [1, 128], strides = [1, 1]} : vector<32x128xf32> to vector<1x128xf32>
    %1884 = vector.broadcast %1883 : vector<1x128xf32> to vector<7x128xf32>
    %1885 = arith.mulf %1874, %1884 : vector<7x128xf32>
    %1886 = arith.addf %1873, %1885 : vector<7x128xf32>
    %1887 = vector.extract_strided_slice %1793 {offsets = [24, 0], sizes = [7, 128], strides = [1, 1]} : vector<128x128xf32> to vector<7x128xf32>
    %1888 = vector.extract_strided_slice %1766 {offsets = [2, 0], sizes = [1, 128], strides = [1, 1]} : vector<32x128xf32> to vector<1x128xf32>
    %1889 = vector.broadcast %1888 : vector<1x128xf32> to vector<7x128xf32>
    %1890 = arith.mulf %1887, %1889 : vector<7x128xf32>
    %1891 = arith.addf %1878, %1890 : vector<7x128xf32>
    %1892 = vector.extract_strided_slice %1766 {offsets = [7, 0], sizes = [1, 128], strides = [1, 1]} : vector<32x128xf32> to vector<1x128xf32>
    %1893 = vector.broadcast %1892 : vector<1x128xf32> to vector<7x128xf32>
    %1894 = arith.mulf %1887, %1893 : vector<7x128xf32>
    %1895 = arith.addf %1882, %1894 : vector<7x128xf32>
    %1896 = vector.extract_strided_slice %1766 {offsets = [12, 0], sizes = [1, 128], strides = [1, 1]} : vector<32x128xf32> to vector<1x128xf32>
    %1897 = vector.broadcast %1896 : vector<1x128xf32> to vector<7x128xf32>
    %1898 = arith.mulf %1887, %1897 : vector<7x128xf32>
    %1899 = arith.addf %1886, %1898 : vector<7x128xf32>
    %1900 = vector.extract_strided_slice %1793 {offsets = [25, 0], sizes = [7, 128], strides = [1, 1]} : vector<128x128xf32> to vector<7x128xf32>
    %1901 = vector.extract_strided_slice %1766 {offsets = [3, 0], sizes = [1, 128], strides = [1, 1]} : vector<32x128xf32> to vector<1x128xf32>
    %1902 = vector.broadcast %1901 : vector<1x128xf32> to vector<7x128xf32>
    %1903 = arith.mulf %1900, %1902 : vector<7x128xf32>
    %1904 = arith.addf %1891, %1903 : vector<7x128xf32>
    %1905 = vector.extract_strided_slice %1766 {offsets = [8, 0], sizes = [1, 128], strides = [1, 1]} : vector<32x128xf32> to vector<1x128xf32>
    %1906 = vector.broadcast %1905 : vector<1x128xf32> to vector<7x128xf32>
    %1907 = arith.mulf %1900, %1906 : vector<7x128xf32>
    %1908 = arith.addf %1895, %1907 : vector<7x128xf32>
    %1909 = vector.extract_strided_slice %1766 {offsets = [13, 0], sizes = [1, 128], strides = [1, 1]} : vector<32x128xf32> to vector<1x128xf32>
    %1910 = vector.broadcast %1909 : vector<1x128xf32> to vector<7x128xf32>
    %1911 = arith.mulf %1900, %1910 : vector<7x128xf32>
    %1912 = arith.addf %1899, %1911 : vector<7x128xf32>
    %1913 = vector.extract_strided_slice %1793 {offsets = [26, 0], sizes = [7, 128], strides = [1, 1]} : vector<128x128xf32> to vector<7x128xf32>
    %1914 = vector.extract_strided_slice %1766 {offsets = [4, 0], sizes = [1, 128], strides = [1, 1]} : vector<32x128xf32> to vector<1x128xf32>
    %1915 = vector.broadcast %1914 : vector<1x128xf32> to vector<7x128xf32>
    %1916 = arith.mulf %1913, %1915 : vector<7x128xf32>
    %1917 = arith.addf %1904, %1916 : vector<7x128xf32>
    %1918 = vector.extract_strided_slice %1766 {offsets = [9, 0], sizes = [1, 128], strides = [1, 1]} : vector<32x128xf32> to vector<1x128xf32>
    %1919 = vector.broadcast %1918 : vector<1x128xf32> to vector<7x128xf32>
    %1920 = arith.mulf %1913, %1919 : vector<7x128xf32>
    %1921 = arith.addf %1908, %1920 : vector<7x128xf32>
    %1922 = vector.extract_strided_slice %1766 {offsets = [14, 0], sizes = [1, 128], strides = [1, 1]} : vector<32x128xf32> to vector<1x128xf32>
    %1923 = vector.broadcast %1922 : vector<1x128xf32> to vector<7x128xf32>
    %1924 = arith.mulf %1913, %1923 : vector<7x128xf32>
    %1925 = arith.addf %1912, %1924 : vector<7x128xf32>
    %1926 = vector.extract_strided_slice %1793 {offsets = [33, 0], sizes = [7, 128], strides = [1, 1]} : vector<128x128xf32> to vector<7x128xf32>
    %1927 = vector.extract_strided_slice %1766 {offsets = [0, 0], sizes = [1, 128], strides = [1, 1]} : vector<32x128xf32> to vector<1x128xf32>
    %1928 = vector.broadcast %1927 : vector<1x128xf32> to vector<7x128xf32>
    %1929 = arith.mulf %1926, %1928 : vector<7x128xf32>
    %1930 = vector.extract_strided_slice %1766 {offsets = [5, 0], sizes = [1, 128], strides = [1, 1]} : vector<32x128xf32> to vector<1x128xf32>
    %1931 = vector.broadcast %1930 : vector<1x128xf32> to vector<7x128xf32>
    %1932 = arith.mulf %1926, %1931 : vector<7x128xf32>
    %1933 = arith.addf %1917, %1932 : vector<7x128xf32>
    %1934 = vector.extract_strided_slice %1766 {offsets = [10, 0], sizes = [1, 128], strides = [1, 1]} : vector<32x128xf32> to vector<1x128xf32>
    %1935 = vector.broadcast %1934 : vector<1x128xf32> to vector<7x128xf32>
    %1936 = arith.mulf %1926, %1935 : vector<7x128xf32>
    %1937 = arith.addf %1921, %1936 : vector<7x128xf32>
    %1938 = vector.extract_strided_slice %1766 {offsets = [15, 0], sizes = [1, 128], strides = [1, 1]} : vector<32x128xf32> to vector<1x128xf32>
    %1939 = vector.broadcast %1938 : vector<1x128xf32> to vector<7x128xf32>
    %1940 = arith.mulf %1926, %1939 : vector<7x128xf32>
    %1941 = arith.addf %1925, %1940 : vector<7x128xf32>
    %1942 = vector.extract_strided_slice %1793 {offsets = [34, 0], sizes = [7, 128], strides = [1, 1]} : vector<128x128xf32> to vector<7x128xf32>
    %1943 = vector.extract_strided_slice %1766 {offsets = [1, 0], sizes = [1, 128], strides = [1, 1]} : vector<32x128xf32> to vector<1x128xf32>
    %1944 = vector.broadcast %1943 : vector<1x128xf32> to vector<7x128xf32>
    %1945 = arith.mulf %1942, %1944 : vector<7x128xf32>
    %1946 = arith.addf %1929, %1945 : vector<7x128xf32>
    %1947 = vector.extract_strided_slice %1766 {offsets = [6, 0], sizes = [1, 128], strides = [1, 1]} : vector<32x128xf32> to vector<1x128xf32>
    %1948 = vector.broadcast %1947 : vector<1x128xf32> to vector<7x128xf32>
    %1949 = arith.mulf %1942, %1948 : vector<7x128xf32>
    %1950 = arith.addf %1933, %1949 : vector<7x128xf32>
    %1951 = vector.extract_strided_slice %1766 {offsets = [11, 0], sizes = [1, 128], strides = [1, 1]} : vector<32x128xf32> to vector<1x128xf32>
    %1952 = vector.broadcast %1951 : vector<1x128xf32> to vector<7x128xf32>
    %1953 = arith.mulf %1942, %1952 : vector<7x128xf32>
    %1954 = arith.addf %1937, %1953 : vector<7x128xf32>
    %1955 = vector.extract_strided_slice %1766 {offsets = [16, 0], sizes = [1, 128], strides = [1, 1]} : vector<32x128xf32> to vector<1x128xf32>
    %1956 = vector.broadcast %1955 : vector<1x128xf32> to vector<7x128xf32>
    %1957 = arith.mulf %1942, %1956 : vector<7x128xf32>
    %1958 = arith.addf %1941, %1957 : vector<7x128xf32>
    %1959 = vector.extract_strided_slice %1793 {offsets = [35, 0], sizes = [7, 128], strides = [1, 1]} : vector<128x128xf32> to vector<7x128xf32>
    %1960 = vector.extract_strided_slice %1766 {offsets = [2, 0], sizes = [1, 128], strides = [1, 1]} : vector<32x128xf32> to vector<1x128xf32>
    %1961 = vector.broadcast %1960 : vector<1x128xf32> to vector<7x128xf32>
    %1962 = arith.mulf %1959, %1961 : vector<7x128xf32>
    %1963 = arith.addf %1946, %1962 : vector<7x128xf32>
    %1964 = vector.extract_strided_slice %1766 {offsets = [7, 0], sizes = [1, 128], strides = [1, 1]} : vector<32x128xf32> to vector<1x128xf32>
    %1965 = vector.broadcast %1964 : vector<1x128xf32> to vector<7x128xf32>
    %1966 = arith.mulf %1959, %1965 : vector<7x128xf32>
    %1967 = arith.addf %1950, %1966 : vector<7x128xf32>
    %1968 = vector.extract_strided_slice %1766 {offsets = [12, 0], sizes = [1, 128], strides = [1, 1]} : vector<32x128xf32> to vector<1x128xf32>
    %1969 = vector.broadcast %1968 : vector<1x128xf32> to vector<7x128xf32>
    %1970 = arith.mulf %1959, %1969 : vector<7x128xf32>
    %1971 = arith.addf %1954, %1970 : vector<7x128xf32>
    %1972 = vector.extract_strided_slice %1766 {offsets = [17, 0], sizes = [1, 128], strides = [1, 1]} : vector<32x128xf32> to vector<1x128xf32>
    %1973 = vector.broadcast %1972 : vector<1x128xf32> to vector<7x128xf32>
    %1974 = arith.mulf %1959, %1973 : vector<7x128xf32>
    %1975 = arith.addf %1958, %1974 : vector<7x128xf32>
    %1976 = vector.extract_strided_slice %1793 {offsets = [36, 0], sizes = [7, 128], strides = [1, 1]} : vector<128x128xf32> to vector<7x128xf32>
    %1977 = vector.extract_strided_slice %1766 {offsets = [3, 0], sizes = [1, 128], strides = [1, 1]} : vector<32x128xf32> to vector<1x128xf32>
    %1978 = vector.broadcast %1977 : vector<1x128xf32> to vector<7x128xf32>
    %1979 = arith.mulf %1976, %1978 : vector<7x128xf32>
    %1980 = arith.addf %1963, %1979 : vector<7x128xf32>
    %1981 = vector.extract_strided_slice %1766 {offsets = [8, 0], sizes = [1, 128], strides = [1, 1]} : vector<32x128xf32> to vector<1x128xf32>
    %1982 = vector.broadcast %1981 : vector<1x128xf32> to vector<7x128xf32>
    %1983 = arith.mulf %1976, %1982 : vector<7x128xf32>
    %1984 = arith.addf %1967, %1983 : vector<7x128xf32>
    %1985 = vector.extract_strided_slice %1766 {offsets = [13, 0], sizes = [1, 128], strides = [1, 1]} : vector<32x128xf32> to vector<1x128xf32>
    %1986 = vector.broadcast %1985 : vector<1x128xf32> to vector<7x128xf32>
    %1987 = arith.mulf %1976, %1986 : vector<7x128xf32>
    %1988 = arith.addf %1971, %1987 : vector<7x128xf32>
    %1989 = vector.extract_strided_slice %1766 {offsets = [18, 0], sizes = [1, 128], strides = [1, 1]} : vector<32x128xf32> to vector<1x128xf32>
    %1990 = vector.broadcast %1989 : vector<1x128xf32> to vector<7x128xf32>
    %1991 = arith.mulf %1976, %1990 : vector<7x128xf32>
    %1992 = arith.addf %1975, %1991 : vector<7x128xf32>
    %1993 = vector.extract_strided_slice %1793 {offsets = [37, 0], sizes = [7, 128], strides = [1, 1]} : vector<128x128xf32> to vector<7x128xf32>
    %1994 = vector.extract_strided_slice %1766 {offsets = [4, 0], sizes = [1, 128], strides = [1, 1]} : vector<32x128xf32> to vector<1x128xf32>
    %1995 = vector.broadcast %1994 : vector<1x128xf32> to vector<7x128xf32>
    %1996 = arith.mulf %1993, %1995 : vector<7x128xf32>
    %1997 = arith.addf %1980, %1996 : vector<7x128xf32>
    %1998 = vector.extract_strided_slice %1766 {offsets = [9, 0], sizes = [1, 128], strides = [1, 1]} : vector<32x128xf32> to vector<1x128xf32>
    %1999 = vector.broadcast %1998 : vector<1x128xf32> to vector<7x128xf32>
    %2000 = arith.mulf %1993, %1999 : vector<7x128xf32>
    %2001 = arith.addf %1984, %2000 : vector<7x128xf32>
    %2002 = vector.extract_strided_slice %1766 {offsets = [14, 0], sizes = [1, 128], strides = [1, 1]} : vector<32x128xf32> to vector<1x128xf32>
    %2003 = vector.broadcast %2002 : vector<1x128xf32> to vector<7x128xf32>
    %2004 = arith.mulf %1993, %2003 : vector<7x128xf32>
    %2005 = arith.addf %1988, %2004 : vector<7x128xf32>
    %2006 = vector.extract_strided_slice %1766 {offsets = [19, 0], sizes = [1, 128], strides = [1, 1]} : vector<32x128xf32> to vector<1x128xf32>
    %2007 = vector.broadcast %2006 : vector<1x128xf32> to vector<7x128xf32>
    %2008 = arith.mulf %1993, %2007 : vector<7x128xf32>
    %2009 = arith.addf %1992, %2008 : vector<7x128xf32>
    %2010 = vector.extract_strided_slice %1793 {offsets = [44, 0], sizes = [7, 128], strides = [1, 1]} : vector<128x128xf32> to vector<7x128xf32>
    %2011 = vector.extract_strided_slice %1766 {offsets = [0, 0], sizes = [1, 128], strides = [1, 1]} : vector<32x128xf32> to vector<1x128xf32>
    %2012 = vector.broadcast %2011 : vector<1x128xf32> to vector<7x128xf32>
    %2013 = arith.mulf %2010, %2012 : vector<7x128xf32>
    %2014 = vector.extract_strided_slice %1766 {offsets = [5, 0], sizes = [1, 128], strides = [1, 1]} : vector<32x128xf32> to vector<1x128xf32>
    %2015 = vector.broadcast %2014 : vector<1x128xf32> to vector<7x128xf32>
    %2016 = arith.mulf %2010, %2015 : vector<7x128xf32>
    %2017 = arith.addf %1997, %2016 : vector<7x128xf32>
    %2018 = vector.extract_strided_slice %1766 {offsets = [10, 0], sizes = [1, 128], strides = [1, 1]} : vector<32x128xf32> to vector<1x128xf32>
    %2019 = vector.broadcast %2018 : vector<1x128xf32> to vector<7x128xf32>
    %2020 = arith.mulf %2010, %2019 : vector<7x128xf32>
    %2021 = arith.addf %2001, %2020 : vector<7x128xf32>
    %2022 = vector.extract_strided_slice %1766 {offsets = [15, 0], sizes = [1, 128], strides = [1, 1]} : vector<32x128xf32> to vector<1x128xf32>
    %2023 = vector.broadcast %2022 : vector<1x128xf32> to vector<7x128xf32>
    %2024 = arith.mulf %2010, %2023 : vector<7x128xf32>
    %2025 = arith.addf %2005, %2024 : vector<7x128xf32>
    %2026 = vector.extract_strided_slice %1766 {offsets = [20, 0], sizes = [1, 128], strides = [1, 1]} : vector<32x128xf32> to vector<1x128xf32>
    %2027 = vector.broadcast %2026 : vector<1x128xf32> to vector<7x128xf32>
    %2028 = arith.mulf %2010, %2027 : vector<7x128xf32>
    %2029 = arith.addf %2009, %2028 : vector<7x128xf32>
    %2030 = vector.extract_strided_slice %1793 {offsets = [45, 0], sizes = [7, 128], strides = [1, 1]} : vector<128x128xf32> to vector<7x128xf32>
    %2031 = vector.extract_strided_slice %1766 {offsets = [1, 0], sizes = [1, 128], strides = [1, 1]} : vector<32x128xf32> to vector<1x128xf32>
    %2032 = vector.broadcast %2031 : vector<1x128xf32> to vector<7x128xf32>
    %2033 = arith.mulf %2030, %2032 : vector<7x128xf32>
    %2034 = arith.addf %2013, %2033 : vector<7x128xf32>
    %2035 = vector.extract_strided_slice %1766 {offsets = [6, 0], sizes = [1, 128], strides = [1, 1]} : vector<32x128xf32> to vector<1x128xf32>
    %2036 = vector.broadcast %2035 : vector<1x128xf32> to vector<7x128xf32>
    %2037 = arith.mulf %2030, %2036 : vector<7x128xf32>
    %2038 = arith.addf %2017, %2037 : vector<7x128xf32>
    %2039 = vector.extract_strided_slice %1766 {offsets = [11, 0], sizes = [1, 128], strides = [1, 1]} : vector<32x128xf32> to vector<1x128xf32>
    %2040 = vector.broadcast %2039 : vector<1x128xf32> to vector<7x128xf32>
    %2041 = arith.mulf %2030, %2040 : vector<7x128xf32>
    %2042 = arith.addf %2021, %2041 : vector<7x128xf32>
    %2043 = vector.extract_strided_slice %1766 {offsets = [16, 0], sizes = [1, 128], strides = [1, 1]} : vector<32x128xf32> to vector<1x128xf32>
    %2044 = vector.broadcast %2043 : vector<1x128xf32> to vector<7x128xf32>
    %2045 = arith.mulf %2030, %2044 : vector<7x128xf32>
    %2046 = arith.addf %2025, %2045 : vector<7x128xf32>
    %2047 = vector.extract_strided_slice %1766 {offsets = [21, 0], sizes = [1, 128], strides = [1, 1]} : vector<32x128xf32> to vector<1x128xf32>
    %2048 = vector.broadcast %2047 : vector<1x128xf32> to vector<7x128xf32>
    %2049 = arith.mulf %2030, %2048 : vector<7x128xf32>
    %2050 = arith.addf %2029, %2049 : vector<7x128xf32>
    %2051 = vector.extract_strided_slice %1793 {offsets = [46, 0], sizes = [7, 128], strides = [1, 1]} : vector<128x128xf32> to vector<7x128xf32>
    %2052 = vector.extract_strided_slice %1766 {offsets = [2, 0], sizes = [1, 128], strides = [1, 1]} : vector<32x128xf32> to vector<1x128xf32>
    %2053 = vector.broadcast %2052 : vector<1x128xf32> to vector<7x128xf32>
    %2054 = arith.mulf %2051, %2053 : vector<7x128xf32>
    %2055 = arith.addf %2034, %2054 : vector<7x128xf32>
    %2056 = vector.extract_strided_slice %1766 {offsets = [7, 0], sizes = [1, 128], strides = [1, 1]} : vector<32x128xf32> to vector<1x128xf32>
    %2057 = vector.broadcast %2056 : vector<1x128xf32> to vector<7x128xf32>
    %2058 = arith.mulf %2051, %2057 : vector<7x128xf32>
    %2059 = arith.addf %2038, %2058 : vector<7x128xf32>
    %2060 = vector.extract_strided_slice %1766 {offsets = [12, 0], sizes = [1, 128], strides = [1, 1]} : vector<32x128xf32> to vector<1x128xf32>
    %2061 = vector.broadcast %2060 : vector<1x128xf32> to vector<7x128xf32>
    %2062 = arith.mulf %2051, %2061 : vector<7x128xf32>
    %2063 = arith.addf %2042, %2062 : vector<7x128xf32>
    %2064 = vector.extract_strided_slice %1766 {offsets = [17, 0], sizes = [1, 128], strides = [1, 1]} : vector<32x128xf32> to vector<1x128xf32>
    %2065 = vector.broadcast %2064 : vector<1x128xf32> to vector<7x128xf32>
    %2066 = arith.mulf %2051, %2065 : vector<7x128xf32>
    %2067 = arith.addf %2046, %2066 : vector<7x128xf32>
    %2068 = vector.extract_strided_slice %1766 {offsets = [22, 0], sizes = [1, 128], strides = [1, 1]} : vector<32x128xf32> to vector<1x128xf32>
    %2069 = vector.broadcast %2068 : vector<1x128xf32> to vector<7x128xf32>
    %2070 = arith.mulf %2051, %2069 : vector<7x128xf32>
    %2071 = arith.addf %2050, %2070 : vector<7x128xf32>
    %2072 = vector.extract_strided_slice %1793 {offsets = [47, 0], sizes = [7, 128], strides = [1, 1]} : vector<128x128xf32> to vector<7x128xf32>
    %2073 = vector.extract_strided_slice %1766 {offsets = [3, 0], sizes = [1, 128], strides = [1, 1]} : vector<32x128xf32> to vector<1x128xf32>
    %2074 = vector.broadcast %2073 : vector<1x128xf32> to vector<7x128xf32>
    %2075 = arith.mulf %2072, %2074 : vector<7x128xf32>
    %2076 = arith.addf %2055, %2075 : vector<7x128xf32>
    %2077 = vector.extract_strided_slice %1766 {offsets = [8, 0], sizes = [1, 128], strides = [1, 1]} : vector<32x128xf32> to vector<1x128xf32>
    %2078 = vector.broadcast %2077 : vector<1x128xf32> to vector<7x128xf32>
    %2079 = arith.mulf %2072, %2078 : vector<7x128xf32>
    %2080 = arith.addf %2059, %2079 : vector<7x128xf32>
    %2081 = vector.extract_strided_slice %1766 {offsets = [13, 0], sizes = [1, 128], strides = [1, 1]} : vector<32x128xf32> to vector<1x128xf32>
    %2082 = vector.broadcast %2081 : vector<1x128xf32> to vector<7x128xf32>
    %2083 = arith.mulf %2072, %2082 : vector<7x128xf32>
    %2084 = arith.addf %2063, %2083 : vector<7x128xf32>
    %2085 = vector.extract_strided_slice %1766 {offsets = [18, 0], sizes = [1, 128], strides = [1, 1]} : vector<32x128xf32> to vector<1x128xf32>
    %2086 = vector.broadcast %2085 : vector<1x128xf32> to vector<7x128xf32>
    %2087 = arith.mulf %2072, %2086 : vector<7x128xf32>
    %2088 = arith.addf %2067, %2087 : vector<7x128xf32>
    %2089 = vector.extract_strided_slice %1766 {offsets = [23, 0], sizes = [1, 128], strides = [1, 1]} : vector<32x128xf32> to vector<1x128xf32>
    %2090 = vector.broadcast %2089 : vector<1x128xf32> to vector<7x128xf32>
    %2091 = arith.mulf %2072, %2090 : vector<7x128xf32>
    %2092 = arith.addf %2071, %2091 : vector<7x128xf32>
    %2093 = vector.extract_strided_slice %1793 {offsets = [48, 0], sizes = [7, 128], strides = [1, 1]} : vector<128x128xf32> to vector<7x128xf32>
    %2094 = vector.extract_strided_slice %1766 {offsets = [4, 0], sizes = [1, 128], strides = [1, 1]} : vector<32x128xf32> to vector<1x128xf32>
    %2095 = vector.broadcast %2094 : vector<1x128xf32> to vector<7x128xf32>
    %2096 = arith.mulf %2093, %2095 : vector<7x128xf32>
    %2097 = arith.addf %2076, %2096 : vector<7x128xf32>
    %2098 = vector.extract_strided_slice %1766 {offsets = [9, 0], sizes = [1, 128], strides = [1, 1]} : vector<32x128xf32> to vector<1x128xf32>
    %2099 = vector.broadcast %2098 : vector<1x128xf32> to vector<7x128xf32>
    %2100 = arith.mulf %2093, %2099 : vector<7x128xf32>
    %2101 = arith.addf %2080, %2100 : vector<7x128xf32>
    %2102 = vector.extract_strided_slice %1766 {offsets = [14, 0], sizes = [1, 128], strides = [1, 1]} : vector<32x128xf32> to vector<1x128xf32>
    %2103 = vector.broadcast %2102 : vector<1x128xf32> to vector<7x128xf32>
    %2104 = arith.mulf %2093, %2103 : vector<7x128xf32>
    %2105 = arith.addf %2084, %2104 : vector<7x128xf32>
    %2106 = vector.extract_strided_slice %1766 {offsets = [19, 0], sizes = [1, 128], strides = [1, 1]} : vector<32x128xf32> to vector<1x128xf32>
    %2107 = vector.broadcast %2106 : vector<1x128xf32> to vector<7x128xf32>
    %2108 = arith.mulf %2093, %2107 : vector<7x128xf32>
    %2109 = arith.addf %2088, %2108 : vector<7x128xf32>
    %2110 = vector.extract_strided_slice %1766 {offsets = [24, 0], sizes = [1, 128], strides = [1, 1]} : vector<32x128xf32> to vector<1x128xf32>
    %2111 = vector.broadcast %2110 : vector<1x128xf32> to vector<7x128xf32>
    %2112 = arith.mulf %2093, %2111 : vector<7x128xf32>
    %2113 = arith.addf %2092, %2112 : vector<7x128xf32>
    %2114 = vector.extract_strided_slice %1793 {offsets = [55, 0], sizes = [7, 128], strides = [1, 1]} : vector<128x128xf32> to vector<7x128xf32>
    %2115 = vector.extract_strided_slice %1766 {offsets = [0, 0], sizes = [1, 128], strides = [1, 1]} : vector<32x128xf32> to vector<1x128xf32>
    %2116 = vector.broadcast %2115 : vector<1x128xf32> to vector<7x128xf32>
    %2117 = arith.mulf %2114, %2116 : vector<7x128xf32>
    %2118 = vector.extract_strided_slice %1766 {offsets = [5, 0], sizes = [1, 128], strides = [1, 1]} : vector<32x128xf32> to vector<1x128xf32>
    %2119 = vector.broadcast %2118 : vector<1x128xf32> to vector<7x128xf32>
    %2120 = arith.mulf %2114, %2119 : vector<7x128xf32>
    %2121 = arith.addf %2097, %2120 : vector<7x128xf32>
    %2122 = vector.extract_strided_slice %1766 {offsets = [10, 0], sizes = [1, 128], strides = [1, 1]} : vector<32x128xf32> to vector<1x128xf32>
    %2123 = vector.broadcast %2122 : vector<1x128xf32> to vector<7x128xf32>
    %2124 = arith.mulf %2114, %2123 : vector<7x128xf32>
    %2125 = arith.addf %2101, %2124 : vector<7x128xf32>
    %2126 = vector.extract_strided_slice %1766 {offsets = [15, 0], sizes = [1, 128], strides = [1, 1]} : vector<32x128xf32> to vector<1x128xf32>
    %2127 = vector.broadcast %2126 : vector<1x128xf32> to vector<7x128xf32>
    %2128 = arith.mulf %2114, %2127 : vector<7x128xf32>
    %2129 = arith.addf %2105, %2128 : vector<7x128xf32>
    %2130 = vector.extract_strided_slice %1766 {offsets = [20, 0], sizes = [1, 128], strides = [1, 1]} : vector<32x128xf32> to vector<1x128xf32>
    %2131 = vector.broadcast %2130 : vector<1x128xf32> to vector<7x128xf32>
    %2132 = arith.mulf %2114, %2131 : vector<7x128xf32>
    %2133 = arith.addf %2109, %2132 : vector<7x128xf32>
    %2134 = vector.extract_strided_slice %1793 {offsets = [56, 0], sizes = [7, 128], strides = [1, 1]} : vector<128x128xf32> to vector<7x128xf32>
    %2135 = vector.extract_strided_slice %1766 {offsets = [1, 0], sizes = [1, 128], strides = [1, 1]} : vector<32x128xf32> to vector<1x128xf32>
    %2136 = vector.broadcast %2135 : vector<1x128xf32> to vector<7x128xf32>
    %2137 = arith.mulf %2134, %2136 : vector<7x128xf32>
    %2138 = arith.addf %2117, %2137 : vector<7x128xf32>
    %2139 = vector.extract_strided_slice %1766 {offsets = [6, 0], sizes = [1, 128], strides = [1, 1]} : vector<32x128xf32> to vector<1x128xf32>
    %2140 = vector.broadcast %2139 : vector<1x128xf32> to vector<7x128xf32>
    %2141 = arith.mulf %2134, %2140 : vector<7x128xf32>
    %2142 = arith.addf %2121, %2141 : vector<7x128xf32>
    %2143 = vector.extract_strided_slice %1766 {offsets = [11, 0], sizes = [1, 128], strides = [1, 1]} : vector<32x128xf32> to vector<1x128xf32>
    %2144 = vector.broadcast %2143 : vector<1x128xf32> to vector<7x128xf32>
    %2145 = arith.mulf %2134, %2144 : vector<7x128xf32>
    %2146 = arith.addf %2125, %2145 : vector<7x128xf32>
    %2147 = vector.extract_strided_slice %1766 {offsets = [16, 0], sizes = [1, 128], strides = [1, 1]} : vector<32x128xf32> to vector<1x128xf32>
    %2148 = vector.broadcast %2147 : vector<1x128xf32> to vector<7x128xf32>
    %2149 = arith.mulf %2134, %2148 : vector<7x128xf32>
    %2150 = arith.addf %2129, %2149 : vector<7x128xf32>
    %2151 = vector.extract_strided_slice %1766 {offsets = [21, 0], sizes = [1, 128], strides = [1, 1]} : vector<32x128xf32> to vector<1x128xf32>
    %2152 = vector.broadcast %2151 : vector<1x128xf32> to vector<7x128xf32>
    %2153 = arith.mulf %2134, %2152 : vector<7x128xf32>
    %2154 = arith.addf %2133, %2153 : vector<7x128xf32>
    %2155 = vector.extract_strided_slice %1793 {offsets = [57, 0], sizes = [7, 128], strides = [1, 1]} : vector<128x128xf32> to vector<7x128xf32>
    %2156 = vector.extract_strided_slice %1766 {offsets = [2, 0], sizes = [1, 128], strides = [1, 1]} : vector<32x128xf32> to vector<1x128xf32>
    %2157 = vector.broadcast %2156 : vector<1x128xf32> to vector<7x128xf32>
    %2158 = arith.mulf %2155, %2157 : vector<7x128xf32>
    %2159 = arith.addf %2138, %2158 : vector<7x128xf32>
    %2160 = vector.extract_strided_slice %1766 {offsets = [7, 0], sizes = [1, 128], strides = [1, 1]} : vector<32x128xf32> to vector<1x128xf32>
    %2161 = vector.broadcast %2160 : vector<1x128xf32> to vector<7x128xf32>
    %2162 = arith.mulf %2155, %2161 : vector<7x128xf32>
    %2163 = arith.addf %2142, %2162 : vector<7x128xf32>
    %2164 = vector.extract_strided_slice %1766 {offsets = [12, 0], sizes = [1, 128], strides = [1, 1]} : vector<32x128xf32> to vector<1x128xf32>
    %2165 = vector.broadcast %2164 : vector<1x128xf32> to vector<7x128xf32>
    %2166 = arith.mulf %2155, %2165 : vector<7x128xf32>
    %2167 = arith.addf %2146, %2166 : vector<7x128xf32>
    %2168 = vector.extract_strided_slice %1766 {offsets = [17, 0], sizes = [1, 128], strides = [1, 1]} : vector<32x128xf32> to vector<1x128xf32>
    %2169 = vector.broadcast %2168 : vector<1x128xf32> to vector<7x128xf32>
    %2170 = arith.mulf %2155, %2169 : vector<7x128xf32>
    %2171 = arith.addf %2150, %2170 : vector<7x128xf32>
    %2172 = vector.extract_strided_slice %1766 {offsets = [22, 0], sizes = [1, 128], strides = [1, 1]} : vector<32x128xf32> to vector<1x128xf32>
    %2173 = vector.broadcast %2172 : vector<1x128xf32> to vector<7x128xf32>
    %2174 = arith.mulf %2155, %2173 : vector<7x128xf32>
    %2175 = arith.addf %2154, %2174 : vector<7x128xf32>
    %2176 = vector.extract_strided_slice %1793 {offsets = [58, 0], sizes = [7, 128], strides = [1, 1]} : vector<128x128xf32> to vector<7x128xf32>
    %2177 = vector.extract_strided_slice %1766 {offsets = [3, 0], sizes = [1, 128], strides = [1, 1]} : vector<32x128xf32> to vector<1x128xf32>
    %2178 = vector.broadcast %2177 : vector<1x128xf32> to vector<7x128xf32>
    %2179 = arith.mulf %2176, %2178 : vector<7x128xf32>
    %2180 = arith.addf %2159, %2179 : vector<7x128xf32>
    %2181 = vector.extract_strided_slice %1766 {offsets = [8, 0], sizes = [1, 128], strides = [1, 1]} : vector<32x128xf32> to vector<1x128xf32>
    %2182 = vector.broadcast %2181 : vector<1x128xf32> to vector<7x128xf32>
    %2183 = arith.mulf %2176, %2182 : vector<7x128xf32>
    %2184 = arith.addf %2163, %2183 : vector<7x128xf32>
    %2185 = vector.extract_strided_slice %1766 {offsets = [13, 0], sizes = [1, 128], strides = [1, 1]} : vector<32x128xf32> to vector<1x128xf32>
    %2186 = vector.broadcast %2185 : vector<1x128xf32> to vector<7x128xf32>
    %2187 = arith.mulf %2176, %2186 : vector<7x128xf32>
    %2188 = arith.addf %2167, %2187 : vector<7x128xf32>
    %2189 = vector.extract_strided_slice %1766 {offsets = [18, 0], sizes = [1, 128], strides = [1, 1]} : vector<32x128xf32> to vector<1x128xf32>
    %2190 = vector.broadcast %2189 : vector<1x128xf32> to vector<7x128xf32>
    %2191 = arith.mulf %2176, %2190 : vector<7x128xf32>
    %2192 = arith.addf %2171, %2191 : vector<7x128xf32>
    %2193 = vector.extract_strided_slice %1766 {offsets = [23, 0], sizes = [1, 128], strides = [1, 1]} : vector<32x128xf32> to vector<1x128xf32>
    %2194 = vector.broadcast %2193 : vector<1x128xf32> to vector<7x128xf32>
    %2195 = arith.mulf %2176, %2194 : vector<7x128xf32>
    %2196 = arith.addf %2175, %2195 : vector<7x128xf32>
    %2197 = vector.extract_strided_slice %1793 {offsets = [59, 0], sizes = [7, 128], strides = [1, 1]} : vector<128x128xf32> to vector<7x128xf32>
    %2198 = vector.extract_strided_slice %1766 {offsets = [4, 0], sizes = [1, 128], strides = [1, 1]} : vector<32x128xf32> to vector<1x128xf32>
    %2199 = vector.broadcast %2198 : vector<1x128xf32> to vector<7x128xf32>
    %2200 = arith.mulf %2197, %2199 : vector<7x128xf32>
    %2201 = arith.addf %2180, %2200 : vector<7x128xf32>
    %2202 = vector.extract_strided_slice %1766 {offsets = [9, 0], sizes = [1, 128], strides = [1, 1]} : vector<32x128xf32> to vector<1x128xf32>
    %2203 = vector.broadcast %2202 : vector<1x128xf32> to vector<7x128xf32>
    %2204 = arith.mulf %2197, %2203 : vector<7x128xf32>
    %2205 = arith.addf %2184, %2204 : vector<7x128xf32>
    %2206 = vector.extract_strided_slice %1766 {offsets = [14, 0], sizes = [1, 128], strides = [1, 1]} : vector<32x128xf32> to vector<1x128xf32>
    %2207 = vector.broadcast %2206 : vector<1x128xf32> to vector<7x128xf32>
    %2208 = arith.mulf %2197, %2207 : vector<7x128xf32>
    %2209 = arith.addf %2188, %2208 : vector<7x128xf32>
    %2210 = vector.extract_strided_slice %1766 {offsets = [19, 0], sizes = [1, 128], strides = [1, 1]} : vector<32x128xf32> to vector<1x128xf32>
    %2211 = vector.broadcast %2210 : vector<1x128xf32> to vector<7x128xf32>
    %2212 = arith.mulf %2197, %2211 : vector<7x128xf32>
    %2213 = arith.addf %2192, %2212 : vector<7x128xf32>
    %2214 = vector.extract_strided_slice %1766 {offsets = [24, 0], sizes = [1, 128], strides = [1, 1]} : vector<32x128xf32> to vector<1x128xf32>
    %2215 = vector.broadcast %2214 : vector<1x128xf32> to vector<7x128xf32>
    %2216 = arith.mulf %2197, %2215 : vector<7x128xf32>
    %2217 = arith.addf %2196, %2216 : vector<7x128xf32>
    %2218 = vector.extract_strided_slice %1793 {offsets = [66, 0], sizes = [7, 128], strides = [1, 1]} : vector<128x128xf32> to vector<7x128xf32>
    %2219 = vector.extract_strided_slice %1766 {offsets = [0, 0], sizes = [1, 128], strides = [1, 1]} : vector<32x128xf32> to vector<1x128xf32>
    %2220 = vector.broadcast %2219 : vector<1x128xf32> to vector<7x128xf32>
    %2221 = arith.mulf %2218, %2220 : vector<7x128xf32>
    %2222 = vector.extract_strided_slice %1766 {offsets = [5, 0], sizes = [1, 128], strides = [1, 1]} : vector<32x128xf32> to vector<1x128xf32>
    %2223 = vector.broadcast %2222 : vector<1x128xf32> to vector<7x128xf32>
    %2224 = arith.mulf %2218, %2223 : vector<7x128xf32>
    %2225 = arith.addf %2201, %2224 : vector<7x128xf32>
    %2226 = vector.extract_strided_slice %1766 {offsets = [10, 0], sizes = [1, 128], strides = [1, 1]} : vector<32x128xf32> to vector<1x128xf32>
    %2227 = vector.broadcast %2226 : vector<1x128xf32> to vector<7x128xf32>
    %2228 = arith.mulf %2218, %2227 : vector<7x128xf32>
    %2229 = arith.addf %2205, %2228 : vector<7x128xf32>
    %2230 = vector.extract_strided_slice %1766 {offsets = [15, 0], sizes = [1, 128], strides = [1, 1]} : vector<32x128xf32> to vector<1x128xf32>
    %2231 = vector.broadcast %2230 : vector<1x128xf32> to vector<7x128xf32>
    %2232 = arith.mulf %2218, %2231 : vector<7x128xf32>
    %2233 = arith.addf %2209, %2232 : vector<7x128xf32>
    %2234 = vector.extract_strided_slice %1766 {offsets = [20, 0], sizes = [1, 128], strides = [1, 1]} : vector<32x128xf32> to vector<1x128xf32>
    %2235 = vector.broadcast %2234 : vector<1x128xf32> to vector<7x128xf32>
    %2236 = arith.mulf %2218, %2235 : vector<7x128xf32>
    %2237 = arith.addf %2213, %2236 : vector<7x128xf32>
    %2238 = vector.extract_strided_slice %1793 {offsets = [67, 0], sizes = [7, 128], strides = [1, 1]} : vector<128x128xf32> to vector<7x128xf32>
    %2239 = vector.extract_strided_slice %1766 {offsets = [1, 0], sizes = [1, 128], strides = [1, 1]} : vector<32x128xf32> to vector<1x128xf32>
    %2240 = vector.broadcast %2239 : vector<1x128xf32> to vector<7x128xf32>
    %2241 = arith.mulf %2238, %2240 : vector<7x128xf32>
    %2242 = arith.addf %2221, %2241 : vector<7x128xf32>
    %2243 = vector.extract_strided_slice %1766 {offsets = [6, 0], sizes = [1, 128], strides = [1, 1]} : vector<32x128xf32> to vector<1x128xf32>
    %2244 = vector.broadcast %2243 : vector<1x128xf32> to vector<7x128xf32>
    %2245 = arith.mulf %2238, %2244 : vector<7x128xf32>
    %2246 = arith.addf %2225, %2245 : vector<7x128xf32>
    %2247 = vector.extract_strided_slice %1766 {offsets = [11, 0], sizes = [1, 128], strides = [1, 1]} : vector<32x128xf32> to vector<1x128xf32>
    %2248 = vector.broadcast %2247 : vector<1x128xf32> to vector<7x128xf32>
    %2249 = arith.mulf %2238, %2248 : vector<7x128xf32>
    %2250 = arith.addf %2229, %2249 : vector<7x128xf32>
    %2251 = vector.extract_strided_slice %1766 {offsets = [16, 0], sizes = [1, 128], strides = [1, 1]} : vector<32x128xf32> to vector<1x128xf32>
    %2252 = vector.broadcast %2251 : vector<1x128xf32> to vector<7x128xf32>
    %2253 = arith.mulf %2238, %2252 : vector<7x128xf32>
    %2254 = arith.addf %2233, %2253 : vector<7x128xf32>
    %2255 = vector.extract_strided_slice %1766 {offsets = [21, 0], sizes = [1, 128], strides = [1, 1]} : vector<32x128xf32> to vector<1x128xf32>
    %2256 = vector.broadcast %2255 : vector<1x128xf32> to vector<7x128xf32>
    %2257 = arith.mulf %2238, %2256 : vector<7x128xf32>
    %2258 = arith.addf %2237, %2257 : vector<7x128xf32>
    %2259 = vector.extract_strided_slice %1793 {offsets = [68, 0], sizes = [7, 128], strides = [1, 1]} : vector<128x128xf32> to vector<7x128xf32>
    %2260 = vector.extract_strided_slice %1766 {offsets = [2, 0], sizes = [1, 128], strides = [1, 1]} : vector<32x128xf32> to vector<1x128xf32>
    %2261 = vector.broadcast %2260 : vector<1x128xf32> to vector<7x128xf32>
    %2262 = arith.mulf %2259, %2261 : vector<7x128xf32>
    %2263 = arith.addf %2242, %2262 : vector<7x128xf32>
    %2264 = vector.extract_strided_slice %1766 {offsets = [7, 0], sizes = [1, 128], strides = [1, 1]} : vector<32x128xf32> to vector<1x128xf32>
    %2265 = vector.broadcast %2264 : vector<1x128xf32> to vector<7x128xf32>
    %2266 = arith.mulf %2259, %2265 : vector<7x128xf32>
    %2267 = arith.addf %2246, %2266 : vector<7x128xf32>
    %2268 = vector.extract_strided_slice %1766 {offsets = [12, 0], sizes = [1, 128], strides = [1, 1]} : vector<32x128xf32> to vector<1x128xf32>
    %2269 = vector.broadcast %2268 : vector<1x128xf32> to vector<7x128xf32>
    %2270 = arith.mulf %2259, %2269 : vector<7x128xf32>
    %2271 = arith.addf %2250, %2270 : vector<7x128xf32>
    %2272 = vector.extract_strided_slice %1766 {offsets = [17, 0], sizes = [1, 128], strides = [1, 1]} : vector<32x128xf32> to vector<1x128xf32>
    %2273 = vector.broadcast %2272 : vector<1x128xf32> to vector<7x128xf32>
    %2274 = arith.mulf %2259, %2273 : vector<7x128xf32>
    %2275 = arith.addf %2254, %2274 : vector<7x128xf32>
    %2276 = vector.extract_strided_slice %1766 {offsets = [22, 0], sizes = [1, 128], strides = [1, 1]} : vector<32x128xf32> to vector<1x128xf32>
    %2277 = vector.broadcast %2276 : vector<1x128xf32> to vector<7x128xf32>
    %2278 = arith.mulf %2259, %2277 : vector<7x128xf32>
    %2279 = arith.addf %2258, %2278 : vector<7x128xf32>
    %2280 = vector.extract_strided_slice %1793 {offsets = [69, 0], sizes = [7, 128], strides = [1, 1]} : vector<128x128xf32> to vector<7x128xf32>
    %2281 = vector.extract_strided_slice %1766 {offsets = [3, 0], sizes = [1, 128], strides = [1, 1]} : vector<32x128xf32> to vector<1x128xf32>
    %2282 = vector.broadcast %2281 : vector<1x128xf32> to vector<7x128xf32>
    %2283 = arith.mulf %2280, %2282 : vector<7x128xf32>
    %2284 = arith.addf %2263, %2283 : vector<7x128xf32>
    %2285 = vector.extract_strided_slice %1766 {offsets = [8, 0], sizes = [1, 128], strides = [1, 1]} : vector<32x128xf32> to vector<1x128xf32>
    %2286 = vector.broadcast %2285 : vector<1x128xf32> to vector<7x128xf32>
    %2287 = arith.mulf %2280, %2286 : vector<7x128xf32>
    %2288 = arith.addf %2267, %2287 : vector<7x128xf32>
    %2289 = vector.extract_strided_slice %1766 {offsets = [13, 0], sizes = [1, 128], strides = [1, 1]} : vector<32x128xf32> to vector<1x128xf32>
    %2290 = vector.broadcast %2289 : vector<1x128xf32> to vector<7x128xf32>
    %2291 = arith.mulf %2280, %2290 : vector<7x128xf32>
    %2292 = arith.addf %2271, %2291 : vector<7x128xf32>
    %2293 = vector.extract_strided_slice %1766 {offsets = [18, 0], sizes = [1, 128], strides = [1, 1]} : vector<32x128xf32> to vector<1x128xf32>
    %2294 = vector.broadcast %2293 : vector<1x128xf32> to vector<7x128xf32>
    %2295 = arith.mulf %2280, %2294 : vector<7x128xf32>
    %2296 = arith.addf %2275, %2295 : vector<7x128xf32>
    %2297 = vector.extract_strided_slice %1766 {offsets = [23, 0], sizes = [1, 128], strides = [1, 1]} : vector<32x128xf32> to vector<1x128xf32>
    %2298 = vector.broadcast %2297 : vector<1x128xf32> to vector<7x128xf32>
    %2299 = arith.mulf %2280, %2298 : vector<7x128xf32>
    %2300 = arith.addf %2279, %2299 : vector<7x128xf32>
    %2301 = vector.extract_strided_slice %1793 {offsets = [70, 0], sizes = [7, 128], strides = [1, 1]} : vector<128x128xf32> to vector<7x128xf32>
    %2302 = vector.extract_strided_slice %1766 {offsets = [4, 0], sizes = [1, 128], strides = [1, 1]} : vector<32x128xf32> to vector<1x128xf32>
    %2303 = vector.broadcast %2302 : vector<1x128xf32> to vector<7x128xf32>
    %2304 = arith.mulf %2301, %2303 : vector<7x128xf32>
    %2305 = arith.addf %2284, %2304 : vector<7x128xf32>
    %2306 = vector.extract_strided_slice %1766 {offsets = [9, 0], sizes = [1, 128], strides = [1, 1]} : vector<32x128xf32> to vector<1x128xf32>
    %2307 = vector.broadcast %2306 : vector<1x128xf32> to vector<7x128xf32>
    %2308 = arith.mulf %2301, %2307 : vector<7x128xf32>
    %2309 = arith.addf %2288, %2308 : vector<7x128xf32>
    %2310 = vector.extract_strided_slice %1766 {offsets = [14, 0], sizes = [1, 128], strides = [1, 1]} : vector<32x128xf32> to vector<1x128xf32>
    %2311 = vector.broadcast %2310 : vector<1x128xf32> to vector<7x128xf32>
    %2312 = arith.mulf %2301, %2311 : vector<7x128xf32>
    %2313 = arith.addf %2292, %2312 : vector<7x128xf32>
    %2314 = vector.extract_strided_slice %1766 {offsets = [19, 0], sizes = [1, 128], strides = [1, 1]} : vector<32x128xf32> to vector<1x128xf32>
    %2315 = vector.broadcast %2314 : vector<1x128xf32> to vector<7x128xf32>
    %2316 = arith.mulf %2301, %2315 : vector<7x128xf32>
    %2317 = arith.addf %2296, %2316 : vector<7x128xf32>
    %2318 = vector.extract_strided_slice %1766 {offsets = [24, 0], sizes = [1, 128], strides = [1, 1]} : vector<32x128xf32> to vector<1x128xf32>
    %2319 = vector.broadcast %2318 : vector<1x128xf32> to vector<7x128xf32>
    %2320 = arith.mulf %2301, %2319 : vector<7x128xf32>
    %2321 = arith.addf %2300, %2320 : vector<7x128xf32>
    %2322 = vector.extract_strided_slice %1793 {offsets = [77, 0], sizes = [7, 128], strides = [1, 1]} : vector<128x128xf32> to vector<7x128xf32>
    %2323 = vector.extract_strided_slice %1766 {offsets = [5, 0], sizes = [1, 128], strides = [1, 1]} : vector<32x128xf32> to vector<1x128xf32>
    %2324 = vector.broadcast %2323 : vector<1x128xf32> to vector<7x128xf32>
    %2325 = arith.mulf %2322, %2324 : vector<7x128xf32>
    %2326 = arith.addf %2305, %2325 : vector<7x128xf32>
    %2327 = vector.extract_strided_slice %1766 {offsets = [10, 0], sizes = [1, 128], strides = [1, 1]} : vector<32x128xf32> to vector<1x128xf32>
    %2328 = vector.broadcast %2327 : vector<1x128xf32> to vector<7x128xf32>
    %2329 = arith.mulf %2322, %2328 : vector<7x128xf32>
    %2330 = arith.addf %2309, %2329 : vector<7x128xf32>
    %2331 = vector.extract_strided_slice %1766 {offsets = [15, 0], sizes = [1, 128], strides = [1, 1]} : vector<32x128xf32> to vector<1x128xf32>
    %2332 = vector.broadcast %2331 : vector<1x128xf32> to vector<7x128xf32>
    %2333 = arith.mulf %2322, %2332 : vector<7x128xf32>
    %2334 = arith.addf %2313, %2333 : vector<7x128xf32>
    %2335 = vector.extract_strided_slice %1766 {offsets = [20, 0], sizes = [1, 128], strides = [1, 1]} : vector<32x128xf32> to vector<1x128xf32>
    %2336 = vector.broadcast %2335 : vector<1x128xf32> to vector<7x128xf32>
    %2337 = arith.mulf %2322, %2336 : vector<7x128xf32>
    %2338 = arith.addf %2317, %2337 : vector<7x128xf32>
    %2339 = vector.extract_strided_slice %1793 {offsets = [78, 0], sizes = [7, 128], strides = [1, 1]} : vector<128x128xf32> to vector<7x128xf32>
    %2340 = vector.extract_strided_slice %1766 {offsets = [6, 0], sizes = [1, 128], strides = [1, 1]} : vector<32x128xf32> to vector<1x128xf32>
    %2341 = vector.broadcast %2340 : vector<1x128xf32> to vector<7x128xf32>
    %2342 = arith.mulf %2339, %2341 : vector<7x128xf32>
    %2343 = arith.addf %2326, %2342 : vector<7x128xf32>
    %2344 = vector.extract_strided_slice %1766 {offsets = [11, 0], sizes = [1, 128], strides = [1, 1]} : vector<32x128xf32> to vector<1x128xf32>
    %2345 = vector.broadcast %2344 : vector<1x128xf32> to vector<7x128xf32>
    %2346 = arith.mulf %2339, %2345 : vector<7x128xf32>
    %2347 = arith.addf %2330, %2346 : vector<7x128xf32>
    %2348 = vector.extract_strided_slice %1766 {offsets = [16, 0], sizes = [1, 128], strides = [1, 1]} : vector<32x128xf32> to vector<1x128xf32>
    %2349 = vector.broadcast %2348 : vector<1x128xf32> to vector<7x128xf32>
    %2350 = arith.mulf %2339, %2349 : vector<7x128xf32>
    %2351 = arith.addf %2334, %2350 : vector<7x128xf32>
    %2352 = vector.extract_strided_slice %1766 {offsets = [21, 0], sizes = [1, 128], strides = [1, 1]} : vector<32x128xf32> to vector<1x128xf32>
    %2353 = vector.broadcast %2352 : vector<1x128xf32> to vector<7x128xf32>
    %2354 = arith.mulf %2339, %2353 : vector<7x128xf32>
    %2355 = arith.addf %2338, %2354 : vector<7x128xf32>
    %2356 = vector.extract_strided_slice %1793 {offsets = [79, 0], sizes = [7, 128], strides = [1, 1]} : vector<128x128xf32> to vector<7x128xf32>
    %2357 = vector.extract_strided_slice %1766 {offsets = [7, 0], sizes = [1, 128], strides = [1, 1]} : vector<32x128xf32> to vector<1x128xf32>
    %2358 = vector.broadcast %2357 : vector<1x128xf32> to vector<7x128xf32>
    %2359 = arith.mulf %2356, %2358 : vector<7x128xf32>
    %2360 = arith.addf %2343, %2359 : vector<7x128xf32>
    %2361 = vector.extract_strided_slice %1766 {offsets = [12, 0], sizes = [1, 128], strides = [1, 1]} : vector<32x128xf32> to vector<1x128xf32>
    %2362 = vector.broadcast %2361 : vector<1x128xf32> to vector<7x128xf32>
    %2363 = arith.mulf %2356, %2362 : vector<7x128xf32>
    %2364 = arith.addf %2347, %2363 : vector<7x128xf32>
    %2365 = vector.extract_strided_slice %1766 {offsets = [17, 0], sizes = [1, 128], strides = [1, 1]} : vector<32x128xf32> to vector<1x128xf32>
    %2366 = vector.broadcast %2365 : vector<1x128xf32> to vector<7x128xf32>
    %2367 = arith.mulf %2356, %2366 : vector<7x128xf32>
    %2368 = arith.addf %2351, %2367 : vector<7x128xf32>
    %2369 = vector.extract_strided_slice %1766 {offsets = [22, 0], sizes = [1, 128], strides = [1, 1]} : vector<32x128xf32> to vector<1x128xf32>
    %2370 = vector.broadcast %2369 : vector<1x128xf32> to vector<7x128xf32>
    %2371 = arith.mulf %2356, %2370 : vector<7x128xf32>
    %2372 = arith.addf %2355, %2371 : vector<7x128xf32>
    %2373 = vector.extract_strided_slice %1793 {offsets = [80, 0], sizes = [7, 128], strides = [1, 1]} : vector<128x128xf32> to vector<7x128xf32>
    %2374 = vector.extract_strided_slice %1766 {offsets = [8, 0], sizes = [1, 128], strides = [1, 1]} : vector<32x128xf32> to vector<1x128xf32>
    %2375 = vector.broadcast %2374 : vector<1x128xf32> to vector<7x128xf32>
    %2376 = arith.mulf %2373, %2375 : vector<7x128xf32>
    %2377 = arith.addf %2360, %2376 : vector<7x128xf32>
    %2378 = vector.extract_strided_slice %1766 {offsets = [13, 0], sizes = [1, 128], strides = [1, 1]} : vector<32x128xf32> to vector<1x128xf32>
    %2379 = vector.broadcast %2378 : vector<1x128xf32> to vector<7x128xf32>
    %2380 = arith.mulf %2373, %2379 : vector<7x128xf32>
    %2381 = arith.addf %2364, %2380 : vector<7x128xf32>
    %2382 = vector.extract_strided_slice %1766 {offsets = [18, 0], sizes = [1, 128], strides = [1, 1]} : vector<32x128xf32> to vector<1x128xf32>
    %2383 = vector.broadcast %2382 : vector<1x128xf32> to vector<7x128xf32>
    %2384 = arith.mulf %2373, %2383 : vector<7x128xf32>
    %2385 = arith.addf %2368, %2384 : vector<7x128xf32>
    %2386 = vector.extract_strided_slice %1766 {offsets = [23, 0], sizes = [1, 128], strides = [1, 1]} : vector<32x128xf32> to vector<1x128xf32>
    %2387 = vector.broadcast %2386 : vector<1x128xf32> to vector<7x128xf32>
    %2388 = arith.mulf %2373, %2387 : vector<7x128xf32>
    %2389 = arith.addf %2372, %2388 : vector<7x128xf32>
    %2390 = vector.extract_strided_slice %1793 {offsets = [81, 0], sizes = [7, 128], strides = [1, 1]} : vector<128x128xf32> to vector<7x128xf32>
    %2391 = vector.extract_strided_slice %1766 {offsets = [9, 0], sizes = [1, 128], strides = [1, 1]} : vector<32x128xf32> to vector<1x128xf32>
    %2392 = vector.broadcast %2391 : vector<1x128xf32> to vector<7x128xf32>
    %2393 = arith.mulf %2390, %2392 : vector<7x128xf32>
    %2394 = arith.addf %2377, %2393 : vector<7x128xf32>
    %2395 = vector.extract_strided_slice %1766 {offsets = [14, 0], sizes = [1, 128], strides = [1, 1]} : vector<32x128xf32> to vector<1x128xf32>
    %2396 = vector.broadcast %2395 : vector<1x128xf32> to vector<7x128xf32>
    %2397 = arith.mulf %2390, %2396 : vector<7x128xf32>
    %2398 = arith.addf %2381, %2397 : vector<7x128xf32>
    %2399 = vector.extract_strided_slice %1766 {offsets = [19, 0], sizes = [1, 128], strides = [1, 1]} : vector<32x128xf32> to vector<1x128xf32>
    %2400 = vector.broadcast %2399 : vector<1x128xf32> to vector<7x128xf32>
    %2401 = arith.mulf %2390, %2400 : vector<7x128xf32>
    %2402 = arith.addf %2385, %2401 : vector<7x128xf32>
    %2403 = vector.extract_strided_slice %1766 {offsets = [24, 0], sizes = [1, 128], strides = [1, 1]} : vector<32x128xf32> to vector<1x128xf32>
    %2404 = vector.broadcast %2403 : vector<1x128xf32> to vector<7x128xf32>
    %2405 = arith.mulf %2390, %2404 : vector<7x128xf32>
    %2406 = arith.addf %2389, %2405 : vector<7x128xf32>
    %2407 = vector.extract_strided_slice %1793 {offsets = [88, 0], sizes = [7, 128], strides = [1, 1]} : vector<128x128xf32> to vector<7x128xf32>
    %2408 = vector.extract_strided_slice %1766 {offsets = [10, 0], sizes = [1, 128], strides = [1, 1]} : vector<32x128xf32> to vector<1x128xf32>
    %2409 = vector.broadcast %2408 : vector<1x128xf32> to vector<7x128xf32>
    %2410 = arith.mulf %2407, %2409 : vector<7x128xf32>
    %2411 = arith.addf %2394, %2410 : vector<7x128xf32>
    %2412 = vector.extract_strided_slice %1766 {offsets = [15, 0], sizes = [1, 128], strides = [1, 1]} : vector<32x128xf32> to vector<1x128xf32>
    %2413 = vector.broadcast %2412 : vector<1x128xf32> to vector<7x128xf32>
    %2414 = arith.mulf %2407, %2413 : vector<7x128xf32>
    %2415 = arith.addf %2398, %2414 : vector<7x128xf32>
    %2416 = vector.extract_strided_slice %1766 {offsets = [20, 0], sizes = [1, 128], strides = [1, 1]} : vector<32x128xf32> to vector<1x128xf32>
    %2417 = vector.broadcast %2416 : vector<1x128xf32> to vector<7x128xf32>
    %2418 = arith.mulf %2407, %2417 : vector<7x128xf32>
    %2419 = arith.addf %2402, %2418 : vector<7x128xf32>
    %2420 = vector.extract_strided_slice %1793 {offsets = [89, 0], sizes = [7, 128], strides = [1, 1]} : vector<128x128xf32> to vector<7x128xf32>
    %2421 = vector.extract_strided_slice %1766 {offsets = [11, 0], sizes = [1, 128], strides = [1, 1]} : vector<32x128xf32> to vector<1x128xf32>
    %2422 = vector.broadcast %2421 : vector<1x128xf32> to vector<7x128xf32>
    %2423 = arith.mulf %2420, %2422 : vector<7x128xf32>
    %2424 = arith.addf %2411, %2423 : vector<7x128xf32>
    %2425 = vector.extract_strided_slice %1766 {offsets = [16, 0], sizes = [1, 128], strides = [1, 1]} : vector<32x128xf32> to vector<1x128xf32>
    %2426 = vector.broadcast %2425 : vector<1x128xf32> to vector<7x128xf32>
    %2427 = arith.mulf %2420, %2426 : vector<7x128xf32>
    %2428 = arith.addf %2415, %2427 : vector<7x128xf32>
    %2429 = vector.extract_strided_slice %1766 {offsets = [21, 0], sizes = [1, 128], strides = [1, 1]} : vector<32x128xf32> to vector<1x128xf32>
    %2430 = vector.broadcast %2429 : vector<1x128xf32> to vector<7x128xf32>
    %2431 = arith.mulf %2420, %2430 : vector<7x128xf32>
    %2432 = arith.addf %2419, %2431 : vector<7x128xf32>
    %2433 = vector.extract_strided_slice %1793 {offsets = [90, 0], sizes = [7, 128], strides = [1, 1]} : vector<128x128xf32> to vector<7x128xf32>
    %2434 = vector.extract_strided_slice %1766 {offsets = [12, 0], sizes = [1, 128], strides = [1, 1]} : vector<32x128xf32> to vector<1x128xf32>
    %2435 = vector.broadcast %2434 : vector<1x128xf32> to vector<7x128xf32>
    %2436 = arith.mulf %2433, %2435 : vector<7x128xf32>
    %2437 = arith.addf %2424, %2436 : vector<7x128xf32>
    %2438 = vector.extract_strided_slice %1766 {offsets = [17, 0], sizes = [1, 128], strides = [1, 1]} : vector<32x128xf32> to vector<1x128xf32>
    %2439 = vector.broadcast %2438 : vector<1x128xf32> to vector<7x128xf32>
    %2440 = arith.mulf %2433, %2439 : vector<7x128xf32>
    %2441 = arith.addf %2428, %2440 : vector<7x128xf32>
    %2442 = vector.extract_strided_slice %1766 {offsets = [22, 0], sizes = [1, 128], strides = [1, 1]} : vector<32x128xf32> to vector<1x128xf32>
    %2443 = vector.broadcast %2442 : vector<1x128xf32> to vector<7x128xf32>
    %2444 = arith.mulf %2433, %2443 : vector<7x128xf32>
    %2445 = arith.addf %2432, %2444 : vector<7x128xf32>
    %2446 = vector.extract_strided_slice %1793 {offsets = [91, 0], sizes = [7, 128], strides = [1, 1]} : vector<128x128xf32> to vector<7x128xf32>
    %2447 = vector.extract_strided_slice %1766 {offsets = [13, 0], sizes = [1, 128], strides = [1, 1]} : vector<32x128xf32> to vector<1x128xf32>
    %2448 = vector.broadcast %2447 : vector<1x128xf32> to vector<7x128xf32>
    %2449 = arith.mulf %2446, %2448 : vector<7x128xf32>
    %2450 = arith.addf %2437, %2449 : vector<7x128xf32>
    %2451 = vector.extract_strided_slice %1766 {offsets = [18, 0], sizes = [1, 128], strides = [1, 1]} : vector<32x128xf32> to vector<1x128xf32>
    %2452 = vector.broadcast %2451 : vector<1x128xf32> to vector<7x128xf32>
    %2453 = arith.mulf %2446, %2452 : vector<7x128xf32>
    %2454 = arith.addf %2441, %2453 : vector<7x128xf32>
    %2455 = vector.extract_strided_slice %1766 {offsets = [23, 0], sizes = [1, 128], strides = [1, 1]} : vector<32x128xf32> to vector<1x128xf32>
    %2456 = vector.broadcast %2455 : vector<1x128xf32> to vector<7x128xf32>
    %2457 = arith.mulf %2446, %2456 : vector<7x128xf32>
    %2458 = arith.addf %2445, %2457 : vector<7x128xf32>
    %2459 = vector.extract_strided_slice %1793 {offsets = [92, 0], sizes = [7, 128], strides = [1, 1]} : vector<128x128xf32> to vector<7x128xf32>
    %2460 = vector.extract_strided_slice %1766 {offsets = [14, 0], sizes = [1, 128], strides = [1, 1]} : vector<32x128xf32> to vector<1x128xf32>
    %2461 = vector.broadcast %2460 : vector<1x128xf32> to vector<7x128xf32>
    %2462 = arith.mulf %2459, %2461 : vector<7x128xf32>
    %2463 = arith.addf %2450, %2462 : vector<7x128xf32>
    %2464 = vector.extract_strided_slice %1766 {offsets = [19, 0], sizes = [1, 128], strides = [1, 1]} : vector<32x128xf32> to vector<1x128xf32>
    %2465 = vector.broadcast %2464 : vector<1x128xf32> to vector<7x128xf32>
    %2466 = arith.mulf %2459, %2465 : vector<7x128xf32>
    %2467 = arith.addf %2454, %2466 : vector<7x128xf32>
    %2468 = vector.extract_strided_slice %1766 {offsets = [24, 0], sizes = [1, 128], strides = [1, 1]} : vector<32x128xf32> to vector<1x128xf32>
    %2469 = vector.broadcast %2468 : vector<1x128xf32> to vector<7x128xf32>
    %2470 = arith.mulf %2459, %2469 : vector<7x128xf32>
    %2471 = arith.addf %2458, %2470 : vector<7x128xf32>
    %2472 = vector.extract_strided_slice %1793 {offsets = [99, 0], sizes = [7, 128], strides = [1, 1]} : vector<128x128xf32> to vector<7x128xf32>
    %2473 = vector.extract_strided_slice %1766 {offsets = [15, 0], sizes = [1, 128], strides = [1, 1]} : vector<32x128xf32> to vector<1x128xf32>
    %2474 = vector.broadcast %2473 : vector<1x128xf32> to vector<7x128xf32>
    %2475 = arith.mulf %2472, %2474 : vector<7x128xf32>
    %2476 = arith.addf %2463, %2475 : vector<7x128xf32>
    %2477 = vector.extract_strided_slice %1766 {offsets = [20, 0], sizes = [1, 128], strides = [1, 1]} : vector<32x128xf32> to vector<1x128xf32>
    %2478 = vector.broadcast %2477 : vector<1x128xf32> to vector<7x128xf32>
    %2479 = arith.mulf %2472, %2478 : vector<7x128xf32>
    %2480 = arith.addf %2467, %2479 : vector<7x128xf32>
    %2481 = vector.extract_strided_slice %1793 {offsets = [100, 0], sizes = [7, 128], strides = [1, 1]} : vector<128x128xf32> to vector<7x128xf32>
    %2482 = vector.extract_strided_slice %1766 {offsets = [16, 0], sizes = [1, 128], strides = [1, 1]} : vector<32x128xf32> to vector<1x128xf32>
    %2483 = vector.broadcast %2482 : vector<1x128xf32> to vector<7x128xf32>
    %2484 = arith.mulf %2481, %2483 : vector<7x128xf32>
    %2485 = arith.addf %2476, %2484 : vector<7x128xf32>
    %2486 = vector.extract_strided_slice %1766 {offsets = [21, 0], sizes = [1, 128], strides = [1, 1]} : vector<32x128xf32> to vector<1x128xf32>
    %2487 = vector.broadcast %2486 : vector<1x128xf32> to vector<7x128xf32>
    %2488 = arith.mulf %2481, %2487 : vector<7x128xf32>
    %2489 = arith.addf %2480, %2488 : vector<7x128xf32>
    %2490 = vector.extract_strided_slice %1793 {offsets = [101, 0], sizes = [7, 128], strides = [1, 1]} : vector<128x128xf32> to vector<7x128xf32>
    %2491 = vector.extract_strided_slice %1766 {offsets = [17, 0], sizes = [1, 128], strides = [1, 1]} : vector<32x128xf32> to vector<1x128xf32>
    %2492 = vector.broadcast %2491 : vector<1x128xf32> to vector<7x128xf32>
    %2493 = arith.mulf %2490, %2492 : vector<7x128xf32>
    %2494 = arith.addf %2485, %2493 : vector<7x128xf32>
    %2495 = vector.extract_strided_slice %1766 {offsets = [22, 0], sizes = [1, 128], strides = [1, 1]} : vector<32x128xf32> to vector<1x128xf32>
    %2496 = vector.broadcast %2495 : vector<1x128xf32> to vector<7x128xf32>
    %2497 = arith.mulf %2490, %2496 : vector<7x128xf32>
    %2498 = arith.addf %2489, %2497 : vector<7x128xf32>
    %2499 = vector.extract_strided_slice %1793 {offsets = [102, 0], sizes = [7, 128], strides = [1, 1]} : vector<128x128xf32> to vector<7x128xf32>
    %2500 = vector.extract_strided_slice %1766 {offsets = [18, 0], sizes = [1, 128], strides = [1, 1]} : vector<32x128xf32> to vector<1x128xf32>
    %2501 = vector.broadcast %2500 : vector<1x128xf32> to vector<7x128xf32>
    %2502 = arith.mulf %2499, %2501 : vector<7x128xf32>
    %2503 = arith.addf %2494, %2502 : vector<7x128xf32>
    %2504 = vector.extract_strided_slice %1766 {offsets = [23, 0], sizes = [1, 128], strides = [1, 1]} : vector<32x128xf32> to vector<1x128xf32>
    %2505 = vector.broadcast %2504 : vector<1x128xf32> to vector<7x128xf32>
    %2506 = arith.mulf %2499, %2505 : vector<7x128xf32>
    %2507 = arith.addf %2498, %2506 : vector<7x128xf32>
    %2508 = vector.extract_strided_slice %1793 {offsets = [103, 0], sizes = [7, 128], strides = [1, 1]} : vector<128x128xf32> to vector<7x128xf32>
    %2509 = vector.extract_strided_slice %1766 {offsets = [19, 0], sizes = [1, 128], strides = [1, 1]} : vector<32x128xf32> to vector<1x128xf32>
    %2510 = vector.broadcast %2509 : vector<1x128xf32> to vector<7x128xf32>
    %2511 = arith.mulf %2508, %2510 : vector<7x128xf32>
    %2512 = arith.addf %2503, %2511 : vector<7x128xf32>
    %2513 = vector.extract_strided_slice %1766 {offsets = [24, 0], sizes = [1, 128], strides = [1, 1]} : vector<32x128xf32> to vector<1x128xf32>
    %2514 = vector.broadcast %2513 : vector<1x128xf32> to vector<7x128xf32>
    %2515 = arith.mulf %2508, %2514 : vector<7x128xf32>
    %2516 = arith.addf %2507, %2515 : vector<7x128xf32>
    %2517 = vector.extract_strided_slice %1793 {offsets = [110, 0], sizes = [7, 128], strides = [1, 1]} : vector<128x128xf32> to vector<7x128xf32>
    %2518 = vector.extract_strided_slice %1766 {offsets = [20, 0], sizes = [1, 128], strides = [1, 1]} : vector<32x128xf32> to vector<1x128xf32>
    %2519 = vector.broadcast %2518 : vector<1x128xf32> to vector<7x128xf32>
    %2520 = arith.mulf %2517, %2519 : vector<7x128xf32>
    %2521 = arith.addf %2512, %2520 : vector<7x128xf32>
    %2522 = vector.extract_strided_slice %1793 {offsets = [111, 0], sizes = [7, 128], strides = [1, 1]} : vector<128x128xf32> to vector<7x128xf32>
    %2523 = vector.extract_strided_slice %1766 {offsets = [21, 0], sizes = [1, 128], strides = [1, 1]} : vector<32x128xf32> to vector<1x128xf32>
    %2524 = vector.broadcast %2523 : vector<1x128xf32> to vector<7x128xf32>
    %2525 = arith.mulf %2522, %2524 : vector<7x128xf32>
    %2526 = arith.addf %2521, %2525 : vector<7x128xf32>
    %2527 = vector.extract_strided_slice %1793 {offsets = [112, 0], sizes = [7, 128], strides = [1, 1]} : vector<128x128xf32> to vector<7x128xf32>
    %2528 = vector.extract_strided_slice %1766 {offsets = [22, 0], sizes = [1, 128], strides = [1, 1]} : vector<32x128xf32> to vector<1x128xf32>
    %2529 = vector.broadcast %2528 : vector<1x128xf32> to vector<7x128xf32>
    %2530 = arith.mulf %2527, %2529 : vector<7x128xf32>
    %2531 = arith.addf %2526, %2530 : vector<7x128xf32>
    %2532 = vector.extract_strided_slice %1793 {offsets = [113, 0], sizes = [7, 128], strides = [1, 1]} : vector<128x128xf32> to vector<7x128xf32>
    %2533 = vector.extract_strided_slice %1766 {offsets = [23, 0], sizes = [1, 128], strides = [1, 1]} : vector<32x128xf32> to vector<1x128xf32>
    %2534 = vector.broadcast %2533 : vector<1x128xf32> to vector<7x128xf32>
    %2535 = arith.mulf %2532, %2534 : vector<7x128xf32>
    %2536 = arith.addf %2531, %2535 : vector<7x128xf32>
    %2537 = vector.extract_strided_slice %1793 {offsets = [114, 0], sizes = [7, 128], strides = [1, 1]} : vector<128x128xf32> to vector<7x128xf32>
    %2538 = vector.extract_strided_slice %1766 {offsets = [24, 0], sizes = [1, 128], strides = [1, 1]} : vector<32x128xf32> to vector<1x128xf32>
    %2539 = vector.broadcast %2538 : vector<1x128xf32> to vector<7x128xf32>
    %2540 = arith.mulf %2537, %2539 : vector<7x128xf32>
    %2541 = arith.addf %2536, %2540 : vector<7x128xf32>
    %2542 = arith.addf %2113, %2217 : vector<7x128xf32>
    %2543 = arith.addf %2542, %2321 : vector<7x128xf32>
    %2544 = arith.addf %2543, %2406 : vector<7x128xf32>
    %2545 = arith.addf %2544, %2471 : vector<7x128xf32>
    %2546 = arith.addf %2545, %2516 : vector<7x128xf32>
    %2547 = arith.addf %2546, %2541 : vector<7x128xf32>
    %cst_87 = arith.constant dense<0.000000e+00> : vector<128xf32>
    %2548 = vector.multi_reduction <add>, %2547, %cst_87 [0] : vector<7x128xf32> to vector<128xf32>
    %2549 = vector.shape_cast %2548 : vector<128xf32> to vector<1x128xf32>
    %cst_88 = arith.constant 0.0204081628 : f32
    %2550 = vector.broadcast %cst_88 : f32 to vector<1x128xf32>
    %2551 = arith.mulf %2549, %2550 : vector<1x128xf32>
    %2552 = vector.broadcast %2551 : vector<1x128xf32> to vector<7x128xf32>
    %2553 = arith.subf %2113, %2552 : vector<7x128xf32>
    %2554 = arith.mulf %2553, %2553 : vector<7x128xf32>
    %2555 = vector.broadcast %2551 : vector<1x128xf32> to vector<7x128xf32>
    %2556 = arith.subf %2217, %2555 : vector<7x128xf32>
    %2557 = arith.mulf %2556, %2556 : vector<7x128xf32>
    %2558 = arith.addf %2554, %2557 : vector<7x128xf32>
    %2559 = vector.broadcast %2551 : vector<1x128xf32> to vector<7x128xf32>
    %2560 = arith.subf %2321, %2559 : vector<7x128xf32>
    %2561 = arith.mulf %2560, %2560 : vector<7x128xf32>
    %2562 = arith.addf %2558, %2561 : vector<7x128xf32>
    %2563 = vector.broadcast %2551 : vector<1x128xf32> to vector<7x128xf32>
    %2564 = arith.subf %2406, %2563 : vector<7x128xf32>
    %2565 = arith.mulf %2564, %2564 : vector<7x128xf32>
    %2566 = arith.addf %2562, %2565 : vector<7x128xf32>
    %2567 = vector.broadcast %2551 : vector<1x128xf32> to vector<7x128xf32>
    %2568 = arith.subf %2471, %2567 : vector<7x128xf32>
    %2569 = arith.mulf %2568, %2568 : vector<7x128xf32>
    %2570 = arith.addf %2566, %2569 : vector<7x128xf32>
    %2571 = vector.broadcast %2551 : vector<1x128xf32> to vector<7x128xf32>
    %2572 = arith.subf %2516, %2571 : vector<7x128xf32>
    %2573 = arith.mulf %2572, %2572 : vector<7x128xf32>
    %2574 = arith.addf %2570, %2573 : vector<7x128xf32>
    %2575 = vector.broadcast %2551 : vector<1x128xf32> to vector<7x128xf32>
    %2576 = arith.subf %2541, %2575 : vector<7x128xf32>
    %2577 = arith.mulf %2576, %2576 : vector<7x128xf32>
    %2578 = arith.addf %2574, %2577 : vector<7x128xf32>
    %cst_89 = arith.constant dense<0.000000e+00> : vector<128xf32>
    %2579 = vector.multi_reduction <add>, %2578, %cst_89 [0] : vector<7x128xf32> to vector<128xf32>
    %2580 = vector.shape_cast %2579 : vector<128xf32> to vector<1x128xf32>
    %cst_90 = arith.constant 0.0204081628 : f32
    %2581 = vector.broadcast %cst_90 : f32 to vector<1x128xf32>
    %2582 = arith.mulf %2580, %2581 : vector<1x128xf32>
    %cst_91 = arith.constant 9.99999974E-6 : f32
    %2583 = vector.broadcast %cst_91 : f32 to vector<1x128xf32>
    %2584 = arith.addf %2582, %2583 : vector<1x128xf32>
    %2585 = math.rsqrt %2584 : vector<1x128xf32>
    %2586 = arith.mulf %1753, %2585 : vector<1x128xf32>
    %2587 = arith.mulf %2551, %2586 : vector<1x128xf32>
    %2588 = arith.subf %1754, %2587 : vector<1x128xf32>
    %2589 = vector.broadcast %2586 : vector<1x128xf32> to vector<7x128xf32>
    %2590 = arith.mulf %2113, %2589 : vector<7x128xf32>
    %2591 = vector.broadcast %2588 : vector<1x128xf32> to vector<7x128xf32>
    %2592 = arith.addf %2590, %2591 : vector<7x128xf32>
    %2593 = vector.broadcast %2586 : vector<1x128xf32> to vector<7x128xf32>
    %2594 = arith.mulf %2217, %2593 : vector<7x128xf32>
    %2595 = vector.broadcast %2588 : vector<1x128xf32> to vector<7x128xf32>
    %2596 = arith.addf %2594, %2595 : vector<7x128xf32>
    %2597 = vector.broadcast %2586 : vector<1x128xf32> to vector<7x128xf32>
    %2598 = arith.mulf %2321, %2597 : vector<7x128xf32>
    %2599 = vector.broadcast %2588 : vector<1x128xf32> to vector<7x128xf32>
    %2600 = arith.addf %2598, %2599 : vector<7x128xf32>
    %2601 = vector.broadcast %2586 : vector<1x128xf32> to vector<7x128xf32>
    %2602 = arith.mulf %2406, %2601 : vector<7x128xf32>
    %2603 = vector.broadcast %2588 : vector<1x128xf32> to vector<7x128xf32>
    %2604 = arith.addf %2602, %2603 : vector<7x128xf32>
    %2605 = vector.broadcast %2586 : vector<1x128xf32> to vector<7x128xf32>
    %2606 = arith.mulf %2471, %2605 : vector<7x128xf32>
    %2607 = vector.broadcast %2588 : vector<1x128xf32> to vector<7x128xf32>
    %2608 = arith.addf %2606, %2607 : vector<7x128xf32>
    %2609 = vector.broadcast %2586 : vector<1x128xf32> to vector<7x128xf32>
    %2610 = arith.mulf %2516, %2609 : vector<7x128xf32>
    %2611 = vector.broadcast %2588 : vector<1x128xf32> to vector<7x128xf32>
    %2612 = arith.addf %2610, %2611 : vector<7x128xf32>
    %2613 = vector.broadcast %2586 : vector<1x128xf32> to vector<7x128xf32>
    %2614 = arith.mulf %2541, %2613 : vector<7x128xf32>
    %2615 = vector.broadcast %2588 : vector<1x128xf32> to vector<7x128xf32>
    %2616 = arith.addf %2614, %2615 : vector<7x128xf32>
    %cst_92 = arith.constant 0.000000e+00 : f32
    %2617 = vector.broadcast %cst_92 : f32 to vector<79x128xf32>
    %2618 = tpu.concatenate %2592, %2596, %2600, %2604, %2608, %2612, %2616, %2617 in 0 : vector<7x128xf32>, vector<7x128xf32>, vector<7x128xf32>, vector<7x128xf32>, vector<7x128xf32>, vector<7x128xf32>, vector<7x128xf32>, vector<79x128xf32> -> vector<128x128xf32>
    %2619 = tpu.transpose %2618, [1, 0] : vector<128x128xf32> -> vector<128x128xf32>
    %2620 = vector.extract_strided_slice %2619 {offsets = [0, 0], sizes = [128, 49], strides = [1, 1]} : vector<128x128xf32> to vector<128x49xf32>
    %c256_93 = arith.constant 256 : index
    %c0_94 = arith.constant 0 : index
    %2621 = vector.load %arg10[%c256_93, %c0_94] : memref<384x49xf32, #tpu.memory_space<vmem>>, vector<128x49xf32>
    tpu.vector_store %arg10[%c256_93, %c0_94], %2620 {strides = array<i32>} : memref<384x49xf32, #tpu.memory_space<vmem>>, vector<128x49xf32>,
    return
  }
  func.func @transform_0(%arg0: i32) -> (i32, i32) {
    %c0_i32 = arith.constant 0 : i32
    %c0_i32_0 = arith.constant 0 : i32
    return %arg0, %c0_i32 : i32, i32
  }
  func.func @transform_1(%arg0: i32) -> (i32, i32) {
    %c0_i32 = arith.constant 0 : i32
    %c0_i32_0 = arith.constant 0 : i32
    return %arg0, %c0_i32 : i32, i32
  }
  func.func @transform_2(%arg0: i32) -> (i32, i32) {
    %c0_i32 = arith.constant 0 : i32
    %c0_i32_0 = arith.constant 0 : i32
    return %c0_i32, %arg0 : i32, i32
  }
  func.func @transform_3(%arg0: i32) -> (i32, i32) {
    %c0_i32 = arith.constant 0 : i32
    %c0_i32_0 = arith.constant 0 : i32
    return %c0_i32, %arg0 : i32, i32
  }
  func.func @transform_4(%arg0: i32) -> (i32, i32) {
    %c0_i32 = arith.constant 0 : i32
    %c0_i32_0 = arith.constant 0 : i32
    return %c0_i32, %arg0 : i32, i32
  }
  func.func @transform_5(%arg0: i32) -> (i32, i32) {
    %c0_i32 = arith.constant 0 : i32
    %c0_i32_0 = arith.constant 0 : i32
    return %c0_i32, %arg0 : i32, i32
  }
  func.func @transform_6(%arg0: i32) -> (i32, i32) {
    %c0_i32 = arith.constant 0 : i32
    %c0_i32_0 = arith.constant 0 : i32
    %c0_i32_1 = arith.constant 0 : i32
    return %c0_i32, %c0_i32_0 : i32, i32
  }
  func.func @transform_7(%arg0: i32) -> (i32, i32) {
    %c0_i32 = arith.constant 0 : i32
    %c0_i32_0 = arith.constant 0 : i32
    %c0_i32_1 = arith.constant 0 : i32
    return %c0_i32, %c0_i32_0 : i32, i32
  }
  func.func @transform_8(%arg0: i32) -> (i32, i32) {
    %c0_i32 = arith.constant 0 : i32
    %c0_i32_0 = arith.constant 0 : i32
    %c0_i32_1 = arith.constant 0 : i32
    return %c0_i32, %c0_i32_0 : i32, i32
  }
  func.func @transform_9(%arg0: i32) -> (i32, i32) {
    %c0_i32 = arith.constant 0 : i32
    %c0_i32_0 = arith.constant 0 : i32
    return %arg0, %c0_i32 : i32, i32
  }
}

</mosaic_0001>

<llo_original>
// kernel: module_forward.1
$region0: #{module_forward.1}
  #allocation0 [shape = 'u32[]', space=smem, size = 0x4, offset = 0x4, fixed_abs, tag = 'smem constant byte address 0x4 - core index']
  #allocation1 [shape = 'u32[144,128]{1,0:T(1,128)}', space=vmem, size = 0x12000, scoped, tag = 'internal scratch']
  %s0 = inlined_call_operand.vmem [shape: f32[1152,49], index: 0, kind: input, shape index: {}]
  %s1 = inlined_call_operand.vmem [shape: f32[1152,25], index: 1, kind: input, shape index: {}]
  %s2 = inlined_call_operand.vmem [shape: f32[1,1152], index: 2, kind: input, shape index: {}]
  %s3 = inlined_call_operand.vmem [shape: f32[1,1152], index: 3, kind: input, shape index: {}]
  %s4 = inlined_call_operand.vmem [shape: f32[1,1152], index: 4, kind: input, shape index: {}]
  %s5 = inlined_call_operand.vmem [shape: f32[1,1152], index: 5, kind: input, shape index: {}]
  %s6 = inlined_call_operand.vmem [shape: bf16[128,128], index: 6, kind: input, shape index: {}]
  %s7 = inlined_call_operand.vmem [shape: bf16[32,128], index: 7, kind: input, shape index: {}]
  %s8 = inlined_call_operand.vmem [shape: f32[128,1], index: 8, kind: input, shape index: {}]
  %s9 = inlined_call_operand.vmem [shape: f32[1152,49], index: 9, kind: output, shape index: {}]
  %s10 = sld [smem:[#allocation0]]
  $region69: #{module_forward.1} parent=0
    _
  %s12 = ssub.s32 1, %s10
  %s13 = scalar_select 0, %s12, %s10
  loop: start=0, step=1, limit=5
  $region2: #{module_forward.1} parent=0 // loop_pre_header
    _
  $region3: #{module_forward.1} parent=0 // loop_header
    %s15 = sphi 0, %s19
    %p16 = scmp.ge.s32.totalorder %s15, 5
    %s25 = sphi 0, %s27
    %s28 = sphi 0, %s25
    %s29 = sphi 0, %s28
    %s45 = sphi 0, %s29
    %s51 = sphi 0, %s53
    %s54 = sphi 0, %s51
    %s55 = sphi 0, %s54
    %s71 = sphi 0, %s55
    %s77 = sphi 0, %s79
    %s80 = sphi 0, %s77
    %s81 = sphi 0, %s80
    %s97 = sphi 0, %s81
    %s103 = sphi 0, %s105
    %s106 = sphi 0, %s103
    %s107 = sphi 0, %s106
    %s123 = sphi 0, %s107
    %s129 = sphi 0, %s131
    %s132 = sphi 0, %s129
    %s133 = sphi 0, %s132
    %s149 = sphi 0, %s133
    %s155 = sphi 0, %s157
    %s158 = sphi 0, %s155
    %s159 = sphi 0, %s158
    %s175 = sphi 0, %s159
    %s179 = sphi 0, %s179
    %s181 = sphi 0, %s179
    %s182 = sphi 0, %s181
    %s196 = sphi 0, %s182
    %s200 = sphi 0, %s200
    %s202 = sphi 0, %s200
    %s203 = sphi 0, %s202
    %s217 = sphi 0, %s203
    %s221 = sphi 0, %s221
    %s223 = sphi 0, %s221
    %s224 = sphi 0, %s223
    %s238 = sphi 0, %s224
    %s244 = sphi 0, %s246
    %s247 = sphi 0, %s244
    %s248 = sphi 0, %s247
    %s264 = sphi 0, %s248
  $region4: #{module_forward.1} parent=0 // loop_header_branch
    %18 = sbr.rel (%p16) target = $region8
  $region5: #{module_forward.1} parent=0 // loop_body
    %s20 = ssub.s32 %s15, 1
    %s21 = ssub.s32 %s15, 2
    %s22 = sadd.s32 %s15, 1
    %s23 = ssub.s32 %s15, %s22
    %p24 = scmp.eq.s32.totalorder %s23, 0
    %s26 = sadd.s32 %s25, 1
    %s27 = scalar_select %p24, %s25, %s26
    %p30 = pneg %p24
    %p31 = scmp.eq.s32.totalorder %s15, 2
    %p32 = por %p30, %p31
    %p33 = scmp.ne.s32.totalorder %s25, %s28
    %p34 = scmp.eq.s32.totalorder %s15, 0
    %p35 = por %p33, %p34
    %p36 = scmp.ne.s32.totalorder %s25, %s28
    %p37 = scmp.eq.s32.totalorder %s20, 2
    %p38 = por %p36, %p37
    %p39 = scmp.ne.s32.totalorder %s28, %s29
    %p40 = scmp.eq.s32.totalorder %s20, 0
    %p41 = por %p39, %p40
    %p42 = scmp.ne.s32.totalorder %s28, %s29
    %p43 = scmp.eq.s32.totalorder %s21, 2
    %p44 = por %p42, %p43
    %p46 = scmp.ne.s32.totalorder %s29, %s45
    %p47 = scmp.eq.s32.totalorder %s21, 0
    %p48 = por %p46, %p47
    %s49 = ssub.s32 %s15, %s22
    %p50 = scmp.eq.s32.totalorder %s49, 0
    %s52 = sadd.s32 %s51, 1
    %s53 = scalar_select %p50, %s51, %s52
    %p56 = pneg %p50
    %p57 = scmp.eq.s32.totalorder %s15, 2
    %p58 = por %p56, %p57
    %p59 = scmp.ne.s32.totalorder %s51, %s54
    %p60 = scmp.eq.s32.totalorder %s15, 0
    %p61 = por %p59, %p60
    %p62 = scmp.ne.s32.totalorder %s51, %s54
    %p63 = scmp.eq.s32.totalorder %s20, 2
    %p64 = por %p62, %p63
    %p65 = scmp.ne.s32.totalorder %s54, %s55
    %p66 = scmp.eq.s32.totalorder %s20, 0
    %p67 = por %p65, %p66
    %p68 = scmp.ne.s32.totalorder %s54, %s55
    %p69 = scmp.eq.s32.totalorder %s21, 2
    %p70 = por %p68, %p69
    %p72 = scmp.ne.s32.totalorder %s55, %s71
    %p73 = scmp.eq.s32.totalorder %s21, 0
    %p74 = por %p72, %p73
    %s75 = ssub.s32 %s15, %s22
    %p76 = scmp.eq.s32.totalorder %s75, 0
    %s78 = sadd.s32 %s77, 1
    %s79 = scalar_select %p76, %s77, %s78
    %p82 = pneg %p76
    %p83 = scmp.eq.s32.totalorder %s15, 2
    %p84 = por %p82, %p83
    %p85 = scmp.ne.s32.totalorder %s77, %s80
    %p86 = scmp.eq.s32.totalorder %s15, 0
    %p87 = por %p85, %p86
    %p88 = scmp.ne.s32.totalorder %s77, %s80
    %p89 = scmp.eq.s32.totalorder %s20, 2
    %p90 = por %p88, %p89
    %p91 = scmp.ne.s32.totalorder %s80, %s81
    %p92 = scmp.eq.s32.totalorder %s20, 0
    %p93 = por %p91, %p92
    %p94 = scmp.ne.s32.totalorder %s80, %s81
    %p95 = scmp.eq.s32.totalorder %s21, 2
    %p96 = por %p94, %p95
    %p98 = scmp.ne.s32.totalorder %s81, %s97
    %p99 = scmp.eq.s32.totalorder %s21, 0
    %p100 = por %p98, %p99
    %s101 = ssub.s32 %s15, %s22
    %p102 = scmp.eq.s32.totalorder %s101, 0
    %s104 = sadd.s32 %s103, 1
    %s105 = scalar_select %p102, %s103, %s104
    %p108 = pneg %p102
    %p109 = scmp.eq.s32.totalorder %s15, 2
    %p110 = por %p108, %p109
    %p111 = scmp.ne.s32.totalorder %s103, %s106
    %p112 = scmp.eq.s32.totalorder %s15, 0
    %p113 = por %p111, %p112
    %p114 = scmp.ne.s32.totalorder %s103, %s106
    %p115 = scmp.eq.s32.totalorder %s20, 2
    %p116 = por %p114, %p115
    %p117 = scmp.ne.s32.totalorder %s106, %s107
    %p118 = scmp.eq.s32.totalorder %s20, 0
    %p119 = por %p117, %p118
    %p120 = scmp.ne.s32.totalorder %s106, %s107
    %p121 = scmp.eq.s32.totalorder %s21, 2
    %p122 = por %p120, %p121
    %p124 = scmp.ne.s32.totalorder %s107, %s123
    %p125 = scmp.eq.s32.totalorder %s21, 0
    %p126 = por %p124, %p125
    %s127 = ssub.s32 %s15, %s22
    %p128 = scmp.eq.s32.totalorder %s127, 0
    %s130 = sadd.s32 %s129, 1
    %s131 = scalar_select %p128, %s129, %s130
    %p134 = pneg %p128
    %p135 = scmp.eq.s32.totalorder %s15, 2
    %p136 = por %p134, %p135
    %p137 = scmp.ne.s32.totalorder %s129, %s132
    %p138 = scmp.eq.s32.totalorder %s15, 0
    %p139 = por %p137, %p138
    %p140 = scmp.ne.s32.totalorder %s129, %s132
    %p141 = scmp.eq.s32.totalorder %s20, 2
    %p142 = por %p140, %p141
    %p143 = scmp.ne.s32.totalorder %s132, %s133
    %p144 = scmp.eq.s32.totalorder %s20, 0
    %p145 = por %p143, %p144
    %p146 = scmp.ne.s32.totalorder %s132, %s133
    %p147 = scmp.eq.s32.totalorder %s21, 2
    %p148 = por %p146, %p147
    %p150 = scmp.ne.s32.totalorder %s133, %s149
    %p151 = scmp.eq.s32.totalorder %s21, 0
    %p152 = por %p150, %p151
    %s153 = ssub.s32 %s15, %s22
    %p154 = scmp.eq.s32.totalorder %s153, 0
    %s156 = sadd.s32 %s155, 1
    %s157 = scalar_select %p154, %s155, %s156
    %p160 = pneg %p154
    %p161 = scmp.eq.s32.totalorder %s15, 2
    %p162 = por %p160, %p161
    %p163 = scmp.ne.s32.totalorder %s155, %s158
    %p164 = scmp.eq.s32.totalorder %s15, 0
    %p165 = por %p163, %p164
    %p166 = scmp.ne.s32.totalorder %s155, %s158
    %p167 = scmp.eq.s32.totalorder %s20, 2
    %p168 = por %p166, %p167
    %p169 = scmp.ne.s32.totalorder %s158, %s159
    %p170 = scmp.eq.s32.totalorder %s20, 0
    %p171 = por %p169, %p170
    %p172 = scmp.ne.s32.totalorder %s158, %s159
    %p173 = scmp.eq.s32.totalorder %s21, 2
    %p174 = por %p172, %p173
    %p176 = scmp.ne.s32.totalorder %s159, %s175
    %p177 = scmp.eq.s32.totalorder %s21, 0
    %p178 = por %p176, %p177
    %s180 = sadd.s32 %s179, 1
    %p183 = scmp.eq.s32.totalorder %s15, 2
    %p184 = scmp.ne.s32.totalorder %s179, %s181
    %p185 = scmp.eq.s32.totalorder %s15, 0
    %p186 = por %p184, %p185
    %p187 = scmp.ne.s32.totalorder %s179, %s181
    %p188 = scmp.eq.s32.totalorder %s20, 2
    %p189 = por %p187, %p188
    %p190 = scmp.ne.s32.totalorder %s181, %s182
    %p191 = scmp.eq.s32.totalorder %s20, 0
    %p192 = por %p190, %p191
    %p193 = scmp.ne.s32.totalorder %s181, %s182
    %p194 = scmp.eq.s32.totalorder %s21, 2
    %p195 = por %p193, %p194
    %p197 = scmp.ne.s32.totalorder %s182, %s196
    %p198 = scmp.eq.s32.totalorder %s21, 0
    %p199 = por %p197, %p198
    %s201 = sadd.s32 %s200, 1
    %p204 = scmp.eq.s32.totalorder %s15, 2
    %p205 = scmp.ne.s32.totalorder %s200, %s202
    %p206 = scmp.eq.s32.totalorder %s15, 0
    %p207 = por %p205, %p206
    %p208 = scmp.ne.s32.totalorder %s200, %s202
    %p209 = scmp.eq.s32.totalorder %s20, 2
    %p210 = por %p208, %p209
    %p211 = scmp.ne.s32.totalorder %s202, %s203
    %p212 = scmp.eq.s32.totalorder %s20, 0
    %p213 = por %p211, %p212
    %p214 = scmp.ne.s32.totalorder %s202, %s203
    %p215 = scmp.eq.s32.totalorder %s21, 2
    %p216 = por %p214, %p215
    %p218 = scmp.ne.s32.totalorder %s203, %s217
    %p219 = scmp.eq.s32.totalorder %s21, 0
    %p220 = por %p218, %p219
    %s222 = sadd.s32 %s221, 1
    %p225 = scmp.eq.s32.totalorder %s15, 2
    %p226 = scmp.ne.s32.totalorder %s221, %s223
    %p227 = scmp.eq.s32.totalorder %s15, 0
    %p228 = por %p226, %p227
    %p229 = scmp.ne.s32.totalorder %s221, %s223
    %p230 = scmp.eq.s32.totalorder %s20, 2
    %p231 = por %p229, %p230
    %p232 = scmp.ne.s32.totalorder %s223, %s224
    %p233 = scmp.eq.s32.totalorder %s20, 0
    %p234 = por %p232, %p233
    %p235 = scmp.ne.s32.totalorder %s223, %s224
    %p236 = scmp.eq.s32.totalorder %s21, 2
    %p237 = por %p235, %p236
    %p239 = scmp.ne.s32.totalorder %s224, %s238
    %p240 = scmp.eq.s32.totalorder %s21, 0
    %p241 = por %p239, %p240
    %s242 = ssub.s32 %s15, %s22
    %p243 = scmp.eq.s32.totalorder %s242, 0
    %s245 = sadd.s32 %s244, 1
    %s246 = scalar_select %p243, %s244, %s245
    %p249 = pneg %p243
    %p250 = scmp.eq.s32.totalorder %s15, 2
    %p251 = por %p249, %p250
    %p252 = scmp.ne.s32.totalorder %s244, %s247
    %p253 = scmp.eq.s32.totalorder %s15, 0
    %p254 = por %p252, %p253
    %p255 = scmp.ne.s32.totalorder %s244, %s247
    %p256 = scmp.eq.s32.totalorder %s20, 2
    %p257 = por %p255, %p256
    %p258 = scmp.ne.s32.totalorder %s247, %s248
    %p259 = scmp.eq.s32.totalorder %s20, 0
    %p260 = por %p258, %p259
    %p261 = scmp.ne.s32.totalorder %s247, %s248
    %p262 = scmp.eq.s32.totalorder %s21, 2
    %p263 = por %p261, %p262
    %p265 = scmp.ne.s32.totalorder %s248, %s264
    %p266 = scmp.eq.s32.totalorder %s21, 0
    %p267 = por %p265, %p266
    %p268 = scmp.le.s32.totalorder 1, %s15
    %p269 = scmp.lt.s32.totalorder %s15, 4
    %p270 = pnand %p268, %p269
    %p271 = pneg %p270
    // Predicated region
    $region9: #{module_forward.1} parent=5 // pred_check
      _
    $region10: #{module_forward.1} parent=5 // pred_check_branch
      %273 = sbr.rel (%p270) target = $region12
    $region11: #{module_forward.1} parent=5 // pred_region
      %s274 = ssub.s32 %s15, 1
      // Predicated region
      $region13: #{module_forward.1} parent=11 // pred_check
        %p275 = pneg %p192
      $region14: #{module_forward.1} parent=11 // pred_check_branch
        %277 = sbr.rel (%p275) target = $region16
      $region15: #{module_forward.1} parent=11 // pred_region
        _
      $region16: #{module_forward.1} parent=11 // pred_fallthru
        _
      // Predicated region
      $region17: #{module_forward.1} parent=11 // pred_check
        %p278 = pneg %p213
      $region18: #{module_forward.1} parent=11 // pred_check_branch
        %280 = sbr.rel (%p278) target = $region20
      $region19: #{module_forward.1} parent=11 // pred_region
        _
      $region20: #{module_forward.1} parent=11 // pred_fallthru
        _
      // Predicated region
      $region21: #{module_forward.1} parent=11 // pred_check
        %p281 = pneg %p234
      $region22: #{module_forward.1} parent=11 // pred_check_branch
        %283 = sbr.rel (%p281) target = $region24
      $region23: #{module_forward.1} parent=11 // pred_region
        _
      $region24: #{module_forward.1} parent=11 // pred_fallthru
        _
    $region12: #{module_forward.1} parent=5 // pred_fallthru
      _
    %p284 = scmp.lt.s32.totalorder %s15, 3
    // Predicated region
    $region25: #{module_forward.1} parent=5 // pred_check
      %p285 = pneg %p284
    $region26: #{module_forward.1} parent=5 // pred_check_branch
      %287 = sbr.rel (%p285) target = $region28
    $region27: #{module_forward.1} parent=5 // pred_region
      // Predicated region
      $region29: #{module_forward.1} parent=27 // pred_check
        %p288 = pneg %p35
      $region30: #{module_forward.1} parent=27 // pred_check_branch
        %290 = sbr.rel (%p288) target = $region32
      $region31: #{module_forward.1} parent=27 // pred_region
        %s291 = smul.u32 48, %s15
        %p292 = scmp.lt.s32.totalorder %s291, 143
        %s293 = scalar_select %p292, %s291, 143
        %s294 = smul.addr %s293, 8
        %s295 = scalar_lea.vmem %s0, %s294
        %s296 = smul.u32 48, %s15
      $region32: #{module_forward.1} parent=27 // pred_fallthru
        _
      // Predicated region
      $region33: #{module_forward.1} parent=27 // pred_check
        %p297 = pneg %p61
      $region34: #{module_forward.1} parent=27 // pred_check_branch
        %299 = sbr.rel (%p297) target = $region36
      $region35: #{module_forward.1} parent=27 // pred_region
        %s300 = smul.u32 48, %s15
        %p301 = scmp.lt.s32.totalorder %s300, 143
        %s302 = scalar_select %p301, %s300, 143
        %s303 = smul.addr %s302, 8
        %s304 = scalar_lea.vmem %s1, %s303
        %s305 = smul.u32 48, %s15
      $region36: #{module_forward.1} parent=27 // pred_fallthru
        _
      // Predicated region
      $region37: #{module_forward.1} parent=27 // pred_check
        %p306 = pneg %p87
      $region38: #{module_forward.1} parent=27 // pred_check_branch
        %308 = sbr.rel (%p306) target = $region40
      $region39: #{module_forward.1} parent=27 // pred_region
        %s309 = smul.u32 3, %s15
        %p310 = scmp.lt.s32.totalorder %s309, 8
        %s311 = scalar_select %p310, %s309, 8
        %s312 = scalar_lea.vmem %s2, %s311
        %s313 = smul.u32 3, %s15
      $region40: #{module_forward.1} parent=27 // pred_fallthru
        _
      // Predicated region
      $region41: #{module_forward.1} parent=27 // pred_check
        %p314 = pneg %p113
      $region42: #{module_forward.1} parent=27 // pred_check_branch
        %316 = sbr.rel (%p314) target = $region44
      $region43: #{module_forward.1} parent=27 // pred_region
        %s317 = smul.u32 3, %s15
        %p318 = scmp.lt.s32.totalorder %s317, 8
        %s319 = scalar_select %p318, %s317, 8
        %s320 = scalar_lea.vmem %s3, %s319
        %s321 = smul.u32 3, %s15
      $region44: #{module_forward.1} parent=27 // pred_fallthru
        _
      // Predicated region
      $region45: #{module_forward.1} parent=27 // pred_check
        %p322 = pneg %p139
      $region46: #{module_forward.1} parent=27 // pred_check_branch
        %324 = sbr.rel (%p322) target = $region48
      $region47: #{module_forward.1} parent=27 // pred_region
        %s325 = smul.u32 3, %s15
        %p326 = scmp.lt.s32.totalorder %s325, 8
        %s327 = scalar_select %p326, %s325, 8
        %s328 = scalar_lea.vmem %s4, %s327
        %s329 = smul.u32 3, %s15
      $region48: #{module_forward.1} parent=27 // pred_fallthru
        _
      // Predicated region
      $region49: #{module_forward.1} parent=27 // pred_check
        %p330 = pneg %p165
      $region50: #{module_forward.1} parent=27 // pred_check_branch
        %332 = sbr.rel (%p330) target = $region52
      $region51: #{module_forward.1} parent=27 // pred_region
        %s333 = smul.u32 3, %s15
        %p334 = scmp.lt.s32.totalorder %s333, 8
        %s335 = scalar_select %p334, %s333, 8
        %s336 = scalar_lea.vmem %s5, %s335
        %s337 = smul.u32 3, %s15
      $region52: #{module_forward.1} parent=27 // pred_fallthru
        _
    $region28: #{module_forward.1} parent=5 // pred_fallthru
      _
    %p338 = scmp.le.s32.totalorder 1, %s15
    %p339 = scmp.lt.s32.totalorder %s15, 4
    %p340 = pnand %p338, %p339
    %p341 = pneg %p340
    // Predicated region
    $region53: #{module_forward.1} parent=5 // pred_check
      _
    $region54: #{module_forward.1} parent=5 // pred_check_branch
      %343 = sbr.rel (%p340) target = $region56
    $region55: #{module_forward.1} parent=5 // pred_region
      %s344 = ssub.s32 %s15, 1
      %s345 = smul.u32 48, %s20
      %p346 = scmp.lt.s32.totalorder %s345, 143
      %s347 = scalar_select %p346, %s345, 143
      %s348 = smul.addr %s347, 8
      %s349 = scalar_lea.vmem %s0, %s348
      %p350 = pneg %p41
      %p351 = pneg %p38
      %s352 = smul.u32 48, %s20
      %p353 = scmp.lt.s32.totalorder %s352, 143
      %s354 = scalar_select %p353, %s352, 143
      %s355 = smul.addr %s354, 8
      %s356 = scalar_lea.vmem %s1, %s355
      %p357 = pneg %p67
      %p358 = pneg %p64
      %s359 = smul.u32 3, %s20
      %p360 = scmp.lt.s32.totalorder %s359, 8
      %s361 = scalar_select %p360, %s359, 8
      %s362 = scalar_lea.vmem %s2, %s361
      %p363 = pneg %p93
      %p364 = pneg %p90
      %s365 = smul.u32 3, %s20
      %p366 = scmp.lt.s32.totalorder %s365, 8
      %s367 = scalar_select %p366, %s365, 8
      %s368 = scalar_lea.vmem %s3, %s367
      %p369 = pneg %p119
      %p370 = pneg %p116
      %s371 = smul.u32 3, %s20
      %p372 = scmp.lt.s32.totalorder %s371, 8
      %s373 = scalar_select %p372, %s371, 8
      %s374 = scalar_lea.vmem %s4, %s373
      %p375 = pneg %p145
      %p376 = pneg %p142
      %s377 = smul.u32 3, %s20
      %p378 = scmp.lt.s32.totalorder %s377, 8
      %s379 = scalar_select %p378, %s377, 8
      %s380 = scalar_lea.vmem %s5, %s379
      %p381 = pneg %p171
      %p382 = pneg %p168
      %p383 = pneg %p192
      %p384 = pneg %p189
      %p385 = pneg %p213
      %p386 = pneg %p210
      %p387 = pneg %p234
      %p388 = pneg %p231
      %p389 = pneg %p260
      %p390 = pneg %p257
      %s391 = smul.u32 48, %s20
      %p392 = scmp.lt.s32.totalorder %s391, 143
      %s393 = scalar_select %p392, %s391, 143
      %s394 = smul.addr %s393, 8
      %s395 = scalar_lea.vmem %s9, %s394
      %s396 = smul.u32 48, %s20
      %p397 = scmp.lt.s32.totalorder %s396, 143
      %s398 = scalar_select %p397, %s396, 143
      %s399 = smul.addr %s398, 8
      %s400 = scalar_lea.vmem %s0, %s399
      %s401 = smul.u32 48, %s20
      %s402 = smul.u32 48, %s20
      %p403 = scmp.lt.s32.totalorder %s402, 143
      %s404 = scalar_select %p403, %s402, 143
      %s405 = smul.addr %s404, 8
      %s406 = scalar_lea.vmem %s1, %s405
      %s407 = smul.u32 48, %s20
      %s408 = smul.u32 3, %s20
      %p409 = scmp.lt.s32.totalorder %s408, 8
      %s410 = scalar_select %p409, %s408, 8
      %s411 = scalar_lea.vmem %s2, %s410
      %s412 = smul.u32 3, %s20
      %s413 = smul.u32 3, %s20
      %p414 = scmp.lt.s32.totalorder %s413, 8
      %s415 = scalar_select %p414, %s413, 8
      %s416 = scalar_lea.vmem %s3, %s415
      %s417 = smul.u32 3, %s20
      %s418 = smul.u32 3, %s20
      %p419 = scmp.lt.s32.totalorder %s418, 8
      %s420 = scalar_select %p419, %s418, 8
      %s421 = scalar_lea.vmem %s4, %s420
      %s422 = smul.u32 3, %s20
      %s423 = smul.u32 3, %s20
      %p424 = scmp.lt.s32.totalorder %s423, 8
      %s425 = scalar_select %p424, %s423, 8
      %s426 = scalar_lea.vmem %s5, %s425
      %s427 = smul.u32 3, %s20
      %s428 = smul.u32 48, %s20
      %p429 = scmp.lt.s32.totalorder %s428, 143
      %s430 = scalar_select %p429, %s428, 143
      %s431 = smul.addr %s430, 8
      %s432 = scalar_lea.vmem %s9, %s431
      %s433 = smul.u32 48, %s20
      %v435 = vld [vmem:[%s6] sm:$0xf]
      %v436 = vld [vmem:[%s6 + $0x4] sm:$0xf]
      %v437 = vld [vmem:[%s6 + $0x8] sm:$0xf]
      %v438 = vld [vmem:[%s6 + $0xc] sm:$0xf]
      %v439 = vld [vmem:[%s6 + $0x10] sm:$0xf]
      %v440 = vld [vmem:[%s6 + $0x14] sm:$0xf]
      %v441 = vld [vmem:[%s6 + $0x18] sm:$0xf]
      %v442 = vld [vmem:[%s6 + $0x1c] sm:$0xf]
      %v443 = vld [vmem:[%s6 + $0x20] sm:$0xf]
      %v444 = vld [vmem:[%s6 + $0x24] sm:$0xf]
      %v445 = vld [vmem:[%s6 + $0x28] sm:$0xf]
      %v446 = vld [vmem:[%s6 + $0x2c] sm:$0xf]
      %v447 = vld [vmem:[%s6 + $0x30] sm:$0xf]
      %v448 = vld [vmem:[%s6 + $0x34] sm:$0xf]
      %v449 = vld [vmem:[%s6 + $0x38] sm:$0xf]
      %v450 = vld [vmem:[%s6 + $0x3c] sm:$0xf]
      %v451 = vld [vmem:[%s7] sm:$0xf]
      %v452 = vld [vmem:[%s7 + $0x4] sm:$0xf]
      %v453 = vld [vmem:[%s7 + $0x8] sm:$0xf]
      %v454 = vld [vmem:[%s7 + $0xc] sm:$0xf]
      %v455 = vld [vmem:[%s8] sm:$0xff]
      %v456 = vld [vmem:[%s8 + $0x8] sm:$0xff]
      %v457 = vld [vmem:[%s8 + $0x10] sm:$0xff]
      %v458 = vld [vmem:[%s8 + $0x18] sm:$0xff]
      %v459 = vld [vmem:[%s8 + $0x20] sm:$0xff]
      %v460 = vld [vmem:[%s8 + $0x28] sm:$0xff]
      %v461 = vld [vmem:[%s8 + $0x30] sm:$0xff]
      %v462 = vld [vmem:[%s8 + $0x38] sm:$0xff]
      %v463 = vld [vmem:[%s8 + $0x40] sm:$0xff]
      %v464 = vld [vmem:[%s8 + $0x48] sm:$0xff]
      %v465 = vld [vmem:[%s8 + $0x50] sm:$0xff]
      %v466 = vld [vmem:[%s8 + $0x58] sm:$0xff]
      %v467 = vld [vmem:[%s8 + $0x60] sm:$0xff]
      %v468 = vld [vmem:[%s8 + $0x68] sm:$0xff]
      %v469 = vld [vmem:[%s8 + $0x70] sm:$0xff]
      %v470 = vld [vmem:[%s8 + $0x78] sm:$0xff]
      %v471 = vld [vmem:[%s400] sm:$0xff]
      %v472 = vld [vmem:[%s400 + $0x8] sm:$0xff]
      %v473 = vld [vmem:[%s400 + $0x10] sm:$0xff]
      %v474 = vld [vmem:[%s400 + $0x18] sm:$0xff]
      %v475 = vld [vmem:[%s400 + $0x20] sm:$0xff]
      %v476 = vld [vmem:[%s400 + $0x28] sm:$0xff]
      %v477 = vld [vmem:[%s400 + $0x30] sm:$0xff]
      %v478 = vld [vmem:[%s400 + $0x38] sm:$0xff]
      %v479 = vld [vmem:[%s400 + $0x40] sm:$0xff]
      %v480 = vld [vmem:[%s400 + $0x48] sm:$0xff]
      %v481 = vld [vmem:[%s400 + $0x50] sm:$0xff]
      %v482 = vld [vmem:[%s400 + $0x58] sm:$0xff]
      %v483 = vld [vmem:[%s400 + $0x60] sm:$0xff]
      %v484 = vld [vmem:[%s400 + $0x68] sm:$0xff]
      %v485 = vld [vmem:[%s400 + $0x70] sm:$0xff]
      %v486 = vld [vmem:[%s400 + $0x78] sm:$0xff]
      %v487 = vld [vmem:[%s406] sm:$0xff]
      %v488 = vld [vmem:[%s406 + $0x8] sm:$0xff]
      %v489 = vld [vmem:[%s406 + $0x10] sm:$0xff]
      %v490 = vld [vmem:[%s406 + $0x18] sm:$0xff]
      %v491 = vld [vmem:[%s406 + $0x20] sm:$0xff]
      %v492 = vld [vmem:[%s406 + $0x28] sm:$0xff]
      %v493 = vld [vmem:[%s406 + $0x30] sm:$0xff]
      %v494 = vld [vmem:[%s406 + $0x38] sm:$0xff]
      %v495 = vld [vmem:[%s406 + $0x40] sm:$0xff]
      %v496 = vld [vmem:[%s406 + $0x48] sm:$0xff]
      %v497 = vld [vmem:[%s406 + $0x50] sm:$0xff]
      %v498 = vld [vmem:[%s406 + $0x58] sm:$0xff]
      %v499 = vld [vmem:[%s406 + $0x60] sm:$0xff]
      %v500 = vld [vmem:[%s406 + $0x68] sm:$0xff]
      %v501 = vld [vmem:[%s406 + $0x70] sm:$0xff]
      %v502 = vld [vmem:[%s406 + $0x78] sm:$0xff]
      %v503 = vld [vmem:[%s411] sm:$0x1]
      %v504 = vld [vmem:[%s416] sm:$0x1]
      %v505 = vld [vmem:[%s421] sm:$0x1]
      %v506 = vld [vmem:[%s426] sm:$0x1]
      %523 = vrot.lane.b32.xlu0 %v487, 49
      %v524 = vpop.permute.xlu0 %523
      %525 = vrot.lane.b32.xlu0 %v488, 49
      %v526 = vpop.permute.xlu0 %525
      %527 = vrot.lane.b32.xlu0 %v489, 49
      %v528 = vpop.permute.xlu0 %527
      %529 = vrot.lane.b32.xlu0 %v490, 49
      %v530 = vpop.permute.xlu0 %529
      %531 = vrot.lane.b32.xlu0 %v491, 49
      %v532 = vpop.permute.xlu0 %531
      %533 = vrot.lane.b32.xlu0 %v492, 49
      %v534 = vpop.permute.xlu0 %533
      %535 = vrot.lane.b32.xlu0 %v493, 49
      %v536 = vpop.permute.xlu0 %535
      %537 = vrot.lane.b32.xlu0 %v494, 49
      %v538 = vpop.permute.xlu0 %537
      %539 = vrot.lane.b32.xlu0 %v495, 49
      %v540 = vpop.permute.xlu0 %539
      %541 = vrot.lane.b32.xlu0 %v496, 49
      %v542 = vpop.permute.xlu0 %541
      %543 = vrot.lane.b32.xlu0 %v497, 49
      %v544 = vpop.permute.xlu0 %543
      %545 = vrot.lane.b32.xlu0 %v498, 49
      %v546 = vpop.permute.xlu0 %545
      %547 = vrot.lane.b32.xlu0 %v499, 49
      %v548 = vpop.permute.xlu0 %547
      %549 = vrot.lane.b32.xlu0 %v500, 49
      %v550 = vpop.permute.xlu0 %549
      %551 = vrot.lane.b32.xlu0 %v501, 49
      %v552 = vpop.permute.xlu0 %551
      %553 = vrot.lane.b32.xlu0 %v502, 49
      %v554 = vpop.permute.xlu0 %553
      %vm571 = vcmask 400384
      %v572 = vsel %vm571, %v471, %v524
      %v573 = vsel %vm571, %v472, %v526
      %v574 = vsel %vm571, %v473, %v528
      %v575 = vsel %vm571, %v474, %v530
      %v576 = vsel %vm571, %v475, %v532
      %v577 = vsel %vm571, %v476, %v534
      %v578 = vsel %vm571, %v477, %v536
      %v579 = vsel %vm571, %v478, %v538
      %v580 = vsel %vm571, %v479, %v540
      %v581 = vsel %vm571, %v480, %v542
      %v582 = vsel %vm571, %v481, %v544
      %v583 = vsel %vm571, %v482, %v546
      %v584 = vsel %vm571, %v483, %v548
      %v585 = vsel %vm571, %v484, %v550
      %v586 = vsel %vm571, %v485, %v552
      %v587 = vsel %vm571, %v486, %v554
      %vm588 = vcmask 605184
      %v589 = vsel %vm588, %v572, 0.0
      %v590 = vsel %vm588, %v573, 0.0
      %v591 = vsel %vm588, %v574, 0.0
      %v592 = vsel %vm588, %v575, 0.0
      %v593 = vsel %vm588, %v576, 0.0
      %v594 = vsel %vm588, %v577, 0.0
      %v595 = vsel %vm588, %v578, 0.0
      %v596 = vsel %vm588, %v579, 0.0
      %v597 = vsel %vm588, %v580, 0.0
      %v598 = vsel %vm588, %v581, 0.0
      %v599 = vsel %vm588, %v582, 0.0
      %v600 = vsel %vm588, %v583, 0.0
      %v601 = vsel %vm588, %v584, 0.0
      %v602 = vsel %vm588, %v585, 0.0
      %v603 = vsel %vm588, %v586, 0.0
      %v604 = vsel %vm588, %v587, 0.0
      %v605 = vpack.c.bf16 %v590, %v589
      %v606 = vpack.c.bf16 %v592, %v591
      %v607 = vpack.c.bf16 %v594, %v593
      %v608 = vpack.c.bf16 %v596, %v595
      %v609 = vpack.c.bf16 %v598, %v597
      %v610 = vpack.c.bf16 %v600, %v599
      %v611 = vpack.c.bf16 %v602, %v601
      %v612 = vpack.c.bf16 %v604, %v603
      %v613 = vunpack.c.l.bf16 %v605
      %v614 = vunpack.c.h.bf16 %v605
      %v615 = vunpack.c.l.bf16 %v606
      %v616 = vunpack.c.h.bf16 %v606
      %v617 = vunpack.c.l.bf16 %v607
      %v618 = vunpack.c.h.bf16 %v607
      %v619 = vunpack.c.l.bf16 %v608
      %v620 = vunpack.c.h.bf16 %v608
      %v621 = vunpack.c.l.bf16 %v609
      %v622 = vunpack.c.h.bf16 %v609
      %v623 = vunpack.c.l.bf16 %v610
      %v624 = vunpack.c.h.bf16 %v610
      %v625 = vunpack.c.l.bf16 %v611
      %v626 = vunpack.c.h.bf16 %v611
      %v627 = vunpack.c.l.bf16 %v612
      %v628 = vunpack.c.h.bf16 %v612
      %v629 = vsub.f32 %v589, %v613
      %v630 = vsub.f32 %v590, %v614
      %v631 = vsub.f32 %v591, %v615
      %v632 = vsub.f32 %v592, %v616
      %v633 = vsub.f32 %v593, %v617
      %v634 = vsub.f32 %v594, %v618
      %v635 = vsub.f32 %v595, %v619
      %v636 = vsub.f32 %v596, %v620
      %v637 = vsub.f32 %v597, %v621
      %v638 = vsub.f32 %v598, %v622
      %v639 = vsub.f32 %v599, %v623
      %v640 = vsub.f32 %v600, %v624
      %v641 = vsub.f32 %v601, %v625
      %v642 = vsub.f32 %v602, %v626
      %v643 = vsub.f32 %v603, %v627
      %v644 = vsub.f32 %v604, %v628
      %v645 = vpack.c.bf16 %v630, %v629
      %v646 = vpack.c.bf16 %v632, %v631
      %v647 = vpack.c.bf16 %v634, %v633
      %v648 = vpack.c.bf16 %v636, %v635
      %v649 = vpack.c.bf16 %v638, %v637
      %v650 = vpack.c.bf16 %v640, %v639
      %v651 = vpack.c.bf16 %v642, %v641
      %v652 = vpack.c.bf16 %v644, %v643
      %v669 = vunpack.c.l.b16 %v435
      %v670 = vunpack.c.l.b16 %v436
      %v671 = vunpack.c.l.b16 %v437
      %v672 = vunpack.c.l.b16 %v438
      %v673 = vunpack.c.l.b16 %v439
      %v674 = vunpack.c.l.b16 %v440
      %v675 = vunpack.c.l.b16 %v441
      %v676 = vunpack.c.l.b16 %v442
      %v677 = vunpack.c.l.b16 %v443
      %v678 = vunpack.c.l.b16 %v444
      %v679 = vunpack.c.l.b16 %v445
      %v680 = vunpack.c.l.b16 %v446
      %v681 = vunpack.c.l.b16 %v447
      %v682 = vunpack.c.l.b16 %v448
      %v683 = vunpack.c.l.b16 %v449
      %v684 = vunpack.c.l.b16 %v450
      %v685 = vpack.c.b16 %v670, %v669
      %v686 = vpack.c.b16 %v672, %v671
      %v687 = vpack.c.b16 %v674, %v673
      %v688 = vpack.c.b16 %v676, %v675
      %v689 = vpack.c.b16 %v678, %v677
      %v690 = vpack.c.b16 %v680, %v679
      %v691 = vpack.c.b16 %v682, %v681
      %v692 = vpack.c.b16 %v684, %v683
      %701 = vmatprep.subr.bf16.mxu0 0
      %702 = vmatpush1.bf16.xpose.msra.mxu0 %v652
      %703 = vmatprep.subr.bf16.mxu0 0
      %704 = vmatpush1.bf16.xpose.msra.mxu0 %v651
      %705 = vmatprep.subr.bf16.mxu0 0
      %706 = vmatpush1.bf16.xpose.msra.mxu0 %v650
      %707 = vmatprep.subr.bf16.mxu0 0
      %708 = vmatpush1.bf16.xpose.msra.mxu0 %v649
      %709 = vmatprep.subr.bf16.mxu0 0
      %710 = vmatpush1.bf16.xpose.msra.mxu0 %v648
      %711 = vmatprep.subr.bf16.mxu0 0
      %712 = vmatpush1.bf16.xpose.msra.mxu0 %v647
      %713 = vmatprep.subr.bf16.mxu0 0
      %714 = vmatpush1.bf16.xpose.msra.mxu0 %v646
      %715 = vmatprep.subr.bf16.mxu0 0
      %716 = vmatpush1.bf16.xpose.msra.mxu0 %v645
      %717 = vmatprep.subr.bf16.mxu0 0
      %718 = vmatpush2.bf16.xpose.msra.mxu0 0
      %719 = vmatprep.subr.bf16.mxu0 0
      %720 = vmatpush2.bf16.xpose.msra.mxu0 0
      %721 = vmatprep.subr.bf16.mxu0 0
      %722 = vmatpush2.bf16.xpose.msra.mxu0 0
      %723 = vmatprep.subr.bf16.mxu0 0
      %724 = vmatpush2.bf16.xpose.msra.mxu0 0
      %725 = vmatprep.subr.bf16.mxu0 0
      %726 = vmatpush2.bf16.xpose.msra.mxu0 0
      %727 = vmatprep.subr.bf16.mxu0 0
      %728 = vmatpush2.bf16.xpose.msra.mxu0 0
      %729 = vmatprep.subr.bf16.mxu0 0
      %730 = vmatpush2.bf16.xpose.msra.mxu0 0
      %731 = vmatprep.subr.bf16.mxu0 0
      %732 = vmatpush2.bf16.xpose.msra.mxu0 0
      %733 = vmatprep.mubr.bf16.mxu0 0
      %734 = vmatmul.mubr.bf16.gmra.mxu0 %v685
      %v735 = vpop.f32.mrf.mxu0
      %v736 = vadd.f32 0.0, %v735
      %v737 = vpop.f32.mrf.mxu0
      %v738 = vpop.f32.mrf.mxu0
      %v739 = vadd.f32 0.0, %v738
      %v740 = vpop.f32.mrf.mxu0
      %741 = vmatprep.mubr.bf16.mxu0 0
      %742 = vmatmul.mubr.bf16.gmra.mxu0 %v686
      %v743 = vpop.f32.mrf.mxu0
      %v744 = vadd.f32 0.0, %v743
      %v745 = vpop.f32.mrf.mxu0
      %v746 = vpop.f32.mrf.mxu0
      %v747 = vadd.f32 0.0, %v746
      %v748 = vpop.f32.mrf.mxu0
      %749 = vmatprep.mubr.bf16.mxu0 0
      %750 = vmatmul.mubr.bf16.gmra.mxu0 %v687
      %v751 = vpop.f32.mrf.mxu0
      %v752 = vadd.f32 0.0, %v751
      %v753 = vpop.f32.mrf.mxu0
      %v754 = vpop.f32.mrf.mxu0
      %v755 = vadd.f32 0.0, %v754
      %v756 = vpop.f32.mrf.mxu0
      %757 = vmatprep.mubr.bf16.mxu0 0
      %758 = vmatmul.mubr.bf16.gmra.mxu0 %v688
      %v759 = vpop.f32.mrf.mxu0
      %v760 = vadd.f32 0.0, %v759
      %v761 = vpop.f32.mrf.mxu0
      %v762 = vpop.f32.mrf.mxu0
      %v763 = vadd.f32 0.0, %v762
      %v764 = vpop.f32.mrf.mxu0
      %765 = vmatprep.mubr.bf16.mxu0 0
      %766 = vmatmul.mubr.bf16.gmra.mxu0 %v689
      %v767 = vpop.f32.mrf.mxu0
      %v768 = vadd.f32 0.0, %v767
      %v769 = vpop.f32.mrf.mxu0
      %v770 = vpop.f32.mrf.mxu0
      %v771 = vadd.f32 0.0, %v770
      %v772 = vpop.f32.mrf.mxu0
      %773 = vmatprep.mubr.bf16.mxu0 0
      %774 = vmatmul.mubr.bf16.gmra.mxu0 %v690
      %v775 = vpop.f32.mrf.mxu0
      %v776 = vadd.f32 0.0, %v775
      %v777 = vpop.f32.mrf.mxu0
      %v778 = vpop.f32.mrf.mxu0
      %v779 = vadd.f32 0.0, %v778
      %v780 = vpop.f32.mrf.mxu0
      %781 = vmatprep.mubr.bf16.mxu0 0
      %782 = vmatmul.mubr.bf16.gmra.mxu0 %v691
      %v783 = vpop.f32.mrf.mxu0
      %v784 = vadd.f32 0.0, %v783
      %v785 = vpop.f32.mrf.mxu0
      %v786 = vpop.f32.mrf.mxu0
      %v787 = vadd.f32 0.0, %v786
      %v788 = vpop.f32.mrf.mxu0
      %789 = vmatprep.mubr.bf16.mxu0 0
      %790 = vmatmul.mubr.bf16.gmra.mxu0 %v692
      %v791 = vpop.f32.mrf.mxu0
      %v792 = vadd.f32 0.0, %v791
      %v793 = vpop.f32.mrf.mxu0
      %v794 = vpop.f32.mrf.mxu0
      %v795 = vadd.f32 0.0, %v794
      %v796 = vpop.f32.mrf.mxu0
      %797 = vdwg.mxu0
      %798 = vmatprep.subr.bf16.mxu0 0
      %799 = vmatpush1.bf16.xpose.msra.mxu0 %v612
      %800 = vmatprep.subr.bf16.mxu0 0
      %801 = vmatpush1.bf16.xpose.msra.mxu0 %v611
      %802 = vmatprep.subr.bf16.mxu0 0
      %803 = vmatpush1.bf16.xpose.msra.mxu0 %v610
      %804 = vmatprep.subr.bf16.mxu0 0
      %805 = vmatpush1.bf16.xpose.msra.mxu0 %v609
      %806 = vmatprep.subr.bf16.mxu0 0
      %807 = vmatpush1.bf16.xpose.msra.mxu0 %v608
      %808 = vmatprep.subr.bf16.mxu0 0
      %809 = vmatpush1.bf16.xpose.msra.mxu0 %v607
      %810 = vmatprep.subr.bf16.mxu0 0
      %811 = vmatpush1.bf16.xpose.msra.mxu0 %v606
      %812 = vmatprep.subr.bf16.mxu0 0
      %813 = vmatpush1.bf16.xpose.msra.mxu0 %v605
      %814 = vmatprep.subr.bf16.mxu0 0
      %815 = vmatpush2.bf16.xpose.msra.mxu0 0
      %816 = vmatprep.subr.bf16.mxu0 0
      %817 = vmatpush2.bf16.xpose.msra.mxu0 0
      %818 = vmatprep.subr.bf16.mxu0 0
      %819 = vmatpush2.bf16.xpose.msra.mxu0 0
      %820 = vmatprep.subr.bf16.mxu0 0
      %821 = vmatpush2.bf16.xpose.msra.mxu0 0
      %822 = vmatprep.subr.bf16.mxu0 0
      %823 = vmatpush2.bf16.xpose.msra.mxu0 0
      %824 = vmatprep.subr.bf16.mxu0 0
      %825 = vmatpush2.bf16.xpose.msra.mxu0 0
      %826 = vmatprep.subr.bf16.mxu0 0
      %827 = vmatpush2.bf16.xpose.msra.mxu0 0
      %828 = vmatprep.subr.bf16.mxu0 0
      %829 = vmatpush2.bf16.xpose.msra.mxu0 0
      %830 = vmatprep.mubr.bf16.mxu0 0
      %831 = vmatmul.mubr.bf16.gmra.mxu0 %v685
      %v832 = vpop.f32.mrf.mxu0
      %v833 = vadd.f32 %v736, %v832
      %v834 = vpop.f32.mrf.mxu0
      %v835 = vpop.f32.mrf.mxu0
      %v836 = vadd.f32 %v739, %v835
      %v837 = vpop.f32.mrf.mxu0
      %838 = vmatprep.mubr.bf16.mxu0 0
      %839 = vmatmul.mubr.bf16.gmra.mxu0 %v686
      %v840 = vpop.f32.mrf.mxu0
      %v841 = vadd.f32 %v744, %v840
      %v842 = vpop.f32.mrf.mxu0
      %v843 = vpop.f32.mrf.mxu0
      %v844 = vadd.f32 %v747, %v843
      %v845 = vpop.f32.mrf.mxu0
      %846 = vmatprep.mubr.bf16.mxu0 0
      %847 = vmatmul.mubr.bf16.gmra.mxu0 %v687
      %v848 = vpop.f32.mrf.mxu0
      %v849 = vadd.f32 %v752, %v848
      %v850 = vpop.f32.mrf.mxu0
      %v851 = vpop.f32.mrf.mxu0
      %v852 = vadd.f32 %v755, %v851
      %v853 = vpop.f32.mrf.mxu0
      %854 = vmatprep.mubr.bf16.mxu0 0
      %855 = vmatmul.mubr.bf16.gmra.mxu0 %v688
      %v856 = vpop.f32.mrf.mxu0
      %v857 = vadd.f32 %v760, %v856
      %v858 = vpop.f32.mrf.mxu0
      %v859 = vpop.f32.mrf.mxu0
      %v860 = vadd.f32 %v763, %v859
      %v861 = vpop.f32.mrf.mxu0
      %862 = vmatprep.mubr.bf16.mxu0 0
      %863 = vmatmul.mubr.bf16.gmra.mxu0 %v689
      %v864 = vpop.f32.mrf.mxu0
      %v865 = vadd.f32 %v768, %v864
      %v866 = vpop.f32.mrf.mxu0
      %v867 = vpop.f32.mrf.mxu0
      %v868 = vadd.f32 %v771, %v867
      %v869 = vpop.f32.mrf.mxu0
      %870 = vmatprep.mubr.bf16.mxu0 0
      %871 = vmatmul.mubr.bf16.gmra.mxu0 %v690
      %v872 = vpop.f32.mrf.mxu0
      %v873 = vadd.f32 %v776, %v872
      %v874 = vpop.f32.mrf.mxu0
      %v875 = vpop.f32.mrf.mxu0
      %v876 = vadd.f32 %v779, %v875
      %v877 = vpop.f32.mrf.mxu0
      %878 = vmatprep.mubr.bf16.mxu0 0
      %879 = vmatmul.mubr.bf16.gmra.mxu0 %v691
      %v880 = vpop.f32.mrf.mxu0
      %v881 = vadd.f32 %v784, %v880
      %v882 = vpop.f32.mrf.mxu0
      %v883 = vpop.f32.mrf.mxu0
      %v884 = vadd.f32 %v787, %v883
      %v885 = vpop.f32.mrf.mxu0
      %886 = vmatprep.mubr.bf16.mxu0 0
      %887 = vmatmul.mubr.bf16.gmra.mxu0 %v692
      %v888 = vpop.f32.mrf.mxu0
      %v889 = vadd.f32 %v792, %v888
      %v890 = vpop.f32.mrf.mxu0
      %v891 = vpop.f32.mrf.mxu0
      %v892 = vadd.f32 %v795, %v891
      %v893 = vpop.f32.mrf.mxu0
      %894 = vdwg.mxu0
      %v899 = vunpack.c.l.b16 %v451
      %v900 = vunpack.c.l.b16 %v452
      %v901 = vunpack.c.l.b16 %v453
      %v902 = vunpack.c.l.b16 %v454
      %v903 = vpack.c.b16 %v900, %v899
      %v904 = vpack.c.b16 %v902, %v901
      %907 = vmatprep.subr.bf16.mxu0 0
      %908 = vmatpush1.bf16.xpose.msra.mxu0 %v652
      %909 = vmatprep.subr.bf16.mxu0 0
      %910 = vmatpush1.bf16.xpose.msra.mxu0 %v651
      %911 = vmatprep.subr.bf16.mxu0 0
      %912 = vmatpush1.bf16.xpose.msra.mxu0 %v650
      %913 = vmatprep.subr.bf16.mxu0 0
      %914 = vmatpush1.bf16.xpose.msra.mxu0 %v649
      %915 = vmatprep.subr.bf16.mxu0 0
      %916 = vmatpush1.bf16.xpose.msra.mxu0 %v648
      %917 = vmatprep.subr.bf16.mxu0 0
      %918 = vmatpush1.bf16.xpose.msra.mxu0 %v647
      %919 = vmatprep.subr.bf16.mxu0 0
      %920 = vmatpush1.bf16.xpose.msra.mxu0 %v646
      %921 = vmatprep.subr.bf16.mxu0 0
      %922 = vmatpush1.bf16.xpose.msra.mxu0 %v645
      %923 = vmatprep.subr.bf16.mxu0 0
      %924 = vmatpush2.bf16.xpose.msra.mxu0 0
      %925 = vmatprep.subr.bf16.mxu0 0
      %926 = vmatpush2.bf16.xpose.msra.mxu0 0
      %927 = vmatprep.subr.bf16.mxu0 0
      %928 = vmatpush2.bf16.xpose.msra.mxu0 0
      %929 = vmatprep.subr.bf16.mxu0 0
      %930 = vmatpush2.bf16.xpose.msra.mxu0 0
      %931 = vmatprep.subr.bf16.mxu0 0
      %932 = vmatpush2.bf16.xpose.msra.mxu0 0
      %933 = vmatprep.subr.bf16.mxu0 0
      %934 = vmatpush2.bf16.xpose.msra.mxu0 0
      %935 = vmatprep.subr.bf16.mxu0 0
      %936 = vmatpush2.bf16.xpose.msra.mxu0 0
      %937 = vmatprep.subr.bf16.mxu0 0
      %938 = vmatpush2.bf16.xpose.msra.mxu0 0
      %939 = vmatprep.mubr.bf16.mxu0 0
      %940 = vmatmul.mubr.bf16.gmra.mxu0 %v903
      %v941 = vpop.f32.mrf.mxu0
      %v942 = vadd.f32 0.0, %v941
      %v943 = vpop.f32.mrf.mxu0
      %v944 = vpop.f32.mrf.mxu0
      %v945 = vadd.f32 0.0, %v944
      %v946 = vpop.f32.mrf.mxu0
      %947 = vmatprep.mubr.bf16.mxu0 0
      %948 = vmatmul.mubr.bf16.gmra.mxu0 %v904
      %v949 = vpop.f32.mrf.mxu0
      %v950 = vadd.f32 0.0, %v949
      %v951 = vpop.f32.mrf.mxu0
      %v952 = vpop.f32.mrf.mxu0
      %v953 = vadd.f32 0.0, %v952
      %v954 = vpop.f32.mrf.mxu0
      %955 = vdwg.mxu0
      %956 = vmatprep.subr.bf16.mxu0 0
      %957 = vmatpush1.bf16.xpose.msra.mxu0 %v612
      %958 = vmatprep.subr.bf16.mxu0 0
      %959 = vmatpush1.bf16.xpose.msra.mxu0 %v611
      %960 = vmatprep.subr.bf16.mxu0 0
      %961 = vmatpush1.bf16.xpose.msra.mxu0 %v610
      %962 = vmatprep.subr.bf16.mxu0 0
      %963 = vmatpush1.bf16.xpose.msra.mxu0 %v609
      %964 = vmatprep.subr.bf16.mxu0 0
      %965 = vmatpush1.bf16.xpose.msra.mxu0 %v608
      %966 = vmatprep.subr.bf16.mxu0 0
      %967 = vmatpush1.bf16.xpose.msra.mxu0 %v607
      %968 = vmatprep.subr.bf16.mxu0 0
      %969 = vmatpush1.bf16.xpose.msra.mxu0 %v606
      %970 = vmatprep.subr.bf16.mxu0 0
      %971 = vmatpush1.bf16.xpose.msra.mxu0 %v605
      %972 = vmatprep.subr.bf16.mxu0 0
      %973 = vmatpush2.bf16.xpose.msra.mxu0 0
      %974 = vmatprep.subr.bf16.mxu0 0
      %975 = vmatpush2.bf16.xpose.msra.mxu0 0
      %976 = vmatprep.subr.bf16.mxu0 0
      %977 = vmatpush2.bf16.xpose.msra.mxu0 0
      %978 = vmatprep.subr.bf16.mxu0 0
      %979 = vmatpush2.bf16.xpose.msra.mxu0 0
      %980 = vmatprep.subr.bf16.mxu0 0
      %981 = vmatpush2.bf16.xpose.msra.mxu0 0
      %982 = vmatprep.subr.bf16.mxu0 0
      %983 = vmatpush2.bf16.xpose.msra.mxu0 0
      %984 = vmatprep.subr.bf16.mxu0 0
      %985 = vmatpush2.bf16.xpose.msra.mxu0 0
      %986 = vmatprep.subr.bf16.mxu0 0
      %987 = vmatpush2.bf16.xpose.msra.mxu0 0
      %988 = vmatprep.mubr.bf16.mxu0 0
      %989 = vmatmul.mubr.bf16.gmra.mxu0 %v903
      %v990 = vpop.f32.mrf.mxu0
      %v991 = vadd.f32 %v942, %v990
      %v992 = vpop.f32.mrf.mxu0
      %v993 = vpop.f32.mrf.mxu0
      %v994 = vadd.f32 %v945, %v993
      %v995 = vpop.f32.mrf.mxu0
      %996 = vmatprep.mubr.bf16.mxu0 0
      %997 = vmatmul.mubr.bf16.gmra.mxu0 %v904
      %v998 = vpop.f32.mrf.mxu0
      %v999 = vadd.f32 %v950, %v998
      %v1000 = vpop.f32.mrf.mxu0
      %v1001 = vpop.f32.mrf.mxu0
      %v1002 = vadd.f32 %v953, %v1001
      %v1003 = vpop.f32.mrf.mxu0
      %1004 = vdwg.mxu0
      %v1005 = vadd.f32 %v833, %v836
      %v1006 = vadd.f32 %v1005, %v841
      %v1007 = vadd.f32 %v1006, %v844
      %v1008 = vadd.f32 %v1007, %v849
      %v1009 = vadd.f32 %v1008, %v852
      %v1010 = vadd.f32 %v1009, %v857
      %v1011 = vadd.f32 %v1010, %v860
      %v1012 = vadd.f32 %v1011, %v865
      %v1013 = vadd.f32 %v1012, %v868
      %v1014 = vadd.f32 %v1013, %v873
      %v1015 = vadd.f32 %v1014, %v876
      %v1016 = vadd.f32 %v1015, %v881
      %v1017 = vadd.f32 %v1016, %v884
      %v1018 = vadd.f32 %v1017, %v889
      %v1019 = vadd.f32 %v1018, %v892
      %v1020 = vrot.slane %v1019, 4
      %v1021 = vadd.f32 %v1019, %v1020
      %v1022 = vrot.slane %v1021, 2
      %v1023 = vadd.f32 %v1021, %v1022
      %v1024 = vrot.slane %v1023, 1
      %v1025 = vadd.f32 %v1023, %v1024
      %v1026 = vmul.f32 %v1025, 0.020408163
      %v1027 = vsub.f32 %v833, %v1026
      %v1028 = vsub.f32 %v836, %v1026
      %v1029 = vsub.f32 %v841, %v1026
      %v1030 = vsub.f32 %v844, %v1026
      %v1031 = vsub.f32 %v849, %v1026
      %v1032 = vsub.f32 %v852, %v1026
      %v1033 = vsub.f32 %v857, %v1026
      %v1034 = vsub.f32 %v860, %v1026
      %v1035 = vsub.f32 %v865, %v1026
      %v1036 = vsub.f32 %v868, %v1026
      %v1037 = vsub.f32 %v873, %v1026
      %v1038 = vsub.f32 %v876, %v1026
      %v1039 = vsub.f32 %v881, %v1026
      %v1040 = vsub.f32 %v884, %v1026
      %v1041 = vsub.f32 %v889, %v1026
      %v1042 = vsub.f32 %v892, %v1026
      %1044 = vset.pattern.permute.xlu0 0
      %1045 = vperm.xlu0 %1044, %v455
      %v1046 = vpop.permute.xlu0 %1045
      %1049 = vset.pattern.permute.xlu0 0
      %1050 = vperm.xlu0 %1049, %v456
      %v1051 = vpop.permute.xlu0 %1050
      %1054 = vset.pattern.permute.xlu0 0
      %1055 = vperm.xlu0 %1054, %v457
      %v1056 = vpop.permute.xlu0 %1055
      %1059 = vset.pattern.permute.xlu0 0
      %1060 = vperm.xlu0 %1059, %v458
      %v1061 = vpop.permute.xlu0 %1060
      %1064 = vset.pattern.permute.xlu0 0
      %1065 = vperm.xlu0 %1064, %v459
      %v1066 = vpop.permute.xlu0 %1065
      %1069 = vset.pattern.permute.xlu0 0
      %1070 = vperm.xlu0 %1069, %v460
      %v1071 = vpop.permute.xlu0 %1070
      %1074 = vset.pattern.permute.xlu0 0
      %1075 = vperm.xlu0 %1074, %v461
      %v1076 = vpop.permute.xlu0 %1075
      %1079 = vset.pattern.permute.xlu0 0
      %1080 = vperm.xlu0 %1079, %v462
      %v1081 = vpop.permute.xlu0 %1080
      %1084 = vset.pattern.permute.xlu0 0
      %1085 = vperm.xlu0 %1084, %v463
      %v1086 = vpop.permute.xlu0 %1085
      %1089 = vset.pattern.permute.xlu0 0
      %1090 = vperm.xlu0 %1089, %v464
      %v1091 = vpop.permute.xlu0 %1090
      %1094 = vset.pattern.permute.xlu0 0
      %1095 = vperm.xlu0 %1094, %v465
      %v1096 = vpop.permute.xlu0 %1095
      %1099 = vset.pattern.permute.xlu0 0
      %1100 = vperm.xlu0 %1099, %v466
      %v1101 = vpop.permute.xlu0 %1100
      %1104 = vset.pattern.permute.xlu0 0
      %1105 = vperm.xlu0 %1104, %v467
      %v1106 = vpop.permute.xlu0 %1105
      %1109 = vset.pattern.permute.xlu0 0
      %1110 = vperm.xlu0 %1109, %v468
      %v1111 = vpop.permute.xlu0 %1110
      %1114 = vset.pattern.permute.xlu0 0
      %1115 = vperm.xlu0 %1114, %v469
      %v1116 = vpop.permute.xlu0 %1115
      %1119 = vset.pattern.permute.xlu0 0
      %1120 = vperm.xlu0 %1119, %v470
      %v1121 = vpop.permute.xlu0 %1120
      %v1123 = vmul.f32 %v1027, %v1046
      %v1124 = vmul.f32 %v1028, %v1051
      %v1125 = vmul.f32 %v1029, %v1056
      %v1126 = vmul.f32 %v1030, %v1061
      %v1127 = vmul.f32 %v1031, %v1066
      %v1128 = vmul.f32 %v1032, %v1071
      %v1129 = vmul.f32 %v1033, %v1076
      %v1130 = vmul.f32 %v1034, %v1081
      %v1131 = vmul.f32 %v1035, %v1086
      %v1132 = vmul.f32 %v1036, %v1091
      %v1133 = vmul.f32 %v1037, %v1096
      %v1134 = vmul.f32 %v1038, %v1101
      %v1135 = vmul.f32 %v1039, %v1106
      %v1136 = vmul.f32 %v1040, %v1111
      %v1137 = vmul.f32 %v1041, %v1116
      %v1138 = vmul.f32 %v1042, %v1121
      %v1139 = vmul.f32 %v1123, %v1123
      %v1140 = vmul.f32 %v1124, %v1124
      %v1141 = vmul.f32 %v1125, %v1125
      %v1142 = vmul.f32 %v1126, %v1126
      %v1143 = vmul.f32 %v1127, %v1127
      %v1144 = vmul.f32 %v1128, %v1128
      %v1145 = vmul.f32 %v1129, %v1129
      %v1146 = vmul.f32 %v1130, %v1130
      %v1147 = vmul.f32 %v1131, %v1131
      %v1148 = vmul.f32 %v1132, %v1132
      %v1149 = vmul.f32 %v1133, %v1133
      %v1150 = vmul.f32 %v1134, %v1134
      %v1151 = vmul.f32 %v1135, %v1135
      %v1152 = vmul.f32 %v1136, %v1136
      %v1153 = vmul.f32 %v1137, %v1137
      %v1154 = vmul.f32 %v1138, %v1138
      %v1155 = vadd.f32 %v1139, %v1140
      %v1156 = vadd.f32 %v1155, %v1141
      %v1157 = vadd.f32 %v1156, %v1142
      %v1158 = vadd.f32 %v1157, %v1143
      %v1159 = vadd.f32 %v1158, %v1144
      %v1160 = vadd.f32 %v1159, %v1145
      %v1161 = vadd.f32 %v1160, %v1146
      %v1162 = vadd.f32 %v1161, %v1147
      %v1163 = vadd.f32 %v1162, %v1148
      %v1164 = vadd.f32 %v1163, %v1149
      %v1165 = vadd.f32 %v1164, %v1150
      %v1166 = vadd.f32 %v1165, %v1151
      %v1167 = vadd.f32 %v1166, %v1152
      %v1168 = vadd.f32 %v1167, %v1153
      %v1169 = vadd.f32 %v1168, %v1154
      %v1170 = vrot.slane %v1169, 4
      %v1171 = vadd.f32 %v1169, %v1170
      %v1172 = vrot.slane %v1171, 2
      %v1173 = vadd.f32 %v1171, %v1172
      %v1174 = vrot.slane %v1173, 1
      %v1175 = vadd.f32 %v1173, %v1174
      %v1176 = vmul.f32 %v1175, 0.020408163
      %v1177 = vadd.f32 %v1176, 1e-05
      %v1178 = vrsqrt.pop %v1177
      %v1179 = vmul.f32 %v503, %v1178
      %v1180 = vmul.f32 %v1026, %v1179
      %v1181 = vsub.f32 %v504, %v1180
      %v1183 = vlaneseq
      %v1184 = vshrl.u32 %v1183, 7
      %v1185 = vsub.s32 0, %v1184
      %v1186 = vrot.slane %v1179, %v1185
      %v1188 = vmul.f32 %v833, %v1186
      %v1189 = vmul.f32 %v836, %v1186
      %v1190 = vmul.f32 %v841, %v1186
      %v1191 = vmul.f32 %v844, %v1186
      %v1192 = vmul.f32 %v849, %v1186
      %v1193 = vmul.f32 %v852, %v1186
      %v1194 = vmul.f32 %v857, %v1186
      %v1195 = vmul.f32 %v860, %v1186
      %v1196 = vmul.f32 %v865, %v1186
      %v1197 = vmul.f32 %v868, %v1186
      %v1198 = vmul.f32 %v873, %v1186
      %v1199 = vmul.f32 %v876, %v1186
      %v1200 = vmul.f32 %v881, %v1186
      %v1201 = vmul.f32 %v884, %v1186
      %v1202 = vmul.f32 %v889, %v1186
      %v1203 = vmul.f32 %v892, %v1186
      %v1205 = vlaneseq
      %v1206 = vshrl.u32 %v1205, 7
      %v1207 = vsub.s32 0, %v1206
      %v1208 = vrot.slane %v1181, %v1207
      %v1210 = vadd.f32 %v1188, %v1208
      %v1211 = vadd.f32 %v1189, %v1208
      %v1212 = vadd.f32 %v1190, %v1208
      %v1213 = vadd.f32 %v1191, %v1208
      %v1214 = vadd.f32 %v1192, %v1208
      %v1215 = vadd.f32 %v1193, %v1208
      %v1216 = vadd.f32 %v1194, %v1208
      %v1217 = vadd.f32 %v1195, %v1208
      %v1218 = vadd.f32 %v1196, %v1208
      %v1219 = vadd.f32 %v1197, %v1208
      %v1220 = vadd.f32 %v1198, %v1208
      %v1221 = vadd.f32 %v1199, %v1208
      %v1222 = vadd.f32 %v1200, %v1208
      %v1223 = vadd.f32 %v1201, %v1208
      %v1224 = vadd.f32 %v1202, %v1208
      %v1225 = vadd.f32 %v1203, %v1208
      %v1226 = vmax.f32 %v1210, 0.0
      %v1227 = vmax.f32 %v1211, 0.0
      %v1228 = vmax.f32 %v1212, 0.0
      %v1229 = vmax.f32 %v1213, 0.0
      %v1230 = vmax.f32 %v1214, 0.0
      %v1231 = vmax.f32 %v1215, 0.0
      %v1232 = vmax.f32 %v1216, 0.0
      %v1233 = vmax.f32 %v1217, 0.0
      %v1234 = vmax.f32 %v1218, 0.0
      %v1235 = vmax.f32 %v1219, 0.0
      %v1236 = vmax.f32 %v1220, 0.0
      %v1237 = vmax.f32 %v1221, 0.0
      %v1238 = vmax.f32 %v1222, 0.0
      %v1239 = vmax.f32 %v1223, 0.0
      %v1240 = vmax.f32 %v1224, 0.0
      %v1241 = vmax.f32 %v1225, 0.0
      %v1242 = vmul.f32 %v1226, %v1046
      %v1243 = vmul.f32 %v1227, %v1051
      %v1244 = vmul.f32 %v1228, %v1056
      %v1245 = vmul.f32 %v1229, %v1061
      %v1246 = vmul.f32 %v1230, %v1066
      %v1247 = vmul.f32 %v1231, %v1071
      %v1248 = vmul.f32 %v1232, %v1076
      %v1249 = vmul.f32 %v1233, %v1081
      %v1250 = vmul.f32 %v1234, %v1086
      %v1251 = vmul.f32 %v1235, %v1091
      %v1252 = vmul.f32 %v1236, %v1096
      %v1253 = vmul.f32 %v1237, %v1101
      %v1254 = vmul.f32 %v1238, %v1106
      %v1255 = vmul.f32 %v1239, %v1111
      %v1256 = vmul.f32 %v1240, %v1116
      %v1257 = vmul.f32 %v1241, %v1121
      %v1258 = vlaneseq
      %v1259 = vshrl.u32 %v1258, 7
      %v1260 = vsub.s32 0, %v1259
      %v1261 = vrot.slane %v991, %v1260
      %v1262 = vmul.f32 %v1242, %v1261
      %v1263 = vlaneseq
      %v1264 = vshrl.u32 %v1263, 7
      %v1265 = vsub.s32 1, %v1264
      %v1266 = vrot.slane %v991, %v1265
      %v1267 = vmul.f32 %v1242, %v1266
      %v1269 = vrot.slane %v1267, 1
      %v1271 = vadd.f32 %v1262, %v1269
      %v1272 = vlaneseq
      %v1273 = vshrl.u32 %v1272, 7
      %v1274 = vsub.s32 2, %v1273
      %v1275 = vrot.slane %v991, %v1274
      %v1276 = vmul.f32 %v1242, %v1275
      %v1277 = vmul.f32 %v1243, %v1275
      %vm1280 = vcmask 1045504
      %v1281 = vrot.slane %v1276, 2
      %v1282 = vrot.slane %v1277, 2
      %v1283 = vsel %vm1280, %v1281, %v1282
      %v1285 = vadd.f32 %v1271, %v1283
      %v1286 = vlaneseq
      %v1287 = vshrl.u32 %v1286, 7
      %v1288 = vsub.s32 3, %v1287
      %v1289 = vrot.slane %v991, %v1288
      %v1290 = vmul.f32 %v1242, %v1289
      %v1291 = vmul.f32 %v1243, %v1289
      %vm1294 = vcmask 1044480
      %v1295 = vrot.slane %v1290, 3
      %v1296 = vrot.slane %v1291, 3
      %v1297 = vsel %vm1294, %v1295, %v1296
      %v1299 = vadd.f32 %v1285, %v1297
      %v1300 = vlaneseq
      %v1301 = vshrl.u32 %v1300, 7
      %v1302 = vsub.s32 4, %v1301
      %v1303 = vrot.slane %v991, %v1302
      %v1304 = vmul.f32 %v1242, %v1303
      %v1305 = vmul.f32 %v1243, %v1303
      %vm1308 = vcmask 1043456
      %v1309 = vrot.slane %v1304, 4
      %v1310 = vrot.slane %v1305, 4
      %v1311 = vsel %vm1308, %v1309, %v1310
      %v1313 = vadd.f32 %v1299, %v1311
      %v1314 = vmul.f32 %v1243, %v1261
      %v1315 = vmul.f32 %v1244, %v1261
      %v1316 = vlaneseq
      %v1317 = vshrl.u32 %v1316, 7
      %v1318 = vsub.s32 5, %v1317
      %v1319 = vrot.slane %v991, %v1318
      %v1320 = vmul.f32 %v1243, %v1319
      %v1321 = vmul.f32 %v1244, %v1319
      %v1324 = vrot.slane %v1320, 3
      %v1325 = vrot.slane %v1321, 3
      %v1326 = vsel %vm1294, %v1324, %v1325
      %v1328 = vadd.f32 %v1313, %v1326
      %v1329 = vmul.f32 %v1243, %v1266
      %v1330 = vmul.f32 %v1244, %v1266
      %vm1333 = vcmask 1046528
      %v1334 = vrot.slane %v1329, 1
      %v1335 = vrot.slane %v1330, 1
      %v1336 = vsel %vm1333, %v1334, %v1335
      %v1339 = vadd.f32 %v1314, %v1336
      %v1340 = vadd.f32 %v1315, %v1335
      %v1341 = vlaneseq
      %v1342 = vshrl.u32 %v1341, 7
      %v1343 = vsub.s32 6, %v1342
      %v1344 = vrot.slane %v991, %v1343
      %v1345 = vmul.f32 %v1243, %v1344
      %v1346 = vmul.f32 %v1244, %v1344
      %v1349 = vrot.slane %v1345, 4
      %v1350 = vrot.slane %v1346, 4
      %v1351 = vsel %vm1308, %v1349, %v1350
      %v1353 = vadd.f32 %v1328, %v1351
      %v1354 = vmul.f32 %v1244, %v1275
      %v1356 = vrot.slane %v1354, 2
      %v1357 = vsel %vm1280, %v1282, %v1356
      %v1360 = vadd.f32 %v1339, %v1357
      %v1361 = vadd.f32 %v1340, %v1356
      %v1362 = vlaneseq
      %v1363 = vshrl.u32 %v1362, 7
      %v1364 = vsub.s32 7, %v1363
      %v1365 = vrot.slane %v991, %v1364
      %v1366 = vmul.f32 %v1243, %v1365
      %v1367 = vmul.f32 %v1244, %v1365
      %vm1370 = vcmask 1042432
      %v1371 = vrot.slane %v1366, 5
      %v1372 = vrot.slane %v1367, 5
      %v1373 = vsel %vm1370, %v1371, %v1372
      %v1375 = vadd.f32 %v1353, %v1373
      %v1376 = vmul.f32 %v1244, %v1289
      %v1378 = vrot.slane %v1376, 3
      %v1379 = vsel %vm1294, %v1296, %v1378
      %v1382 = vadd.f32 %v1360, %v1379
      %v1383 = vadd.f32 %v1361, %v1378
      %v1384 = vlaneseq
      %v1385 = vshrl.u32 %v1384, 7
      %v1386 = vsub.s32 0, %v1385
      %v1387 = vrot.slane %v994, %v1386
      %v1388 = vmul.f32 %v1243, %v1387
      %v1389 = vmul.f32 %v1244, %v1387
      %vm1392 = vcmask 1041408
      %v1393 = vrot.slane %v1388, 6
      %v1394 = vrot.slane %v1389, 6
      %v1395 = vsel %vm1392, %v1393, %v1394
      %v1397 = vadd.f32 %v1375, %v1395
      %v1398 = vmul.f32 %v1244, %v1303
      %v1400 = vrot.slane %v1398, 4
      %v1401 = vsel %vm1308, %v1310, %v1400
      %v1404 = vadd.f32 %v1382, %v1401
      %v1405 = vadd.f32 %v1383, %v1400
      %v1406 = vlaneseq
      %v1407 = vshrl.u32 %v1406, 7
      %v1408 = vsub.s32 1, %v1407
      %v1409 = vrot.slane %v994, %v1408
      %v1410 = vmul.f32 %v1243, %v1409
      %v1411 = vmul.f32 %v1244, %v1409
      %vm1414 = vcmask 1040384
      %v1415 = vrot.slane %v1410, 7
      %v1416 = vrot.slane %v1411, 7
      %v1417 = vsel %vm1414, %v1415, %v1416
      %v1419 = vadd.f32 %v1397, %v1417
      %v1420 = vmul.f32 %v1245, %v1261
      %v1421 = vmul.f32 %v1245, %v1319
      %v1423 = vrot.slane %v1421, 3
      %v1424 = vsel %vm1294, %v1325, %v1423
      %v1427 = vadd.f32 %v1404, %v1424
      %v1428 = vadd.f32 %v1405, %v1423
      %v1429 = vlaneseq
      %v1430 = vshrl.u32 %v1429, 7
      %v1431 = vsub.s32 2, %v1430
      %v1432 = vrot.slane %v994, %v1431
      %v1433 = vmul.f32 %v1244, %v1432
      %v1434 = vmul.f32 %v1245, %v1432
      %v1437 = vrot.slane %v1433, 6
      %v1438 = vrot.slane %v1434, 6
      %v1439 = vsel %vm1392, %v1437, %v1438
      %v1441 = vadd.f32 %v1419, %v1439
      %v1442 = vmul.f32 %v1245, %v1266
      %v1444 = vrot.slane %v1442, 1
      %v1445 = vsel %vm1333, %v1335, %v1444
      %v1448 = vadd.f32 %v1315, %v1445
      %v1449 = vadd.f32 %v1420, %v1444
      %v1450 = vmul.f32 %v1245, %v1344
      %v1452 = vrot.slane %v1450, 4
      %v1453 = vsel %vm1308, %v1350, %v1452
      %v1456 = vadd.f32 %v1427, %v1453
      %v1457 = vadd.f32 %v1428, %v1452
      %v1458 = vlaneseq
      %v1459 = vshrl.u32 %v1458, 7
      %v1460 = vsub.s32 3, %v1459
      %v1461 = vrot.slane %v994, %v1460
      %v1462 = vmul.f32 %v1244, %v1461
      %v1463 = vmul.f32 %v1245, %v1461
      %v1466 = vrot.slane %v1462, 7
      %v1467 = vrot.slane %v1463, 7
      %v1468 = vsel %vm1414, %v1466, %v1467
      %v1470 = vadd.f32 %v1441, %v1468
      %v1471 = vmul.f32 %v1245, %v1275
      %v1473 = vrot.slane %v1471, 2
      %v1475 = vadd.f32 %v1448, %v1473
      %v1476 = vadd.f32 %v1449, %v1473
      %v1477 = vmul.f32 %v1245, %v1365
      %v1479 = vrot.slane %v1477, 5
      %v1481 = vadd.f32 %v1456, %v1479
      %v1482 = vadd.f32 %v1457, %v1479
      %v1483 = vlaneseq
      %v1484 = vshrl.u32 %v1483, 7
      %v1485 = vsub.s32 4, %v1484
      %v1486 = vrot.slane %v994, %v1485
      %v1487 = vmul.f32 %v1245, %v1486
      %v1488 = vadd.f32 %v1470, %v1487
      %v1489 = vmul.f32 %v1245, %v1289
      %v1491 = vrot.slane %v1489, 3
      %v1493 = vadd.f32 %v1475, %v1491
      %v1494 = vadd.f32 %v1476, %v1491
      %v1495 = vmul.f32 %v1245, %v1387
      %v1497 = vrot.slane %v1495, 6
      %v1499 = vadd.f32 %v1481, %v1497
      %v1500 = vadd.f32 %v1482, %v1497
      %v1501 = vlaneseq
      %v1502 = vshrl.u32 %v1501, 7
      %v1503 = vsub.s32 5, %v1502
      %v1504 = vrot.slane %v994, %v1503
      %v1505 = vmul.f32 %v1245, %v1504
      %v1507 = vrot.slane %v1505, 1
      %v1509 = vadd.f32 %v1488, %v1507
      %v1510 = vmul.f32 %v1245, %v1303
      %v1511 = vmul.f32 %v1246, %v1303
      %v1514 = vrot.slane %v1510, 4
      %v1515 = vrot.slane %v1511, 4
      %v1516 = vsel %vm1308, %v1514, %v1515
      %v1519 = vadd.f32 %v1493, %v1514
      %v1520 = vadd.f32 %v1494, %v1516
      %v1521 = vmul.f32 %v1245, %v1409
      %v1522 = vmul.f32 %v1246, %v1409
      %v1525 = vrot.slane %v1521, 7
      %v1526 = vrot.slane %v1522, 7
      %v1527 = vsel %vm1414, %v1525, %v1526
      %v1530 = vadd.f32 %v1499, %v1525
      %v1531 = vadd.f32 %v1500, %v1527
      %v1532 = vlaneseq
      %v1533 = vshrl.u32 %v1532, 7
      %v1534 = vsub.s32 6, %v1533
      %v1535 = vrot.slane %v994, %v1534
      %v1536 = vmul.f32 %v1245, %v1535
      %v1537 = vmul.f32 %v1246, %v1535
      %v1540 = vrot.slane %v1536, 2
      %v1541 = vrot.slane %v1537, 2
      %v1542 = vsel %vm1280, %v1540, %v1541
      %v1544 = vadd.f32 %v1509, %v1542
      %v1545 = vmul.f32 %v1246, %v1261
      %v1546 = vmul.f32 %v1246, %v1319
      %v1548 = vrot.slane %v1546, 3
      %v1550 = vadd.f32 %v1519, %v1548
      %v1551 = vadd.f32 %v1520, %v1548
      %v1552 = vmul.f32 %v1246, %v1432
      %v1554 = vrot.slane %v1552, 6
      %v1556 = vadd.f32 %v1530, %v1554
      %v1557 = vadd.f32 %v1531, %v1554
      %v1558 = vlaneseq
      %v1559 = vshrl.u32 %v1558, 7
      %v1560 = vsub.s32 7, %v1559
      %v1561 = vrot.slane %v994, %v1560
      %v1562 = vmul.f32 %v1246, %v1561
      %v1564 = vrot.slane %v1562, 1
      %v1566 = vadd.f32 %v1544, %v1564
      %v1567 = vmul.f32 %v1246, %v1266
      %v1568 = vmul.f32 %v1247, %v1266
      %v1571 = vrot.slane %v1567, 1
      %v1572 = vrot.slane %v1568, 1
      %v1573 = vsel %vm1333, %v1571, %v1572
      %v1575 = vadd.f32 %v1545, %v1573
      %v1576 = vmul.f32 %v1246, %v1344
      %v1577 = vmul.f32 %v1247, %v1344
      %v1580 = vrot.slane %v1576, 4
      %v1581 = vrot.slane %v1577, 4
      %v1582 = vsel %vm1308, %v1580, %v1581
      %v1585 = vadd.f32 %v1550, %v1580
      %v1586 = vadd.f32 %v1551, %v1582
      %v1587 = vmul.f32 %v1246, %v1461
      %v1588 = vmul.f32 %v1247, %v1461
      %v1591 = vrot.slane %v1587, 7
      %v1592 = vrot.slane %v1588, 7
      %v1593 = vsel %vm1414, %v1591, %v1592
      %v1596 = vadd.f32 %v1556, %v1591
      %v1597 = vadd.f32 %v1557, %v1593
      %v1598 = vlaneseq
      %v1599 = vshrl.u32 %v1598, 7
      %v1600 = vsub.s32 0, %v1599
      %v1601 = vrot.slane %v999, %v1600
      %v1602 = vmul.f32 %v1246, %v1601
      %v1603 = vmul.f32 %v1247, %v1601
      %v1606 = vrot.slane %v1602, 2
      %v1607 = vrot.slane %v1603, 2
      %v1608 = vsel %vm1280, %v1606, %v1607
      %v1610 = vadd.f32 %v1566, %v1608
      %v1611 = vmul.f32 %v1246, %v1275
      %v1612 = vmul.f32 %v1247, %v1275
      %v1615 = vrot.slane %v1611, 2
      %v1616 = vrot.slane %v1612, 2
      %v1617 = vsel %vm1280, %v1615, %v1616
      %v1619 = vadd.f32 %v1575, %v1617
      %v1620 = vmul.f32 %v1246, %v1365
      %v1621 = vmul.f32 %v1247, %v1365
      %v1624 = vrot.slane %v1620, 5
      %v1625 = vrot.slane %v1621, 5
      %v1626 = vsel %vm1370, %v1624, %v1625
      %v1629 = vadd.f32 %v1585, %v1624
      %v1630 = vadd.f32 %v1586, %v1626
      %v1631 = vmul.f32 %v1246, %v1486
      %v1632 = vmul.f32 %v1247, %v1486
      %v1633 = vadd.f32 %v1596, %v1631
      %v1634 = vadd.f32 %v1597, %v1632
      %v1635 = vlaneseq
      %v1636 = vshrl.u32 %v1635, 7
      %v1637 = vsub.s32 1, %v1636
      %v1638 = vrot.slane %v999, %v1637
      %v1639 = vmul.f32 %v1246, %v1638
      %v1640 = vmul.f32 %v1247, %v1638
      %v1643 = vrot.slane %v1639, 3
      %v1644 = vrot.slane %v1640, 3
      %v1645 = vsel %vm1294, %v1643, %v1644
      %v1647 = vadd.f32 %v1610, %v1645
      %v1648 = vmul.f32 %v1246, %v1289
      %v1649 = vmul.f32 %v1247, %v1289
      %v1652 = vrot.slane %v1648, 3
      %v1653 = vrot.slane %v1649, 3
      %v1654 = vsel %vm1294, %v1652, %v1653
      %v1656 = vadd.f32 %v1619, %v1654
      %v1657 = vmul.f32 %v1246, %v1387
      %v1658 = vmul.f32 %v1247, %v1387
      %v1661 = vrot.slane %v1657, 6
      %v1662 = vrot.slane %v1658, 6
      %v1663 = vsel %vm1392, %v1661, %v1662
      %v1666 = vadd.f32 %v1629, %v1661
      %v1667 = vadd.f32 %v1630, %v1663
      %v1668 = vmul.f32 %v1246, %v1504
      %v1669 = vmul.f32 %v1247, %v1504
      %v1672 = vrot.slane %v1668, 1
      %v1673 = vrot.slane %v1669, 1
      %v1674 = vsel %vm1333, %v1672, %v1673
      %v1677 = vadd.f32 %v1633, %v1674
      %v1678 = vadd.f32 %v1634, %v1673
      %v1679 = vlaneseq
      %v1680 = vshrl.u32 %v1679, 7
      %v1681 = vsub.s32 2, %v1680
      %v1682 = vrot.slane %v999, %v1681
      %v1683 = vmul.f32 %v1246, %v1682
      %v1684 = vmul.f32 %v1247, %v1682
      %v1687 = vrot.slane %v1683, 4
      %v1688 = vrot.slane %v1684, 4
      %v1689 = vsel %vm1308, %v1687, %v1688
      %v1691 = vadd.f32 %v1647, %v1689
      %v1692 = vmul.f32 %v1247, %v1303
      %v1694 = vrot.slane %v1692, 4
      %v1695 = vsel %vm1308, %v1515, %v1694
      %v1697 = vadd.f32 %v1656, %v1695
      %v1698 = vmul.f32 %v1247, %v1409
      %v1700 = vrot.slane %v1698, 7
      %v1701 = vsel %vm1414, %v1526, %v1700
      %v1704 = vadd.f32 %v1666, %v1526
      %v1705 = vadd.f32 %v1667, %v1701
      %v1706 = vmul.f32 %v1247, %v1535
      %v1708 = vrot.slane %v1706, 2
      %v1709 = vsel %vm1280, %v1541, %v1708
      %v1712 = vadd.f32 %v1677, %v1709
      %v1713 = vadd.f32 %v1678, %v1708
      %v1714 = vlaneseq
      %v1715 = vshrl.u32 %v1714, 7
      %v1716 = vsub.s32 3, %v1715
      %v1717 = vrot.slane %v999, %v1716
      %v1718 = vmul.f32 %v1246, %v1717
      %v1719 = vmul.f32 %v1247, %v1717
      %v1722 = vrot.slane %v1718, 5
      %v1723 = vrot.slane %v1719, 5
      %v1724 = vsel %vm1370, %v1722, %v1723
      %v1726 = vadd.f32 %v1691, %v1724
      %v1727 = vmul.f32 %v1247, %v1261
      %v1728 = vmul.f32 %v1248, %v1261
      %v1729 = vmul.f32 %v1247, %v1319
      %v1730 = vmul.f32 %v1248, %v1319
      %v1733 = vrot.slane %v1729, 3
      %v1734 = vrot.slane %v1730, 3
      %v1735 = vsel %vm1294, %v1733, %v1734
      %v1737 = vadd.f32 %v1697, %v1735
      %v1738 = vmul.f32 %v1247, %v1432
      %v1739 = vmul.f32 %v1248, %v1432
      %v1742 = vrot.slane %v1738, 6
      %v1743 = vrot.slane %v1739, 6
      %v1744 = vsel %vm1392, %v1742, %v1743
      %v1747 = vadd.f32 %v1704, %v1742
      %v1748 = vadd.f32 %v1705, %v1744
      %v1749 = vmul.f32 %v1247, %v1561
      %v1750 = vmul.f32 %v1248, %v1561
      %v1753 = vrot.slane %v1749, 1
      %v1754 = vrot.slane %v1750, 1
      %v1755 = vsel %vm1333, %v1753, %v1754
      %v1758 = vadd.f32 %v1712, %v1755
      %v1759 = vadd.f32 %v1713, %v1754
      %v1760 = vlaneseq
      %v1761 = vshrl.u32 %v1760, 7
      %v1762 = vsub.s32 4, %v1761
      %v1763 = vrot.slane %v999, %v1762
      %v1764 = vmul.f32 %v1247, %v1763
      %v1765 = vmul.f32 %v1248, %v1763
      %v1768 = vrot.slane %v1764, 4
      %v1769 = vrot.slane %v1765, 4
      %v1770 = vsel %vm1308, %v1768, %v1769
      %v1772 = vadd.f32 %v1726, %v1770
      %v1773 = vmul.f32 %v1248, %v1266
      %v1775 = vrot.slane %v1773, 1
      %v1776 = vsel %vm1333, %v1572, %v1775
      %v1779 = vadd.f32 %v1727, %v1776
      %v1780 = vadd.f32 %v1728, %v1775
      %v1781 = vmul.f32 %v1248, %v1344
      %v1783 = vrot.slane %v1781, 4
      %v1784 = vsel %vm1308, %v1581, %v1783
      %v1786 = vadd.f32 %v1737, %v1784
      %v1787 = vmul.f32 %v1248, %v1461
      %v1789 = vrot.slane %v1787, 7
      %v1790 = vsel %vm1414, %v1592, %v1789
      %v1793 = vadd.f32 %v1747, %v1592
      %v1794 = vadd.f32 %v1748, %v1790
      %v1795 = vmul.f32 %v1248, %v1601
      %v1797 = vrot.slane %v1795, 2
      %v1798 = vsel %vm1280, %v1607, %v1797
      %v1801 = vadd.f32 %v1758, %v1798
      %v1802 = vadd.f32 %v1759, %v1797
      %v1803 = vlaneseq
      %v1804 = vshrl.u32 %v1803, 7
      %v1805 = vsub.s32 5, %v1804
      %v1806 = vrot.slane %v999, %v1805
      %v1807 = vmul.f32 %v1247, %v1806
      %v1808 = vmul.f32 %v1248, %v1806
      %v1811 = vrot.slane %v1807, 5
      %v1812 = vrot.slane %v1808, 5
      %v1813 = vsel %vm1370, %v1811, %v1812
      %v1815 = vadd.f32 %v1772, %v1813
      %v1816 = vmul.f32 %v1248, %v1275
      %v1818 = vrot.slane %v1816, 2
      %v1819 = vsel %vm1280, %v1616, %v1818
      %v1822 = vadd.f32 %v1779, %v1819
      %v1823 = vadd.f32 %v1780, %v1818
      %v1824 = vmul.f32 %v1248, %v1365
      %v1826 = vrot.slane %v1824, 5
      %v1827 = vsel %vm1370, %v1625, %v1826
      %v1829 = vadd.f32 %v1786, %v1827
      %v1830 = vmul.f32 %v1248, %v1486
      %v1831 = vadd.f32 %v1793, %v1632
      %v1832 = vadd.f32 %v1794, %v1830
      %v1833 = vmul.f32 %v1248, %v1638
      %v1835 = vrot.slane %v1833, 3
      %v1836 = vsel %vm1294, %v1644, %v1835
      %v1839 = vadd.f32 %v1801, %v1836
      %v1840 = vadd.f32 %v1802, %v1835
      %v1841 = vlaneseq
      %v1842 = vshrl.u32 %v1841, 7
      %v1843 = vsub.s32 6, %v1842
      %v1844 = vrot.slane %v999, %v1843
      %v1845 = vmul.f32 %v1247, %v1844
      %v1846 = vmul.f32 %v1248, %v1844
      %v1849 = vrot.slane %v1845, 6
      %v1850 = vrot.slane %v1846, 6
      %v1851 = vsel %vm1392, %v1849, %v1850
      %v1853 = vadd.f32 %v1815, %v1851
      %v1854 = vmul.f32 %v1248, %v1289
      %v1856 = vrot.slane %v1854, 3
      %v1857 = vsel %vm1294, %v1653, %v1856
      %v1860 = vadd.f32 %v1822, %v1857
      %v1861 = vadd.f32 %v1823, %v1856
      %v1862 = vmul.f32 %v1248, %v1387
      %v1864 = vrot.slane %v1862, 6
      %v1865 = vsel %vm1392, %v1662, %v1864
      %v1867 = vadd.f32 %v1829, %v1865
      %v1868 = vmul.f32 %v1248, %v1504
      %v1870 = vrot.slane %v1868, 1
      %v1871 = vsel %vm1333, %v1673, %v1870
      %v1874 = vadd.f32 %v1831, %v1871
      %v1875 = vadd.f32 %v1832, %v1870
      %v1876 = vmul.f32 %v1248, %v1682
      %v1878 = vrot.slane %v1876, 4
      %v1879 = vsel %vm1308, %v1688, %v1878
      %v1882 = vadd.f32 %v1839, %v1879
      %v1883 = vadd.f32 %v1840, %v1878
      %v1884 = vlaneseq
      %v1885 = vshrl.u32 %v1884, 7
      %v1886 = vsub.s32 7, %v1885
      %v1887 = vrot.slane %v999, %v1886
      %v1888 = vmul.f32 %v1247, %v1887
      %v1889 = vmul.f32 %v1248, %v1887
      %v1892 = vrot.slane %v1888, 7
      %v1893 = vrot.slane %v1889, 7
      %v1894 = vsel %vm1414, %v1892, %v1893
      %v1896 = vadd.f32 %v1853, %v1894
      %v1897 = vmul.f32 %v1248, %v1303
      %v1899 = vrot.slane %v1897, 4
      %v1901 = vadd.f32 %v1860, %v1899
      %v1902 = vadd.f32 %v1861, %v1899
      %v1903 = vmul.f32 %v1248, %v1409
      %v1905 = vrot.slane %v1903, 7
      %v1907 = vadd.f32 %v1867, %v1905
      %v1908 = vmul.f32 %v1248, %v1535
      %v1910 = vrot.slane %v1908, 2
      %v1912 = vadd.f32 %v1874, %v1910
      %v1913 = vadd.f32 %v1875, %v1910
      %v1914 = vmul.f32 %v1248, %v1717
      %v1916 = vrot.slane %v1914, 5
      %v1918 = vadd.f32 %v1882, %v1916
      %v1919 = vadd.f32 %v1883, %v1916
      %v1920 = vlaneseq
      %v1921 = vshrl.u32 %v1920, 7
      %v1922 = vsub.s32 0, %v1921
      %v1923 = vrot.slane %v1002, %v1922
      %v1924 = vmul.f32 %v1248, %v1923
      %v1925 = vadd.f32 %v1896, %v1924
      %v1926 = vmul.f32 %v1249, %v1261
      %v1927 = vmul.f32 %v1249, %v1319
      %v1929 = vrot.slane %v1927, 3
      %v1930 = vsel %vm1294, %v1734, %v1929
      %v1933 = vadd.f32 %v1901, %v1930
      %v1934 = vadd.f32 %v1902, %v1929
      %v1935 = vmul.f32 %v1249, %v1432
      %v1937 = vrot.slane %v1935, 6
      %v1938 = vsel %vm1392, %v1743, %v1937
      %v1940 = vadd.f32 %v1907, %v1938
      %v1941 = vmul.f32 %v1249, %v1561
      %v1943 = vrot.slane %v1941, 1
      %v1944 = vsel %vm1333, %v1754, %v1943
      %v1947 = vadd.f32 %v1912, %v1944
      %v1948 = vadd.f32 %v1913, %v1943
      %v1949 = vmul.f32 %v1249, %v1763
      %v1951 = vrot.slane %v1949, 4
      %v1952 = vsel %vm1308, %v1769, %v1951
      %v1955 = vadd.f32 %v1918, %v1952
      %v1956 = vadd.f32 %v1919, %v1951
      %v1957 = vmul.f32 %v1249, %v1266
      %v1959 = vrot.slane %v1957, 1
      %v1961 = vadd.f32 %v1728, %v1959
      %v1962 = vadd.f32 %v1926, %v1959
      %v1963 = vmul.f32 %v1249, %v1344
      %v1965 = vrot.slane %v1963, 4
      %v1967 = vadd.f32 %v1933, %v1965
      %v1968 = vadd.f32 %v1934, %v1965
      %v1969 = vmul.f32 %v1249, %v1461
      %v1971 = vrot.slane %v1969, 7
      %v1973 = vadd.f32 %v1940, %v1971
      %v1974 = vmul.f32 %v1249, %v1601
      %v1976 = vrot.slane %v1974, 2
      %v1978 = vadd.f32 %v1947, %v1976
      %v1979 = vadd.f32 %v1948, %v1976
      %v1980 = vmul.f32 %v1249, %v1806
      %v1982 = vrot.slane %v1980, 5
      %v1984 = vadd.f32 %v1955, %v1982
      %v1985 = vadd.f32 %v1956, %v1982
      %v1986 = vmul.f32 %v1249, %v1275
      %v1988 = vrot.slane %v1986, 2
      %v1990 = vadd.f32 %v1961, %v1988
      %v1991 = vadd.f32 %v1962, %v1988
      %v1992 = vmul.f32 %v1249, %v1365
      %v1994 = vrot.slane %v1992, 5
      %v1996 = vadd.f32 %v1967, %v1994
      %v1997 = vadd.f32 %v1968, %v1994
      %v1998 = vmul.f32 %v1249, %v1486
      %v1999 = vadd.f32 %v1973, %v1998
      %v2000 = vmul.f32 %v1249, %v1638
      %v2002 = vrot.slane %v2000, 3
      %v2004 = vadd.f32 %v1978, %v2002
      %v2005 = vadd.f32 %v1979, %v2002
      %v2006 = vmul.f32 %v1249, %v1844
      %v2008 = vrot.slane %v2006, 6
      %v2010 = vadd.f32 %v1984, %v2008
      %v2011 = vadd.f32 %v1985, %v2008
      %v2012 = vmul.f32 %v1249, %v1289
      %v2013 = vmul.f32 %v1250, %v1289
      %v2016 = vrot.slane %v2012, 3
      %v2017 = vrot.slane %v2013, 3
      %v2018 = vsel %vm1294, %v2016, %v2017
      %v2021 = vadd.f32 %v1990, %v2016
      %v2022 = vadd.f32 %v1991, %v2018
      %v2023 = vmul.f32 %v1249, %v1387
      %v2024 = vmul.f32 %v1250, %v1387
      %v2027 = vrot.slane %v2023, 6
      %v2028 = vrot.slane %v2024, 6
      %v2029 = vsel %vm1392, %v2027, %v2028
      %v2032 = vadd.f32 %v1996, %v2027
      %v2033 = vadd.f32 %v1997, %v2029
      %v2034 = vmul.f32 %v1249, %v1504
      %v2035 = vmul.f32 %v1250, %v1504
      %v2038 = vrot.slane %v2034, 1
      %v2039 = vrot.slane %v2035, 1
      %v2040 = vsel %vm1333, %v2038, %v2039
      %v2042 = vadd.f32 %v1999, %v2040
      %v2043 = vmul.f32 %v1249, %v1682
      %v2044 = vmul.f32 %v1250, %v1682
      %v2047 = vrot.slane %v2043, 4
      %v2048 = vrot.slane %v2044, 4
      %v2049 = vsel %vm1308, %v2047, %v2048
      %v2052 = vadd.f32 %v2004, %v2047
      %v2053 = vadd.f32 %v2005, %v2049
      %v2054 = vmul.f32 %v1249, %v1887
      %v2055 = vmul.f32 %v1250, %v1887
      %v2058 = vrot.slane %v2054, 7
      %v2059 = vrot.slane %v2055, 7
      %v2060 = vsel %vm1414, %v2058, %v2059
      %v2063 = vadd.f32 %v2010, %v2058
      %v2064 = vadd.f32 %v2011, %v2060
      %v2065 = vmul.f32 %v1249, %v1303
      %v2066 = vmul.f32 %v1250, %v1303
      %v2069 = vrot.slane %v2065, 4
      %v2070 = vrot.slane %v2066, 4
      %v2071 = vsel %vm1308, %v2069, %v2070
      %v2074 = vadd.f32 %v2021, %v2069
      %v2075 = vadd.f32 %v2022, %v2071
      %v2076 = vmul.f32 %v1249, %v1409
      %v2077 = vmul.f32 %v1250, %v1409
      %v2080 = vrot.slane %v2076, 7
      %v2081 = vrot.slane %v2077, 7
      %v2082 = vsel %vm1414, %v2080, %v2081
      %v2085 = vadd.f32 %v2032, %v2080
      %v2086 = vadd.f32 %v2033, %v2082
      %v2087 = vmul.f32 %v1249, %v1535
      %v2088 = vmul.f32 %v1250, %v1535
      %v2091 = vrot.slane %v2087, 2
      %v2092 = vrot.slane %v2088, 2
      %v2093 = vsel %vm1280, %v2091, %v2092
      %v2095 = vadd.f32 %v2042, %v2093
      %v2096 = vmul.f32 %v1249, %v1717
      %v2097 = vmul.f32 %v1250, %v1717
      %v2100 = vrot.slane %v2096, 5
      %v2101 = vrot.slane %v2097, 5
      %v2102 = vsel %vm1370, %v2100, %v2101
      %v2105 = vadd.f32 %v2052, %v2100
      %v2106 = vadd.f32 %v2053, %v2102
      %v2107 = vmul.f32 %v1249, %v1923
      %v2108 = vmul.f32 %v1250, %v1923
      %v2109 = vadd.f32 %v2063, %v2107
      %v2110 = vadd.f32 %v2064, %v2108
      %v2111 = vmul.f32 %v1250, %v1261
      %v2112 = vmul.f32 %v1251, %v1261
      %v2113 = vmul.f32 %v1250, %v1319
      %v2114 = vmul.f32 %v1251, %v1319
      %v2117 = vrot.slane %v2113, 3
      %v2118 = vrot.slane %v2114, 3
      %v2119 = vsel %vm1294, %v2117, %v2118
      %v2122 = vadd.f32 %v2074, %v2117
      %v2123 = vadd.f32 %v2075, %v2119
      %v2124 = vmul.f32 %v1250, %v1432
      %v2125 = vmul.f32 %v1251, %v1432
      %v2128 = vrot.slane %v2124, 6
      %v2129 = vrot.slane %v2125, 6
      %v2130 = vsel %vm1392, %v2128, %v2129
      %v2133 = vadd.f32 %v2085, %v2128
      %v2134 = vadd.f32 %v2086, %v2130
      %v2135 = vmul.f32 %v1250, %v1561
      %v2136 = vmul.f32 %v1251, %v1561
      %v2139 = vrot.slane %v2135, 1
      %v2140 = vrot.slane %v2136, 1
      %v2141 = vsel %vm1333, %v2139, %v2140
      %v2143 = vadd.f32 %v2095, %v2141
      %v2144 = vmul.f32 %v1250, %v1763
      %v2145 = vmul.f32 %v1251, %v1763
      %v2148 = vrot.slane %v2144, 4
      %v2149 = vrot.slane %v2145, 4
      %v2150 = vsel %vm1308, %v2148, %v2149
      %v2153 = vadd.f32 %v2105, %v2148
      %v2154 = vadd.f32 %v2106, %v2150
      %v2155 = vmul.f32 %v1250, %v1266
      %v2156 = vmul.f32 %v1251, %v1266
      %v2159 = vrot.slane %v2155, 1
      %v2160 = vrot.slane %v2156, 1
      %v2161 = vsel %vm1333, %v2159, %v2160
      %v2164 = vadd.f32 %v2111, %v2161
      %v2165 = vadd.f32 %v2112, %v2160
      %v2166 = vmul.f32 %v1250, %v1344
      %v2167 = vmul.f32 %v1251, %v1344
      %v2170 = vrot.slane %v2166, 4
      %v2171 = vrot.slane %v2167, 4
      %v2172 = vsel %vm1308, %v2170, %v2171
      %v2175 = vadd.f32 %v2122, %v2170
      %v2176 = vadd.f32 %v2123, %v2172
      %v2177 = vmul.f32 %v1250, %v1461
      %v2178 = vmul.f32 %v1251, %v1461
      %v2181 = vrot.slane %v2177, 7
      %v2182 = vrot.slane %v2178, 7
      %v2183 = vsel %vm1414, %v2181, %v2182
      %v2186 = vadd.f32 %v2133, %v2181
      %v2187 = vadd.f32 %v2134, %v2183
      %v2188 = vmul.f32 %v1250, %v1601
      %v2189 = vmul.f32 %v1251, %v1601
      %v2192 = vrot.slane %v2188, 2
      %v2193 = vrot.slane %v2189, 2
      %v2194 = vsel %vm1280, %v2192, %v2193
      %v2196 = vadd.f32 %v2143, %v2194
      %v2197 = vmul.f32 %v1250, %v1806
      %v2198 = vmul.f32 %v1251, %v1806
      %v2201 = vrot.slane %v2197, 5
      %v2202 = vrot.slane %v2198, 5
      %v2203 = vsel %vm1370, %v2201, %v2202
      %v2206 = vadd.f32 %v2153, %v2201
      %v2207 = vadd.f32 %v2154, %v2203
      %v2208 = vmul.f32 %v1250, %v1275
      %v2209 = vmul.f32 %v1251, %v1275
      %v2212 = vrot.slane %v2208, 2
      %v2213 = vrot.slane %v2209, 2
      %v2214 = vsel %vm1280, %v2212, %v2213
      %v2217 = vadd.f32 %v2164, %v2214
      %v2218 = vadd.f32 %v2165, %v2213
      %v2219 = vmul.f32 %v1250, %v1365
      %v2220 = vmul.f32 %v1251, %v1365
      %v2223 = vrot.slane %v2219, 5
      %v2224 = vrot.slane %v2220, 5
      %v2225 = vsel %vm1370, %v2223, %v2224
      %v2228 = vadd.f32 %v2175, %v2223
      %v2229 = vadd.f32 %v2176, %v2225
      %v2230 = vmul.f32 %v1250, %v1486
      %v2231 = vmul.f32 %v1251, %v1486
      %v2232 = vadd.f32 %v2186, %v2230
      %v2233 = vadd.f32 %v2187, %v2231
      %v2234 = vmul.f32 %v1250, %v1638
      %v2235 = vmul.f32 %v1251, %v1638
      %v2238 = vrot.slane %v2234, 3
      %v2239 = vrot.slane %v2235, 3
      %v2240 = vsel %vm1294, %v2238, %v2239
      %v2242 = vadd.f32 %v2196, %v2240
      %v2243 = vmul.f32 %v1250, %v1844
      %v2244 = vmul.f32 %v1251, %v1844
      %v2247 = vrot.slane %v2243, 6
      %v2248 = vrot.slane %v2244, 6
      %v2249 = vsel %vm1392, %v2247, %v2248
      %v2252 = vadd.f32 %v2206, %v2247
      %v2253 = vadd.f32 %v2207, %v2249
      %v2254 = vmul.f32 %v1251, %v1289
      %v2256 = vrot.slane %v2254, 3
      %v2257 = vsel %vm1294, %v2017, %v2256
      %v2260 = vadd.f32 %v2217, %v2257
      %v2261 = vadd.f32 %v2218, %v2256
      %v2262 = vmul.f32 %v1251, %v1387
      %v2264 = vrot.slane %v2262, 6
      %v2265 = vsel %vm1392, %v2028, %v2264
      %v2268 = vadd.f32 %v2228, %v2028
      %v2269 = vadd.f32 %v2229, %v2265
      %v2270 = vmul.f32 %v1251, %v1504
      %v2272 = vrot.slane %v2270, 1
      %v2273 = vsel %vm1333, %v2039, %v2272
      %v2276 = vadd.f32 %v2232, %v2273
      %v2277 = vadd.f32 %v2233, %v2272
      %v2278 = vmul.f32 %v1251, %v1682
      %v2280 = vrot.slane %v2278, 4
      %v2281 = vsel %vm1308, %v2048, %v2280
      %v2283 = vadd.f32 %v2242, %v2281
      %v2284 = vmul.f32 %v1251, %v1887
      %v2286 = vrot.slane %v2284, 7
      %v2287 = vsel %vm1414, %v2059, %v2286
      %v2290 = vadd.f32 %v2252, %v2059
      %v2291 = vadd.f32 %v2253, %v2287
      %v2292 = vmul.f32 %v1251, %v1303
      %v2294 = vrot.slane %v2292, 4
      %v2295 = vsel %vm1308, %v2070, %v2294
      %v2298 = vadd.f32 %v2260, %v2295
      %v2299 = vadd.f32 %v2261, %v2294
      %v2300 = vmul.f32 %v1251, %v1409
      %v2302 = vrot.slane %v2300, 7
      %v2303 = vsel %vm1414, %v2081, %v2302
      %v2306 = vadd.f32 %v2268, %v2081
      %v2307 = vadd.f32 %v2269, %v2303
      %v2308 = vmul.f32 %v1251, %v1535
      %v2310 = vrot.slane %v2308, 2
      %v2311 = vsel %vm1280, %v2092, %v2310
      %v2314 = vadd.f32 %v2276, %v2311
      %v2315 = vadd.f32 %v2277, %v2310
      %v2316 = vmul.f32 %v1251, %v1717
      %v2318 = vrot.slane %v2316, 5
      %v2319 = vsel %vm1370, %v2101, %v2318
      %v2321 = vadd.f32 %v2283, %v2319
      %v2322 = vmul.f32 %v1251, %v1923
      %v2323 = vadd.f32 %v2290, %v2108
      %v2324 = vadd.f32 %v2291, %v2322
      %v2325 = vmul.f32 %v1252, %v1319
      %v2327 = vrot.slane %v2325, 3
      %v2328 = vsel %vm1294, %v2118, %v2327
      %v2331 = vadd.f32 %v2298, %v2328
      %v2332 = vadd.f32 %v2299, %v2327
      %v2333 = vmul.f32 %v1252, %v1432
      %v2335 = vrot.slane %v2333, 6
      %v2336 = vsel %vm1392, %v2129, %v2335
      %v2339 = vadd.f32 %v2306, %v2129
      %v2340 = vadd.f32 %v2307, %v2336
      %v2341 = vmul.f32 %v1252, %v1561
      %v2343 = vrot.slane %v2341, 1
      %v2344 = vsel %vm1333, %v2140, %v2343
      %v2347 = vadd.f32 %v2314, %v2344
      %v2348 = vadd.f32 %v2315, %v2343
      %v2349 = vmul.f32 %v1252, %v1763
      %v2351 = vrot.slane %v2349, 4
      %v2352 = vsel %vm1308, %v2149, %v2351
      %v2354 = vadd.f32 %v2321, %v2352
      %v2355 = vmul.f32 %v1252, %v1344
      %v2357 = vrot.slane %v2355, 4
      %v2358 = vsel %vm1308, %v2171, %v2357
      %v2361 = vadd.f32 %v2331, %v2358
      %v2362 = vadd.f32 %v2332, %v2357
      %v2363 = vmul.f32 %v1252, %v1461
      %v2365 = vrot.slane %v2363, 7
      %v2366 = vsel %vm1414, %v2182, %v2365
      %v2369 = vadd.f32 %v2339, %v2182
      %v2370 = vadd.f32 %v2340, %v2366
      %v2371 = vmul.f32 %v1252, %v1601
      %v2373 = vrot.slane %v2371, 2
      %v2374 = vsel %vm1280, %v2193, %v2373
      %v2377 = vadd.f32 %v2347, %v2374
      %v2378 = vadd.f32 %v2348, %v2373
      %v2379 = vmul.f32 %v1252, %v1806
      %v2381 = vrot.slane %v2379, 5
      %v2382 = vsel %vm1370, %v2202, %v2381
      %v2384 = vadd.f32 %v2354, %v2382
      %v2385 = vmul.f32 %v1252, %v1365
      %v2387 = vrot.slane %v2385, 5
      %v2388 = vsel %vm1370, %v2224, %v2387
      %v2391 = vadd.f32 %v2361, %v2388
      %v2392 = vadd.f32 %v2362, %v2387
      %v2393 = vmul.f32 %v1252, %v1486
      %v2394 = vadd.f32 %v2369, %v2231
      %v2395 = vadd.f32 %v2370, %v2393
      %v2396 = vmul.f32 %v1252, %v1638
      %v2398 = vrot.slane %v2396, 3
      %v2399 = vsel %vm1294, %v2239, %v2398
      %v2402 = vadd.f32 %v2377, %v2399
      %v2403 = vadd.f32 %v2378, %v2398
      %v2404 = vmul.f32 %v1252, %v1844
      %v2406 = vrot.slane %v2404, 6
      %v2407 = vsel %vm1392, %v2248, %v2406
      %v2409 = vadd.f32 %v2384, %v2407
      %v2410 = vmul.f32 %v1252, %v1387
      %v2412 = vrot.slane %v2410, 6
      %v2414 = vadd.f32 %v2391, %v2412
      %v2415 = vadd.f32 %v2392, %v2412
      %v2416 = vmul.f32 %v1252, %v1504
      %v2418 = vrot.slane %v2416, 1
      %v2420 = vadd.f32 %v2394, %v2418
      %v2421 = vadd.f32 %v2395, %v2418
      %v2422 = vmul.f32 %v1252, %v1682
      %v2424 = vrot.slane %v2422, 4
      %v2426 = vadd.f32 %v2402, %v2424
      %v2427 = vadd.f32 %v2403, %v2424
      %v2428 = vmul.f32 %v1252, %v1887
      %v2430 = vrot.slane %v2428, 7
      %v2432 = vadd.f32 %v2409, %v2430
      %v2433 = vmul.f32 %v1252, %v1409
      %v2435 = vrot.slane %v2433, 7
      %v2437 = vadd.f32 %v2414, %v2435
      %v2438 = vadd.f32 %v2415, %v2435
      %v2439 = vmul.f32 %v1252, %v1535
      %v2441 = vrot.slane %v2439, 2
      %v2443 = vadd.f32 %v2420, %v2441
      %v2444 = vadd.f32 %v2421, %v2441
      %v2445 = vmul.f32 %v1252, %v1717
      %v2447 = vrot.slane %v2445, 5
      %v2449 = vadd.f32 %v2426, %v2447
      %v2450 = vadd.f32 %v2427, %v2447
      %v2451 = vmul.f32 %v1252, %v1923
      %v2452 = vadd.f32 %v2432, %v2451
      %v2453 = vmul.f32 %v1253, %v1432
      %v2455 = vrot.slane %v2453, 6
      %v2457 = vadd.f32 %v2437, %v2455
      %v2458 = vadd.f32 %v2438, %v2455
      %v2459 = vmul.f32 %v1253, %v1561
      %v2461 = vrot.slane %v2459, 1
      %v2463 = vadd.f32 %v2443, %v2461
      %v2464 = vadd.f32 %v2444, %v2461
      %v2465 = vmul.f32 %v1253, %v1763
      %v2467 = vrot.slane %v2465, 4
      %v2469 = vadd.f32 %v2449, %v2467
      %v2470 = vadd.f32 %v2450, %v2467
      %v2471 = vmul.f32 %v1253, %v1461
      %v2473 = vrot.slane %v2471, 7
      %v2475 = vadd.f32 %v2457, %v2473
      %v2476 = vadd.f32 %v2458, %v2473
      %v2477 = vmul.f32 %v1253, %v1601
      %v2479 = vrot.slane %v2477, 2
      %v2481 = vadd.f32 %v2463, %v2479
      %v2482 = vadd.f32 %v2464, %v2479
      %v2483 = vmul.f32 %v1253, %v1806
      %v2485 = vrot.slane %v2483, 5
      %v2487 = vadd.f32 %v2469, %v2485
      %v2488 = vadd.f32 %v2470, %v2485
      %v2489 = vmul.f32 %v1253, %v1486
      %v2490 = vmul.f32 %v1254, %v1486
      %v2491 = vadd.f32 %v2475, %v2489
      %v2492 = vadd.f32 %v2476, %v2490
      %v2493 = vmul.f32 %v1253, %v1638
      %v2494 = vmul.f32 %v1254, %v1638
      %v2497 = vrot.slane %v2493, 3
      %v2498 = vrot.slane %v2494, 3
      %v2499 = vsel %vm1294, %v2497, %v2498
      %v2502 = vadd.f32 %v2481, %v2497
      %v2503 = vadd.f32 %v2482, %v2499
      %v2504 = vmul.f32 %v1253, %v1844
      %v2505 = vmul.f32 %v1254, %v1844
      %v2508 = vrot.slane %v2504, 6
      %v2509 = vrot.slane %v2505, 6
      %v2510 = vsel %vm1392, %v2508, %v2509
      %v2513 = vadd.f32 %v2487, %v2508
      %v2514 = vadd.f32 %v2488, %v2510
      %v2515 = vmul.f32 %v1253, %v1504
      %v2516 = vmul.f32 %v1254, %v1504
      %v2519 = vrot.slane %v2515, 1
      %v2520 = vrot.slane %v2516, 1
      %v2521 = vsel %vm1333, %v2519, %v2520
      %v2524 = vadd.f32 %v2491, %v2521
      %v2525 = vadd.f32 %v2492, %v2520
      %v2526 = vmul.f32 %v1253, %v1682
      %v2527 = vmul.f32 %v1254, %v1682
      %v2530 = vrot.slane %v2526, 4
      %v2531 = vrot.slane %v2527, 4
      %v2532 = vsel %vm1308, %v2530, %v2531
      %v2535 = vadd.f32 %v2502, %v2530
      %v2536 = vadd.f32 %v2503, %v2532
      %v2537 = vmul.f32 %v1253, %v1887
      %v2538 = vmul.f32 %v1254, %v1887
      %v2541 = vrot.slane %v2537, 7
      %v2542 = vrot.slane %v2538, 7
      %v2543 = vsel %vm1414, %v2541, %v2542
      %v2546 = vadd.f32 %v2513, %v2541
      %v2547 = vadd.f32 %v2514, %v2543
      %v2548 = vmul.f32 %v1253, %v1535
      %v2549 = vmul.f32 %v1254, %v1535
      %v2552 = vrot.slane %v2548, 2
      %v2553 = vrot.slane %v2549, 2
      %v2554 = vsel %vm1280, %v2552, %v2553
      %v2557 = vadd.f32 %v2524, %v2554
      %v2558 = vadd.f32 %v2525, %v2553
      %v2559 = vmul.f32 %v1253, %v1717
      %v2560 = vmul.f32 %v1254, %v1717
      %v2563 = vrot.slane %v2559, 5
      %v2564 = vrot.slane %v2560, 5
      %v2565 = vsel %vm1370, %v2563, %v2564
      %v2568 = vadd.f32 %v2535, %v2563
      %v2569 = vadd.f32 %v2536, %v2565
      %v2570 = vmul.f32 %v1253, %v1923
      %v2571 = vmul.f32 %v1254, %v1923
      %v2572 = vadd.f32 %v2546, %v2570
      %v2573 = vadd.f32 %v2547, %v2571
      %v2574 = vmul.f32 %v1254, %v1561
      %v2575 = vmul.f32 %v1255, %v1561
      %v2578 = vrot.slane %v2574, 1
      %v2579 = vrot.slane %v2575, 1
      %v2580 = vsel %vm1333, %v2578, %v2579
      %v2583 = vadd.f32 %v2557, %v2580
      %v2584 = vadd.f32 %v2558, %v2579
      %v2585 = vmul.f32 %v1254, %v1763
      %v2586 = vmul.f32 %v1255, %v1763
      %v2589 = vrot.slane %v2585, 4
      %v2590 = vrot.slane %v2586, 4
      %v2591 = vsel %vm1308, %v2589, %v2590
      %v2594 = vadd.f32 %v2568, %v2589
      %v2595 = vadd.f32 %v2569, %v2591
      %v2596 = vmul.f32 %v1254, %v1601
      %v2597 = vmul.f32 %v1255, %v1601
      %v2600 = vrot.slane %v2596, 2
      %v2601 = vrot.slane %v2597, 2
      %v2602 = vsel %vm1280, %v2600, %v2601
      %v2605 = vadd.f32 %v2583, %v2602
      %v2606 = vadd.f32 %v2584, %v2601
      %v2607 = vmul.f32 %v1254, %v1806
      %v2608 = vmul.f32 %v1255, %v1806
      %v2611 = vrot.slane %v2607, 5
      %v2612 = vrot.slane %v2608, 5
      %v2613 = vsel %vm1370, %v2611, %v2612
      %v2616 = vadd.f32 %v2594, %v2611
      %v2617 = vadd.f32 %v2595, %v2613
      %v2618 = vmul.f32 %v1255, %v1638
      %v2620 = vrot.slane %v2618, 3
      %v2621 = vsel %vm1294, %v2498, %v2620
      %v2624 = vadd.f32 %v2605, %v2621
      %v2625 = vadd.f32 %v2606, %v2620
      %v2626 = vmul.f32 %v1255, %v1844
      %v2628 = vrot.slane %v2626, 6
      %v2629 = vsel %vm1392, %v2509, %v2628
      %v2632 = vadd.f32 %v2616, %v2509
      %v2633 = vadd.f32 %v2617, %v2629
      %v2634 = vmul.f32 %v1255, %v1682
      %v2636 = vrot.slane %v2634, 4
      %v2637 = vsel %vm1308, %v2531, %v2636
      %v2640 = vadd.f32 %v2624, %v2637
      %v2641 = vadd.f32 %v2625, %v2636
      %v2642 = vmul.f32 %v1255, %v1887
      %v2644 = vrot.slane %v2642, 7
      %v2645 = vsel %vm1414, %v2542, %v2644
      %v2648 = vadd.f32 %v2632, %v2542
      %v2649 = vadd.f32 %v2633, %v2645
      %v2650 = vmul.f32 %v1255, %v1717
      %v2652 = vrot.slane %v2650, 5
      %v2653 = vsel %vm1370, %v2564, %v2652
      %v2656 = vadd.f32 %v2640, %v2653
      %v2657 = vadd.f32 %v2641, %v2652
      %v2658 = vmul.f32 %v1255, %v1923
      %v2659 = vadd.f32 %v2648, %v2571
      %v2660 = vadd.f32 %v2649, %v2658
      %v2661 = vmul.f32 %v1256, %v1763
      %v2663 = vrot.slane %v2661, 4
      %v2664 = vsel %vm1308, %v2590, %v2663
      %v2667 = vadd.f32 %v2656, %v2664
      %v2668 = vadd.f32 %v2657, %v2663
      %v2669 = vmul.f32 %v1256, %v1806
      %v2671 = vrot.slane %v2669, 5
      %v2672 = vsel %vm1370, %v2612, %v2671
      %v2675 = vadd.f32 %v2667, %v2672
      %v2676 = vadd.f32 %v2668, %v2671
      %v2677 = vmul.f32 %v1256, %v1844
      %v2679 = vrot.slane %v2677, 6
      %v2681 = vadd.f32 %v2675, %v2679
      %v2682 = vadd.f32 %v2676, %v2679
      %v2683 = vmul.f32 %v1256, %v1887
      %v2685 = vrot.slane %v2683, 7
      %v2687 = vadd.f32 %v2681, %v2685
      %v2688 = vadd.f32 %v2682, %v2685
      %v2689 = vmul.f32 %v1256, %v1923
      %v2690 = vmul.f32 %v1257, %v1923
      %v2691 = vadd.f32 %v2687, %v2689
      %v2692 = vadd.f32 %v2688, %v2690
      %v2695 = vrot.slane %v2109, 3
      %v2696 = vrot.slane %v2110, 3
      %v2697 = vsel %vm1294, %v2695, %v2696
      %v2699 = vadd.f32 %v1925, %v2697
      %v2702 = vrot.slane %v2323, 6
      %v2703 = vrot.slane %v2324, 6
      %v2704 = vsel %vm1392, %v2702, %v2703
      %v2706 = vadd.f32 %v2699, %v2704
      %v2708 = vrot.slane %v2452, 1
      %v2710 = vadd.f32 %v2706, %v2708
      %v2713 = vrot.slane %v2572, 4
      %v2714 = vrot.slane %v2573, 4
      %v2715 = vsel %vm1308, %v2713, %v2714
      %v2717 = vadd.f32 %v2710, %v2715
      %v2720 = vrot.slane %v2659, 7
      %v2721 = vrot.slane %v2660, 7
      %v2722 = vsel %vm1414, %v2720, %v2721
      %v2724 = vadd.f32 %v2717, %v2722
      %v2727 = vrot.slane %v2691, 2
      %v2728 = vrot.slane %v2692, 2
      %v2729 = vsel %vm1280, %v2727, %v2728
      %v2731 = vadd.f32 %v2724, %v2729
      %v2732 = vsel %vm1333, %v2731, 0.0
      %v2733 = vrot.slane %v2732, 4
      %v2734 = vadd.f32 %v2732, %v2733
      %v2735 = vrot.slane %v2734, 2
      %v2736 = vadd.f32 %v2734, %v2735
      %v2737 = vrot.slane %v2736, 1
      %v2738 = vadd.f32 %v2736, %v2737
      %v2739 = vmul.f32 %v2738, 0.020408163
      %v2740 = vsub.f32 %v1925, %v2739
      %v2741 = vmul.f32 %v2740, %v2740
      %v2742 = vsub.f32 %v2109, %v2739
      %v2743 = vsub.f32 %v2110, %v2739
      %v2744 = vmul.f32 %v2742, %v2742
      %v2745 = vmul.f32 %v2743, %v2743
      %v2748 = vrot.slane %v2744, 3
      %v2749 = vrot.slane %v2745, 3
      %v2750 = vsel %vm1294, %v2748, %v2749
      %v2752 = vadd.f32 %v2741, %v2750
      %v2753 = vsub.f32 %v2323, %v2739
      %v2754 = vsub.f32 %v2324, %v2739
      %v2755 = vmul.f32 %v2753, %v2753
      %v2756 = vmul.f32 %v2754, %v2754
      %v2759 = vrot.slane %v2755, 6
      %v2760 = vrot.slane %v2756, 6
      %v2761 = vsel %vm1392, %v2759, %v2760
      %v2763 = vadd.f32 %v2752, %v2761
      %v2764 = vsub.f32 %v2452, %v2739
      %v2765 = vmul.f32 %v2764, %v2764
      %v2767 = vrot.slane %v2765, 1
      %v2769 = vadd.f32 %v2763, %v2767
      %v2770 = vsub.f32 %v2572, %v2739
      %v2771 = vsub.f32 %v2573, %v2739
      %v2772 = vmul.f32 %v2770, %v2770
      %v2773 = vmul.f32 %v2771, %v2771
      %v2776 = vrot.slane %v2772, 4
      %v2777 = vrot.slane %v2773, 4
      %v2778 = vsel %vm1308, %v2776, %v2777
      %v2780 = vadd.f32 %v2769, %v2778
      %v2781 = vsub.f32 %v2659, %v2739
      %v2782 = vsub.f32 %v2660, %v2739
      %v2783 = vmul.f32 %v2781, %v2781
      %v2784 = vmul.f32 %v2782, %v2782
      %v2787 = vrot.slane %v2783, 7
      %v2788 = vrot.slane %v2784, 7
      %v2789 = vsel %vm1414, %v2787, %v2788
      %v2791 = vadd.f32 %v2780, %v2789
      %v2792 = vsub.f32 %v2691, %v2739
      %v2793 = vsub.f32 %v2692, %v2739
      %v2794 = vmul.f32 %v2792, %v2792
      %v2795 = vmul.f32 %v2793, %v2793
      %v2798 = vrot.slane %v2794, 2
      %v2799 = vrot.slane %v2795, 2
      %v2800 = vsel %vm1280, %v2798, %v2799
      %v2802 = vadd.f32 %v2791, %v2800
      %v2803 = vsel %vm1333, %v2802, 0.0
      %v2804 = vrot.slane %v2803, 4
      %v2805 = vadd.f32 %v2803, %v2804
      %v2806 = vrot.slane %v2805, 2
      %v2807 = vadd.f32 %v2805, %v2806
      %v2808 = vrot.slane %v2807, 1
      %v2809 = vadd.f32 %v2807, %v2808
      %v2810 = vmul.f32 %v2809, 0.020408163
      %v2811 = vadd.f32 %v2810, 1e-05
      %v2812 = vrsqrt.pop %v2811
      %v2813 = vmul.f32 %v505, %v2812
      %v2814 = vmul.f32 %v2739, %v2813
      %v2815 = vsub.f32 %v506, %v2814
      %v2817 = vlaneseq
      %v2818 = vshrl.u32 %v2817, 7
      %v2819 = vsub.s32 0, %v2818
      %v2820 = vrot.slane %v2813, %v2819
      %v2822 = vmul.f32 %v1925, %v2820
      %v2824 = vlaneseq
      %v2825 = vshrl.u32 %v2824, 7
      %v2826 = vsub.s32 0, %v2825
      %v2827 = vrot.slane %v2815, %v2826
      %v2829 = vadd.f32 %v2822, %v2827
      %v2830 = vmul.f32 %v2109, %v2820
      %v2831 = vmul.f32 %v2110, %v2820
      %v2832 = vadd.f32 %v2830, %v2827
      %v2833 = vadd.f32 %v2831, %v2827
      %v2834 = vmul.f32 %v2323, %v2820
      %v2835 = vmul.f32 %v2324, %v2820
      %v2836 = vadd.f32 %v2834, %v2827
      %v2837 = vadd.f32 %v2835, %v2827
      %v2838 = vmul.f32 %v2452, %v2820
      %v2839 = vadd.f32 %v2838, %v2827
      %v2840 = vmul.f32 %v2572, %v2820
      %v2841 = vmul.f32 %v2573, %v2820
      %v2842 = vadd.f32 %v2840, %v2827
      %v2843 = vadd.f32 %v2841, %v2827
      %v2844 = vmul.f32 %v2659, %v2820
      %v2845 = vmul.f32 %v2660, %v2820
      %v2846 = vadd.f32 %v2844, %v2827
      %v2847 = vadd.f32 %v2845, %v2827
      %v2848 = vmul.f32 %v2691, %v2820
      %v2849 = vmul.f32 %v2692, %v2820
      %v2850 = vadd.f32 %v2848, %v2827
      %v2851 = vadd.f32 %v2849, %v2827
      %v2854 = vrot.slane %v2832, 4
      %v2855 = vrot.slane %v2833, 4
      %v2856 = vsel %vm1308, %v2854, %v2855
      %v2860 = vrot.slane %v2839, 4
      %v2864 = vrot.slane %v2846, 4
      %v2865 = vrot.slane %v2847, 4
      %v2866 = vsel %vm1308, %v2864, %v2865
      %v2869 = vsel %vm1333, %v2829, %v2854
      %v2870 = vsel %vm1280, %v2856, %v2836
      %v2871 = vsel %vm1294, %v2837, %v2860
      %v2872 = vsel %vm1308, %v2860, %v2842
      %v2873 = vsel %vm1370, %v2843, %v2866
      %v2874 = vsel %vm1392, %v2865, %v2850
      %v2875 = vsel %vm1414, %v2851, 0.0
      %2876 = vxpose.xlu0.b32.start [1/16] %v2869, 128
      %2877 = vxpose.xlu0.b32.cont [2/16] %v2870, 128
      %2878 = vxpose.xlu0.b32.cont [3/16] %v2871, 128
      %2879 = vxpose.xlu0.b32.cont [4/16] %v2872, 128
      %2880 = vxpose.xlu0.b32.cont [5/16] %v2873, 128
      %2881 = vxpose.xlu0.b32.cont [6/16] %v2874, 128
      %2882 = vxpose.xlu0.b32.cont [7/16] %v2875, 128
      %2883 = vxpose.xlu0.b32.cont [8/16] 0.0, 128
      %2884 = vxpose.xlu0.b32.cont [9/16] 0.0, 128
      %2885 = vxpose.xlu0.b32.cont [10/16] 0.0, 128
      %2886 = vxpose.xlu0.b32.cont [11/16] 0.0, 128
      %2887 = vxpose.xlu0.b32.cont [12/16] 0.0, 128
      %2888 = vxpose.xlu0.b32.cont [13/16] 0.0, 128
      %2889 = vxpose.xlu0.b32.cont [14/16] 0.0, 128
      %2890 = vxpose.xlu0.b32.cont [15/16] 0.0, 128
      %2891 = vxpose.xlu0.b32.end [16/16] 0.0, 128
      %v2892 = vpop.trf.xlu0
      %v2893 = vpop.trf.xlu0
      %v2894 = vpop.trf.xlu0
      %v2895 = vpop.trf.xlu0
      %v2896 = vpop.trf.xlu0
      %v2897 = vpop.trf.xlu0
      %v2898 = vpop.trf.xlu0
      %v2899 = vpop.trf.xlu0
      %v2900 = vpop.trf.xlu0
      %v2901 = vpop.trf.xlu0
      %v2902 = vpop.trf.xlu0
      %v2903 = vpop.trf.xlu0
      %v2904 = vpop.trf.xlu0
      %v2905 = vpop.trf.xlu0
      %v2906 = vpop.trf.xlu0
      %v2907 = vpop.trf.xlu0
      %2908 = vst.msk [vmem:[%s432] sm:$0xff] %vm571, %v2892
      %2909 = vst.msk [vmem:[%s432 + $0x8] sm:$0xff] %vm571, %v2893
      %2910 = vst.msk [vmem:[%s432 + $0x10] sm:$0xff] %vm571, %v2894
      %2911 = vst.msk [vmem:[%s432 + $0x18] sm:$0xff] %vm571, %v2895
      %2912 = vst.msk [vmem:[%s432 + $0x20] sm:$0xff] %vm571, %v2896
      %2913 = vst.msk [vmem:[%s432 + $0x28] sm:$0xff] %vm571, %v2897
      %2914 = vst.msk [vmem:[%s432 + $0x30] sm:$0xff] %vm571, %v2898
      %2915 = vst.msk [vmem:[%s432 + $0x38] sm:$0xff] %vm571, %v2899
      %2916 = vst.msk [vmem:[%s432 + $0x40] sm:$0xff] %vm571, %v2900
      %2917 = vst.msk [vmem:[%s432 + $0x48] sm:$0xff] %vm571, %v2901
      %2918 = vst.msk [vmem:[%s432 + $0x50] sm:$0xff] %vm571, %v2902
      %2919 = vst.msk [vmem:[%s432 + $0x58] sm:$0xff] %vm571, %v2903
      %2920 = vst.msk [vmem:[%s432 + $0x60] sm:$0xff] %vm571, %v2904
      %2921 = vst.msk [vmem:[%s432 + $0x68] sm:$0xff] %vm571, %v2905
      %2922 = vst.msk [vmem:[%s432 + $0x70] sm:$0xff] %vm571, %v2906
      %2923 = vst.msk [vmem:[%s432 + $0x78] sm:$0xff] %vm571, %v2907
      %v2924 = vld [vmem:[%s400 + $0x80] sm:$0xff]
      %v2925 = vld [vmem:[%s400 + $0x88] sm:$0xff]
      %v2926 = vld [vmem:[%s400 + $0x90] sm:$0xff]
      %v2927 = vld [vmem:[%s400 + $0x98] sm:$0xff]
      %v2928 = vld [vmem:[%s400 + $0xa0] sm:$0xff]
      %v2929 = vld [vmem:[%s400 + $0xa8] sm:$0xff]
      %v2930 = vld [vmem:[%s400 + $0xb0] sm:$0xff]
      %v2931 = vld [vmem:[%s400 + $0xb8] sm:$0xff]
      %v2932 = vld [vmem:[%s400 + $0xc0] sm:$0xff]
      %v2933 = vld [vmem:[%s400 + $0xc8] sm:$0xff]
      %v2934 = vld [vmem:[%s400 + $0xd0] sm:$0xff]
      %v2935 = vld [vmem:[%s400 + $0xd8] sm:$0xff]
      %v2936 = vld [vmem:[%s400 + $0xe0] sm:$0xff]
      %v2937 = vld [vmem:[%s400 + $0xe8] sm:$0xff]
      %v2938 = vld [vmem:[%s400 + $0xf0] sm:$0xff]
      %v2939 = vld [vmem:[%s400 + $0xf8] sm:$0xff]
      %v2940 = vld [vmem:[%s406 + $0x80] sm:$0xff]
      %v2941 = vld [vmem:[%s406 + $0x88] sm:$0xff]
      %v2942 = vld [vmem:[%s406 + $0x90] sm:$0xff]
      %v2943 = vld [vmem:[%s406 + $0x98] sm:$0xff]
      %v2944 = vld [vmem:[%s406 + $0xa0] sm:$0xff]
      %v2945 = vld [vmem:[%s406 + $0xa8] sm:$0xff]
      %v2946 = vld [vmem:[%s406 + $0xb0] sm:$0xff]
      %v2947 = vld [vmem:[%s406 + $0xb8] sm:$0xff]
      %v2948 = vld [vmem:[%s406 + $0xc0] sm:$0xff]
      %v2949 = vld [vmem:[%s406 + $0xc8] sm:$0xff]
      %v2950 = vld [vmem:[%s406 + $0xd0] sm:$0xff]
      %v2951 = vld [vmem:[%s406 + $0xd8] sm:$0xff]
      %v2952 = vld [vmem:[%s406 + $0xe0] sm:$0xff]
      %v2953 = vld [vmem:[%s406 + $0xe8] sm:$0xff]
      %v2954 = vld [vmem:[%s406 + $0xf0] sm:$0xff]
      %v2955 = vld [vmem:[%s406 + $0xf8] sm:$0xff]
      %v2956 = vld [vmem:[%s411 + $0x1] sm:$0x1]
      %v2957 = vld [vmem:[%s416 + $0x1] sm:$0x1]
      %v2958 = vld [vmem:[%s421 + $0x1] sm:$0x1]
      %v2959 = vld [vmem:[%s426 + $0x1] sm:$0x1]
      %2976 = vrot.lane.b32.xlu0 %v2940, 49
      %v2977 = vpop.permute.xlu0 %2976
      %2978 = vrot.lane.b32.xlu0 %v2941, 49
      %v2979 = vpop.permute.xlu0 %2978
      %2980 = vrot.lane.b32.xlu0 %v2942, 49
      %v2981 = vpop.permute.xlu0 %2980
      %2982 = vrot.lane.b32.xlu0 %v2943, 49
      %v2983 = vpop.permute.xlu0 %2982
      %2984 = vrot.lane.b32.xlu0 %v2944, 49
      %v2985 = vpop.permute.xlu0 %2984
      %2986 = vrot.lane.b32.xlu0 %v2945, 49
      %v2987 = vpop.permute.xlu0 %2986
      %2988 = vrot.lane.b32.xlu0 %v2946, 49
      %v2989 = vpop.permute.xlu0 %2988
      %2990 = vrot.lane.b32.xlu0 %v2947, 49
      %v2991 = vpop.permute.xlu0 %2990
      %2992 = vrot.lane.b32.xlu0 %v2948, 49
      %v2993 = vpop.permute.xlu0 %2992
      %2994 = vrot.lane.b32.xlu0 %v2949, 49
      %v2995 = vpop.permute.xlu0 %2994
      %2996 = vrot.lane.b32.xlu0 %v2950, 49
      %v2997 = vpop.permute.xlu0 %2996
      %2998 = vrot.lane.b32.xlu0 %v2951, 49
      %v2999 = vpop.permute.xlu0 %2998
      %3000 = vrot.lane.b32.xlu0 %v2952, 49
      %v3001 = vpop.permute.xlu0 %3000
      %3002 = vrot.lane.b32.xlu0 %v2953, 49
      %v3003 = vpop.permute.xlu0 %3002
      %3004 = vrot.lane.b32.xlu0 %v2954, 49
      %v3005 = vpop.permute.xlu0 %3004
      %3006 = vrot.lane.b32.xlu0 %v2955, 49
      %v3007 = vpop.permute.xlu0 %3006
      %v3024 = vsel %vm571, %v2924, %v2977
      %v3025 = vsel %vm571, %v2925, %v2979
      %v3026 = vsel %vm571, %v2926, %v2981
      %v3027 = vsel %vm571, %v2927, %v2983
      %v3028 = vsel %vm571, %v2928, %v2985
      %v3029 = vsel %vm571, %v2929, %v2987
      %v3030 = vsel %vm571, %v2930, %v2989
      %v3031 = vsel %vm571, %v2931, %v2991
      %v3032 = vsel %vm571, %v2932, %v2993
      %v3033 = vsel %vm571, %v2933, %v2995
      %v3034 = vsel %vm571, %v2934, %v2997
      %v3035 = vsel %vm571, %v2935, %v2999
      %v3036 = vsel %vm571, %v2936, %v3001
      %v3037 = vsel %vm571, %v2937, %v3003
      %v3038 = vsel %vm571, %v2938, %v3005
      %v3039 = vsel %vm571, %v2939, %v3007
      %v3040 = vsel %vm588, %v3024, 0.0
      %v3041 = vsel %vm588, %v3025, 0.0
      %v3042 = vsel %vm588, %v3026, 0.0
      %v3043 = vsel %vm588, %v3027, 0.0
      %v3044 = vsel %vm588, %v3028, 0.0
      %v3045 = vsel %vm588, %v3029, 0.0
      %v3046 = vsel %vm588, %v3030, 0.0
      %v3047 = vsel %vm588, %v3031, 0.0
      %v3048 = vsel %vm588, %v3032, 0.0
      %v3049 = vsel %vm588, %v3033, 0.0
      %v3050 = vsel %vm588, %v3034, 0.0
      %v3051 = vsel %vm588, %v3035, 0.0
      %v3052 = vsel %vm588, %v3036, 0.0
      %v3053 = vsel %vm588, %v3037, 0.0
      %v3054 = vsel %vm588, %v3038, 0.0
      %v3055 = vsel %vm588, %v3039, 0.0
      %v3056 = vpack.c.bf16 %v3041, %v3040
      %v3057 = vpack.c.bf16 %v3043, %v3042
      %v3058 = vpack.c.bf16 %v3045, %v3044
      %v3059 = vpack.c.bf16 %v3047, %v3046
      %v3060 = vpack.c.bf16 %v3049, %v3048
      %v3061 = vpack.c.bf16 %v3051, %v3050
      %v3062 = vpack.c.bf16 %v3053, %v3052
      %v3063 = vpack.c.bf16 %v3055, %v3054
      %v3064 = vunpack.c.l.bf16 %v3056
      %v3065 = vunpack.c.h.bf16 %v3056
      %v3066 = vunpack.c.l.bf16 %v3057
      %v3067 = vunpack.c.h.bf16 %v3057
      %v3068 = vunpack.c.l.bf16 %v3058
      %v3069 = vunpack.c.h.bf16 %v3058
      %v3070 = vunpack.c.l.bf16 %v3059
      %v3071 = vunpack.c.h.bf16 %v3059
      %v3072 = vunpack.c.l.bf16 %v3060
      %v3073 = vunpack.c.h.bf16 %v3060
      %v3074 = vunpack.c.l.bf16 %v3061
      %v3075 = vunpack.c.h.bf16 %v3061
      %v3076 = vunpack.c.l.bf16 %v3062
      %v3077 = vunpack.c.h.bf16 %v3062
      %v3078 = vunpack.c.l.bf16 %v3063
      %v3079 = vunpack.c.h.bf16 %v3063
      %v3080 = vsub.f32 %v3040, %v3064
      %v3081 = vsub.f32 %v3041, %v3065
      %v3082 = vsub.f32 %v3042, %v3066
      %v3083 = vsub.f32 %v3043, %v3067
      %v3084 = vsub.f32 %v3044, %v3068
      %v3085 = vsub.f32 %v3045, %v3069
      %v3086 = vsub.f32 %v3046, %v3070
      %v3087 = vsub.f32 %v3047, %v3071
      %v3088 = vsub.f32 %v3048, %v3072
      %v3089 = vsub.f32 %v3049, %v3073
      %v3090 = vsub.f32 %v3050, %v3074
      %v3091 = vsub.f32 %v3051, %v3075
      %v3092 = vsub.f32 %v3052, %v3076
      %v3093 = vsub.f32 %v3053, %v3077
      %v3094 = vsub.f32 %v3054, %v3078
      %v3095 = vsub.f32 %v3055, %v3079
      %v3096 = vpack.c.bf16 %v3081, %v3080
      %v3097 = vpack.c.bf16 %v3083, %v3082
      %v3098 = vpack.c.bf16 %v3085, %v3084
      %v3099 = vpack.c.bf16 %v3087, %v3086
      %v3100 = vpack.c.bf16 %v3089, %v3088
      %v3101 = vpack.c.bf16 %v3091, %v3090
      %v3102 = vpack.c.bf16 %v3093, %v3092
      %v3103 = vpack.c.bf16 %v3095, %v3094
      %3104 = vmatprep.subr.bf16.mxu0 0
      %3105 = vmatpush1.bf16.xpose.msra.mxu0 %v3103
      %3106 = vmatprep.subr.bf16.mxu0 0
      %3107 = vmatpush1.bf16.xpose.msra.mxu0 %v3102
      %3108 = vmatprep.subr.bf16.mxu0 0
      %3109 = vmatpush1.bf16.xpose.msra.mxu0 %v3101
      %3110 = vmatprep.subr.bf16.mxu0 0
      %3111 = vmatpush1.bf16.xpose.msra.mxu0 %v3100
      %3112 = vmatprep.subr.bf16.mxu0 0
      %3113 = vmatpush1.bf16.xpose.msra.mxu0 %v3099
      %3114 = vmatprep.subr.bf16.mxu0 0
      %3115 = vmatpush1.bf16.xpose.msra.mxu0 %v3098
      %3116 = vmatprep.subr.bf16.mxu0 0
      %3117 = vmatpush1.bf16.xpose.msra.mxu0 %v3097
      %3118 = vmatprep.subr.bf16.mxu0 0
      %3119 = vmatpush1.bf16.xpose.msra.mxu0 %v3096
      %3120 = vmatprep.subr.bf16.mxu0 0
      %3121 = vmatpush2.bf16.xpose.msra.mxu0 0
      %3122 = vmatprep.subr.bf16.mxu0 0
      %3123 = vmatpush2.bf16.xpose.msra.mxu0 0
      %3124 = vmatprep.subr.bf16.mxu0 0
      %3125 = vmatpush2.bf16.xpose.msra.mxu0 0
      %3126 = vmatprep.subr.bf16.mxu0 0
      %3127 = vmatpush2.bf16.xpose.msra.mxu0 0
      %3128 = vmatprep.subr.bf16.mxu0 0
      %3129 = vmatpush2.bf16.xpose.msra.mxu0 0
      %3130 = vmatprep.subr.bf16.mxu0 0
      %3131 = vmatpush2.bf16.xpose.msra.mxu0 0
      %3132 = vmatprep.subr.bf16.mxu0 0
      %3133 = vmatpush2.bf16.xpose.msra.mxu0 0
      %3134 = vmatprep.subr.bf16.mxu0 0
      %3135 = vmatpush2.bf16.xpose.msra.mxu0 0
      %3136 = vmatprep.mubr.bf16.mxu0 0
      %3137 = vmatmul.mubr.bf16.gmra.mxu0 %v685
      %v3138 = vpop.f32.mrf.mxu0
      %v3139 = vadd.f32 0.0, %v3138
      %v3140 = vpop.f32.mrf.mxu0
      %v3141 = vpop.f32.mrf.mxu0
      %v3142 = vadd.f32 0.0, %v3141
      %v3143 = vpop.f32.mrf.mxu0
      %3144 = vmatprep.mubr.bf16.mxu0 0
      %3145 = vmatmul.mubr.bf16.gmra.mxu0 %v686
      %v3146 = vpop.f32.mrf.mxu0
      %v3147 = vadd.f32 0.0, %v3146
      %v3148 = vpop.f32.mrf.mxu0
      %v3149 = vpop.f32.mrf.mxu0
      %v3150 = vadd.f32 0.0, %v3149
      %v3151 = vpop.f32.mrf.mxu0
      %3152 = vmatprep.mubr.bf16.mxu0 0
      %3153 = vmatmul.mubr.bf16.gmra.mxu0 %v687
      %v3154 = vpop.f32.mrf.mxu0
      %v3155 = vadd.f32 0.0, %v3154
      %v3156 = vpop.f32.mrf.mxu0
      %v3157 = vpop.f32.mrf.mxu0
      %v3158 = vadd.f32 0.0, %v3157
      %v3159 = vpop.f32.mrf.mxu0
      %3160 = vmatprep.mubr.bf16.mxu0 0
      %3161 = vmatmul.mubr.bf16.gmra.mxu0 %v688
      %v3162 = vpop.f32.mrf.mxu0
      %v3163 = vadd.f32 0.0, %v3162
      %v3164 = vpop.f32.mrf.mxu0
      %v3165 = vpop.f32.mrf.mxu0
      %v3166 = vadd.f32 0.0, %v3165
      %v3167 = vpop.f32.mrf.mxu0
      %3168 = vmatprep.mubr.bf16.mxu0 0
      %3169 = vmatmul.mubr.bf16.gmra.mxu0 %v689
      %v3170 = vpop.f32.mrf.mxu0
      %v3171 = vadd.f32 0.0, %v3170
      %v3172 = vpop.f32.mrf.mxu0
      %v3173 = vpop.f32.mrf.mxu0
      %v3174 = vadd.f32 0.0, %v3173
      %v3175 = vpop.f32.mrf.mxu0
      %3176 = vmatprep.mubr.bf16.mxu0 0
      %3177 = vmatmul.mubr.bf16.gmra.mxu0 %v690
      %v3178 = vpop.f32.mrf.mxu0
      %v3179 = vadd.f32 0.0, %v3178
      %v3180 = vpop.f32.mrf.mxu0
      %v3181 = vpop.f32.mrf.mxu0
      %v3182 = vadd.f32 0.0, %v3181
      %v3183 = vpop.f32.mrf.mxu0
      %3184 = vmatprep.mubr.bf16.mxu0 0
      %3185 = vmatmul.mubr.bf16.gmra.mxu0 %v691
      %v3186 = vpop.f32.mrf.mxu0
      %v3187 = vadd.f32 0.0, %v3186
      %v3188 = vpop.f32.mrf.mxu0
      %v3189 = vpop.f32.mrf.mxu0
      %v3190 = vadd.f32 0.0, %v3189
      %v3191 = vpop.f32.mrf.mxu0
      %3192 = vmatprep.mubr.bf16.mxu0 0
      %3193 = vmatmul.mubr.bf16.gmra.mxu0 %v692
      %v3194 = vpop.f32.mrf.mxu0
      %v3195 = vadd.f32 0.0, %v3194
      %v3196 = vpop.f32.mrf.mxu0
      %v3197 = vpop.f32.mrf.mxu0
      %v3198 = vadd.f32 0.0, %v3197
      %v3199 = vpop.f32.mrf.mxu0
      %3200 = vdwg.mxu0
      %3201 = vmatprep.subr.bf16.mxu0 0
      %3202 = vmatpush1.bf16.xpose.msra.mxu0 %v3063
      %3203 = vmatprep.subr.bf16.mxu0 0
      %3204 = vmatpush1.bf16.xpose.msra.mxu0 %v3062
      %3205 = vmatprep.subr.bf16.mxu0 0
      %3206 = vmatpush1.bf16.xpose.msra.mxu0 %v3061
      %3207 = vmatprep.subr.bf16.mxu0 0
      %3208 = vmatpush1.bf16.xpose.msra.mxu0 %v3060
      %3209 = vmatprep.subr.bf16.mxu0 0
      %3210 = vmatpush1.bf16.xpose.msra.mxu0 %v3059
      %3211 = vmatprep.subr.bf16.mxu0 0
      %3212 = vmatpush1.bf16.xpose.msra.mxu0 %v3058
      %3213 = vmatprep.subr.bf16.mxu0 0
      %3214 = vmatpush1.bf16.xpose.msra.mxu0 %v3057
      %3215 = vmatprep.subr.bf16.mxu0 0
      %3216 = vmatpush1.bf16.xpose.msra.mxu0 %v3056
      %3217 = vmatprep.subr.bf16.mxu0 0
      %3218 = vmatpush2.bf16.xpose.msra.mxu0 0
      %3219 = vmatprep.subr.bf16.mxu0 0
      %3220 = vmatpush2.bf16.xpose.msra.mxu0 0
      %3221 = vmatprep.subr.bf16.mxu0 0
      %3222 = vmatpush2.bf16.xpose.msra.mxu0 0
      %3223 = vmatprep.subr.bf16.mxu0 0
      %3224 = vmatpush2.bf16.xpose.msra.mxu0 0
      %3225 = vmatprep.subr.bf16.mxu0 0
      %3226 = vmatpush2.bf16.xpose.msra.mxu0 0
      %3227 = vmatprep.subr.bf16.mxu0 0
      %3228 = vmatpush2.bf16.xpose.msra.mxu0 0
      %3229 = vmatprep.subr.bf16.mxu0 0
      %3230 = vmatpush2.bf16.xpose.msra.mxu0 0
      %3231 = vmatprep.subr.bf16.mxu0 0
      %3232 = vmatpush2.bf16.xpose.msra.mxu0 0
      %3233 = vmatprep.mubr.bf16.mxu0 0
      %3234 = vmatmul.mubr.bf16.gmra.mxu0 %v685
      %v3235 = vpop.f32.mrf.mxu0
      %v3236 = vadd.f32 %v3139, %v3235
      %v3237 = vpop.f32.mrf.mxu0
      %v3238 = vpop.f32.mrf.mxu0
      %v3239 = vadd.f32 %v3142, %v3238
      %v3240 = vpop.f32.mrf.mxu0
      %3241 = vmatprep.mubr.bf16.mxu0 0
      %3242 = vmatmul.mubr.bf16.gmra.mxu0 %v686
      %v3243 = vpop.f32.mrf.mxu0
      %v3244 = vadd.f32 %v3147, %v3243
      %v3245 = vpop.f32.mrf.mxu0
      %v3246 = vpop.f32.mrf.mxu0
      %v3247 = vadd.f32 %v3150, %v3246
      %v3248 = vpop.f32.mrf.mxu0
      %3249 = vmatprep.mubr.bf16.mxu0 0
      %3250 = vmatmul.mubr.bf16.gmra.mxu0 %v687
      %v3251 = vpop.f32.mrf.mxu0
      %v3252 = vadd.f32 %v3155, %v3251
      %v3253 = vpop.f32.mrf.mxu0
      %v3254 = vpop.f32.mrf.mxu0
      %v3255 = vadd.f32 %v3158, %v3254
      %v3256 = vpop.f32.mrf.mxu0
      %3257 = vmatprep.mubr.bf16.mxu0 0
      %3258 = vmatmul.mubr.bf16.gmra.mxu0 %v688
      %v3259 = vpop.f32.mrf.mxu0
      %v3260 = vadd.f32 %v3163, %v3259
      %v3261 = vpop.f32.mrf.mxu0
      %v3262 = vpop.f32.mrf.mxu0
      %v3263 = vadd.f32 %v3166, %v3262
      %v3264 = vpop.f32.mrf.mxu0
      %3265 = vmatprep.mubr.bf16.mxu0 0
      %3266 = vmatmul.mubr.bf16.gmra.mxu0 %v689
      %v3267 = vpop.f32.mrf.mxu0
      %v3268 = vadd.f32 %v3171, %v3267
      %v3269 = vpop.f32.mrf.mxu0
      %v3270 = vpop.f32.mrf.mxu0
      %v3271 = vadd.f32 %v3174, %v3270
      %v3272 = vpop.f32.mrf.mxu0
      %3273 = vmatprep.mubr.bf16.mxu0 0
      %3274 = vmatmul.mubr.bf16.gmra.mxu0 %v690
      %v3275 = vpop.f32.mrf.mxu0
      %v3276 = vadd.f32 %v3179, %v3275
      %v3277 = vpop.f32.mrf.mxu0
      %v3278 = vpop.f32.mrf.mxu0
      %v3279 = vadd.f32 %v3182, %v3278
      %v3280 = vpop.f32.mrf.mxu0
      %3281 = vmatprep.mubr.bf16.mxu0 0
      %3282 = vmatmul.mubr.bf16.gmra.mxu0 %v691
      %v3283 = vpop.f32.mrf.mxu0
      %v3284 = vadd.f32 %v3187, %v3283
      %v3285 = vpop.f32.mrf.mxu0
      %v3286 = vpop.f32.mrf.mxu0
      %v3287 = vadd.f32 %v3190, %v3286
      %v3288 = vpop.f32.mrf.mxu0
      %3289 = vmatprep.mubr.bf16.mxu0 0
      %3290 = vmatmul.mubr.bf16.gmra.mxu0 %v692
      %v3291 = vpop.f32.mrf.mxu0
      %v3292 = vadd.f32 %v3195, %v3291
      %v3293 = vpop.f32.mrf.mxu0
      %v3294 = vpop.f32.mrf.mxu0
      %v3295 = vadd.f32 %v3198, %v3294
      %v3296 = vpop.f32.mrf.mxu0
      %3297 = vdwg.mxu0
      %3298 = vmatprep.subr.bf16.mxu0 0
      %3299 = vmatpush1.bf16.xpose.msra.mxu0 %v3103
      %3300 = vmatprep.subr.bf16.mxu0 0
      %3301 = vmatpush1.bf16.xpose.msra.mxu0 %v3102
      %3302 = vmatprep.subr.bf16.mxu0 0
      %3303 = vmatpush1.bf16.xpose.msra.mxu0 %v3101
      %3304 = vmatprep.subr.bf16.mxu0 0
      %3305 = vmatpush1.bf16.xpose.msra.mxu0 %v3100
      %3306 = vmatprep.subr.bf16.mxu0 0
      %3307 = vmatpush1.bf16.xpose.msra.mxu0 %v3099
      %3308 = vmatprep.subr.bf16.mxu0 0
      %3309 = vmatpush1.bf16.xpose.msra.mxu0 %v3098
      %3310 = vmatprep.subr.bf16.mxu0 0
      %3311 = vmatpush1.bf16.xpose.msra.mxu0 %v3097
      %3312 = vmatprep.subr.bf16.mxu0 0
      %3313 = vmatpush1.bf16.xpose.msra.mxu0 %v3096
      %3314 = vmatprep.subr.bf16.mxu0 0
      %3315 = vmatpush2.bf16.xpose.msra.mxu0 0
      %3316 = vmatprep.subr.bf16.mxu0 0
      %3317 = vmatpush2.bf16.xpose.msra.mxu0 0
      %3318 = vmatprep.subr.bf16.mxu0 0
      %3319 = vmatpush2.bf16.xpose.msra.mxu0 0
      %3320 = vmatprep.subr.bf16.mxu0 0
      %3321 = vmatpush2.bf16.xpose.msra.mxu0 0
      %3322 = vmatprep.subr.bf16.mxu0 0
      %3323 = vmatpush2.bf16.xpose.msra.mxu0 0
      %3324 = vmatprep.subr.bf16.mxu0 0
      %3325 = vmatpush2.bf16.xpose.msra.mxu0 0
      %3326 = vmatprep.subr.bf16.mxu0 0
      %3327 = vmatpush2.bf16.xpose.msra.mxu0 0
      %3328 = vmatprep.subr.bf16.mxu0 0
      %3329 = vmatpush2.bf16.xpose.msra.mxu0 0
      %3330 = vmatprep.mubr.bf16.mxu0 0
      %3331 = vmatmul.mubr.bf16.gmra.mxu0 %v903
      %v3332 = vpop.f32.mrf.mxu0
      %v3333 = vadd.f32 0.0, %v3332
      %v3334 = vpop.f32.mrf.mxu0
      %v3335 = vpop.f32.mrf.mxu0
      %v3336 = vadd.f32 0.0, %v3335
      %v3337 = vpop.f32.mrf.mxu0
      %3338 = vmatprep.mubr.bf16.mxu0 0
      %3339 = vmatmul.mubr.bf16.gmra.mxu0 %v904
      %v3340 = vpop.f32.mrf.mxu0
      %v3341 = vadd.f32 0.0, %v3340
      %v3342 = vpop.f32.mrf.mxu0
      %v3343 = vpop.f32.mrf.mxu0
      %v3344 = vadd.f32 0.0, %v3343
      %v3345 = vpop.f32.mrf.mxu0
      %3346 = vdwg.mxu0
      %3347 = vmatprep.subr.bf16.mxu0 0
      %3348 = vmatpush1.bf16.xpose.msra.mxu0 %v3063
      %3349 = vmatprep.subr.bf16.mxu0 0
      %3350 = vmatpush1.bf16.xpose.msra.mxu0 %v3062
      %3351 = vmatprep.subr.bf16.mxu0 0
      %3352 = vmatpush1.bf16.xpose.msra.mxu0 %v3061
      %3353 = vmatprep.subr.bf16.mxu0 0
      %3354 = vmatpush1.bf16.xpose.msra.mxu0 %v3060
      %3355 = vmatprep.subr.bf16.mxu0 0
      %3356 = vmatpush1.bf16.xpose.msra.mxu0 %v3059
      %3357 = vmatprep.subr.bf16.mxu0 0
      %3358 = vmatpush1.bf16.xpose.msra.mxu0 %v3058
      %3359 = vmatprep.subr.bf16.mxu0 0
      %3360 = vmatpush1.bf16.xpose.msra.mxu0 %v3057
      %3361 = vmatprep.subr.bf16.mxu0 0
      %3362 = vmatpush1.bf16.xpose.msra.mxu0 %v3056
      %3363 = vmatprep.subr.bf16.mxu0 0
      %3364 = vmatpush2.bf16.xpose.msra.mxu0 0
      %3365 = vmatprep.subr.bf16.mxu0 0
      %3366 = vmatpush2.bf16.xpose.msra.mxu0 0
      %3367 = vmatprep.subr.bf16.mxu0 0
      %3368 = vmatpush2.bf16.xpose.msra.mxu0 0
      %3369 = vmatprep.subr.bf16.mxu0 0
      %3370 = vmatpush2.bf16.xpose.msra.mxu0 0
      %3371 = vmatprep.subr.bf16.mxu0 0
      %3372 = vmatpush2.bf16.xpose.msra.mxu0 0
      %3373 = vmatprep.subr.bf16.mxu0 0
      %3374 = vmatpush2.bf16.xpose.msra.mxu0 0
      %3375 = vmatprep.subr.bf16.mxu0 0
      %3376 = vmatpush2.bf16.xpose.msra.mxu0 0
      %3377 = vmatprep.subr.bf16.mxu0 0
      %3378 = vmatpush2.bf16.xpose.msra.mxu0 0
      %3379 = vmatprep.mubr.bf16.mxu0 0
      %3380 = vmatmul.mubr.bf16.gmra.mxu0 %v903
      %v3381 = vpop.f32.mrf.mxu0
      %v3382 = vadd.f32 %v3333, %v3381
      %v3383 = vpop.f32.mrf.mxu0
      %v3384 = vpop.f32.mrf.mxu0
      %v3385 = vadd.f32 %v3336, %v3384
      %v3386 = vpop.f32.mrf.mxu0
      %3387 = vmatprep.mubr.bf16.mxu0 0
      %3388 = vmatmul.mubr.bf16.gmra.mxu0 %v904
      %v3389 = vpop.f32.mrf.mxu0
      %v3390 = vadd.f32 %v3341, %v3389
      %v3391 = vpop.f32.mrf.mxu0
      %v3392 = vpop.f32.mrf.mxu0
      %v3393 = vadd.f32 %v3344, %v3392
      %v3394 = vpop.f32.mrf.mxu0
      %3395 = vdwg.mxu0
      %v3396 = vadd.f32 %v3236, %v3239
      %v3397 = vadd.f32 %v3396, %v3244
      %v3398 = vadd.f32 %v3397, %v3247
      %v3399 = vadd.f32 %v3398, %v3252
      %v3400 = vadd.f32 %v3399, %v3255
      %v3401 = vadd.f32 %v3400, %v3260
      %v3402 = vadd.f32 %v3401, %v3263
      %v3403 = vadd.f32 %v3402, %v3268
      %v3404 = vadd.f32 %v3403, %v3271
      %v3405 = vadd.f32 %v3404, %v3276
      %v3406 = vadd.f32 %v3405, %v3279
      %v3407 = vadd.f32 %v3406, %v3284
      %v3408 = vadd.f32 %v3407, %v3287
      %v3409 = vadd.f32 %v3408, %v3292
      %v3410 = vadd.f32 %v3409, %v3295
      %v3411 = vrot.slane %v3410, 4
      %v3412 = vadd.f32 %v3410, %v3411
      %v3413 = vrot.slane %v3412, 2
      %v3414 = vadd.f32 %v3412, %v3413
      %v3415 = vrot.slane %v3414, 1
      %v3416 = vadd.f32 %v3414, %v3415
      %v3417 = vmul.f32 %v3416, 0.020408163
      %v3418 = vsub.f32 %v3236, %v3417
      %v3419 = vsub.f32 %v3239, %v3417
      %v3420 = vsub.f32 %v3244, %v3417
      %v3421 = vsub.f32 %v3247, %v3417
      %v3422 = vsub.f32 %v3252, %v3417
      %v3423 = vsub.f32 %v3255, %v3417
      %v3424 = vsub.f32 %v3260, %v3417
      %v3425 = vsub.f32 %v3263, %v3417
      %v3426 = vsub.f32 %v3268, %v3417
      %v3427 = vsub.f32 %v3271, %v3417
      %v3428 = vsub.f32 %v3276, %v3417
      %v3429 = vsub.f32 %v3279, %v3417
      %v3430 = vsub.f32 %v3284, %v3417
      %v3431 = vsub.f32 %v3287, %v3417
      %v3432 = vsub.f32 %v3292, %v3417
      %v3433 = vsub.f32 %v3295, %v3417
      %v3434 = vmul.f32 %v3418, %v1046
      %v3435 = vmul.f32 %v3419, %v1051
      %v3436 = vmul.f32 %v3420, %v1056
      %v3437 = vmul.f32 %v3421, %v1061
      %v3438 = vmul.f32 %v3422, %v1066
      %v3439 = vmul.f32 %v3423, %v1071
      %v3440 = vmul.f32 %v3424, %v1076
      %v3441 = vmul.f32 %v3425, %v1081
      %v3442 = vmul.f32 %v3426, %v1086
      %v3443 = vmul.f32 %v3427, %v1091
      %v3444 = vmul.f32 %v3428, %v1096
      %v3445 = vmul.f32 %v3429, %v1101
      %v3446 = vmul.f32 %v3430, %v1106
      %v3447 = vmul.f32 %v3431, %v1111
      %v3448 = vmul.f32 %v3432, %v1116
      %v3449 = vmul.f32 %v3433, %v1121
      %v3450 = vmul.f32 %v3434, %v3434
      %v3451 = vmul.f32 %v3435, %v3435
      %v3452 = vmul.f32 %v3436, %v3436
      %v3453 = vmul.f32 %v3437, %v3437
      %v3454 = vmul.f32 %v3438, %v3438
      %v3455 = vmul.f32 %v3439, %v3439
      %v3456 = vmul.f32 %v3440, %v3440
      %v3457 = vmul.f32 %v3441, %v3441
      %v3458 = vmul.f32 %v3442, %v3442
      %v3459 = vmul.f32 %v3443, %v3443
      %v3460 = vmul.f32 %v3444, %v3444
      %v3461 = vmul.f32 %v3445, %v3445
      %v3462 = vmul.f32 %v3446, %v3446
      %v3463 = vmul.f32 %v3447, %v3447
      %v3464 = vmul.f32 %v3448, %v3448
      %v3465 = vmul.f32 %v3449, %v3449
      %v3466 = vadd.f32 %v3450, %v3451
      %v3467 = vadd.f32 %v3466, %v3452
      %v3468 = vadd.f32 %v3467, %v3453
      %v3469 = vadd.f32 %v3468, %v3454
      %v3470 = vadd.f32 %v3469, %v3455
      %v3471 = vadd.f32 %v3470, %v3456
      %v3472 = vadd.f32 %v3471, %v3457
      %v3473 = vadd.f32 %v3472, %v3458
      %v3474 = vadd.f32 %v3473, %v3459
      %v3475 = vadd.f32 %v3474, %v3460
      %v3476 = vadd.f32 %v3475, %v3461
      %v3477 = vadd.f32 %v3476, %v3462
      %v3478 = vadd.f32 %v3477, %v3463
      %v3479 = vadd.f32 %v3478, %v3464
      %v3480 = vadd.f32 %v3479, %v3465
      %v3481 = vrot.slane %v3480, 4
      %v3482 = vadd.f32 %v3480, %v3481
      %v3483 = vrot.slane %v3482, 2
      %v3484 = vadd.f32 %v3482, %v3483
      %v3485 = vrot.slane %v3484, 1
      %v3486 = vadd.f32 %v3484, %v3485
      %v3487 = vmul.f32 %v3486, 0.020408163
      %v3488 = vadd.f32 %v3487, 1e-05
      %v3489 = vrsqrt.pop %v3488
      %v3490 = vmul.f32 %v2956, %v3489
      %v3491 = vmul.f32 %v3417, %v3490
      %v3492 = vsub.f32 %v2957, %v3491
      %v3494 = vlaneseq
      %v3495 = vshrl.u32 %v3494, 7
      %v3496 = vsub.s32 0, %v3495
      %v3497 = vrot.slane %v3490, %v3496
      %v3499 = vmul.f32 %v3236, %v3497
      %v3500 = vmul.f32 %v3239, %v3497
      %v3501 = vmul.f32 %v3244, %v3497
      %v3502 = vmul.f32 %v3247, %v3497
      %v3503 = vmul.f32 %v3252, %v3497
      %v3504 = vmul.f32 %v3255, %v3497
      %v3505 = vmul.f32 %v3260, %v3497
      %v3506 = vmul.f32 %v3263, %v3497
      %v3507 = vmul.f32 %v3268, %v3497
      %v3508 = vmul.f32 %v3271, %v3497
      %v3509 = vmul.f32 %v3276, %v3497
      %v3510 = vmul.f32 %v3279, %v3497
      %v3511 = vmul.f32 %v3284, %v3497
      %v3512 = vmul.f32 %v3287, %v3497
      %v3513 = vmul.f32 %v3292, %v3497
      %v3514 = vmul.f32 %v3295, %v3497
      %v3516 = vlaneseq
      %v3517 = vshrl.u32 %v3516, 7
      %v3518 = vsub.s32 0, %v3517
      %v3519 = vrot.slane %v3492, %v3518
      %v3521 = vadd.f32 %v3499, %v3519
      %v3522 = vadd.f32 %v3500, %v3519
      %v3523 = vadd.f32 %v3501, %v3519
      %v3524 = vadd.f32 %v3502, %v3519
      %v3525 = vadd.f32 %v3503, %v3519
      %v3526 = vadd.f32 %v3504, %v3519
      %v3527 = vadd.f32 %v3505, %v3519
      %v3528 = vadd.f32 %v3506, %v3519
      %v3529 = vadd.f32 %v3507, %v3519
      %v3530 = vadd.f32 %v3508, %v3519
      %v3531 = vadd.f32 %v3509, %v3519
      %v3532 = vadd.f32 %v3510, %v3519
      %v3533 = vadd.f32 %v3511, %v3519
      %v3534 = vadd.f32 %v3512, %v3519
      %v3535 = vadd.f32 %v3513, %v3519
      %v3536 = vadd.f32 %v3514, %v3519
      %v3537 = vmax.f32 %v3521, 0.0
      %v3538 = vmax.f32 %v3522, 0.0
      %v3539 = vmax.f32 %v3523, 0.0
      %v3540 = vmax.f32 %v3524, 0.0
      %v3541 = vmax.f32 %v3525, 0.0
      %v3542 = vmax.f32 %v3526, 0.0
      %v3543 = vmax.f32 %v3527, 0.0
      %v3544 = vmax.f32 %v3528, 0.0
      %v3545 = vmax.f32 %v3529, 0.0
      %v3546 = vmax.f32 %v3530, 0.0
      %v3547 = vmax.f32 %v3531, 0.0
      %v3548 = vmax.f32 %v3532, 0.0
      %v3549 = vmax.f32 %v3533, 0.0
      %v3550 = vmax.f32 %v3534, 0.0
      %v3551 = vmax.f32 %v3535, 0.0
      %v3552 = vmax.f32 %v3536, 0.0
      %v3553 = vmul.f32 %v3537, %v1046
      %v3554 = vmul.f32 %v3538, %v1051
      %v3555 = vmul.f32 %v3539, %v1056
      %v3556 = vmul.f32 %v3540, %v1061
      %v3557 = vmul.f32 %v3541, %v1066
      %v3558 = vmul.f32 %v3542, %v1071
      %v3559 = vmul.f32 %v3543, %v1076
      %v3560 = vmul.f32 %v3544, %v1081
      %v3561 = vmul.f32 %v3545, %v1086
      %v3562 = vmul.f32 %v3546, %v1091
      %v3563 = vmul.f32 %v3547, %v1096
      %v3564 = vmul.f32 %v3548, %v1101
      %v3565 = vmul.f32 %v3549, %v1106
      %v3566 = vmul.f32 %v3550, %v1111
      %v3567 = vmul.f32 %v3551, %v1116
      %v3568 = vmul.f32 %v3552, %v1121
      %v3569 = vlaneseq
      %v3570 = vshrl.u32 %v3569, 7
      %v3571 = vsub.s32 0, %v3570
      %v3572 = vrot.slane %v3382, %v3571
      %v3573 = vmul.f32 %v3553, %v3572
      %v3574 = vlaneseq
      %v3575 = vshrl.u32 %v3574, 7
      %v3576 = vsub.s32 1, %v3575
      %v3577 = vrot.slane %v3382, %v3576
      %v3578 = vmul.f32 %v3553, %v3577
      %v3580 = vrot.slane %v3578, 1
      %v3582 = vadd.f32 %v3573, %v3580
      %v3583 = vlaneseq
      %v3584 = vshrl.u32 %v3583, 7
      %v3585 = vsub.s32 2, %v3584
      %v3586 = vrot.slane %v3382, %v3585
      %v3587 = vmul.f32 %v3553, %v3586
      %v3588 = vmul.f32 %v3554, %v3586
      %v3591 = vrot.slane %v3587, 2
      %v3592 = vrot.slane %v3588, 2
      %v3593 = vsel %vm1280, %v3591, %v3592
      %v3595 = vadd.f32 %v3582, %v3593
      %v3596 = vlaneseq
      %v3597 = vshrl.u32 %v3596, 7
      %v3598 = vsub.s32 3, %v3597
      %v3599 = vrot.slane %v3382, %v3598
      %v3600 = vmul.f32 %v3553, %v3599
      %v3601 = vmul.f32 %v3554, %v3599
      %v3604 = vrot.slane %v3600, 3
      %v3605 = vrot.slane %v3601, 3
      %v3606 = vsel %vm1294, %v3604, %v3605
      %v3608 = vadd.f32 %v3595, %v3606
      %v3609 = vlaneseq
      %v3610 = vshrl.u32 %v3609, 7
      %v3611 = vsub.s32 4, %v3610
      %v3612 = vrot.slane %v3382, %v3611
      %v3613 = vmul.f32 %v3553, %v3612
      %v3614 = vmul.f32 %v3554, %v3612
      %v3617 = vrot.slane %v3613, 4
      %v3618 = vrot.slane %v3614, 4
      %v3619 = vsel %vm1308, %v3617, %v3618
      %v3621 = vadd.f32 %v3608, %v3619
      %v3622 = vmul.f32 %v3554, %v3572
      %v3623 = vmul.f32 %v3555, %v3572
      %v3624 = vlaneseq
      %v3625 = vshrl.u32 %v3624, 7
      %v3626 = vsub.s32 5, %v3625
      %v3627 = vrot.slane %v3382, %v3626
      %v3628 = vmul.f32 %v3554, %v3627
      %v3629 = vmul.f32 %v3555, %v3627
      %v3632 = vrot.slane %v3628, 3
      %v3633 = vrot.slane %v3629, 3
      %v3634 = vsel %vm1294, %v3632, %v3633
      %v3636 = vadd.f32 %v3621, %v3634
      %v3637 = vmul.f32 %v3554, %v3577
      %v3638 = vmul.f32 %v3555, %v3577
      %v3641 = vrot.slane %v3637, 1
      %v3642 = vrot.slane %v3638, 1
      %v3643 = vsel %vm1333, %v3641, %v3642
      %v3646 = vadd.f32 %v3622, %v3643
      %v3647 = vadd.f32 %v3623, %v3642
      %v3648 = vlaneseq
      %v3649 = vshrl.u32 %v3648, 7
      %v3650 = vsub.s32 6, %v3649
      %v3651 = vrot.slane %v3382, %v3650
      %v3652 = vmul.f32 %v3554, %v3651
      %v3653 = vmul.f32 %v3555, %v3651
      %v3656 = vrot.slane %v3652, 4
      %v3657 = vrot.slane %v3653, 4
      %v3658 = vsel %vm1308, %v3656, %v3657
      %v3660 = vadd.f32 %v3636, %v3658
      %v3661 = vmul.f32 %v3555, %v3586
      %v3663 = vrot.slane %v3661, 2
      %v3664 = vsel %vm1280, %v3592, %v3663
      %v3667 = vadd.f32 %v3646, %v3664
      %v3668 = vadd.f32 %v3647, %v3663
      %v3669 = vlaneseq
      %v3670 = vshrl.u32 %v3669, 7
      %v3671 = vsub.s32 7, %v3670
      %v3672 = vrot.slane %v3382, %v3671
      %v3673 = vmul.f32 %v3554, %v3672
      %v3674 = vmul.f32 %v3555, %v3672
      %v3677 = vrot.slane %v3673, 5
      %v3678 = vrot.slane %v3674, 5
      %v3679 = vsel %vm1370, %v3677, %v3678
      %v3681 = vadd.f32 %v3660, %v3679
      %v3682 = vmul.f32 %v3555, %v3599
      %v3684 = vrot.slane %v3682, 3
      %v3685 = vsel %vm1294, %v3605, %v3684
      %v3688 = vadd.f32 %v3667, %v3685
      %v3689 = vadd.f32 %v3668, %v3684
      %v3690 = vlaneseq
      %v3691 = vshrl.u32 %v3690, 7
      %v3692 = vsub.s32 0, %v3691
      %v3693 = vrot.slane %v3385, %v3692
      %v3694 = vmul.f32 %v3554, %v3693
      %v3695 = vmul.f32 %v3555, %v3693
      %v3698 = vrot.slane %v3694, 6
      %v3699 = vrot.slane %v3695, 6
      %v3700 = vsel %vm1392, %v3698, %v3699
      %v3702 = vadd.f32 %v3681, %v3700
      %v3703 = vmul.f32 %v3555, %v3612
      %v3705 = vrot.slane %v3703, 4
      %v3706 = vsel %vm1308, %v3618, %v3705
      %v3709 = vadd.f32 %v3688, %v3706
      %v3710 = vadd.f32 %v3689, %v3705
      %v3711 = vlaneseq
      %v3712 = vshrl.u32 %v3711, 7
      %v3713 = vsub.s32 1, %v3712
      %v3714 = vrot.slane %v3385, %v3713
      %v3715 = vmul.f32 %v3554, %v3714
      %v3716 = vmul.f32 %v3555, %v3714
      %v3719 = vrot.slane %v3715, 7
      %v3720 = vrot.slane %v3716, 7
      %v3721 = vsel %vm1414, %v3719, %v3720
      %v3723 = vadd.f32 %v3702, %v3721
      %v3724 = vmul.f32 %v3556, %v3572
      %v3725 = vmul.f32 %v3556, %v3627
      %v3727 = vrot.slane %v3725, 3
      %v3728 = vsel %vm1294, %v3633, %v3727
      %v3731 = vadd.f32 %v3709, %v3728
      %v3732 = vadd.f32 %v3710, %v3727
      %v3733 = vlaneseq
      %v3734 = vshrl.u32 %v3733, 7
      %v3735 = vsub.s32 2, %v3734
      %v3736 = vrot.slane %v3385, %v3735
      %v3737 = vmul.f32 %v3555, %v3736
      %v3738 = vmul.f32 %v3556, %v3736
      %v3741 = vrot.slane %v3737, 6
      %v3742 = vrot.slane %v3738, 6
      %v3743 = vsel %vm1392, %v3741, %v3742
      %v3745 = vadd.f32 %v3723, %v3743
      %v3746 = vmul.f32 %v3556, %v3577
      %v3748 = vrot.slane %v3746, 1
      %v3749 = vsel %vm1333, %v3642, %v3748
      %v3752 = vadd.f32 %v3623, %v3749
      %v3753 = vadd.f32 %v3724, %v3748
      %v3754 = vmul.f32 %v3556, %v3651
      %v3756 = vrot.slane %v3754, 4
      %v3757 = vsel %vm1308, %v3657, %v3756
      %v3760 = vadd.f32 %v3731, %v3757
      %v3761 = vadd.f32 %v3732, %v3756
      %v3762 = vlaneseq
      %v3763 = vshrl.u32 %v3762, 7
      %v3764 = vsub.s32 3, %v3763
      %v3765 = vrot.slane %v3385, %v3764
      %v3766 = vmul.f32 %v3555, %v3765
      %v3767 = vmul.f32 %v3556, %v3765
      %v3770 = vrot.slane %v3766, 7
      %v3771 = vrot.slane %v3767, 7
      %v3772 = vsel %vm1414, %v3770, %v3771
      %v3774 = vadd.f32 %v3745, %v3772
      %v3775 = vmul.f32 %v3556, %v3586
      %v3777 = vrot.slane %v3775, 2
      %v3779 = vadd.f32 %v3752, %v3777
      %v3780 = vadd.f32 %v3753, %v3777
      %v3781 = vmul.f32 %v3556, %v3672
      %v3783 = vrot.slane %v3781, 5
      %v3785 = vadd.f32 %v3760, %v3783
      %v3786 = vadd.f32 %v3761, %v3783
      %v3787 = vlaneseq
      %v3788 = vshrl.u32 %v3787, 7
      %v3789 = vsub.s32 4, %v3788
      %v3790 = vrot.slane %v3385, %v3789
      %v3791 = vmul.f32 %v3556, %v3790
      %v3792 = vadd.f32 %v3774, %v3791
      %v3793 = vmul.f32 %v3556, %v3599
      %v3795 = vrot.slane %v3793, 3
      %v3797 = vadd.f32 %v3779, %v3795
      %v3798 = vadd.f32 %v3780, %v3795
      %v3799 = vmul.f32 %v3556, %v3693
      %v3801 = vrot.slane %v3799, 6
      %v3803 = vadd.f32 %v3785, %v3801
      %v3804 = vadd.f32 %v3786, %v3801
      %v3805 = vlaneseq
      %v3806 = vshrl.u32 %v3805, 7
      %v3807 = vsub.s32 5, %v3806
      %v3808 = vrot.slane %v3385, %v3807
      %v3809 = vmul.f32 %v3556, %v3808
      %v3811 = vrot.slane %v3809, 1
      %v3813 = vadd.f32 %v3792, %v3811
      %v3814 = vmul.f32 %v3556, %v3612
      %v3815 = vmul.f32 %v3557, %v3612
      %v3818 = vrot.slane %v3814, 4
      %v3819 = vrot.slane %v3815, 4
      %v3820 = vsel %vm1308, %v3818, %v3819
      %v3823 = vadd.f32 %v3797, %v3818
      %v3824 = vadd.f32 %v3798, %v3820
      %v3825 = vmul.f32 %v3556, %v3714
      %v3826 = vmul.f32 %v3557, %v3714
      %v3829 = vrot.slane %v3825, 7
      %v3830 = vrot.slane %v3826, 7
      %v3831 = vsel %vm1414, %v3829, %v3830
      %v3834 = vadd.f32 %v3803, %v3829
      %v3835 = vadd.f32 %v3804, %v3831
      %v3836 = vlaneseq
      %v3837 = vshrl.u32 %v3836, 7
      %v3838 = vsub.s32 6, %v3837
      %v3839 = vrot.slane %v3385, %v3838
      %v3840 = vmul.f32 %v3556, %v3839
      %v3841 = vmul.f32 %v3557, %v3839
      %v3844 = vrot.slane %v3840, 2
      %v3845 = vrot.slane %v3841, 2
      %v3846 = vsel %vm1280, %v3844, %v3845
      %v3848 = vadd.f32 %v3813, %v3846
      %v3849 = vmul.f32 %v3557, %v3572
      %v3850 = vmul.f32 %v3557, %v3627
      %v3852 = vrot.slane %v3850, 3
      %v3854 = vadd.f32 %v3823, %v3852
      %v3855 = vadd.f32 %v3824, %v3852
      %v3856 = vmul.f32 %v3557, %v3736
      %v3858 = vrot.slane %v3856, 6
      %v3860 = vadd.f32 %v3834, %v3858
      %v3861 = vadd.f32 %v3835, %v3858
      %v3862 = vlaneseq
      %v3863 = vshrl.u32 %v3862, 7
      %v3864 = vsub.s32 7, %v3863
      %v3865 = vrot.slane %v3385, %v3864
      %v3866 = vmul.f32 %v3557, %v3865
      %v3868 = vrot.slane %v3866, 1
      %v3870 = vadd.f32 %v3848, %v3868
      %v3871 = vmul.f32 %v3557, %v3577
      %v3872 = vmul.f32 %v3558, %v3577
      %v3875 = vrot.slane %v3871, 1
      %v3876 = vrot.slane %v3872, 1
      %v3877 = vsel %vm1333, %v3875, %v3876
      %v3879 = vadd.f32 %v3849, %v3877
      %v3880 = vmul.f32 %v3557, %v3651
      %v3881 = vmul.f32 %v3558, %v3651
      %v3884 = vrot.slane %v3880, 4
      %v3885 = vrot.slane %v3881, 4
      %v3886 = vsel %vm1308, %v3884, %v3885
      %v3889 = vadd.f32 %v3854, %v3884
      %v3890 = vadd.f32 %v3855, %v3886
      %v3891 = vmul.f32 %v3557, %v3765
      %v3892 = vmul.f32 %v3558, %v3765
      %v3895 = vrot.slane %v3891, 7
      %v3896 = vrot.slane %v3892, 7
      %v3897 = vsel %vm1414, %v3895, %v3896
      %v3900 = vadd.f32 %v3860, %v3895
      %v3901 = vadd.f32 %v3861, %v3897
      %v3902 = vlaneseq
      %v3903 = vshrl.u32 %v3902, 7
      %v3904 = vsub.s32 0, %v3903
      %v3905 = vrot.slane %v3390, %v3904
      %v3906 = vmul.f32 %v3557, %v3905
      %v3907 = vmul.f32 %v3558, %v3905
      %v3910 = vrot.slane %v3906, 2
      %v3911 = vrot.slane %v3907, 2
      %v3912 = vsel %vm1280, %v3910, %v3911
      %v3914 = vadd.f32 %v3870, %v3912
      %v3915 = vmul.f32 %v3557, %v3586
      %v3916 = vmul.f32 %v3558, %v3586
      %v3919 = vrot.slane %v3915, 2
      %v3920 = vrot.slane %v3916, 2
      %v3921 = vsel %vm1280, %v3919, %v3920
      %v3923 = vadd.f32 %v3879, %v3921
      %v3924 = vmul.f32 %v3557, %v3672
      %v3925 = vmul.f32 %v3558, %v3672
      %v3928 = vrot.slane %v3924, 5
      %v3929 = vrot.slane %v3925, 5
      %v3930 = vsel %vm1370, %v3928, %v3929
      %v3933 = vadd.f32 %v3889, %v3928
      %v3934 = vadd.f32 %v3890, %v3930
      %v3935 = vmul.f32 %v3557, %v3790
      %v3936 = vmul.f32 %v3558, %v3790
      %v3937 = vadd.f32 %v3900, %v3935
      %v3938 = vadd.f32 %v3901, %v3936
      %v3939 = vlaneseq
      %v3940 = vshrl.u32 %v3939, 7
      %v3941 = vsub.s32 1, %v3940
      %v3942 = vrot.slane %v3390, %v3941
      %v3943 = vmul.f32 %v3557, %v3942
      %v3944 = vmul.f32 %v3558, %v3942
      %v3947 = vrot.slane %v3943, 3
      %v3948 = vrot.slane %v3944, 3
      %v3949 = vsel %vm1294, %v3947, %v3948
      %v3951 = vadd.f32 %v3914, %v3949
      %v3952 = vmul.f32 %v3557, %v3599
      %v3953 = vmul.f32 %v3558, %v3599
      %v3956 = vrot.slane %v3952, 3
      %v3957 = vrot.slane %v3953, 3
      %v3958 = vsel %vm1294, %v3956, %v3957
      %v3960 = vadd.f32 %v3923, %v3958
      %v3961 = vmul.f32 %v3557, %v3693
      %v3962 = vmul.f32 %v3558, %v3693
      %v3965 = vrot.slane %v3961, 6
      %v3966 = vrot.slane %v3962, 6
      %v3967 = vsel %vm1392, %v3965, %v3966
      %v3970 = vadd.f32 %v3933, %v3965
      %v3971 = vadd.f32 %v3934, %v3967
      %v3972 = vmul.f32 %v3557, %v3808
      %v3973 = vmul.f32 %v3558, %v3808
      %v3976 = vrot.slane %v3972, 1
      %v3977 = vrot.slane %v3973, 1
      %v3978 = vsel %vm1333, %v3976, %v3977
      %v3981 = vadd.f32 %v3937, %v3978
      %v3982 = vadd.f32 %v3938, %v3977
      %v3983 = vlaneseq
      %v3984 = vshrl.u32 %v3983, 7
      %v3985 = vsub.s32 2, %v3984
      %v3986 = vrot.slane %v3390, %v3985
      %v3987 = vmul.f32 %v3557, %v3986
      %v3988 = vmul.f32 %v3558, %v3986
      %v3991 = vrot.slane %v3987, 4
      %v3992 = vrot.slane %v3988, 4
      %v3993 = vsel %vm1308, %v3991, %v3992
      %v3995 = vadd.f32 %v3951, %v3993
      %v3996 = vmul.f32 %v3558, %v3612
      %v3998 = vrot.slane %v3996, 4
      %v3999 = vsel %vm1308, %v3819, %v3998
      %v4001 = vadd.f32 %v3960, %v3999
      %v4002 = vmul.f32 %v3558, %v3714
      %v4004 = vrot.slane %v4002, 7
      %v4005 = vsel %vm1414, %v3830, %v4004
      %v4008 = vadd.f32 %v3970, %v3830
      %v4009 = vadd.f32 %v3971, %v4005
      %v4010 = vmul.f32 %v3558, %v3839
      %v4012 = vrot.slane %v4010, 2
      %v4013 = vsel %vm1280, %v3845, %v4012
      %v4016 = vadd.f32 %v3981, %v4013
      %v4017 = vadd.f32 %v3982, %v4012
      %v4018 = vlaneseq
      %v4019 = vshrl.u32 %v4018, 7
      %v4020 = vsub.s32 3, %v4019
      %v4021 = vrot.slane %v3390, %v4020
      %v4022 = vmul.f32 %v3557, %v4021
      %v4023 = vmul.f32 %v3558, %v4021
      %v4026 = vrot.slane %v4022, 5
      %v4027 = vrot.slane %v4023, 5
      %v4028 = vsel %vm1370, %v4026, %v4027
      %v4030 = vadd.f32 %v3995, %v4028
      %v4031 = vmul.f32 %v3558, %v3572
      %v4032 = vmul.f32 %v3559, %v3572
      %v4033 = vmul.f32 %v3558, %v3627
      %v4034 = vmul.f32 %v3559, %v3627
      %v4037 = vrot.slane %v4033, 3
      %v4038 = vrot.slane %v4034, 3
      %v4039 = vsel %vm1294, %v4037, %v4038
      %v4041 = vadd.f32 %v4001, %v4039
      %v4042 = vmul.f32 %v3558, %v3736
      %v4043 = vmul.f32 %v3559, %v3736
      %v4046 = vrot.slane %v4042, 6
      %v4047 = vrot.slane %v4043, 6
      %v4048 = vsel %vm1392, %v4046, %v4047
      %v4051 = vadd.f32 %v4008, %v4046
      %v4052 = vadd.f32 %v4009, %v4048
      %v4053 = vmul.f32 %v3558, %v3865
      %v4054 = vmul.f32 %v3559, %v3865
      %v4057 = vrot.slane %v4053, 1
      %v4058 = vrot.slane %v4054, 1
      %v4059 = vsel %vm1333, %v4057, %v4058
      %v4062 = vadd.f32 %v4016, %v4059
      %v4063 = vadd.f32 %v4017, %v4058
      %v4064 = vlaneseq
      %v4065 = vshrl.u32 %v4064, 7
      %v4066 = vsub.s32 4, %v4065
      %v4067 = vrot.slane %v3390, %v4066
      %v4068 = vmul.f32 %v3558, %v4067
      %v4069 = vmul.f32 %v3559, %v4067
      %v4072 = vrot.slane %v4068, 4
      %v4073 = vrot.slane %v4069, 4
      %v4074 = vsel %vm1308, %v4072, %v4073
      %v4076 = vadd.f32 %v4030, %v4074
      %v4077 = vmul.f32 %v3559, %v3577
      %v4079 = vrot.slane %v4077, 1
      %v4080 = vsel %vm1333, %v3876, %v4079
      %v4083 = vadd.f32 %v4031, %v4080
      %v4084 = vadd.f32 %v4032, %v4079
      %v4085 = vmul.f32 %v3559, %v3651
      %v4087 = vrot.slane %v4085, 4
      %v4088 = vsel %vm1308, %v3885, %v4087
      %v4090 = vadd.f32 %v4041, %v4088
      %v4091 = vmul.f32 %v3559, %v3765
      %v4093 = vrot.slane %v4091, 7
      %v4094 = vsel %vm1414, %v3896, %v4093
      %v4097 = vadd.f32 %v4051, %v3896
      %v4098 = vadd.f32 %v4052, %v4094
      %v4099 = vmul.f32 %v3559, %v3905
      %v4101 = vrot.slane %v4099, 2
      %v4102 = vsel %vm1280, %v3911, %v4101
      %v4105 = vadd.f32 %v4062, %v4102
      %v4106 = vadd.f32 %v4063, %v4101
      %v4107 = vlaneseq
      %v4108 = vshrl.u32 %v4107, 7
      %v4109 = vsub.s32 5, %v4108
      %v4110 = vrot.slane %v3390, %v4109
      %v4111 = vmul.f32 %v3558, %v4110
      %v4112 = vmul.f32 %v3559, %v4110
      %v4115 = vrot.slane %v4111, 5
      %v4116 = vrot.slane %v4112, 5
      %v4117 = vsel %vm1370, %v4115, %v4116
      %v4119 = vadd.f32 %v4076, %v4117
      %v4120 = vmul.f32 %v3559, %v3586
      %v4122 = vrot.slane %v4120, 2
      %v4123 = vsel %vm1280, %v3920, %v4122
      %v4126 = vadd.f32 %v4083, %v4123
      %v4127 = vadd.f32 %v4084, %v4122
      %v4128 = vmul.f32 %v3559, %v3672
      %v4130 = vrot.slane %v4128, 5
      %v4131 = vsel %vm1370, %v3929, %v4130
      %v4133 = vadd.f32 %v4090, %v4131
      %v4134 = vmul.f32 %v3559, %v3790
      %v4135 = vadd.f32 %v4097, %v3936
      %v4136 = vadd.f32 %v4098, %v4134
      %v4137 = vmul.f32 %v3559, %v3942
      %v4139 = vrot.slane %v4137, 3
      %v4140 = vsel %vm1294, %v3948, %v4139
      %v4143 = vadd.f32 %v4105, %v4140
      %v4144 = vadd.f32 %v4106, %v4139
      %v4145 = vlaneseq
      %v4146 = vshrl.u32 %v4145, 7
      %v4147 = vsub.s32 6, %v4146
      %v4148 = vrot.slane %v3390, %v4147
      %v4149 = vmul.f32 %v3558, %v4148
      %v4150 = vmul.f32 %v3559, %v4148
      %v4153 = vrot.slane %v4149, 6
      %v4154 = vrot.slane %v4150, 6
      %v4155 = vsel %vm1392, %v4153, %v4154
      %v4157 = vadd.f32 %v4119, %v4155
      %v4158 = vmul.f32 %v3559, %v3599
      %v4160 = vrot.slane %v4158, 3
      %v4161 = vsel %vm1294, %v3957, %v4160
      %v4164 = vadd.f32 %v4126, %v4161
      %v4165 = vadd.f32 %v4127, %v4160
      %v4166 = vmul.f32 %v3559, %v3693
      %v4168 = vrot.slane %v4166, 6
      %v4169 = vsel %vm1392, %v3966, %v4168
      %v4171 = vadd.f32 %v4133, %v4169
      %v4172 = vmul.f32 %v3559, %v3808
      %v4174 = vrot.slane %v4172, 1
      %v4175 = vsel %vm1333, %v3977, %v4174
      %v4178 = vadd.f32 %v4135, %v4175
      %v4179 = vadd.f32 %v4136, %v4174
      %v4180 = vmul.f32 %v3559, %v3986
      %v4182 = vrot.slane %v4180, 4
      %v4183 = vsel %vm1308, %v3992, %v4182
      %v4186 = vadd.f32 %v4143, %v4183
      %v4187 = vadd.f32 %v4144, %v4182
      %v4188 = vlaneseq
      %v4189 = vshrl.u32 %v4188, 7
      %v4190 = vsub.s32 7, %v4189
      %v4191 = vrot.slane %v3390, %v4190
      %v4192 = vmul.f32 %v3558, %v4191
      %v4193 = vmul.f32 %v3559, %v4191
      %v4196 = vrot.slane %v4192, 7
      %v4197 = vrot.slane %v4193, 7
      %v4198 = vsel %vm1414, %v4196, %v4197
      %v4200 = vadd.f32 %v4157, %v4198
      %v4201 = vmul.f32 %v3559, %v3612
      %v4203 = vrot.slane %v4201, 4
      %v4205 = vadd.f32 %v4164, %v4203
      %v4206 = vadd.f32 %v4165, %v4203
      %v4207 = vmul.f32 %v3559, %v3714
      %v4209 = vrot.slane %v4207, 7
      %v4211 = vadd.f32 %v4171, %v4209
      %v4212 = vmul.f32 %v3559, %v3839
      %v4214 = vrot.slane %v4212, 2
      %v4216 = vadd.f32 %v4178, %v4214
      %v4217 = vadd.f32 %v4179, %v4214
      %v4218 = vmul.f32 %v3559, %v4021
      %v4220 = vrot.slane %v4218, 5
      %v4222 = vadd.f32 %v4186, %v4220
      %v4223 = vadd.f32 %v4187, %v4220
      %v4224 = vlaneseq
      %v4225 = vshrl.u32 %v4224, 7
      %v4226 = vsub.s32 0, %v4225
      %v4227 = vrot.slane %v3393, %v4226
      %v4228 = vmul.f32 %v3559, %v4227
      %v4229 = vadd.f32 %v4200, %v4228
      %v4230 = vmul.f32 %v3560, %v3572
      %v4231 = vmul.f32 %v3560, %v3627
      %v4233 = vrot.slane %v4231, 3
      %v4234 = vsel %vm1294, %v4038, %v4233
      %v4237 = vadd.f32 %v4205, %v4234
      %v4238 = vadd.f32 %v4206, %v4233
      %v4239 = vmul.f32 %v3560, %v3736
      %v4241 = vrot.slane %v4239, 6
      %v4242 = vsel %vm1392, %v4047, %v4241
      %v4244 = vadd.f32 %v4211, %v4242
      %v4245 = vmul.f32 %v3560, %v3865
      %v4247 = vrot.slane %v4245, 1
      %v4248 = vsel %vm1333, %v4058, %v4247
      %v4251 = vadd.f32 %v4216, %v4248
      %v4252 = vadd.f32 %v4217, %v4247
      %v4253 = vmul.f32 %v3560, %v4067
      %v4255 = vrot.slane %v4253, 4
      %v4256 = vsel %vm1308, %v4073, %v4255
      %v4259 = vadd.f32 %v4222, %v4256
      %v4260 = vadd.f32 %v4223, %v4255
      %v4261 = vmul.f32 %v3560, %v3577
      %v4263 = vrot.slane %v4261, 1
      %v4265 = vadd.f32 %v4032, %v4263
      %v4266 = vadd.f32 %v4230, %v4263
      %v4267 = vmul.f32 %v3560, %v3651
      %v4269 = vrot.slane %v4267, 4
      %v4271 = vadd.f32 %v4237, %v4269
      %v4272 = vadd.f32 %v4238, %v4269
      %v4273 = vmul.f32 %v3560, %v3765
      %v4275 = vrot.slane %v4273, 7
      %v4277 = vadd.f32 %v4244, %v4275
      %v4278 = vmul.f32 %v3560, %v3905
      %v4280 = vrot.slane %v4278, 2
      %v4282 = vadd.f32 %v4251, %v4280
      %v4283 = vadd.f32 %v4252, %v4280
      %v4284 = vmul.f32 %v3560, %v4110
      %v4286 = vrot.slane %v4284, 5
      %v4288 = vadd.f32 %v4259, %v4286
      %v4289 = vadd.f32 %v4260, %v4286
      %v4290 = vmul.f32 %v3560, %v3586
      %v4292 = vrot.slane %v4290, 2
      %v4294 = vadd.f32 %v4265, %v4292
      %v4295 = vadd.f32 %v4266, %v4292
      %v4296 = vmul.f32 %v3560, %v3672
      %v4298 = vrot.slane %v4296, 5
      %v4300 = vadd.f32 %v4271, %v4298
      %v4301 = vadd.f32 %v4272, %v4298
      %v4302 = vmul.f32 %v3560, %v3790
      %v4303 = vadd.f32 %v4277, %v4302
      %v4304 = vmul.f32 %v3560, %v3942
      %v4306 = vrot.slane %v4304, 3
      %v4308 = vadd.f32 %v4282, %v4306
      %v4309 = vadd.f32 %v4283, %v4306
      %v4310 = vmul.f32 %v3560, %v4148
      %v4312 = vrot.slane %v4310, 6
      %v4314 = vadd.f32 %v4288, %v4312
      %v4315 = vadd.f32 %v4289, %v4312
      %v4316 = vmul.f32 %v3560, %v3599
      %v4317 = vmul.f32 %v3561, %v3599
      %v4320 = vrot.slane %v4316, 3
      %v4321 = vrot.slane %v4317, 3
      %v4322 = vsel %vm1294, %v4320, %v4321
      %v4325 = vadd.f32 %v4294, %v4320
      %v4326 = vadd.f32 %v4295, %v4322
      %v4327 = vmul.f32 %v3560, %v3693
      %v4328 = vmul.f32 %v3561, %v3693
      %v4331 = vrot.slane %v4327, 6
      %v4332 = vrot.slane %v4328, 6
      %v4333 = vsel %vm1392, %v4331, %v4332
      %v4336 = vadd.f32 %v4300, %v4331
      %v4337 = vadd.f32 %v4301, %v4333
      %v4338 = vmul.f32 %v3560, %v3808
      %v4339 = vmul.f32 %v3561, %v3808
      %v4342 = vrot.slane %v4338, 1
      %v4343 = vrot.slane %v4339, 1
      %v4344 = vsel %vm1333, %v4342, %v4343
      %v4346 = vadd.f32 %v4303, %v4344
      %v4347 = vmul.f32 %v3560, %v3986
      %v4348 = vmul.f32 %v3561, %v3986
      %v4351 = vrot.slane %v4347, 4
      %v4352 = vrot.slane %v4348, 4
      %v4353 = vsel %vm1308, %v4351, %v4352
      %v4356 = vadd.f32 %v4308, %v4351
      %v4357 = vadd.f32 %v4309, %v4353
      %v4358 = vmul.f32 %v3560, %v4191
      %v4359 = vmul.f32 %v3561, %v4191
      %v4362 = vrot.slane %v4358, 7
      %v4363 = vrot.slane %v4359, 7
      %v4364 = vsel %vm1414, %v4362, %v4363
      %v4367 = vadd.f32 %v4314, %v4362
      %v4368 = vadd.f32 %v4315, %v4364
      %v4369 = vmul.f32 %v3560, %v3612
      %v4370 = vmul.f32 %v3561, %v3612
      %v4373 = vrot.slane %v4369, 4
      %v4374 = vrot.slane %v4370, 4
      %v4375 = vsel %vm1308, %v4373, %v4374
      %v4378 = vadd.f32 %v4325, %v4373
      %v4379 = vadd.f32 %v4326, %v4375
      %v4380 = vmul.f32 %v3560, %v3714
      %v4381 = vmul.f32 %v3561, %v3714
      %v4384 = vrot.slane %v4380, 7
      %v4385 = vrot.slane %v4381, 7
      %v4386 = vsel %vm1414, %v4384, %v4385
      %v4389 = vadd.f32 %v4336, %v4384
      %v4390 = vadd.f32 %v4337, %v4386
      %v4391 = vmul.f32 %v3560, %v3839
      %v4392 = vmul.f32 %v3561, %v3839
      %v4395 = vrot.slane %v4391, 2
      %v4396 = vrot.slane %v4392, 2
      %v4397 = vsel %vm1280, %v4395, %v4396
      %v4399 = vadd.f32 %v4346, %v4397
      %v4400 = vmul.f32 %v3560, %v4021
      %v4401 = vmul.f32 %v3561, %v4021
      %v4404 = vrot.slane %v4400, 5
      %v4405 = vrot.slane %v4401, 5
      %v4406 = vsel %vm1370, %v4404, %v4405
      %v4409 = vadd.f32 %v4356, %v4404
      %v4410 = vadd.f32 %v4357, %v4406
      %v4411 = vmul.f32 %v3560, %v4227
      %v4412 = vmul.f32 %v3561, %v4227
      %v4413 = vadd.f32 %v4367, %v4411
      %v4414 = vadd.f32 %v4368, %v4412
      %v4415 = vmul.f32 %v3561, %v3572
      %v4416 = vmul.f32 %v3562, %v3572
      %v4417 = vmul.f32 %v3561, %v3627
      %v4418 = vmul.f32 %v3562, %v3627
      %v4421 = vrot.slane %v4417, 3
      %v4422 = vrot.slane %v4418, 3
      %v4423 = vsel %vm1294, %v4421, %v4422
      %v4426 = vadd.f32 %v4378, %v4421
      %v4427 = vadd.f32 %v4379, %v4423
      %v4428 = vmul.f32 %v3561, %v3736
      %v4429 = vmul.f32 %v3562, %v3736
      %v4432 = vrot.slane %v4428, 6
      %v4433 = vrot.slane %v4429, 6
      %v4434 = vsel %vm1392, %v4432, %v4433
      %v4437 = vadd.f32 %v4389, %v4432
      %v4438 = vadd.f32 %v4390, %v4434
      %v4439 = vmul.f32 %v3561, %v3865
      %v4440 = vmul.f32 %v3562, %v3865
      %v4443 = vrot.slane %v4439, 1
      %v4444 = vrot.slane %v4440, 1
      %v4445 = vsel %vm1333, %v4443, %v4444
      %v4447 = vadd.f32 %v4399, %v4445
      %v4448 = vmul.f32 %v3561, %v4067
      %v4449 = vmul.f32 %v3562, %v4067
      %v4452 = vrot.slane %v4448, 4
      %v4453 = vrot.slane %v4449, 4
      %v4454 = vsel %vm1308, %v4452, %v4453
      %v4457 = vadd.f32 %v4409, %v4452
      %v4458 = vadd.f32 %v4410, %v4454
      %v4459 = vmul.f32 %v3561, %v3577
      %v4460 = vmul.f32 %v3562, %v3577
      %v4463 = vrot.slane %v4459, 1
      %v4464 = vrot.slane %v4460, 1
      %v4465 = vsel %vm1333, %v4463, %v4464
      %v4468 = vadd.f32 %v4415, %v4465
      %v4469 = vadd.f32 %v4416, %v4464
      %v4470 = vmul.f32 %v3561, %v3651
      %v4471 = vmul.f32 %v3562, %v3651
      %v4474 = vrot.slane %v4470, 4
      %v4475 = vrot.slane %v4471, 4
      %v4476 = vsel %vm1308, %v4474, %v4475
      %v4479 = vadd.f32 %v4426, %v4474
      %v4480 = vadd.f32 %v4427, %v4476
      %v4481 = vmul.f32 %v3561, %v3765
      %v4482 = vmul.f32 %v3562, %v3765
      %v4485 = vrot.slane %v4481, 7
      %v4486 = vrot.slane %v4482, 7
      %v4487 = vsel %vm1414, %v4485, %v4486
      %v4490 = vadd.f32 %v4437, %v4485
      %v4491 = vadd.f32 %v4438, %v4487
      %v4492 = vmul.f32 %v3561, %v3905
      %v4493 = vmul.f32 %v3562, %v3905
      %v4496 = vrot.slane %v4492, 2
      %v4497 = vrot.slane %v4493, 2
      %v4498 = vsel %vm1280, %v4496, %v4497
      %v4500 = vadd.f32 %v4447, %v4498
      %v4501 = vmul.f32 %v3561, %v4110
      %v4502 = vmul.f32 %v3562, %v4110
      %v4505 = vrot.slane %v4501, 5
      %v4506 = vrot.slane %v4502, 5
      %v4507 = vsel %vm1370, %v4505, %v4506
      %v4510 = vadd.f32 %v4457, %v4505
      %v4511 = vadd.f32 %v4458, %v4507
      %v4512 = vmul.f32 %v3561, %v3586
      %v4513 = vmul.f32 %v3562, %v3586
      %v4516 = vrot.slane %v4512, 2
      %v4517 = vrot.slane %v4513, 2
      %v4518 = vsel %vm1280, %v4516, %v4517
      %v4521 = vadd.f32 %v4468, %v4518
      %v4522 = vadd.f32 %v4469, %v4517
      %v4523 = vmul.f32 %v3561, %v3672
      %v4524 = vmul.f32 %v3562, %v3672
      %v4527 = vrot.slane %v4523, 5
      %v4528 = vrot.slane %v4524, 5
      %v4529 = vsel %vm1370, %v4527, %v4528
      %v4532 = vadd.f32 %v4479, %v4527
      %v4533 = vadd.f32 %v4480, %v4529
      %v4534 = vmul.f32 %v3561, %v3790
      %v4535 = vmul.f32 %v3562, %v3790
      %v4536 = vadd.f32 %v4490, %v4534
      %v4537 = vadd.f32 %v4491, %v4535
      %v4538 = vmul.f32 %v3561, %v3942
      %v4539 = vmul.f32 %v3562, %v3942
      %v4542 = vrot.slane %v4538, 3
      %v4543 = vrot.slane %v4539, 3
      %v4544 = vsel %vm1294, %v4542, %v4543
      %v4546 = vadd.f32 %v4500, %v4544
      %v4547 = vmul.f32 %v3561, %v4148
      %v4548 = vmul.f32 %v3562, %v4148
      %v4551 = vrot.slane %v4547, 6
      %v4552 = vrot.slane %v4548, 6
      %v4553 = vsel %vm1392, %v4551, %v4552
      %v4556 = vadd.f32 %v4510, %v4551
      %v4557 = vadd.f32 %v4511, %v4553
      %v4558 = vmul.f32 %v3562, %v3599
      %v4560 = vrot.slane %v4558, 3
      %v4561 = vsel %vm1294, %v4321, %v4560
      %v4564 = vadd.f32 %v4521, %v4561
      %v4565 = vadd.f32 %v4522, %v4560
      %v4566 = vmul.f32 %v3562, %v3693
      %v4568 = vrot.slane %v4566, 6
      %v4569 = vsel %vm1392, %v4332, %v4568
      %v4572 = vadd.f32 %v4532, %v4332
      %v4573 = vadd.f32 %v4533, %v4569
      %v4574 = vmul.f32 %v3562, %v3808
      %v4576 = vrot.slane %v4574, 1
      %v4577 = vsel %vm1333, %v4343, %v4576
      %v4580 = vadd.f32 %v4536, %v4577
      %v4581 = vadd.f32 %v4537, %v4576
      %v4582 = vmul.f32 %v3562, %v3986
      %v4584 = vrot.slane %v4582, 4
      %v4585 = vsel %vm1308, %v4352, %v4584
      %v4587 = vadd.f32 %v4546, %v4585
      %v4588 = vmul.f32 %v3562, %v4191
      %v4590 = vrot.slane %v4588, 7
      %v4591 = vsel %vm1414, %v4363, %v4590
      %v4594 = vadd.f32 %v4556, %v4363
      %v4595 = vadd.f32 %v4557, %v4591
      %v4596 = vmul.f32 %v3562, %v3612
      %v4598 = vrot.slane %v4596, 4
      %v4599 = vsel %vm1308, %v4374, %v4598
      %v4602 = vadd.f32 %v4564, %v4599
      %v4603 = vadd.f32 %v4565, %v4598
      %v4604 = vmul.f32 %v3562, %v3714
      %v4606 = vrot.slane %v4604, 7
      %v4607 = vsel %vm1414, %v4385, %v4606
      %v4610 = vadd.f32 %v4572, %v4385
      %v4611 = vadd.f32 %v4573, %v4607
      %v4612 = vmul.f32 %v3562, %v3839
      %v4614 = vrot.slane %v4612, 2
      %v4615 = vsel %vm1280, %v4396, %v4614
      %v4618 = vadd.f32 %v4580, %v4615
      %v4619 = vadd.f32 %v4581, %v4614
      %v4620 = vmul.f32 %v3562, %v4021
      %v4622 = vrot.slane %v4620, 5
      %v4623 = vsel %vm1370, %v4405, %v4622
      %v4625 = vadd.f32 %v4587, %v4623
      %v4626 = vmul.f32 %v3562, %v4227
      %v4627 = vadd.f32 %v4594, %v4412
      %v4628 = vadd.f32 %v4595, %v4626
      %v4629 = vmul.f32 %v3563, %v3627
      %v4631 = vrot.slane %v4629, 3
      %v4632 = vsel %vm1294, %v4422, %v4631
      %v4635 = vadd.f32 %v4602, %v4632
      %v4636 = vadd.f32 %v4603, %v4631
      %v4637 = vmul.f32 %v3563, %v3736
      %v4639 = vrot.slane %v4637, 6
      %v4640 = vsel %vm1392, %v4433, %v4639
      %v4643 = vadd.f32 %v4610, %v4433
      %v4644 = vadd.f32 %v4611, %v4640
      %v4645 = vmul.f32 %v3563, %v3865
      %v4647 = vrot.slane %v4645, 1
      %v4648 = vsel %vm1333, %v4444, %v4647
      %v4651 = vadd.f32 %v4618, %v4648
      %v4652 = vadd.f32 %v4619, %v4647
      %v4653 = vmul.f32 %v3563, %v4067
      %v4655 = vrot.slane %v4653, 4
      %v4656 = vsel %vm1308, %v4453, %v4655
      %v4658 = vadd.f32 %v4625, %v4656
      %v4659 = vmul.f32 %v3563, %v3651
      %v4661 = vrot.slane %v4659, 4
      %v4662 = vsel %vm1308, %v4475, %v4661
      %v4665 = vadd.f32 %v4635, %v4662
      %v4666 = vadd.f32 %v4636, %v4661
      %v4667 = vmul.f32 %v3563, %v3765
      %v4669 = vrot.slane %v4667, 7
      %v4670 = vsel %vm1414, %v4486, %v4669
      %v4673 = vadd.f32 %v4643, %v4486
      %v4674 = vadd.f32 %v4644, %v4670
      %v4675 = vmul.f32 %v3563, %v3905
      %v4677 = vrot.slane %v4675, 2
      %v4678 = vsel %vm1280, %v4497, %v4677
      %v4681 = vadd.f32 %v4651, %v4678
      %v4682 = vadd.f32 %v4652, %v4677
      %v4683 = vmul.f32 %v3563, %v4110
      %v4685 = vrot.slane %v4683, 5
      %v4686 = vsel %vm1370, %v4506, %v4685
      %v4688 = vadd.f32 %v4658, %v4686
      %v4689 = vmul.f32 %v3563, %v3672
      %v4691 = vrot.slane %v4689, 5
      %v4692 = vsel %vm1370, %v4528, %v4691
      %v4695 = vadd.f32 %v4665, %v4692
      %v4696 = vadd.f32 %v4666, %v4691
      %v4697 = vmul.f32 %v3563, %v3790
      %v4698 = vadd.f32 %v4673, %v4535
      %v4699 = vadd.f32 %v4674, %v4697
      %v4700 = vmul.f32 %v3563, %v3942
      %v4702 = vrot.slane %v4700, 3
      %v4703 = vsel %vm1294, %v4543, %v4702
      %v4706 = vadd.f32 %v4681, %v4703
      %v4707 = vadd.f32 %v4682, %v4702
      %v4708 = vmul.f32 %v3563, %v4148
      %v4710 = vrot.slane %v4708, 6
      %v4711 = vsel %vm1392, %v4552, %v4710
      %v4713 = vadd.f32 %v4688, %v4711
      %v4714 = vmul.f32 %v3563, %v3693
      %v4716 = vrot.slane %v4714, 6
      %v4718 = vadd.f32 %v4695, %v4716
      %v4719 = vadd.f32 %v4696, %v4716
      %v4720 = vmul.f32 %v3563, %v3808
      %v4722 = vrot.slane %v4720, 1
      %v4724 = vadd.f32 %v4698, %v4722
      %v4725 = vadd.f32 %v4699, %v4722
      %v4726 = vmul.f32 %v3563, %v3986
      %v4728 = vrot.slane %v4726, 4
      %v4730 = vadd.f32 %v4706, %v4728
      %v4731 = vadd.f32 %v4707, %v4728
      %v4732 = vmul.f32 %v3563, %v4191
      %v4734 = vrot.slane %v4732, 7
      %v4736 = vadd.f32 %v4713, %v4734
      %v4737 = vmul.f32 %v3563, %v3714
      %v4739 = vrot.slane %v4737, 7
      %v4741 = vadd.f32 %v4718, %v4739
      %v4742 = vadd.f32 %v4719, %v4739
      %v4743 = vmul.f32 %v3563, %v3839
      %v4745 = vrot.slane %v4743, 2
      %v4747 = vadd.f32 %v4724, %v4745
      %v4748 = vadd.f32 %v4725, %v4745
      %v4749 = vmul.f32 %v3563, %v4021
      %v4751 = vrot.slane %v4749, 5
      %v4753 = vadd.f32 %v4730, %v4751
      %v4754 = vadd.f32 %v4731, %v4751
      %v4755 = vmul.f32 %v3563, %v4227
      %v4756 = vadd.f32 %v4736, %v4755
      %v4757 = vmul.f32 %v3564, %v3736
      %v4759 = vrot.slane %v4757, 6
      %v4761 = vadd.f32 %v4741, %v4759
      %v4762 = vadd.f32 %v4742, %v4759
      %v4763 = vmul.f32 %v3564, %v3865
      %v4765 = vrot.slane %v4763, 1
      %v4767 = vadd.f32 %v4747, %v4765
      %v4768 = vadd.f32 %v4748, %v4765
      %v4769 = vmul.f32 %v3564, %v4067
      %v4771 = vrot.slane %v4769, 4
      %v4773 = vadd.f32 %v4753, %v4771
      %v4774 = vadd.f32 %v4754, %v4771
      %v4775 = vmul.f32 %v3564, %v3765
      %v4777 = vrot.slane %v4775, 7
      %v4779 = vadd.f32 %v4761, %v4777
      %v4780 = vadd.f32 %v4762, %v4777
      %v4781 = vmul.f32 %v3564, %v3905
      %v4783 = vrot.slane %v4781, 2
      %v4785 = vadd.f32 %v4767, %v4783
      %v4786 = vadd.f32 %v4768, %v4783
      %v4787 = vmul.f32 %v3564, %v4110
      %v4789 = vrot.slane %v4787, 5
      %v4791 = vadd.f32 %v4773, %v4789
      %v4792 = vadd.f32 %v4774, %v4789
      %v4793 = vmul.f32 %v3564, %v3790
      %v4794 = vmul.f32 %v3565, %v3790
      %v4795 = vadd.f32 %v4779, %v4793
      %v4796 = vadd.f32 %v4780, %v4794
      %v4797 = vmul.f32 %v3564, %v3942
      %v4798 = vmul.f32 %v3565, %v3942
      %v4801 = vrot.slane %v4797, 3
      %v4802 = vrot.slane %v4798, 3
      %v4803 = vsel %vm1294, %v4801, %v4802
      %v4806 = vadd.f32 %v4785, %v4801
      %v4807 = vadd.f32 %v4786, %v4803
      %v4808 = vmul.f32 %v3564, %v4148
      %v4809 = vmul.f32 %v3565, %v4148
      %v4812 = vrot.slane %v4808, 6
      %v4813 = vrot.slane %v4809, 6
      %v4814 = vsel %vm1392, %v4812, %v4813
      %v4817 = vadd.f32 %v4791, %v4812
      %v4818 = vadd.f32 %v4792, %v4814
      %v4819 = vmul.f32 %v3564, %v3808
      %v4820 = vmul.f32 %v3565, %v3808
      %v4823 = vrot.slane %v4819, 1
      %v4824 = vrot.slane %v4820, 1
      %v4825 = vsel %vm1333, %v4823, %v4824
      %v4828 = vadd.f32 %v4795, %v4825
      %v4829 = vadd.f32 %v4796, %v4824
      %v4830 = vmul.f32 %v3564, %v3986
      %v4831 = vmul.f32 %v3565, %v3986
      %v4834 = vrot.slane %v4830, 4
      %v4835 = vrot.slane %v4831, 4
      %v4836 = vsel %vm1308, %v4834, %v4835
      %v4839 = vadd.f32 %v4806, %v4834
      %v4840 = vadd.f32 %v4807, %v4836
      %v4841 = vmul.f32 %v3564, %v4191
      %v4842 = vmul.f32 %v3565, %v4191
      %v4845 = vrot.slane %v4841, 7
      %v4846 = vrot.slane %v4842, 7
      %v4847 = vsel %vm1414, %v4845, %v4846
      %v4850 = vadd.f32 %v4817, %v4845
      %v4851 = vadd.f32 %v4818, %v4847
      %v4852 = vmul.f32 %v3564, %v3839
      %v4853 = vmul.f32 %v3565, %v3839
      %v4856 = vrot.slane %v4852, 2
      %v4857 = vrot.slane %v4853, 2
      %v4858 = vsel %vm1280, %v4856, %v4857
      %v4861 = vadd.f32 %v4828, %v4858
      %v4862 = vadd.f32 %v4829, %v4857
      %v4863 = vmul.f32 %v3564, %v4021
      %v4864 = vmul.f32 %v3565, %v4021
      %v4867 = vrot.slane %v4863, 5
      %v4868 = vrot.slane %v4864, 5
      %v4869 = vsel %vm1370, %v4867, %v4868
      %v4872 = vadd.f32 %v4839, %v4867
      %v4873 = vadd.f32 %v4840, %v4869
      %v4874 = vmul.f32 %v3564, %v4227
      %v4875 = vmul.f32 %v3565, %v4227
      %v4876 = vadd.f32 %v4850, %v4874
      %v4877 = vadd.f32 %v4851, %v4875
      %v4878 = vmul.f32 %v3565, %v3865
      %v4879 = vmul.f32 %v3566, %v3865
      %v4882 = vrot.slane %v4878, 1
      %v4883 = vrot.slane %v4879, 1
      %v4884 = vsel %vm1333, %v4882, %v4883
      %v4887 = vadd.f32 %v4861, %v4884
      %v4888 = vadd.f32 %v4862, %v4883
      %v4889 = vmul.f32 %v3565, %v4067
      %v4890 = vmul.f32 %v3566, %v4067
      %v4893 = vrot.slane %v4889, 4
      %v4894 = vrot.slane %v4890, 4
      %v4895 = vsel %vm1308, %v4893, %v4894
      %v4898 = vadd.f32 %v4872, %v4893
      %v4899 = vadd.f32 %v4873, %v4895
      %v4900 = vmul.f32 %v3565, %v3905
      %v4901 = vmul.f32 %v3566, %v3905
      %v4904 = vrot.slane %v4900, 2
      %v4905 = vrot.slane %v4901, 2
      %v4906 = vsel %vm1280, %v4904, %v4905
      %v4909 = vadd.f32 %v4887, %v4906
      %v4910 = vadd.f32 %v4888, %v4905
      %v4911 = vmul.f32 %v3565, %v4110
      %v4912 = vmul.f32 %v3566, %v4110
      %v4915 = vrot.slane %v4911, 5
      %v4916 = vrot.slane %v4912, 5
      %v4917 = vsel %vm1370, %v4915, %v4916
      %v4920 = vadd.f32 %v4898, %v4915
      %v4921 = vadd.f32 %v4899, %v4917
      %v4922 = vmul.f32 %v3566, %v3942
      %v4924 = vrot.slane %v4922, 3
      %v4925 = vsel %vm1294, %v4802, %v4924
      %v4928 = vadd.f32 %v4909, %v4925
      %v4929 = vadd.f32 %v4910, %v4924
      %v4930 = vmul.f32 %v3566, %v4148
      %v4932 = vrot.slane %v4930, 6
      %v4933 = vsel %vm1392, %v4813, %v4932
      %v4936 = vadd.f32 %v4920, %v4813
      %v4937 = vadd.f32 %v4921, %v4933
      %v4938 = vmul.f32 %v3566, %v3986
      %v4940 = vrot.slane %v4938, 4
      %v4941 = vsel %vm1308, %v4835, %v4940
      %v4944 = vadd.f32 %v4928, %v4941
      %v4945 = vadd.f32 %v4929, %v4940
      %v4946 = vmul.f32 %v3566, %v4191
      %v4948 = vrot.slane %v4946, 7
      %v4949 = vsel %vm1414, %v4846, %v4948
      %v4952 = vadd.f32 %v4936, %v4846
      %v4953 = vadd.f32 %v4937, %v4949
      %v4954 = vmul.f32 %v3566, %v4021
      %v4956 = vrot.slane %v4954, 5
      %v4957 = vsel %vm1370, %v4868, %v4956
      %v4960 = vadd.f32 %v4944, %v4957
      %v4961 = vadd.f32 %v4945, %v4956
      %v4962 = vmul.f32 %v3566, %v4227
      %v4963 = vadd.f32 %v4952, %v4875
      %v4964 = vadd.f32 %v4953, %v4962
      %v4965 = vmul.f32 %v3567, %v4067
      %v4967 = vrot.slane %v4965, 4
      %v4968 = vsel %vm1308, %v4894, %v4967
      %v4971 = vadd.f32 %v4960, %v4968
      %v4972 = vadd.f32 %v4961, %v4967
      %v4973 = vmul.f32 %v3567, %v4110
      %v4975 = vrot.slane %v4973, 5
      %v4976 = vsel %vm1370, %v4916, %v4975
      %v4979 = vadd.f32 %v4971, %v4976
      %v4980 = vadd.f32 %v4972, %v4975
      %v4981 = vmul.f32 %v3567, %v4148
      %v4983 = vrot.slane %v4981, 6
      %v4985 = vadd.f32 %v4979, %v4983
      %v4986 = vadd.f32 %v4980, %v4983
      %v4987 = vmul.f32 %v3567, %v4191
      %v4989 = vrot.slane %v4987, 7
      %v4991 = vadd.f32 %v4985, %v4989
      %v4992 = vadd.f32 %v4986, %v4989
      %v4993 = vmul.f32 %v3567, %v4227
      %v4994 = vmul.f32 %v3568, %v4227
      %v4995 = vadd.f32 %v4991, %v4993
      %v4996 = vadd.f32 %v4992, %v4994
      %v4999 = vrot.slane %v4413, 3
      %v5000 = vrot.slane %v4414, 3
      %v5001 = vsel %vm1294, %v4999, %v5000
      %v5003 = vadd.f32 %v4229, %v5001
      %v5006 = vrot.slane %v4627, 6
      %v5007 = vrot.slane %v4628, 6
      %v5008 = vsel %vm1392, %v5006, %v5007
      %v5010 = vadd.f32 %v5003, %v5008
      %v5012 = vrot.slane %v4756, 1
      %v5014 = vadd.f32 %v5010, %v5012
      %v5017 = vrot.slane %v4876, 4
      %v5018 = vrot.slane %v4877, 4
      %v5019 = vsel %vm1308, %v5017, %v5018
      %v5021 = vadd.f32 %v5014, %v5019
      %v5024 = vrot.slane %v4963, 7
      %v5025 = vrot.slane %v4964, 7
      %v5026 = vsel %vm1414, %v5024, %v5025
      %v5028 = vadd.f32 %v5021, %v5026
      %v5031 = vrot.slane %v4995, 2
      %v5032 = vrot.slane %v4996, 2
      %v5033 = vsel %vm1280, %v5031, %v5032
      %v5035 = vadd.f32 %v5028, %v5033
      %v5036 = vsel %vm1333, %v5035, 0.0
      %v5037 = vrot.slane %v5036, 4
      %v5038 = vadd.f32 %v5036, %v5037
      %v5039 = vrot.slane %v5038, 2
      %v5040 = vadd.f32 %v5038, %v5039
      %v5041 = vrot.slane %v5040, 1
      %v5042 = vadd.f32 %v5040, %v5041
      %v5043 = vmul.f32 %v5042, 0.020408163
      %v5044 = vsub.f32 %v4229, %v5043
      %v5045 = vmul.f32 %v5044, %v5044
      %v5046 = vsub.f32 %v4413, %v5043
      %v5047 = vsub.f32 %v4414, %v5043
      %v5048 = vmul.f32 %v5046, %v5046
      %v5049 = vmul.f32 %v5047, %v5047
      %v5052 = vrot.slane %v5048, 3
      %v5053 = vrot.slane %v5049, 3
      %v5054 = vsel %vm1294, %v5052, %v5053
      %v5056 = vadd.f32 %v5045, %v5054
      %v5057 = vsub.f32 %v4627, %v5043
      %v5058 = vsub.f32 %v4628, %v5043
      %v5059 = vmul.f32 %v5057, %v5057
      %v5060 = vmul.f32 %v5058, %v5058
      %v5063 = vrot.slane %v5059, 6
      %v5064 = vrot.slane %v5060, 6
      %v5065 = vsel %vm1392, %v5063, %v5064
      %v5067 = vadd.f32 %v5056, %v5065
      %v5068 = vsub.f32 %v4756, %v5043
      %v5069 = vmul.f32 %v5068, %v5068
      %v5071 = vrot.slane %v5069, 1
      %v5073 = vadd.f32 %v5067, %v5071
      %v5074 = vsub.f32 %v4876, %v5043
      %v5075 = vsub.f32 %v4877, %v5043
      %v5076 = vmul.f32 %v5074, %v5074
      %v5077 = vmul.f32 %v5075, %v5075
      %v5080 = vrot.slane %v5076, 4
      %v5081 = vrot.slane %v5077, 4
      %v5082 = vsel %vm1308, %v5080, %v5081
      %v5084 = vadd.f32 %v5073, %v5082
      %v5085 = vsub.f32 %v4963, %v5043
      %v5086 = vsub.f32 %v4964, %v5043
      %v5087 = vmul.f32 %v5085, %v5085
      %v5088 = vmul.f32 %v5086, %v5086
      %v5091 = vrot.slane %v5087, 7
      %v5092 = vrot.slane %v5088, 7
      %v5093 = vsel %vm1414, %v5091, %v5092
      %v5095 = vadd.f32 %v5084, %v5093
      %v5096 = vsub.f32 %v4995, %v5043
      %v5097 = vsub.f32 %v4996, %v5043
      %v5098 = vmul.f32 %v5096, %v5096
      %v5099 = vmul.f32 %v5097, %v5097
      %v5102 = vrot.slane %v5098, 2
      %v5103 = vrot.slane %v5099, 2
      %v5104 = vsel %vm1280, %v5102, %v5103
      %v5106 = vadd.f32 %v5095, %v5104
      %v5107 = vsel %vm1333, %v5106, 0.0
      %v5108 = vrot.slane %v5107, 4
      %v5109 = vadd.f32 %v5107, %v5108
      %v5110 = vrot.slane %v5109, 2
      %v5111 = vadd.f32 %v5109, %v5110
      %v5112 = vrot.slane %v5111, 1
      %v5113 = vadd.f32 %v5111, %v5112
      %v5114 = vmul.f32 %v5113, 0.020408163
      %v5115 = vadd.f32 %v5114, 1e-05
      %v5116 = vrsqrt.pop %v5115
      %v5117 = vmul.f32 %v2958, %v5116
      %v5118 = vmul.f32 %v5043, %v5117
      %v5119 = vsub.f32 %v2959, %v5118
      %v5121 = vlaneseq
      %v5122 = vshrl.u32 %v5121, 7
      %v5123 = vsub.s32 0, %v5122
      %v5124 = vrot.slane %v5117, %v5123
      %v5126 = vmul.f32 %v4229, %v5124
      %v5128 = vlaneseq
      %v5129 = vshrl.u32 %v5128, 7
      %v5130 = vsub.s32 0, %v5129
      %v5131 = vrot.slane %v5119, %v5130
      %v5133 = vadd.f32 %v5126, %v5131
      %v5134 = vmul.f32 %v4413, %v5124
      %v5135 = vmul.f32 %v4414, %v5124
      %v5136 = vadd.f32 %v5134, %v5131
      %v5137 = vadd.f32 %v5135, %v5131
      %v5138 = vmul.f32 %v4627, %v5124
      %v5139 = vmul.f32 %v4628, %v5124
      %v5140 = vadd.f32 %v5138, %v5131
      %v5141 = vadd.f32 %v5139, %v5131
      %v5142 = vmul.f32 %v4756, %v5124
      %v5143 = vadd.f32 %v5142, %v5131
      %v5144 = vmul.f32 %v4876, %v5124
      %v5145 = vmul.f32 %v4877, %v5124
      %v5146 = vadd.f32 %v5144, %v5131
      %v5147 = vadd.f32 %v5145, %v5131
      %v5148 = vmul.f32 %v4963, %v5124
      %v5149 = vmul.f32 %v4964, %v5124
      %v5150 = vadd.f32 %v5148, %v5131
      %v5151 = vadd.f32 %v5149, %v5131
      %v5152 = vmul.f32 %v4995, %v5124
      %v5153 = vmul.f32 %v4996, %v5124
      %v5154 = vadd.f32 %v5152, %v5131
      %v5155 = vadd.f32 %v5153, %v5131
      %v5158 = vrot.slane %v5136, 4
      %v5159 = vrot.slane %v5137, 4
      %v5160 = vsel %vm1308, %v5158, %v5159
      %v5164 = vrot.slane %v5143, 4
      %v5168 = vrot.slane %v5150, 4
      %v5169 = vrot.slane %v5151, 4
      %v5170 = vsel %vm1308, %v5168, %v5169
      %v5173 = vsel %vm1333, %v5133, %v5158
      %v5174 = vsel %vm1280, %v5160, %v5140
      %v5175 = vsel %vm1294, %v5141, %v5164
      %v5176 = vsel %vm1308, %v5164, %v5146
      %v5177 = vsel %vm1370, %v5147, %v5170
      %v5178 = vsel %vm1392, %v5169, %v5154
      %v5179 = vsel %vm1414, %v5155, 0.0
      %5180 = vxpose.xlu0.b32.start [1/16] %v5173, 128
      %5181 = vxpose.xlu0.b32.cont [2/16] %v5174, 128
      %5182 = vxpose.xlu0.b32.cont [3/16] %v5175, 128
      %5183 = vxpose.xlu0.b32.cont [4/16] %v5176, 128
      %5184 = vxpose.xlu0.b32.cont [5/16] %v5177, 128
      %5185 = vxpose.xlu0.b32.cont [6/16] %v5178, 128
      %5186 = vxpose.xlu0.b32.cont [7/16] %v5179, 128
      %5187 = vxpose.xlu0.b32.cont [8/16] 0.0, 128
      %5188 = vxpose.xlu0.b32.cont [9/16] 0.0, 128
      %5189 = vxpose.xlu0.b32.cont [10/16] 0.0, 128
      %5190 = vxpose.xlu0.b32.cont [11/16] 0.0, 128
      %5191 = vxpose.xlu0.b32.cont [12/16] 0.0, 128
      %5192 = vxpose.xlu0.b32.cont [13/16] 0.0, 128
      %5193 = vxpose.xlu0.b32.cont [14/16] 0.0, 128
      %5194 = vxpose.xlu0.b32.cont [15/16] 0.0, 128
      %5195 = vxpose.xlu0.b32.end [16/16] 0.0, 128
      %v5196 = vpop.trf.xlu0
      %v5197 = vpop.trf.xlu0
      %v5198 = vpop.trf.xlu0
      %v5199 = vpop.trf.xlu0
      %v5200 = vpop.trf.xlu0
      %v5201 = vpop.trf.xlu0
      %v5202 = vpop.trf.xlu0
      %v5203 = vpop.trf.xlu0
      %v5204 = vpop.trf.xlu0
      %v5205 = vpop.trf.xlu0
      %v5206 = vpop.trf.xlu0
      %v5207 = vpop.trf.xlu0
      %v5208 = vpop.trf.xlu0
      %v5209 = vpop.trf.xlu0
      %v5210 = vpop.trf.xlu0
      %v5211 = vpop.trf.xlu0
      %5212 = vst.msk [vmem:[%s432 + $0x80] sm:$0xff] %vm571, %v5196
      %5213 = vst.msk [vmem:[%s432 + $0x88] sm:$0xff] %vm571, %v5197
      %5214 = vst.msk [vmem:[%s432 + $0x90] sm:$0xff] %vm571, %v5198
      %5215 = vst.msk [vmem:[%s432 + $0x98] sm:$0xff] %vm571, %v5199
      %5216 = vst.msk [vmem:[%s432 + $0xa0] sm:$0xff] %vm571, %v5200
      %5217 = vst.msk [vmem:[%s432 + $0xa8] sm:$0xff] %vm571, %v5201
      %5218 = vst.msk [vmem:[%s432 + $0xb0] sm:$0xff] %vm571, %v5202
      %5219 = vst.msk [vmem:[%s432 + $0xb8] sm:$0xff] %vm571, %v5203
      %5220 = vst.msk [vmem:[%s432 + $0xc0] sm:$0xff] %vm571, %v5204
      %5221 = vst.msk [vmem:[%s432 + $0xc8] sm:$0xff] %vm571, %v5205
      %5222 = vst.msk [vmem:[%s432 + $0xd0] sm:$0xff] %vm571, %v5206
      %5223 = vst.msk [vmem:[%s432 + $0xd8] sm:$0xff] %vm571, %v5207
      %5224 = vst.msk [vmem:[%s432 + $0xe0] sm:$0xff] %vm571, %v5208
      %5225 = vst.msk [vmem:[%s432 + $0xe8] sm:$0xff] %vm571, %v5209
      %5226 = vst.msk [vmem:[%s432 + $0xf0] sm:$0xff] %vm571, %v5210
      %5227 = vst.msk [vmem:[%s432 + $0xf8] sm:$0xff] %vm571, %v5211
      %v5228 = vld [vmem:[%s400 + $0x100] sm:$0xff]
      %v5229 = vld [vmem:[%s400 + $0x108] sm:$0xff]
      %v5230 = vld [vmem:[%s400 + $0x110] sm:$0xff]
      %v5231 = vld [vmem:[%s400 + $0x118] sm:$0xff]
      %v5232 = vld [vmem:[%s400 + $0x120] sm:$0xff]
      %v5233 = vld [vmem:[%s400 + $0x128] sm:$0xff]
      %v5234 = vld [vmem:[%s400 + $0x130] sm:$0xff]
      %v5235 = vld [vmem:[%s400 + $0x138] sm:$0xff]
      %v5236 = vld [vmem:[%s400 + $0x140] sm:$0xff]
      %v5237 = vld [vmem:[%s400 + $0x148] sm:$0xff]
      %v5238 = vld [vmem:[%s400 + $0x150] sm:$0xff]
      %v5239 = vld [vmem:[%s400 + $0x158] sm:$0xff]
      %v5240 = vld [vmem:[%s400 + $0x160] sm:$0xff]
      %v5241 = vld [vmem:[%s400 + $0x168] sm:$0xff]
      %v5242 = vld [vmem:[%s400 + $0x170] sm:$0xff]
      %v5243 = vld [vmem:[%s400 + $0x178] sm:$0xff]
      %v5244 = vld [vmem:[%s406 + $0x100] sm:$0xff]
      %v5245 = vld [vmem:[%s406 + $0x108] sm:$0xff]
      %v5246 = vld [vmem:[%s406 + $0x110] sm:$0xff]
      %v5247 = vld [vmem:[%s406 + $0x118] sm:$0xff]
      %v5248 = vld [vmem:[%s406 + $0x120] sm:$0xff]
      %v5249 = vld [vmem:[%s406 + $0x128] sm:$0xff]
      %v5250 = vld [vmem:[%s406 + $0x130] sm:$0xff]
      %v5251 = vld [vmem:[%s406 + $0x138] sm:$0xff]
      %v5252 = vld [vmem:[%s406 + $0x140] sm:$0xff]
      %v5253 = vld [vmem:[%s406 + $0x148] sm:$0xff]
      %v5254 = vld [vmem:[%s406 + $0x150] sm:$0xff]
      %v5255 = vld [vmem:[%s406 + $0x158] sm:$0xff]
      %v5256 = vld [vmem:[%s406 + $0x160] sm:$0xff]
      %v5257 = vld [vmem:[%s406 + $0x168] sm:$0xff]
      %v5258 = vld [vmem:[%s406 + $0x170] sm:$0xff]
      %v5259 = vld [vmem:[%s406 + $0x178] sm:$0xff]
      %v5260 = vld [vmem:[%s411 + $0x2] sm:$0x1]
      %v5261 = vld [vmem:[%s416 + $0x2] sm:$0x1]
      %v5262 = vld [vmem:[%s421 + $0x2] sm:$0x1]
      %v5263 = vld [vmem:[%s426 + $0x2] sm:$0x1]
      %5280 = vrot.lane.b32.xlu0 %v5244, 49
      %v5281 = vpop.permute.xlu0 %5280
      %5282 = vrot.lane.b32.xlu0 %v5245, 49
      %v5283 = vpop.permute.xlu0 %5282
      %5284 = vrot.lane.b32.xlu0 %v5246, 49
      %v5285 = vpop.permute.xlu0 %5284
      %5286 = vrot.lane.b32.xlu0 %v5247, 49
      %v5287 = vpop.permute.xlu0 %5286
      %5288 = vrot.lane.b32.xlu0 %v5248, 49
      %v5289 = vpop.permute.xlu0 %5288
      %5290 = vrot.lane.b32.xlu0 %v5249, 49
      %v5291 = vpop.permute.xlu0 %5290
      %5292 = vrot.lane.b32.xlu0 %v5250, 49
      %v5293 = vpop.permute.xlu0 %5292
      %5294 = vrot.lane.b32.xlu0 %v5251, 49
      %v5295 = vpop.permute.xlu0 %5294
      %5296 = vrot.lane.b32.xlu0 %v5252, 49
      %v5297 = vpop.permute.xlu0 %5296
      %5298 = vrot.lane.b32.xlu0 %v5253, 49
      %v5299 = vpop.permute.xlu0 %5298
      %5300 = vrot.lane.b32.xlu0 %v5254, 49
      %v5301 = vpop.permute.xlu0 %5300
      %5302 = vrot.lane.b32.xlu0 %v5255, 49
      %v5303 = vpop.permute.xlu0 %5302
      %5304 = vrot.lane.b32.xlu0 %v5256, 49
      %v5305 = vpop.permute.xlu0 %5304
      %5306 = vrot.lane.b32.xlu0 %v5257, 49
      %v5307 = vpop.permute.xlu0 %5306
      %5308 = vrot.lane.b32.xlu0 %v5258, 49
      %v5309 = vpop.permute.xlu0 %5308
      %5310 = vrot.lane.b32.xlu0 %v5259, 49
      %v5311 = vpop.permute.xlu0 %5310
      %v5328 = vsel %vm571, %v5228, %v5281
      %v5329 = vsel %vm571, %v5229, %v5283
      %v5330 = vsel %vm571, %v5230, %v5285
      %v5331 = vsel %vm571, %v5231, %v5287
      %v5332 = vsel %vm571, %v5232, %v5289
      %v5333 = vsel %vm571, %v5233, %v5291
      %v5334 = vsel %vm571, %v5234, %v5293
      %v5335 = vsel %vm571, %v5235, %v5295
      %v5336 = vsel %vm571, %v5236, %v5297
      %v5337 = vsel %vm571, %v5237, %v5299
      %v5338 = vsel %vm571, %v5238, %v5301
      %v5339 = vsel %vm571, %v5239, %v5303
      %v5340 = vsel %vm571, %v5240, %v5305
      %v5341 = vsel %vm571, %v5241, %v5307
      %v5342 = vsel %vm571, %v5242, %v5309
      %v5343 = vsel %vm571, %v5243, %v5311
      %v5344 = vsel %vm588, %v5328, 0.0
      %v5345 = vsel %vm588, %v5329, 0.0
      %v5346 = vsel %vm588, %v5330, 0.0
      %v5347 = vsel %vm588, %v5331, 0.0
      %v5348 = vsel %vm588, %v5332, 0.0
      %v5349 = vsel %vm588, %v5333, 0.0
      %v5350 = vsel %vm588, %v5334, 0.0
      %v5351 = vsel %vm588, %v5335, 0.0
      %v5352 = vsel %vm588, %v5336, 0.0
      %v5353 = vsel %vm588, %v5337, 0.0
      %v5354 = vsel %vm588, %v5338, 0.0
      %v5355 = vsel %vm588, %v5339, 0.0
      %v5356 = vsel %vm588, %v5340, 0.0
      %v5357 = vsel %vm588, %v5341, 0.0
      %v5358 = vsel %vm588, %v5342, 0.0
      %v5359 = vsel %vm588, %v5343, 0.0
      %v5360 = vpack.c.bf16 %v5345, %v5344
      %v5361 = vpack.c.bf16 %v5347, %v5346
      %v5362 = vpack.c.bf16 %v5349, %v5348
      %v5363 = vpack.c.bf16 %v5351, %v5350
      %v5364 = vpack.c.bf16 %v5353, %v5352
      %v5365 = vpack.c.bf16 %v5355, %v5354
      %v5366 = vpack.c.bf16 %v5357, %v5356
      %v5367 = vpack.c.bf16 %v5359, %v5358
      %v5368 = vunpack.c.l.bf16 %v5360
      %v5369 = vunpack.c.h.bf16 %v5360
      %v5370 = vunpack.c.l.bf16 %v5361
      %v5371 = vunpack.c.h.bf16 %v5361
      %v5372 = vunpack.c.l.bf16 %v5362
      %v5373 = vunpack.c.h.bf16 %v5362
      %v5374 = vunpack.c.l.bf16 %v5363
      %v5375 = vunpack.c.h.bf16 %v5363
      %v5376 = vunpack.c.l.bf16 %v5364
      %v5377 = vunpack.c.h.bf16 %v5364
      %v5378 = vunpack.c.l.bf16 %v5365
      %v5379 = vunpack.c.h.bf16 %v5365
      %v5380 = vunpack.c.l.bf16 %v5366
      %v5381 = vunpack.c.h.bf16 %v5366
      %v5382 = vunpack.c.l.bf16 %v5367
      %v5383 = vunpack.c.h.bf16 %v5367
      %v5384 = vsub.f32 %v5344, %v5368
      %v5385 = vsub.f32 %v5345, %v5369
      %v5386 = vsub.f32 %v5346, %v5370
      %v5387 = vsub.f32 %v5347, %v5371
      %v5388 = vsub.f32 %v5348, %v5372
      %v5389 = vsub.f32 %v5349, %v5373
      %v5390 = vsub.f32 %v5350, %v5374
      %v5391 = vsub.f32 %v5351, %v5375
      %v5392 = vsub.f32 %v5352, %v5376
      %v5393 = vsub.f32 %v5353, %v5377
      %v5394 = vsub.f32 %v5354, %v5378
      %v5395 = vsub.f32 %v5355, %v5379
      %v5396 = vsub.f32 %v5356, %v5380
      %v5397 = vsub.f32 %v5357, %v5381
      %v5398 = vsub.f32 %v5358, %v5382
      %v5399 = vsub.f32 %v5359, %v5383
      %v5400 = vpack.c.bf16 %v5385, %v5384
      %v5401 = vpack.c.bf16 %v5387, %v5386
      %v5402 = vpack.c.bf16 %v5389, %v5388
      %v5403 = vpack.c.bf16 %v5391, %v5390
      %v5404 = vpack.c.bf16 %v5393, %v5392
      %v5405 = vpack.c.bf16 %v5395, %v5394
      %v5406 = vpack.c.bf16 %v5397, %v5396
      %v5407 = vpack.c.bf16 %v5399, %v5398
      %5408 = vmatprep.subr.bf16.mxu0 0
      %5409 = vmatpush1.bf16.xpose.msra.mxu0 %v5407
      %5410 = vmatprep.subr.bf16.mxu0 0
      %5411 = vmatpush1.bf16.xpose.msra.mxu0 %v5406
      %5412 = vmatprep.subr.bf16.mxu0 0
      %5413 = vmatpush1.bf16.xpose.msra.mxu0 %v5405
      %5414 = vmatprep.subr.bf16.mxu0 0
      %5415 = vmatpush1.bf16.xpose.msra.mxu0 %v5404
      %5416 = vmatprep.subr.bf16.mxu0 0
      %5417 = vmatpush1.bf16.xpose.msra.mxu0 %v5403
      %5418 = vmatprep.subr.bf16.mxu0 0
      %5419 = vmatpush1.bf16.xpose.msra.mxu0 %v5402
      %5420 = vmatprep.subr.bf16.mxu0 0
      %5421 = vmatpush1.bf16.xpose.msra.mxu0 %v5401
      %5422 = vmatprep.subr.bf16.mxu0 0
      %5423 = vmatpush1.bf16.xpose.msra.mxu0 %v5400
      %5424 = vmatprep.subr.bf16.mxu0 0
      %5425 = vmatpush2.bf16.xpose.msra.mxu0 0
      %5426 = vmatprep.subr.bf16.mxu0 0
      %5427 = vmatpush2.bf16.xpose.msra.mxu0 0
      %5428 = vmatprep.subr.bf16.mxu0 0
      %5429 = vmatpush2.bf16.xpose.msra.mxu0 0
      %5430 = vmatprep.subr.bf16.mxu0 0
      %5431 = vmatpush2.bf16.xpose.msra.mxu0 0
      %5432 = vmatprep.subr.bf16.mxu0 0
      %5433 = vmatpush2.bf16.xpose.msra.mxu0 0
      %5434 = vmatprep.subr.bf16.mxu0 0
      %5435 = vmatpush2.bf16.xpose.msra.mxu0 0
      %5436 = vmatprep.subr.bf16.mxu0 0
      %5437 = vmatpush2.bf16.xpose.msra.mxu0 0
      %5438 = vmatprep.subr.bf16.mxu0 0
      %5439 = vmatpush2.bf16.xpose.msra.mxu0 0
      %5440 = vmatprep.mubr.bf16.mxu0 0
      %5441 = vmatmul.mubr.bf16.gmra.mxu0 %v685
      %v5442 = vpop.f32.mrf.mxu0
      %v5443 = vadd.f32 0.0, %v5442
      %v5444 = vpop.f32.mrf.mxu0
      %v5445 = vpop.f32.mrf.mxu0
      %v5446 = vadd.f32 0.0, %v5445
      %v5447 = vpop.f32.mrf.mxu0
      %5448 = vmatprep.mubr.bf16.mxu0 0
      %5449 = vmatmul.mubr.bf16.gmra.mxu0 %v686
      %v5450 = vpop.f32.mrf.mxu0
      %v5451 = vadd.f32 0.0, %v5450
      %v5452 = vpop.f32.mrf.mxu0
      %v5453 = vpop.f32.mrf.mxu0
      %v5454 = vadd.f32 0.0, %v5453
      %v5455 = vpop.f32.mrf.mxu0
      %5456 = vmatprep.mubr.bf16.mxu0 0
      %5457 = vmatmul.mubr.bf16.gmra.mxu0 %v687
      %v5458 = vpop.f32.mrf.mxu0
      %v5459 = vadd.f32 0.0, %v5458
      %v5460 = vpop.f32.mrf.mxu0
      %v5461 = vpop.f32.mrf.mxu0
      %v5462 = vadd.f32 0.0, %v5461
      %v5463 = vpop.f32.mrf.mxu0
      %5464 = vmatprep.mubr.bf16.mxu0 0
      %5465 = vmatmul.mubr.bf16.gmra.mxu0 %v688
      %v5466 = vpop.f32.mrf.mxu0
      %v5467 = vadd.f32 0.0, %v5466
      %v5468 = vpop.f32.mrf.mxu0
      %v5469 = vpop.f32.mrf.mxu0
      %v5470 = vadd.f32 0.0, %v5469
      %v5471 = vpop.f32.mrf.mxu0
      %5472 = vmatprep.mubr.bf16.mxu0 0
      %5473 = vmatmul.mubr.bf16.gmra.mxu0 %v689
      %v5474 = vpop.f32.mrf.mxu0
      %v5475 = vadd.f32 0.0, %v5474
      %v5476 = vpop.f32.mrf.mxu0
      %v5477 = vpop.f32.mrf.mxu0
      %v5478 = vadd.f32 0.0, %v5477
      %v5479 = vpop.f32.mrf.mxu0
      %5480 = vmatprep.mubr.bf16.mxu0 0
      %5481 = vmatmul.mubr.bf16.gmra.mxu0 %v690
      %v5482 = vpop.f32.mrf.mxu0
      %v5483 = vadd.f32 0.0, %v5482
      %v5484 = vpop.f32.mrf.mxu0
      %v5485 = vpop.f32.mrf.mxu0
      %v5486 = vadd.f32 0.0, %v5485
      %v5487 = vpop.f32.mrf.mxu0
      %5488 = vmatprep.mubr.bf16.mxu0 0
      %5489 = vmatmul.mubr.bf16.gmra.mxu0 %v691
      %v5490 = vpop.f32.mrf.mxu0
      %v5491 = vadd.f32 0.0, %v5490
      %v5492 = vpop.f32.mrf.mxu0
      %v5493 = vpop.f32.mrf.mxu0
      %v5494 = vadd.f32 0.0, %v5493
      %v5495 = vpop.f32.mrf.mxu0
      %5496 = vmatprep.mubr.bf16.mxu0 0
      %5497 = vmatmul.mubr.bf16.gmra.mxu0 %v692
      %v5498 = vpop.f32.mrf.mxu0
      %v5499 = vadd.f32 0.0, %v5498
      %v5500 = vpop.f32.mrf.mxu0
      %v5501 = vpop.f32.mrf.mxu0
      %v5502 = vadd.f32 0.0, %v5501
      %v5503 = vpop.f32.mrf.mxu0
      %5504 = vdwg.mxu0
      %5505 = vmatprep.subr.bf16.mxu0 0
      %5506 = vmatpush1.bf16.xpose.msra.mxu0 %v5367
      %5507 = vmatprep.subr.bf16.mxu0 0
      %5508 = vmatpush1.bf16.xpose.msra.mxu0 %v5366
      %5509 = vmatprep.subr.bf16.mxu0 0
      %5510 = vmatpush1.bf16.xpose.msra.mxu0 %v5365
      %5511 = vmatprep.subr.bf16.mxu0 0
      %5512 = vmatpush1.bf16.xpose.msra.mxu0 %v5364
      %5513 = vmatprep.subr.bf16.mxu0 0
      %5514 = vmatpush1.bf16.xpose.msra.mxu0 %v5363
      %5515 = vmatprep.subr.bf16.mxu0 0
      %5516 = vmatpush1.bf16.xpose.msra.mxu0 %v5362
      %5517 = vmatprep.subr.bf16.mxu0 0
      %5518 = vmatpush1.bf16.xpose.msra.mxu0 %v5361
      %5519 = vmatprep.subr.bf16.mxu0 0
      %5520 = vmatpush1.bf16.xpose.msra.mxu0 %v5360
      %5521 = vmatprep.subr.bf16.mxu0 0
      %5522 = vmatpush2.bf16.xpose.msra.mxu0 0
      %5523 = vmatprep.subr.bf16.mxu0 0
      %5524 = vmatpush2.bf16.xpose.msra.mxu0 0
      %5525 = vmatprep.subr.bf16.mxu0 0
      %5526 = vmatpush2.bf16.xpose.msra.mxu0 0
      %5527 = vmatprep.subr.bf16.mxu0 0
      %5528 = vmatpush2.bf16.xpose.msra.mxu0 0
      %5529 = vmatprep.subr.bf16.mxu0 0
      %5530 = vmatpush2.bf16.xpose.msra.mxu0 0
      %5531 = vmatprep.subr.bf16.mxu0 0
      %5532 = vmatpush2.bf16.xpose.msra.mxu0 0
      %5533 = vmatprep.subr.bf16.mxu0 0
      %5534 = vmatpush2.bf16.xpose.msra.mxu0 0
      %5535 = vmatprep.subr.bf16.mxu0 0
      %5536 = vmatpush2.bf16.xpose.msra.mxu0 0
      %5537 = vmatprep.mubr.bf16.mxu0 0
      %5538 = vmatmul.mubr.bf16.gmra.mxu0 %v685
      %v5539 = vpop.f32.mrf.mxu0
      %v5540 = vadd.f32 %v5443, %v5539
      %v5541 = vpop.f32.mrf.mxu0
      %v5542 = vpop.f32.mrf.mxu0
      %v5543 = vadd.f32 %v5446, %v5542
      %v5544 = vpop.f32.mrf.mxu0
      %5545 = vmatprep.mubr.bf16.mxu0 0
      %5546 = vmatmul.mubr.bf16.gmra.mxu0 %v686
      %v5547 = vpop.f32.mrf.mxu0
      %v5548 = vadd.f32 %v5451, %v5547
      %v5549 = vpop.f32.mrf.mxu0
      %v5550 = vpop.f32.mrf.mxu0
      %v5551 = vadd.f32 %v5454, %v5550
      %v5552 = vpop.f32.mrf.mxu0
      %5553 = vmatprep.mubr.bf16.mxu0 0
      %5554 = vmatmul.mubr.bf16.gmra.mxu0 %v687
      %v5555 = vpop.f32.mrf.mxu0
      %v5556 = vadd.f32 %v5459, %v5555
      %v5557 = vpop.f32.mrf.mxu0
      %v5558 = vpop.f32.mrf.mxu0
      %v5559 = vadd.f32 %v5462, %v5558
      %v5560 = vpop.f32.mrf.mxu0
      %5561 = vmatprep.mubr.bf16.mxu0 0
      %5562 = vmatmul.mubr.bf16.gmra.mxu0 %v688
      %v5563 = vpop.f32.mrf.mxu0
      %v5564 = vadd.f32 %v5467, %v5563
      %v5565 = vpop.f32.mrf.mxu0
      %v5566 = vpop.f32.mrf.mxu0
      %v5567 = vadd.f32 %v5470, %v5566
      %v5568 = vpop.f32.mrf.mxu0
      %5569 = vmatprep.mubr.bf16.mxu0 0
      %5570 = vmatmul.mubr.bf16.gmra.mxu0 %v689
      %v5571 = vpop.f32.mrf.mxu0
      %v5572 = vadd.f32 %v5475, %v5571
      %v5573 = vpop.f32.mrf.mxu0
      %v5574 = vpop.f32.mrf.mxu0
      %v5575 = vadd.f32 %v5478, %v5574
      %v5576 = vpop.f32.mrf.mxu0
      %5577 = vmatprep.mubr.bf16.mxu0 0
      %5578 = vmatmul.mubr.bf16.gmra.mxu0 %v690
      %v5579 = vpop.f32.mrf.mxu0
      %v5580 = vadd.f32 %v5483, %v5579
      %v5581 = vpop.f32.mrf.mxu0
      %v5582 = vpop.f32.mrf.mxu0
      %v5583 = vadd.f32 %v5486, %v5582
      %v5584 = vpop.f32.mrf.mxu0
      %5585 = vmatprep.mubr.bf16.mxu0 0
      %5586 = vmatmul.mubr.bf16.gmra.mxu0 %v691
      %v5587 = vpop.f32.mrf.mxu0
      %v5588 = vadd.f32 %v5491, %v5587
      %v5589 = vpop.f32.mrf.mxu0
      %v5590 = vpop.f32.mrf.mxu0
      %v5591 = vadd.f32 %v5494, %v5590
      %v5592 = vpop.f32.mrf.mxu0
      %5593 = vmatprep.mubr.bf16.mxu0 0
      %5594 = vmatmul.mubr.bf16.gmra.mxu0 %v692
      %v5595 = vpop.f32.mrf.mxu0
      %v5596 = vadd.f32 %v5499, %v5595
      %v5597 = vpop.f32.mrf.mxu0
      %v5598 = vpop.f32.mrf.mxu0
      %v5599 = vadd.f32 %v5502, %v5598
      %v5600 = vpop.f32.mrf.mxu0
      %5601 = vdwg.mxu0
      %5602 = vmatprep.subr.bf16.mxu0 0
      %5603 = vmatpush1.bf16.xpose.msra.mxu0 %v5407
      %5604 = vmatprep.subr.bf16.mxu0 0
      %5605 = vmatpush1.bf16.xpose.msra.mxu0 %v5406
      %5606 = vmatprep.subr.bf16.mxu0 0
      %5607 = vmatpush1.bf16.xpose.msra.mxu0 %v5405
      %5608 = vmatprep.subr.bf16.mxu0 0
      %5609 = vmatpush1.bf16.xpose.msra.mxu0 %v5404
      %5610 = vmatprep.subr.bf16.mxu0 0
      %5611 = vmatpush1.bf16.xpose.msra.mxu0 %v5403
      %5612 = vmatprep.subr.bf16.mxu0 0
      %5613 = vmatpush1.bf16.xpose.msra.mxu0 %v5402
      %5614 = vmatprep.subr.bf16.mxu0 0
      %5615 = vmatpush1.bf16.xpose.msra.mxu0 %v5401
      %5616 = vmatprep.subr.bf16.mxu0 0
      %5617 = vmatpush1.bf16.xpose.msra.mxu0 %v5400
      %5618 = vmatprep.subr.bf16.mxu0 0
      %5619 = vmatpush2.bf16.xpose.msra.mxu0 0
      %5620 = vmatprep.subr.bf16.mxu0 0
      %5621 = vmatpush2.bf16.xpose.msra.mxu0 0
      %5622 = vmatprep.subr.bf16.mxu0 0
      %5623 = vmatpush2.bf16.xpose.msra.mxu0 0
      %5624 = vmatprep.subr.bf16.mxu0 0
      %5625 = vmatpush2.bf16.xpose.msra.mxu0 0
      %5626 = vmatprep.subr.bf16.mxu0 0
      %5627 = vmatpush2.bf16.xpose.msra.mxu0 0
      %5628 = vmatprep.subr.bf16.mxu0 0
      %5629 = vmatpush2.bf16.xpose.msra.mxu0 0
      %5630 = vmatprep.subr.bf16.mxu0 0
      %5631 = vmatpush2.bf16.xpose.msra.mxu0 0
      %5632 = vmatprep.subr.bf16.mxu0 0
      %5633 = vmatpush2.bf16.xpose.msra.mxu0 0
      %5634 = vmatprep.mubr.bf16.mxu0 0
      %5635 = vmatmul.mubr.bf16.gmra.mxu0 %v903
      %v5636 = vpop.f32.mrf.mxu0
      %v5637 = vadd.f32 0.0, %v5636
      %v5638 = vpop.f32.mrf.mxu0
      %v5639 = vpop.f32.mrf.mxu0
      %v5640 = vadd.f32 0.0, %v5639
      %v5641 = vpop.f32.mrf.mxu0
      %5642 = vmatprep.mubr.bf16.mxu0 0
      %5643 = vmatmul.mubr.bf16.gmra.mxu0 %v904
      %v5644 = vpop.f32.mrf.mxu0
      %v5645 = vadd.f32 0.0, %v5644
      %v5646 = vpop.f32.mrf.mxu0
      %v5647 = vpop.f32.mrf.mxu0
      %v5648 = vadd.f32 0.0, %v5647
      %v5649 = vpop.f32.mrf.mxu0
      %5650 = vdwg.mxu0
      %5651 = vmatprep.subr.bf16.mxu0 0
      %5652 = vmatpush1.bf16.xpose.msra.mxu0 %v5367
      %5653 = vmatprep.subr.bf16.mxu0 0
      %5654 = vmatpush1.bf16.xpose.msra.mxu0 %v5366
      %5655 = vmatprep.subr.bf16.mxu0 0
      %5656 = vmatpush1.bf16.xpose.msra.mxu0 %v5365
      %5657 = vmatprep.subr.bf16.mxu0 0
      %5658 = vmatpush1.bf16.xpose.msra.mxu0 %v5364
      %5659 = vmatprep.subr.bf16.mxu0 0
      %5660 = vmatpush1.bf16.xpose.msra.mxu0 %v5363
      %5661 = vmatprep.subr.bf16.mxu0 0
      %5662 = vmatpush1.bf16.xpose.msra.mxu0 %v5362
      %5663 = vmatprep.subr.bf16.mxu0 0
      %5664 = vmatpush1.bf16.xpose.msra.mxu0 %v5361
      %5665 = vmatprep.subr.bf16.mxu0 0
      %5666 = vmatpush1.bf16.xpose.msra.mxu0 %v5360
      %5667 = vmatprep.subr.bf16.mxu0 0
      %5668 = vmatpush2.bf16.xpose.msra.mxu0 0
      %5669 = vmatprep.subr.bf16.mxu0 0
      %5670 = vmatpush2.bf16.xpose.msra.mxu0 0
      %5671 = vmatprep.subr.bf16.mxu0 0
      %5672 = vmatpush2.bf16.xpose.msra.mxu0 0
      %5673 = vmatprep.subr.bf16.mxu0 0
      %5674 = vmatpush2.bf16.xpose.msra.mxu0 0
      %5675 = vmatprep.subr.bf16.mxu0 0
      %5676 = vmatpush2.bf16.xpose.msra.mxu0 0
      %5677 = vmatprep.subr.bf16.mxu0 0
      %5678 = vmatpush2.bf16.xpose.msra.mxu0 0
      %5679 = vmatprep.subr.bf16.mxu0 0
      %5680 = vmatpush2.bf16.xpose.msra.mxu0 0
      %5681 = vmatprep.subr.bf16.mxu0 0
      %5682 = vmatpush2.bf16.xpose.msra.mxu0 0
      %5683 = vmatprep.mubr.bf16.mxu0 0
      %5684 = vmatmul.mubr.bf16.gmra.mxu0 %v903
      %v5685 = vpop.f32.mrf.mxu0
      %v5686 = vadd.f32 %v5637, %v5685
      %v5687 = vpop.f32.mrf.mxu0
      %v5688 = vpop.f32.mrf.mxu0
      %v5689 = vadd.f32 %v5640, %v5688
      %v5690 = vpop.f32.mrf.mxu0
      %5691 = vmatprep.mubr.bf16.mxu0 0
      %5692 = vmatmul.mubr.bf16.gmra.mxu0 %v904
      %v5693 = vpop.f32.mrf.mxu0
      %v5694 = vadd.f32 %v5645, %v5693
      %v5695 = vpop.f32.mrf.mxu0
      %v5696 = vpop.f32.mrf.mxu0
      %v5697 = vadd.f32 %v5648, %v5696
      %v5698 = vpop.f32.mrf.mxu0
      %5699 = vdwg.mxu0
      %v5700 = vadd.f32 %v5540, %v5543
      %v5701 = vadd.f32 %v5700, %v5548
      %v5702 = vadd.f32 %v5701, %v5551
      %v5703 = vadd.f32 %v5702, %v5556
      %v5704 = vadd.f32 %v5703, %v5559
      %v5705 = vadd.f32 %v5704, %v5564
      %v5706 = vadd.f32 %v5705, %v5567
      %v5707 = vadd.f32 %v5706, %v5572
      %v5708 = vadd.f32 %v5707, %v5575
      %v5709 = vadd.f32 %v5708, %v5580
      %v5710 = vadd.f32 %v5709, %v5583
      %v5711 = vadd.f32 %v5710, %v5588
      %v5712 = vadd.f32 %v5711, %v5591
      %v5713 = vadd.f32 %v5712, %v5596
      %v5714 = vadd.f32 %v5713, %v5599
      %v5715 = vrot.slane %v5714, 4
      %v5716 = vadd.f32 %v5714, %v5715
      %v5717 = vrot.slane %v5716, 2
      %v5718 = vadd.f32 %v5716, %v5717
      %v5719 = vrot.slane %v5718, 1
      %v5720 = vadd.f32 %v5718, %v5719
      %v5721 = vmul.f32 %v5720, 0.020408163
      %v5722 = vsub.f32 %v5540, %v5721
      %v5723 = vsub.f32 %v5543, %v5721
      %v5724 = vsub.f32 %v5548, %v5721
      %v5725 = vsub.f32 %v5551, %v5721
      %v5726 = vsub.f32 %v5556, %v5721
      %v5727 = vsub.f32 %v5559, %v5721
      %v5728 = vsub.f32 %v5564, %v5721
      %v5729 = vsub.f32 %v5567, %v5721
      %v5730 = vsub.f32 %v5572, %v5721
      %v5731 = vsub.f32 %v5575, %v5721
      %v5732 = vsub.f32 %v5580, %v5721
      %v5733 = vsub.f32 %v5583, %v5721
      %v5734 = vsub.f32 %v5588, %v5721
      %v5735 = vsub.f32 %v5591, %v5721
      %v5736 = vsub.f32 %v5596, %v5721
      %v5737 = vsub.f32 %v5599, %v5721
      %v5738 = vmul.f32 %v5722, %v1046
      %v5739 = vmul.f32 %v5723, %v1051
      %v5740 = vmul.f32 %v5724, %v1056
      %v5741 = vmul.f32 %v5725, %v1061
      %v5742 = vmul.f32 %v5726, %v1066
      %v5743 = vmul.f32 %v5727, %v1071
      %v5744 = vmul.f32 %v5728, %v1076
      %v5745 = vmul.f32 %v5729, %v1081
      %v5746 = vmul.f32 %v5730, %v1086
      %v5747 = vmul.f32 %v5731, %v1091
      %v5748 = vmul.f32 %v5732, %v1096
      %v5749 = vmul.f32 %v5733, %v1101
      %v5750 = vmul.f32 %v5734, %v1106
      %v5751 = vmul.f32 %v5735, %v1111
      %v5752 = vmul.f32 %v5736, %v1116
      %v5753 = vmul.f32 %v5737, %v1121
      %v5754 = vmul.f32 %v5738, %v5738
      %v5755 = vmul.f32 %v5739, %v5739
      %v5756 = vmul.f32 %v5740, %v5740
      %v5757 = vmul.f32 %v5741, %v5741
      %v5758 = vmul.f32 %v5742, %v5742
      %v5759 = vmul.f32 %v5743, %v5743
      %v5760 = vmul.f32 %v5744, %v5744
      %v5761 = vmul.f32 %v5745, %v5745
      %v5762 = vmul.f32 %v5746, %v5746
      %v5763 = vmul.f32 %v5747, %v5747
      %v5764 = vmul.f32 %v5748, %v5748
      %v5765 = vmul.f32 %v5749, %v5749
      %v5766 = vmul.f32 %v5750, %v5750
      %v5767 = vmul.f32 %v5751, %v5751
      %v5768 = vmul.f32 %v5752, %v5752
      %v5769 = vmul.f32 %v5753, %v5753
      %v5770 = vadd.f32 %v5754, %v5755
      %v5771 = vadd.f32 %v5770, %v5756
      %v5772 = vadd.f32 %v5771, %v5757
      %v5773 = vadd.f32 %v5772, %v5758
      %v5774 = vadd.f32 %v5773, %v5759
      %v5775 = vadd.f32 %v5774, %v5760
      %v5776 = vadd.f32 %v5775, %v5761
      %v5777 = vadd.f32 %v5776, %v5762
      %v5778 = vadd.f32 %v5777, %v5763
      %v5779 = vadd.f32 %v5778, %v5764
      %v5780 = vadd.f32 %v5779, %v5765
      %v5781 = vadd.f32 %v5780, %v5766
      %v5782 = vadd.f32 %v5781, %v5767
      %v5783 = vadd.f32 %v5782, %v5768
      %v5784 = vadd.f32 %v5783, %v5769
      %v5785 = vrot.slane %v5784, 4
      %v5786 = vadd.f32 %v5784, %v5785
      %v5787 = vrot.slane %v5786, 2
      %v5788 = vadd.f32 %v5786, %v5787
      %v5789 = vrot.slane %v5788, 1
      %v5790 = vadd.f32 %v5788, %v5789
      %v5791 = vmul.f32 %v5790, 0.020408163
      %v5792 = vadd.f32 %v5791, 1e-05
      %v5793 = vrsqrt.pop %v5792
      %v5794 = vmul.f32 %v5260, %v5793
      %v5795 = vmul.f32 %v5721, %v5794
      %v5796 = vsub.f32 %v5261, %v5795
      %v5798 = vlaneseq
      %v5799 = vshrl.u32 %v5798, 7
      %v5800 = vsub.s32 0, %v5799
      %v5801 = vrot.slane %v5794, %v5800
      %v5803 = vmul.f32 %v5540, %v5801
      %v5804 = vmul.f32 %v5543, %v5801
      %v5805 = vmul.f32 %v5548, %v5801
      %v5806 = vmul.f32 %v5551, %v5801
      %v5807 = vmul.f32 %v5556, %v5801
      %v5808 = vmul.f32 %v5559, %v5801
      %v5809 = vmul.f32 %v5564, %v5801
      %v5810 = vmul.f32 %v5567, %v5801
      %v5811 = vmul.f32 %v5572, %v5801
      %v5812 = vmul.f32 %v5575, %v5801
      %v5813 = vmul.f32 %v5580, %v5801
      %v5814 = vmul.f32 %v5583, %v5801
      %v5815 = vmul.f32 %v5588, %v5801
      %v5816 = vmul.f32 %v5591, %v5801
      %v5817 = vmul.f32 %v5596, %v5801
      %v5818 = vmul.f32 %v5599, %v5801
      %v5820 = vlaneseq
      %v5821 = vshrl.u32 %v5820, 7
      %v5822 = vsub.s32 0, %v5821
      %v5823 = vrot.slane %v5796, %v5822
      %v5825 = vadd.f32 %v5803, %v5823
      %v5826 = vadd.f32 %v5804, %v5823
      %v5827 = vadd.f32 %v5805, %v5823
      %v5828 = vadd.f32 %v5806, %v5823
      %v5829 = vadd.f32 %v5807, %v5823
      %v5830 = vadd.f32 %v5808, %v5823
      %v5831 = vadd.f32 %v5809, %v5823
      %v5832 = vadd.f32 %v5810, %v5823
      %v5833 = vadd.f32 %v5811, %v5823
      %v5834 = vadd.f32 %v5812, %v5823
      %v5835 = vadd.f32 %v5813, %v5823
      %v5836 = vadd.f32 %v5814, %v5823
      %v5837 = vadd.f32 %v5815, %v5823
      %v5838 = vadd.f32 %v5816, %v5823
      %v5839 = vadd.f32 %v5817, %v5823
      %v5840 = vadd.f32 %v5818, %v5823
      %v5841 = vmax.f32 %v5825, 0.0
      %v5842 = vmax.f32 %v5826, 0.0
      %v5843 = vmax.f32 %v5827, 0.0
      %v5844 = vmax.f32 %v5828, 0.0
      %v5845 = vmax.f32 %v5829, 0.0
      %v5846 = vmax.f32 %v5830, 0.0
      %v5847 = vmax.f32 %v5831, 0.0
      %v5848 = vmax.f32 %v5832, 0.0
      %v5849 = vmax.f32 %v5833, 0.0
      %v5850 = vmax.f32 %v5834, 0.0
      %v5851 = vmax.f32 %v5835, 0.0
      %v5852 = vmax.f32 %v5836, 0.0
      %v5853 = vmax.f32 %v5837, 0.0
      %v5854 = vmax.f32 %v5838, 0.0
      %v5855 = vmax.f32 %v5839, 0.0
      %v5856 = vmax.f32 %v5840, 0.0
      %v5857 = vmul.f32 %v5841, %v1046
      %v5858 = vmul.f32 %v5842, %v1051
      %v5859 = vmul.f32 %v5843, %v1056
      %v5860 = vmul.f32 %v5844, %v1061
      %v5861 = vmul.f32 %v5845, %v1066
      %v5862 = vmul.f32 %v5846, %v1071
      %v5863 = vmul.f32 %v5847, %v1076
      %v5864 = vmul.f32 %v5848, %v1081
      %v5865 = vmul.f32 %v5849, %v1086
      %v5866 = vmul.f32 %v5850, %v1091
      %v5867 = vmul.f32 %v5851, %v1096
      %v5868 = vmul.f32 %v5852, %v1101
      %v5869 = vmul.f32 %v5853, %v1106
      %v5870 = vmul.f32 %v5854, %v1111
      %v5871 = vmul.f32 %v5855, %v1116
      %v5872 = vmul.f32 %v5856, %v1121
      %v5873 = vlaneseq
      %v5874 = vshrl.u32 %v5873, 7
      %v5875 = vsub.s32 0, %v5874
      %v5876 = vrot.slane %v5686, %v5875
      %v5877 = vmul.f32 %v5857, %v5876
      %v5878 = vlaneseq
      %v5879 = vshrl.u32 %v5878, 7
      %v5880 = vsub.s32 1, %v5879
      %v5881 = vrot.slane %v5686, %v5880
      %v5882 = vmul.f32 %v5857, %v5881
      %v5884 = vrot.slane %v5882, 1
      %v5886 = vadd.f32 %v5877, %v5884
      %v5887 = vlaneseq
      %v5888 = vshrl.u32 %v5887, 7
      %v5889 = vsub.s32 2, %v5888
      %v5890 = vrot.slane %v5686, %v5889
      %v5891 = vmul.f32 %v5857, %v5890
      %v5892 = vmul.f32 %v5858, %v5890
      %v5895 = vrot.slane %v5891, 2
      %v5896 = vrot.slane %v5892, 2
      %v5897 = vsel %vm1280, %v5895, %v5896
      %v5899 = vadd.f32 %v5886, %v5897
      %v5900 = vlaneseq
      %v5901 = vshrl.u32 %v5900, 7
      %v5902 = vsub.s32 3, %v5901
      %v5903 = vrot.slane %v5686, %v5902
      %v5904 = vmul.f32 %v5857, %v5903
      %v5905 = vmul.f32 %v5858, %v5903
      %v5908 = vrot.slane %v5904, 3
      %v5909 = vrot.slane %v5905, 3
      %v5910 = vsel %vm1294, %v5908, %v5909
      %v5912 = vadd.f32 %v5899, %v5910
      %v5913 = vlaneseq
      %v5914 = vshrl.u32 %v5913, 7
      %v5915 = vsub.s32 4, %v5914
      %v5916 = vrot.slane %v5686, %v5915
      %v5917 = vmul.f32 %v5857, %v5916
      %v5918 = vmul.f32 %v5858, %v5916
      %v5921 = vrot.slane %v5917, 4
      %v5922 = vrot.slane %v5918, 4
      %v5923 = vsel %vm1308, %v5921, %v5922
      %v5925 = vadd.f32 %v5912, %v5923
      %v5926 = vmul.f32 %v5858, %v5876
      %v5927 = vmul.f32 %v5859, %v5876
      %v5928 = vlaneseq
      %v5929 = vshrl.u32 %v5928, 7
      %v5930 = vsub.s32 5, %v5929
      %v5931 = vrot.slane %v5686, %v5930
      %v5932 = vmul.f32 %v5858, %v5931
      %v5933 = vmul.f32 %v5859, %v5931
      %v5936 = vrot.slane %v5932, 3
      %v5937 = vrot.slane %v5933, 3
      %v5938 = vsel %vm1294, %v5936, %v5937
      %v5940 = vadd.f32 %v5925, %v5938
      %v5941 = vmul.f32 %v5858, %v5881
      %v5942 = vmul.f32 %v5859, %v5881
      %v5945 = vrot.slane %v5941, 1
      %v5946 = vrot.slane %v5942, 1
      %v5947 = vsel %vm1333, %v5945, %v5946
      %v5950 = vadd.f32 %v5926, %v5947
      %v5951 = vadd.f32 %v5927, %v5946
      %v5952 = vlaneseq
      %v5953 = vshrl.u32 %v5952, 7
      %v5954 = vsub.s32 6, %v5953
      %v5955 = vrot.slane %v5686, %v5954
      %v5956 = vmul.f32 %v5858, %v5955
      %v5957 = vmul.f32 %v5859, %v5955
      %v5960 = vrot.slane %v5956, 4
      %v5961 = vrot.slane %v5957, 4
      %v5962 = vsel %vm1308, %v5960, %v5961
      %v5964 = vadd.f32 %v5940, %v5962
      %v5965 = vmul.f32 %v5859, %v5890
      %v5967 = vrot.slane %v5965, 2
      %v5968 = vsel %vm1280, %v5896, %v5967
      %v5971 = vadd.f32 %v5950, %v5968
      %v5972 = vadd.f32 %v5951, %v5967
      %v5973 = vlaneseq
      %v5974 = vshrl.u32 %v5973, 7
      %v5975 = vsub.s32 7, %v5974
      %v5976 = vrot.slane %v5686, %v5975
      %v5977 = vmul.f32 %v5858, %v5976
      %v5978 = vmul.f32 %v5859, %v5976
      %v5981 = vrot.slane %v5977, 5
      %v5982 = vrot.slane %v5978, 5
      %v5983 = vsel %vm1370, %v5981, %v5982
      %v5985 = vadd.f32 %v5964, %v5983
      %v5986 = vmul.f32 %v5859, %v5903
      %v5988 = vrot.slane %v5986, 3
      %v5989 = vsel %vm1294, %v5909, %v5988
      %v5992 = vadd.f32 %v5971, %v5989
      %v5993 = vadd.f32 %v5972, %v5988
      %v5994 = vlaneseq
      %v5995 = vshrl.u32 %v5994, 7
      %v5996 = vsub.s32 0, %v5995
      %v5997 = vrot.slane %v5689, %v5996
      %v5998 = vmul.f32 %v5858, %v5997
      %v5999 = vmul.f32 %v5859, %v5997
      %v6002 = vrot.slane %v5998, 6
      %v6003 = vrot.slane %v5999, 6
      %v6004 = vsel %vm1392, %v6002, %v6003
      %v6006 = vadd.f32 %v5985, %v6004
      %v6007 = vmul.f32 %v5859, %v5916
      %v6009 = vrot.slane %v6007, 4
      %v6010 = vsel %vm1308, %v5922, %v6009
      %v6013 = vadd.f32 %v5992, %v6010
      %v6014 = vadd.f32 %v5993, %v6009
      %v6015 = vlaneseq
      %v6016 = vshrl.u32 %v6015, 7
      %v6017 = vsub.s32 1, %v6016
      %v6018 = vrot.slane %v5689, %v6017
      %v6019 = vmul.f32 %v5858, %v6018
      %v6020 = vmul.f32 %v5859, %v6018
      %v6023 = vrot.slane %v6019, 7
      %v6024 = vrot.slane %v6020, 7
      %v6025 = vsel %vm1414, %v6023, %v6024
      %v6027 = vadd.f32 %v6006, %v6025
      %v6028 = vmul.f32 %v5860, %v5876
      %v6029 = vmul.f32 %v5860, %v5931
      %v6031 = vrot.slane %v6029, 3
      %v6032 = vsel %vm1294, %v5937, %v6031
      %v6035 = vadd.f32 %v6013, %v6032
      %v6036 = vadd.f32 %v6014, %v6031
      %v6037 = vlaneseq
      %v6038 = vshrl.u32 %v6037, 7
      %v6039 = vsub.s32 2, %v6038
      %v6040 = vrot.slane %v5689, %v6039
      %v6041 = vmul.f32 %v5859, %v6040
      %v6042 = vmul.f32 %v5860, %v6040
      %v6045 = vrot.slane %v6041, 6
      %v6046 = vrot.slane %v6042, 6
      %v6047 = vsel %vm1392, %v6045, %v6046
      %v6049 = vadd.f32 %v6027, %v6047
      %v6050 = vmul.f32 %v5860, %v5881
      %v6052 = vrot.slane %v6050, 1
      %v6053 = vsel %vm1333, %v5946, %v6052
      %v6056 = vadd.f32 %v5927, %v6053
      %v6057 = vadd.f32 %v6028, %v6052
      %v6058 = vmul.f32 %v5860, %v5955
      %v6060 = vrot.slane %v6058, 4
      %v6061 = vsel %vm1308, %v5961, %v6060
      %v6064 = vadd.f32 %v6035, %v6061
      %v6065 = vadd.f32 %v6036, %v6060
      %v6066 = vlaneseq
      %v6067 = vshrl.u32 %v6066, 7
      %v6068 = vsub.s32 3, %v6067
      %v6069 = vrot.slane %v5689, %v6068
      %v6070 = vmul.f32 %v5859, %v6069
      %v6071 = vmul.f32 %v5860, %v6069
      %v6074 = vrot.slane %v6070, 7
      %v6075 = vrot.slane %v6071, 7
      %v6076 = vsel %vm1414, %v6074, %v6075
      %v6078 = vadd.f32 %v6049, %v6076
      %v6079 = vmul.f32 %v5860, %v5890
      %v6081 = vrot.slane %v6079, 2
      %v6083 = vadd.f32 %v6056, %v6081
      %v6084 = vadd.f32 %v6057, %v6081
      %v6085 = vmul.f32 %v5860, %v5976
      %v6087 = vrot.slane %v6085, 5
      %v6089 = vadd.f32 %v6064, %v6087
      %v6090 = vadd.f32 %v6065, %v6087
      %v6091 = vlaneseq
      %v6092 = vshrl.u32 %v6091, 7
      %v6093 = vsub.s32 4, %v6092
      %v6094 = vrot.slane %v5689, %v6093
      %v6095 = vmul.f32 %v5860, %v6094
      %v6096 = vadd.f32 %v6078, %v6095
      %v6097 = vmul.f32 %v5860, %v5903
      %v6099 = vrot.slane %v6097, 3
      %v6101 = vadd.f32 %v6083, %v6099
      %v6102 = vadd.f32 %v6084, %v6099
      %v6103 = vmul.f32 %v5860, %v5997
      %v6105 = vrot.slane %v6103, 6
      %v6107 = vadd.f32 %v6089, %v6105
      %v6108 = vadd.f32 %v6090, %v6105
      %v6109 = vlaneseq
      %v6110 = vshrl.u32 %v6109, 7
      %v6111 = vsub.s32 5, %v6110
      %v6112 = vrot.slane %v5689, %v6111
      %v6113 = vmul.f32 %v5860, %v6112
      %v6115 = vrot.slane %v6113, 1
      %v6117 = vadd.f32 %v6096, %v6115
      %v6118 = vmul.f32 %v5860, %v5916
      %v6119 = vmul.f32 %v5861, %v5916
      %v6122 = vrot.slane %v6118, 4
      %v6123 = vrot.slane %v6119, 4
      %v6124 = vsel %vm1308, %v6122, %v6123
      %v6127 = vadd.f32 %v6101, %v6122
      %v6128 = vadd.f32 %v6102, %v6124
      %v6129 = vmul.f32 %v5860, %v6018
      %v6130 = vmul.f32 %v5861, %v6018
      %v6133 = vrot.slane %v6129, 7
      %v6134 = vrot.slane %v6130, 7
      %v6135 = vsel %vm1414, %v6133, %v6134
      %v6138 = vadd.f32 %v6107, %v6133
      %v6139 = vadd.f32 %v6108, %v6135
      %v6140 = vlaneseq
      %v6141 = vshrl.u32 %v6140, 7
      %v6142 = vsub.s32 6, %v6141
      %v6143 = vrot.slane %v5689, %v6142
      %v6144 = vmul.f32 %v5860, %v6143
      %v6145 = vmul.f32 %v5861, %v6143
      %v6148 = vrot.slane %v6144, 2
      %v6149 = vrot.slane %v6145, 2
      %v6150 = vsel %vm1280, %v6148, %v6149
      %v6152 = vadd.f32 %v6117, %v6150
      %v6153 = vmul.f32 %v5861, %v5876
      %v6154 = vmul.f32 %v5861, %v5931
      %v6156 = vrot.slane %v6154, 3
      %v6158 = vadd.f32 %v6127, %v6156
      %v6159 = vadd.f32 %v6128, %v6156
      %v6160 = vmul.f32 %v5861, %v6040
      %v6162 = vrot.slane %v6160, 6
      %v6164 = vadd.f32 %v6138, %v6162
      %v6165 = vadd.f32 %v6139, %v6162
      %v6166 = vlaneseq
      %v6167 = vshrl.u32 %v6166, 7
      %v6168 = vsub.s32 7, %v6167
      %v6169 = vrot.slane %v5689, %v6168
      %v6170 = vmul.f32 %v5861, %v6169
      %v6172 = vrot.slane %v6170, 1
      %v6174 = vadd.f32 %v6152, %v6172
      %v6175 = vmul.f32 %v5861, %v5881
      %v6176 = vmul.f32 %v5862, %v5881
      %v6179 = vrot.slane %v6175, 1
      %v6180 = vrot.slane %v6176, 1
      %v6181 = vsel %vm1333, %v6179, %v6180
      %v6183 = vadd.f32 %v6153, %v6181
      %v6184 = vmul.f32 %v5861, %v5955
      %v6185 = vmul.f32 %v5862, %v5955
      %v6188 = vrot.slane %v6184, 4
      %v6189 = vrot.slane %v6185, 4
      %v6190 = vsel %vm1308, %v6188, %v6189
      %v6193 = vadd.f32 %v6158, %v6188
      %v6194 = vadd.f32 %v6159, %v6190
      %v6195 = vmul.f32 %v5861, %v6069
      %v6196 = vmul.f32 %v5862, %v6069
      %v6199 = vrot.slane %v6195, 7
      %v6200 = vrot.slane %v6196, 7
      %v6201 = vsel %vm1414, %v6199, %v6200
      %v6204 = vadd.f32 %v6164, %v6199
      %v6205 = vadd.f32 %v6165, %v6201
      %v6206 = vlaneseq
      %v6207 = vshrl.u32 %v6206, 7
      %v6208 = vsub.s32 0, %v6207
      %v6209 = vrot.slane %v5694, %v6208
      %v6210 = vmul.f32 %v5861, %v6209
      %v6211 = vmul.f32 %v5862, %v6209
      %v6214 = vrot.slane %v6210, 2
      %v6215 = vrot.slane %v6211, 2
      %v6216 = vsel %vm1280, %v6214, %v6215
      %v6218 = vadd.f32 %v6174, %v6216
      %v6219 = vmul.f32 %v5861, %v5890
      %v6220 = vmul.f32 %v5862, %v5890
      %v6223 = vrot.slane %v6219, 2
      %v6224 = vrot.slane %v6220, 2
      %v6225 = vsel %vm1280, %v6223, %v6224
      %v6227 = vadd.f32 %v6183, %v6225
      %v6228 = vmul.f32 %v5861, %v5976
      %v6229 = vmul.f32 %v5862, %v5976
      %v6232 = vrot.slane %v6228, 5
      %v6233 = vrot.slane %v6229, 5
      %v6234 = vsel %vm1370, %v6232, %v6233
      %v6237 = vadd.f32 %v6193, %v6232
      %v6238 = vadd.f32 %v6194, %v6234
      %v6239 = vmul.f32 %v5861, %v6094
      %v6240 = vmul.f32 %v5862, %v6094
      %v6241 = vadd.f32 %v6204, %v6239
      %v6242 = vadd.f32 %v6205, %v6240
      %v6243 = vlaneseq
      %v6244 = vshrl.u32 %v6243, 7
      %v6245 = vsub.s32 1, %v6244
      %v6246 = vrot.slane %v5694, %v6245
      %v6247 = vmul.f32 %v5861, %v6246
      %v6248 = vmul.f32 %v5862, %v6246
      %v6251 = vrot.slane %v6247, 3
      %v6252 = vrot.slane %v6248, 3
      %v6253 = vsel %vm1294, %v6251, %v6252
      %v6255 = vadd.f32 %v6218, %v6253
      %v6256 = vmul.f32 %v5861, %v5903
      %v6257 = vmul.f32 %v5862, %v5903
      %v6260 = vrot.slane %v6256, 3
      %v6261 = vrot.slane %v6257, 3
      %v6262 = vsel %vm1294, %v6260, %v6261
      %v6264 = vadd.f32 %v6227, %v6262
      %v6265 = vmul.f32 %v5861, %v5997
      %v6266 = vmul.f32 %v5862, %v5997
      %v6269 = vrot.slane %v6265, 6
      %v6270 = vrot.slane %v6266, 6
      %v6271 = vsel %vm1392, %v6269, %v6270
      %v6274 = vadd.f32 %v6237, %v6269
      %v6275 = vadd.f32 %v6238, %v6271
      %v6276 = vmul.f32 %v5861, %v6112
      %v6277 = vmul.f32 %v5862, %v6112
      %v6280 = vrot.slane %v6276, 1
      %v6281 = vrot.slane %v6277, 1
      %v6282 = vsel %vm1333, %v6280, %v6281
      %v6285 = vadd.f32 %v6241, %v6282
      %v6286 = vadd.f32 %v6242, %v6281
      %v6287 = vlaneseq
      %v6288 = vshrl.u32 %v6287, 7
      %v6289 = vsub.s32 2, %v6288
      %v6290 = vrot.slane %v5694, %v6289
      %v6291 = vmul.f32 %v5861, %v6290
      %v6292 = vmul.f32 %v5862, %v6290
      %v6295 = vrot.slane %v6291, 4
      %v6296 = vrot.slane %v6292, 4
      %v6297 = vsel %vm1308, %v6295, %v6296
      %v6299 = vadd.f32 %v6255, %v6297
      %v6300 = vmul.f32 %v5862, %v5916
      %v6302 = vrot.slane %v6300, 4
      %v6303 = vsel %vm1308, %v6123, %v6302
      %v6305 = vadd.f32 %v6264, %v6303
      %v6306 = vmul.f32 %v5862, %v6018
      %v6308 = vrot.slane %v6306, 7
      %v6309 = vsel %vm1414, %v6134, %v6308
      %v6312 = vadd.f32 %v6274, %v6134
      %v6313 = vadd.f32 %v6275, %v6309
      %v6314 = vmul.f32 %v5862, %v6143
      %v6316 = vrot.slane %v6314, 2
      %v6317 = vsel %vm1280, %v6149, %v6316
      %v6320 = vadd.f32 %v6285, %v6317
      %v6321 = vadd.f32 %v6286, %v6316
      %v6322 = vlaneseq
      %v6323 = vshrl.u32 %v6322, 7
      %v6324 = vsub.s32 3, %v6323
      %v6325 = vrot.slane %v5694, %v6324
      %v6326 = vmul.f32 %v5861, %v6325
      %v6327 = vmul.f32 %v5862, %v6325
      %v6330 = vrot.slane %v6326, 5
      %v6331 = vrot.slane %v6327, 5
      %v6332 = vsel %vm1370, %v6330, %v6331
      %v6334 = vadd.f32 %v6299, %v6332
      %v6335 = vmul.f32 %v5862, %v5876
      %v6336 = vmul.f32 %v5863, %v5876
      %v6337 = vmul.f32 %v5862, %v5931
      %v6338 = vmul.f32 %v5863, %v5931
      %v6341 = vrot.slane %v6337, 3
      %v6342 = vrot.slane %v6338, 3
      %v6343 = vsel %vm1294, %v6341, %v6342
      %v6345 = vadd.f32 %v6305, %v6343
      %v6346 = vmul.f32 %v5862, %v6040
      %v6347 = vmul.f32 %v5863, %v6040
      %v6350 = vrot.slane %v6346, 6
      %v6351 = vrot.slane %v6347, 6
      %v6352 = vsel %vm1392, %v6350, %v6351
      %v6355 = vadd.f32 %v6312, %v6350
      %v6356 = vadd.f32 %v6313, %v6352
      %v6357 = vmul.f32 %v5862, %v6169
      %v6358 = vmul.f32 %v5863, %v6169
      %v6361 = vrot.slane %v6357, 1
      %v6362 = vrot.slane %v6358, 1
      %v6363 = vsel %vm1333, %v6361, %v6362
      %v6366 = vadd.f32 %v6320, %v6363
      %v6367 = vadd.f32 %v6321, %v6362
      %v6368 = vlaneseq
      %v6369 = vshrl.u32 %v6368, 7
      %v6370 = vsub.s32 4, %v6369
      %v6371 = vrot.slane %v5694, %v6370
      %v6372 = vmul.f32 %v5862, %v6371
      %v6373 = vmul.f32 %v5863, %v6371
      %v6376 = vrot.slane %v6372, 4
      %v6377 = vrot.slane %v6373, 4
      %v6378 = vsel %vm1308, %v6376, %v6377
      %v6380 = vadd.f32 %v6334, %v6378
      %v6381 = vmul.f32 %v5863, %v5881
      %v6383 = vrot.slane %v6381, 1
      %v6384 = vsel %vm1333, %v6180, %v6383
      %v6387 = vadd.f32 %v6335, %v6384
      %v6388 = vadd.f32 %v6336, %v6383
      %v6389 = vmul.f32 %v5863, %v5955
      %v6391 = vrot.slane %v6389, 4
      %v6392 = vsel %vm1308, %v6189, %v6391
      %v6394 = vadd.f32 %v6345, %v6392
      %v6395 = vmul.f32 %v5863, %v6069
      %v6397 = vrot.slane %v6395, 7
      %v6398 = vsel %vm1414, %v6200, %v6397
      %v6401 = vadd.f32 %v6355, %v6200
      %v6402 = vadd.f32 %v6356, %v6398
      %v6403 = vmul.f32 %v5863, %v6209
      %v6405 = vrot.slane %v6403, 2
      %v6406 = vsel %vm1280, %v6215, %v6405
      %v6409 = vadd.f32 %v6366, %v6406
      %v6410 = vadd.f32 %v6367, %v6405
      %v6411 = vlaneseq
      %v6412 = vshrl.u32 %v6411, 7
      %v6413 = vsub.s32 5, %v6412
      %v6414 = vrot.slane %v5694, %v6413
      %v6415 = vmul.f32 %v5862, %v6414
      %v6416 = vmul.f32 %v5863, %v6414
      %v6419 = vrot.slane %v6415, 5
      %v6420 = vrot.slane %v6416, 5
      %v6421 = vsel %vm1370, %v6419, %v6420
      %v6423 = vadd.f32 %v6380, %v6421
      %v6424 = vmul.f32 %v5863, %v5890
      %v6426 = vrot.slane %v6424, 2
      %v6427 = vsel %vm1280, %v6224, %v6426
      %v6430 = vadd.f32 %v6387, %v6427
      %v6431 = vadd.f32 %v6388, %v6426
      %v6432 = vmul.f32 %v5863, %v5976
      %v6434 = vrot.slane %v6432, 5
      %v6435 = vsel %vm1370, %v6233, %v6434
      %v6437 = vadd.f32 %v6394, %v6435
      %v6438 = vmul.f32 %v5863, %v6094
      %v6439 = vadd.f32 %v6401, %v6240
      %v6440 = vadd.f32 %v6402, %v6438
      %v6441 = vmul.f32 %v5863, %v6246
      %v6443 = vrot.slane %v6441, 3
      %v6444 = vsel %vm1294, %v6252, %v6443
      %v6447 = vadd.f32 %v6409, %v6444
      %v6448 = vadd.f32 %v6410, %v6443
      %v6449 = vlaneseq
      %v6450 = vshrl.u32 %v6449, 7
      %v6451 = vsub.s32 6, %v6450
      %v6452 = vrot.slane %v5694, %v6451
      %v6453 = vmul.f32 %v5862, %v6452
      %v6454 = vmul.f32 %v5863, %v6452
      %v6457 = vrot.slane %v6453, 6
      %v6458 = vrot.slane %v6454, 6
      %v6459 = vsel %vm1392, %v6457, %v6458
      %v6461 = vadd.f32 %v6423, %v6459
      %v6462 = vmul.f32 %v5863, %v5903
      %v6464 = vrot.slane %v6462, 3
      %v6465 = vsel %vm1294, %v6261, %v6464
      %v6468 = vadd.f32 %v6430, %v6465
      %v6469 = vadd.f32 %v6431, %v6464
      %v6470 = vmul.f32 %v5863, %v5997
      %v6472 = vrot.slane %v6470, 6
      %v6473 = vsel %vm1392, %v6270, %v6472
      %v6475 = vadd.f32 %v6437, %v6473
      %v6476 = vmul.f32 %v5863, %v6112
      %v6478 = vrot.slane %v6476, 1
      %v6479 = vsel %vm1333, %v6281, %v6478
      %v6482 = vadd.f32 %v6439, %v6479
      %v6483 = vadd.f32 %v6440, %v6478
      %v6484 = vmul.f32 %v5863, %v6290
      %v6486 = vrot.slane %v6484, 4
      %v6487 = vsel %vm1308, %v6296, %v6486
      %v6490 = vadd.f32 %v6447, %v6487
      %v6491 = vadd.f32 %v6448, %v6486
      %v6492 = vlaneseq
      %v6493 = vshrl.u32 %v6492, 7
      %v6494 = vsub.s32 7, %v6493
      %v6495 = vrot.slane %v5694, %v6494
      %v6496 = vmul.f32 %v5862, %v6495
      %v6497 = vmul.f32 %v5863, %v6495
      %v6500 = vrot.slane %v6496, 7
      %v6501 = vrot.slane %v6497, 7
      %v6502 = vsel %vm1414, %v6500, %v6501
      %v6504 = vadd.f32 %v6461, %v6502
      %v6505 = vmul.f32 %v5863, %v5916
      %v6507 = vrot.slane %v6505, 4
      %v6509 = vadd.f32 %v6468, %v6507
      %v6510 = vadd.f32 %v6469, %v6507
      %v6511 = vmul.f32 %v5863, %v6018
      %v6513 = vrot.slane %v6511, 7
      %v6515 = vadd.f32 %v6475, %v6513
      %v6516 = vmul.f32 %v5863, %v6143
      %v6518 = vrot.slane %v6516, 2
      %v6520 = vadd.f32 %v6482, %v6518
      %v6521 = vadd.f32 %v6483, %v6518
      %v6522 = vmul.f32 %v5863, %v6325
      %v6524 = vrot.slane %v6522, 5
      %v6526 = vadd.f32 %v6490, %v6524
      %v6527 = vadd.f32 %v6491, %v6524
      %v6528 = vlaneseq
      %v6529 = vshrl.u32 %v6528, 7
      %v6530 = vsub.s32 0, %v6529
      %v6531 = vrot.slane %v5697, %v6530
      %v6532 = vmul.f32 %v5863, %v6531
      %v6533 = vadd.f32 %v6504, %v6532
      %v6534 = vmul.f32 %v5864, %v5876
      %v6535 = vmul.f32 %v5864, %v5931
      %v6537 = vrot.slane %v6535, 3
      %v6538 = vsel %vm1294, %v6342, %v6537
      %v6541 = vadd.f32 %v6509, %v6538
      %v6542 = vadd.f32 %v6510, %v6537
      %v6543 = vmul.f32 %v5864, %v6040
      %v6545 = vrot.slane %v6543, 6
      %v6546 = vsel %vm1392, %v6351, %v6545
      %v6548 = vadd.f32 %v6515, %v6546
      %v6549 = vmul.f32 %v5864, %v6169
      %v6551 = vrot.slane %v6549, 1
      %v6552 = vsel %vm1333, %v6362, %v6551
      %v6555 = vadd.f32 %v6520, %v6552
      %v6556 = vadd.f32 %v6521, %v6551
      %v6557 = vmul.f32 %v5864, %v6371
      %v6559 = vrot.slane %v6557, 4
      %v6560 = vsel %vm1308, %v6377, %v6559
      %v6563 = vadd.f32 %v6526, %v6560
      %v6564 = vadd.f32 %v6527, %v6559
      %v6565 = vmul.f32 %v5864, %v5881
      %v6567 = vrot.slane %v6565, 1
      %v6569 = vadd.f32 %v6336, %v6567
      %v6570 = vadd.f32 %v6534, %v6567
      %v6571 = vmul.f32 %v5864, %v5955
      %v6573 = vrot.slane %v6571, 4
      %v6575 = vadd.f32 %v6541, %v6573
      %v6576 = vadd.f32 %v6542, %v6573
      %v6577 = vmul.f32 %v5864, %v6069
      %v6579 = vrot.slane %v6577, 7
      %v6581 = vadd.f32 %v6548, %v6579
      %v6582 = vmul.f32 %v5864, %v6209
      %v6584 = vrot.slane %v6582, 2
      %v6586 = vadd.f32 %v6555, %v6584
      %v6587 = vadd.f32 %v6556, %v6584
      %v6588 = vmul.f32 %v5864, %v6414
      %v6590 = vrot.slane %v6588, 5
      %v6592 = vadd.f32 %v6563, %v6590
      %v6593 = vadd.f32 %v6564, %v6590
      %v6594 = vmul.f32 %v5864, %v5890
      %v6596 = vrot.slane %v6594, 2
      %v6598 = vadd.f32 %v6569, %v6596
      %v6599 = vadd.f32 %v6570, %v6596
      %v6600 = vmul.f32 %v5864, %v5976
      %v6602 = vrot.slane %v6600, 5
      %v6604 = vadd.f32 %v6575, %v6602
      %v6605 = vadd.f32 %v6576, %v6602
      %v6606 = vmul.f32 %v5864, %v6094
      %v6607 = vadd.f32 %v6581, %v6606
      %v6608 = vmul.f32 %v5864, %v6246
      %v6610 = vrot.slane %v6608, 3
      %v6612 = vadd.f32 %v6586, %v6610
      %v6613 = vadd.f32 %v6587, %v6610
      %v6614 = vmul.f32 %v5864, %v6452
      %v6616 = vrot.slane %v6614, 6
      %v6618 = vadd.f32 %v6592, %v6616
      %v6619 = vadd.f32 %v6593, %v6616
      %v6620 = vmul.f32 %v5864, %v5903
      %v6621 = vmul.f32 %v5865, %v5903
      %v6624 = vrot.slane %v6620, 3
      %v6625 = vrot.slane %v6621, 3
      %v6626 = vsel %vm1294, %v6624, %v6625
      %v6629 = vadd.f32 %v6598, %v6624
      %v6630 = vadd.f32 %v6599, %v6626
      %v6631 = vmul.f32 %v5864, %v5997
      %v6632 = vmul.f32 %v5865, %v5997
      %v6635 = vrot.slane %v6631, 6
      %v6636 = vrot.slane %v6632, 6
      %v6637 = vsel %vm1392, %v6635, %v6636
      %v6640 = vadd.f32 %v6604, %v6635
      %v6641 = vadd.f32 %v6605, %v6637
      %v6642 = vmul.f32 %v5864, %v6112
      %v6643 = vmul.f32 %v5865, %v6112
      %v6646 = vrot.slane %v6642, 1
      %v6647 = vrot.slane %v6643, 1
      %v6648 = vsel %vm1333, %v6646, %v6647
      %v6650 = vadd.f32 %v6607, %v6648
      %v6651 = vmul.f32 %v5864, %v6290
      %v6652 = vmul.f32 %v5865, %v6290
      %v6655 = vrot.slane %v6651, 4
      %v6656 = vrot.slane %v6652, 4
      %v6657 = vsel %vm1308, %v6655, %v6656
      %v6660 = vadd.f32 %v6612, %v6655
      %v6661 = vadd.f32 %v6613, %v6657
      %v6662 = vmul.f32 %v5864, %v6495
      %v6663 = vmul.f32 %v5865, %v6495
      %v6666 = vrot.slane %v6662, 7
      %v6667 = vrot.slane %v6663, 7
      %v6668 = vsel %vm1414, %v6666, %v6667
      %v6671 = vadd.f32 %v6618, %v6666
      %v6672 = vadd.f32 %v6619, %v6668
      %v6673 = vmul.f32 %v5864, %v5916
      %v6674 = vmul.f32 %v5865, %v5916
      %v6677 = vrot.slane %v6673, 4
      %v6678 = vrot.slane %v6674, 4
      %v6679 = vsel %vm1308, %v6677, %v6678
      %v6682 = vadd.f32 %v6629, %v6677
      %v6683 = vadd.f32 %v6630, %v6679
      %v6684 = vmul.f32 %v5864, %v6018
      %v6685 = vmul.f32 %v5865, %v6018
      %v6688 = vrot.slane %v6684, 7
      %v6689 = vrot.slane %v6685, 7
      %v6690 = vsel %vm1414, %v6688, %v6689
      %v6693 = vadd.f32 %v6640, %v6688
      %v6694 = vadd.f32 %v6641, %v6690
      %v6695 = vmul.f32 %v5864, %v6143
      %v6696 = vmul.f32 %v5865, %v6143
      %v6699 = vrot.slane %v6695, 2
      %v6700 = vrot.slane %v6696, 2
      %v6701 = vsel %vm1280, %v6699, %v6700
      %v6703 = vadd.f32 %v6650, %v6701
      %v6704 = vmul.f32 %v5864, %v6325
      %v6705 = vmul.f32 %v5865, %v6325
      %v6708 = vrot.slane %v6704, 5
      %v6709 = vrot.slane %v6705, 5
      %v6710 = vsel %vm1370, %v6708, %v6709
      %v6713 = vadd.f32 %v6660, %v6708
      %v6714 = vadd.f32 %v6661, %v6710
      %v6715 = vmul.f32 %v5864, %v6531
      %v6716 = vmul.f32 %v5865, %v6531
      %v6717 = vadd.f32 %v6671, %v6715
      %v6718 = vadd.f32 %v6672, %v6716
      %v6719 = vmul.f32 %v5865, %v5876
      %v6720 = vmul.f32 %v5866, %v5876
      %v6721 = vmul.f32 %v5865, %v5931
      %v6722 = vmul.f32 %v5866, %v5931
      %v6725 = vrot.slane %v6721, 3
      %v6726 = vrot.slane %v6722, 3
      %v6727 = vsel %vm1294, %v6725, %v6726
      %v6730 = vadd.f32 %v6682, %v6725
      %v6731 = vadd.f32 %v6683, %v6727
      %v6732 = vmul.f32 %v5865, %v6040
      %v6733 = vmul.f32 %v5866, %v6040
      %v6736 = vrot.slane %v6732, 6
      %v6737 = vrot.slane %v6733, 6
      %v6738 = vsel %vm1392, %v6736, %v6737
      %v6741 = vadd.f32 %v6693, %v6736
      %v6742 = vadd.f32 %v6694, %v6738
      %v6743 = vmul.f32 %v5865, %v6169
      %v6744 = vmul.f32 %v5866, %v6169
      %v6747 = vrot.slane %v6743, 1
      %v6748 = vrot.slane %v6744, 1
      %v6749 = vsel %vm1333, %v6747, %v6748
      %v6751 = vadd.f32 %v6703, %v6749
      %v6752 = vmul.f32 %v5865, %v6371
      %v6753 = vmul.f32 %v5866, %v6371
      %v6756 = vrot.slane %v6752, 4
      %v6757 = vrot.slane %v6753, 4
      %v6758 = vsel %vm1308, %v6756, %v6757
      %v6761 = vadd.f32 %v6713, %v6756
      %v6762 = vadd.f32 %v6714, %v6758
      %v6763 = vmul.f32 %v5865, %v5881
      %v6764 = vmul.f32 %v5866, %v5881
      %v6767 = vrot.slane %v6763, 1
      %v6768 = vrot.slane %v6764, 1
      %v6769 = vsel %vm1333, %v6767, %v6768
      %v6772 = vadd.f32 %v6719, %v6769
      %v6773 = vadd.f32 %v6720, %v6768
      %v6774 = vmul.f32 %v5865, %v5955
      %v6775 = vmul.f32 %v5866, %v5955
      %v6778 = vrot.slane %v6774, 4
      %v6779 = vrot.slane %v6775, 4
      %v6780 = vsel %vm1308, %v6778, %v6779
      %v6783 = vadd.f32 %v6730, %v6778
      %v6784 = vadd.f32 %v6731, %v6780
      %v6785 = vmul.f32 %v5865, %v6069
      %v6786 = vmul.f32 %v5866, %v6069
      %v6789 = vrot.slane %v6785, 7
      %v6790 = vrot.slane %v6786, 7
      %v6791 = vsel %vm1414, %v6789, %v6790
      %v6794 = vadd.f32 %v6741, %v6789
      %v6795 = vadd.f32 %v6742, %v6791
      %v6796 = vmul.f32 %v5865, %v6209
      %v6797 = vmul.f32 %v5866, %v6209
      %v6800 = vrot.slane %v6796, 2
      %v6801 = vrot.slane %v6797, 2
      %v6802 = vsel %vm1280, %v6800, %v6801
      %v6804 = vadd.f32 %v6751, %v6802
      %v6805 = vmul.f32 %v5865, %v6414
      %v6806 = vmul.f32 %v5866, %v6414
      %v6809 = vrot.slane %v6805, 5
      %v6810 = vrot.slane %v6806, 5
      %v6811 = vsel %vm1370, %v6809, %v6810
      %v6814 = vadd.f32 %v6761, %v6809
      %v6815 = vadd.f32 %v6762, %v6811
      %v6816 = vmul.f32 %v5865, %v5890
      %v6817 = vmul.f32 %v5866, %v5890
      %v6820 = vrot.slane %v6816, 2
      %v6821 = vrot.slane %v6817, 2
      %v6822 = vsel %vm1280, %v6820, %v6821
      %v6825 = vadd.f32 %v6772, %v6822
      %v6826 = vadd.f32 %v6773, %v6821
      %v6827 = vmul.f32 %v5865, %v5976
      %v6828 = vmul.f32 %v5866, %v5976
      %v6831 = vrot.slane %v6827, 5
      %v6832 = vrot.slane %v6828, 5
      %v6833 = vsel %vm1370, %v6831, %v6832
      %v6836 = vadd.f32 %v6783, %v6831
      %v6837 = vadd.f32 %v6784, %v6833
      %v6838 = vmul.f32 %v5865, %v6094
      %v6839 = vmul.f32 %v5866, %v6094
      %v6840 = vadd.f32 %v6794, %v6838
      %v6841 = vadd.f32 %v6795, %v6839
      %v6842 = vmul.f32 %v5865, %v6246
      %v6843 = vmul.f32 %v5866, %v6246
      %v6846 = vrot.slane %v6842, 3
      %v6847 = vrot.slane %v6843, 3
      %v6848 = vsel %vm1294, %v6846, %v6847
      %v6850 = vadd.f32 %v6804, %v6848
      %v6851 = vmul.f32 %v5865, %v6452
      %v6852 = vmul.f32 %v5866, %v6452
      %v6855 = vrot.slane %v6851, 6
      %v6856 = vrot.slane %v6852, 6
      %v6857 = vsel %vm1392, %v6855, %v6856
      %v6860 = vadd.f32 %v6814, %v6855
      %v6861 = vadd.f32 %v6815, %v6857
      %v6862 = vmul.f32 %v5866, %v5903
      %v6864 = vrot.slane %v6862, 3
      %v6865 = vsel %vm1294, %v6625, %v6864
      %v6868 = vadd.f32 %v6825, %v6865
      %v6869 = vadd.f32 %v6826, %v6864
      %v6870 = vmul.f32 %v5866, %v5997
      %v6872 = vrot.slane %v6870, 6
      %v6873 = vsel %vm1392, %v6636, %v6872
      %v6876 = vadd.f32 %v6836, %v6636
      %v6877 = vadd.f32 %v6837, %v6873
      %v6878 = vmul.f32 %v5866, %v6112
      %v6880 = vrot.slane %v6878, 1
      %v6881 = vsel %vm1333, %v6647, %v6880
      %v6884 = vadd.f32 %v6840, %v6881
      %v6885 = vadd.f32 %v6841, %v6880
      %v6886 = vmul.f32 %v5866, %v6290
      %v6888 = vrot.slane %v6886, 4
      %v6889 = vsel %vm1308, %v6656, %v6888
      %v6891 = vadd.f32 %v6850, %v6889
      %v6892 = vmul.f32 %v5866, %v6495
      %v6894 = vrot.slane %v6892, 7
      %v6895 = vsel %vm1414, %v6667, %v6894
      %v6898 = vadd.f32 %v6860, %v6667
      %v6899 = vadd.f32 %v6861, %v6895
      %v6900 = vmul.f32 %v5866, %v5916
      %v6902 = vrot.slane %v6900, 4
      %v6903 = vsel %vm1308, %v6678, %v6902
      %v6906 = vadd.f32 %v6868, %v6903
      %v6907 = vadd.f32 %v6869, %v6902
      %v6908 = vmul.f32 %v5866, %v6018
      %v6910 = vrot.slane %v6908, 7
      %v6911 = vsel %vm1414, %v6689, %v6910
      %v6914 = vadd.f32 %v6876, %v6689
      %v6915 = vadd.f32 %v6877, %v6911
      %v6916 = vmul.f32 %v5866, %v6143
      %v6918 = vrot.slane %v6916, 2
      %v6919 = vsel %vm1280, %v6700, %v6918
      %v6922 = vadd.f32 %v6884, %v6919
      %v6923 = vadd.f32 %v6885, %v6918
      %v6924 = vmul.f32 %v5866, %v6325
      %v6926 = vrot.slane %v6924, 5
      %v6927 = vsel %vm1370, %v6709, %v6926
      %v6929 = vadd.f32 %v6891, %v6927
      %v6930 = vmul.f32 %v5866, %v6531
      %v6931 = vadd.f32 %v6898, %v6716
      %v6932 = vadd.f32 %v6899, %v6930
      %v6933 = vmul.f32 %v5867, %v5931
      %v6935 = vrot.slane %v6933, 3
      %v6936 = vsel %vm1294, %v6726, %v6935
      %v6939 = vadd.f32 %v6906, %v6936
      %v6940 = vadd.f32 %v6907, %v6935
      %v6941 = vmul.f32 %v5867, %v6040
      %v6943 = vrot.slane %v6941, 6
      %v6944 = vsel %vm1392, %v6737, %v6943
      %v6947 = vadd.f32 %v6914, %v6737
      %v6948 = vadd.f32 %v6915, %v6944
      %v6949 = vmul.f32 %v5867, %v6169
      %v6951 = vrot.slane %v6949, 1
      %v6952 = vsel %vm1333, %v6748, %v6951
      %v6955 = vadd.f32 %v6922, %v6952
      %v6956 = vadd.f32 %v6923, %v6951
      %v6957 = vmul.f32 %v5867, %v6371
      %v6959 = vrot.slane %v6957, 4
      %v6960 = vsel %vm1308, %v6757, %v6959
      %v6962 = vadd.f32 %v6929, %v6960
      %v6963 = vmul.f32 %v5867, %v5955
      %v6965 = vrot.slane %v6963, 4
      %v6966 = vsel %vm1308, %v6779, %v6965
      %v6969 = vadd.f32 %v6939, %v6966
      %v6970 = vadd.f32 %v6940, %v6965
      %v6971 = vmul.f32 %v5867, %v6069
      %v6973 = vrot.slane %v6971, 7
      %v6974 = vsel %vm1414, %v6790, %v6973
      %v6977 = vadd.f32 %v6947, %v6790
      %v6978 = vadd.f32 %v6948, %v6974
      %v6979 = vmul.f32 %v5867, %v6209
      %v6981 = vrot.slane %v6979, 2
      %v6982 = vsel %vm1280, %v6801, %v6981
      %v6985 = vadd.f32 %v6955, %v6982
      %v6986 = vadd.f32 %v6956, %v6981
      %v6987 = vmul.f32 %v5867, %v6414
      %v6989 = vrot.slane %v6987, 5
      %v6990 = vsel %vm1370, %v6810, %v6989
      %v6992 = vadd.f32 %v6962, %v6990
      %v6993 = vmul.f32 %v5867, %v5976
      %v6995 = vrot.slane %v6993, 5
      %v6996 = vsel %vm1370, %v6832, %v6995
      %v6999 = vadd.f32 %v6969, %v6996
      %v7000 = vadd.f32 %v6970, %v6995
      %v7001 = vmul.f32 %v5867, %v6094
      %v7002 = vadd.f32 %v6977, %v6839
      %v7003 = vadd.f32 %v6978, %v7001
      %v7004 = vmul.f32 %v5867, %v6246
      %v7006 = vrot.slane %v7004, 3
      %v7007 = vsel %vm1294, %v6847, %v7006
      %v7010 = vadd.f32 %v6985, %v7007
      %v7011 = vadd.f32 %v6986, %v7006
      %v7012 = vmul.f32 %v5867, %v6452
      %v7014 = vrot.slane %v7012, 6
      %v7015 = vsel %vm1392, %v6856, %v7014
      %v7017 = vadd.f32 %v6992, %v7015
      %v7018 = vmul.f32 %v5867, %v5997
      %v7020 = vrot.slane %v7018, 6
      %v7022 = vadd.f32 %v6999, %v7020
      %v7023 = vadd.f32 %v7000, %v7020
      %v7024 = vmul.f32 %v5867, %v6112
      %v7026 = vrot.slane %v7024, 1
      %v7028 = vadd.f32 %v7002, %v7026
      %v7029 = vadd.f32 %v7003, %v7026
      %v7030 = vmul.f32 %v5867, %v6290
      %v7032 = vrot.slane %v7030, 4
      %v7034 = vadd.f32 %v7010, %v7032
      %v7035 = vadd.f32 %v7011, %v7032
      %v7036 = vmul.f32 %v5867, %v6495
      %v7038 = vrot.slane %v7036, 7
      %v7040 = vadd.f32 %v7017, %v7038
      %v7041 = vmul.f32 %v5867, %v6018
      %v7043 = vrot.slane %v7041, 7
      %v7045 = vadd.f32 %v7022, %v7043
      %v7046 = vadd.f32 %v7023, %v7043
      %v7047 = vmul.f32 %v5867, %v6143
      %v7049 = vrot.slane %v7047, 2
      %v7051 = vadd.f32 %v7028, %v7049
      %v7052 = vadd.f32 %v7029, %v7049
      %v7053 = vmul.f32 %v5867, %v6325
      %v7055 = vrot.slane %v7053, 5
      %v7057 = vadd.f32 %v7034, %v7055
      %v7058 = vadd.f32 %v7035, %v7055
      %v7059 = vmul.f32 %v5867, %v6531
      %v7060 = vadd.f32 %v7040, %v7059
      %v7061 = vmul.f32 %v5868, %v6040
      %v7063 = vrot.slane %v7061, 6
      %v7065 = vadd.f32 %v7045, %v7063
      %v7066 = vadd.f32 %v7046, %v7063
      %v7067 = vmul.f32 %v5868, %v6169
      %v7069 = vrot.slane %v7067, 1
      %v7071 = vadd.f32 %v7051, %v7069
      %v7072 = vadd.f32 %v7052, %v7069
      %v7073 = vmul.f32 %v5868, %v6371
      %v7075 = vrot.slane %v7073, 4
      %v7077 = vadd.f32 %v7057, %v7075
      %v7078 = vadd.f32 %v7058, %v7075
      %v7079 = vmul.f32 %v5868, %v6069
      %v7081 = vrot.slane %v7079, 7
      %v7083 = vadd.f32 %v7065, %v7081
      %v7084 = vadd.f32 %v7066, %v7081
      %v7085 = vmul.f32 %v5868, %v6209
      %v7087 = vrot.slane %v7085, 2
      %v7089 = vadd.f32 %v7071, %v7087
      %v7090 = vadd.f32 %v7072, %v7087
      %v7091 = vmul.f32 %v5868, %v6414
      %v7093 = vrot.slane %v7091, 5
      %v7095 = vadd.f32 %v7077, %v7093
      %v7096 = vadd.f32 %v7078, %v7093
      %v7097 = vmul.f32 %v5868, %v6094
      %v7098 = vmul.f32 %v5869, %v6094
      %v7099 = vadd.f32 %v7083, %v7097
      %v7100 = vadd.f32 %v7084, %v7098
      %v7101 = vmul.f32 %v5868, %v6246
      %v7102 = vmul.f32 %v5869, %v6246
      %v7105 = vrot.slane %v7101, 3
      %v7106 = vrot.slane %v7102, 3
      %v7107 = vsel %vm1294, %v7105, %v7106
      %v7110 = vadd.f32 %v7089, %v7105
      %v7111 = vadd.f32 %v7090, %v7107
      %v7112 = vmul.f32 %v5868, %v6452
      %v7113 = vmul.f32 %v5869, %v6452
      %v7116 = vrot.slane %v7112, 6
      %v7117 = vrot.slane %v7113, 6
      %v7118 = vsel %vm1392, %v7116, %v7117
      %v7121 = vadd.f32 %v7095, %v7116
      %v7122 = vadd.f32 %v7096, %v7118
      %v7123 = vmul.f32 %v5868, %v6112
      %v7124 = vmul.f32 %v5869, %v6112
      %v7127 = vrot.slane %v7123, 1
      %v7128 = vrot.slane %v7124, 1
      %v7129 = vsel %vm1333, %v7127, %v7128
      %v7132 = vadd.f32 %v7099, %v7129
      %v7133 = vadd.f32 %v7100, %v7128
      %v7134 = vmul.f32 %v5868, %v6290
      %v7135 = vmul.f32 %v5869, %v6290
      %v7138 = vrot.slane %v7134, 4
      %v7139 = vrot.slane %v7135, 4
      %v7140 = vsel %vm1308, %v7138, %v7139
      %v7143 = vadd.f32 %v7110, %v7138
      %v7144 = vadd.f32 %v7111, %v7140
      %v7145 = vmul.f32 %v5868, %v6495
      %v7146 = vmul.f32 %v5869, %v6495
      %v7149 = vrot.slane %v7145, 7
      %v7150 = vrot.slane %v7146, 7
      %v7151 = vsel %vm1414, %v7149, %v7150
      %v7154 = vadd.f32 %v7121, %v7149
      %v7155 = vadd.f32 %v7122, %v7151
      %v7156 = vmul.f32 %v5868, %v6143
      %v7157 = vmul.f32 %v5869, %v6143
      %v7160 = vrot.slane %v7156, 2
      %v7161 = vrot.slane %v7157, 2
      %v7162 = vsel %vm1280, %v7160, %v7161
      %v7165 = vadd.f32 %v7132, %v7162
      %v7166 = vadd.f32 %v7133, %v7161
      %v7167 = vmul.f32 %v5868, %v6325
      %v7168 = vmul.f32 %v5869, %v6325
      %v7171 = vrot.slane %v7167, 5
      %v7172 = vrot.slane %v7168, 5
      %v7173 = vsel %vm1370, %v7171, %v7172
      %v7176 = vadd.f32 %v7143, %v7171
      %v7177 = vadd.f32 %v7144, %v7173
      %v7178 = vmul.f32 %v5868, %v6531
      %v7179 = vmul.f32 %v5869, %v6531
      %v7180 = vadd.f32 %v7154, %v7178
      %v7181 = vadd.f32 %v7155, %v7179
      %v7182 = vmul.f32 %v5869, %v6169
      %v7183 = vmul.f32 %v5870, %v6169
      %v7186 = vrot.slane %v7182, 1
      %v7187 = vrot.slane %v7183, 1
      %v7188 = vsel %vm1333, %v7186, %v7187
      %v7191 = vadd.f32 %v7165, %v7188
      %v7192 = vadd.f32 %v7166, %v7187
      %v7193 = vmul.f32 %v5869, %v6371
      %v7194 = vmul.f32 %v5870, %v6371
      %v7197 = vrot.slane %v7193, 4
      %v7198 = vrot.slane %v7194, 4
      %v7199 = vsel %vm1308, %v7197, %v7198
      %v7202 = vadd.f32 %v7176, %v7197
      %v7203 = vadd.f32 %v7177, %v7199
      %v7204 = vmul.f32 %v5869, %v6209
      %v7205 = vmul.f32 %v5870, %v6209
      %v7208 = vrot.slane %v7204, 2
      %v7209 = vrot.slane %v7205, 2
      %v7210 = vsel %vm1280, %v7208, %v7209
      %v7213 = vadd.f32 %v7191, %v7210
      %v7214 = vadd.f32 %v7192, %v7209
      %v7215 = vmul.f32 %v5869, %v6414
      %v7216 = vmul.f32 %v5870, %v6414
      %v7219 = vrot.slane %v7215, 5
      %v7220 = vrot.slane %v7216, 5
      %v7221 = vsel %vm1370, %v7219, %v7220
      %v7224 = vadd.f32 %v7202, %v7219
      %v7225 = vadd.f32 %v7203, %v7221
      %v7226 = vmul.f32 %v5870, %v6246
      %v7228 = vrot.slane %v7226, 3
      %v7229 = vsel %vm1294, %v7106, %v7228
      %v7232 = vadd.f32 %v7213, %v7229
      %v7233 = vadd.f32 %v7214, %v7228
      %v7234 = vmul.f32 %v5870, %v6452
      %v7236 = vrot.slane %v7234, 6
      %v7237 = vsel %vm1392, %v7117, %v7236
      %v7240 = vadd.f32 %v7224, %v7117
      %v7241 = vadd.f32 %v7225, %v7237
      %v7242 = vmul.f32 %v5870, %v6290
      %v7244 = vrot.slane %v7242, 4
      %v7245 = vsel %vm1308, %v7139, %v7244
      %v7248 = vadd.f32 %v7232, %v7245
      %v7249 = vadd.f32 %v7233, %v7244
      %v7250 = vmul.f32 %v5870, %v6495
      %v7252 = vrot.slane %v7250, 7
      %v7253 = vsel %vm1414, %v7150, %v7252
      %v7256 = vadd.f32 %v7240, %v7150
      %v7257 = vadd.f32 %v7241, %v7253
      %v7258 = vmul.f32 %v5870, %v6325
      %v7260 = vrot.slane %v7258, 5
      %v7261 = vsel %vm1370, %v7172, %v7260
      %v7264 = vadd.f32 %v7248, %v7261
      %v7265 = vadd.f32 %v7249, %v7260
      %v7266 = vmul.f32 %v5870, %v6531
      %v7267 = vadd.f32 %v7256, %v7179
      %v7268 = vadd.f32 %v7257, %v7266
      %v7269 = vmul.f32 %v5871, %v6371
      %v7271 = vrot.slane %v7269, 4
      %v7272 = vsel %vm1308, %v7198, %v7271
      %v7275 = vadd.f32 %v7264, %v7272
      %v7276 = vadd.f32 %v7265, %v7271
      %v7277 = vmul.f32 %v5871, %v6414
      %v7279 = vrot.slane %v7277, 5
      %v7280 = vsel %vm1370, %v7220, %v7279
      %v7283 = vadd.f32 %v7275, %v7280
      %v7284 = vadd.f32 %v7276, %v7279
      %v7285 = vmul.f32 %v5871, %v6452
      %v7287 = vrot.slane %v7285, 6
      %v7289 = vadd.f32 %v7283, %v7287
      %v7290 = vadd.f32 %v7284, %v7287
      %v7291 = vmul.f32 %v5871, %v6495
      %v7293 = vrot.slane %v7291, 7
      %v7295 = vadd.f32 %v7289, %v7293
      %v7296 = vadd.f32 %v7290, %v7293
      %v7297 = vmul.f32 %v5871, %v6531
      %v7298 = vmul.f32 %v5872, %v6531
      %v7299 = vadd.f32 %v7295, %v7297
      %v7300 = vadd.f32 %v7296, %v7298
      %v7303 = vrot.slane %v6717, 3
      %v7304 = vrot.slane %v6718, 3
      %v7305 = vsel %vm1294, %v7303, %v7304
      %v7307 = vadd.f32 %v6533, %v7305
      %v7310 = vrot.slane %v6931, 6
      %v7311 = vrot.slane %v6932, 6
      %v7312 = vsel %vm1392, %v7310, %v7311
      %v7314 = vadd.f32 %v7307, %v7312
      %v7316 = vrot.slane %v7060, 1
      %v7318 = vadd.f32 %v7314, %v7316
      %v7321 = vrot.slane %v7180, 4
      %v7322 = vrot.slane %v7181, 4
      %v7323 = vsel %vm1308, %v7321, %v7322
      %v7325 = vadd.f32 %v7318, %v7323
      %v7328 = vrot.slane %v7267, 7
      %v7329 = vrot.slane %v7268, 7
      %v7330 = vsel %vm1414, %v7328, %v7329
      %v7332 = vadd.f32 %v7325, %v7330
      %v7335 = vrot.slane %v7299, 2
      %v7336 = vrot.slane %v7300, 2
      %v7337 = vsel %vm1280, %v7335, %v7336
      %v7339 = vadd.f32 %v7332, %v7337
      %v7340 = vsel %vm1333, %v7339, 0.0
      %v7341 = vrot.slane %v7340, 4
      %v7342 = vadd.f32 %v7340, %v7341
      %v7343 = vrot.slane %v7342, 2
      %v7344 = vadd.f32 %v7342, %v7343
      %v7345 = vrot.slane %v7344, 1
      %v7346 = vadd.f32 %v7344, %v7345
      %v7347 = vmul.f32 %v7346, 0.020408163
      %v7348 = vsub.f32 %v6533, %v7347
      %v7349 = vmul.f32 %v7348, %v7348
      %v7350 = vsub.f32 %v6717, %v7347
      %v7351 = vsub.f32 %v6718, %v7347
      %v7352 = vmul.f32 %v7350, %v7350
      %v7353 = vmul.f32 %v7351, %v7351
      %v7356 = vrot.slane %v7352, 3
      %v7357 = vrot.slane %v7353, 3
      %v7358 = vsel %vm1294, %v7356, %v7357
      %v7360 = vadd.f32 %v7349, %v7358
      %v7361 = vsub.f32 %v6931, %v7347
      %v7362 = vsub.f32 %v6932, %v7347
      %v7363 = vmul.f32 %v7361, %v7361
      %v7364 = vmul.f32 %v7362, %v7362
      %v7367 = vrot.slane %v7363, 6
      %v7368 = vrot.slane %v7364, 6
      %v7369 = vsel %vm1392, %v7367, %v7368
      %v7371 = vadd.f32 %v7360, %v7369
      %v7372 = vsub.f32 %v7060, %v7347
      %v7373 = vmul.f32 %v7372, %v7372
      %v7375 = vrot.slane %v7373, 1
      %v7377 = vadd.f32 %v7371, %v7375
      %v7378 = vsub.f32 %v7180, %v7347
      %v7379 = vsub.f32 %v7181, %v7347
      %v7380 = vmul.f32 %v7378, %v7378
      %v7381 = vmul.f32 %v7379, %v7379
      %v7384 = vrot.slane %v7380, 4
      %v7385 = vrot.slane %v7381, 4
      %v7386 = vsel %vm1308, %v7384, %v7385
      %v7388 = vadd.f32 %v7377, %v7386
      %v7389 = vsub.f32 %v7267, %v7347
      %v7390 = vsub.f32 %v7268, %v7347
      %v7391 = vmul.f32 %v7389, %v7389
      %v7392 = vmul.f32 %v7390, %v7390
      %v7395 = vrot.slane %v7391, 7
      %v7396 = vrot.slane %v7392, 7
      %v7397 = vsel %vm1414, %v7395, %v7396
      %v7399 = vadd.f32 %v7388, %v7397
      %v7400 = vsub.f32 %v7299, %v7347
      %v7401 = vsub.f32 %v7300, %v7347
      %v7402 = vmul.f32 %v7400, %v7400
      %v7403 = vmul.f32 %v7401, %v7401
      %v7406 = vrot.slane %v7402, 2
      %v7407 = vrot.slane %v7403, 2
      %v7408 = vsel %vm1280, %v7406, %v7407
      %v7410 = vadd.f32 %v7399, %v7408
      %v7411 = vsel %vm1333, %v7410, 0.0
      %v7412 = vrot.slane %v7411, 4
      %v7413 = vadd.f32 %v7411, %v7412
      %v7414 = vrot.slane %v7413, 2
      %v7415 = vadd.f32 %v7413, %v7414
      %v7416 = vrot.slane %v7415, 1
      %v7417 = vadd.f32 %v7415, %v7416
      %v7418 = vmul.f32 %v7417, 0.020408163
      %v7419 = vadd.f32 %v7418, 1e-05
      %v7420 = vrsqrt.pop %v7419
      %v7421 = vmul.f32 %v5262, %v7420
      %v7422 = vmul.f32 %v7347, %v7421
      %v7423 = vsub.f32 %v5263, %v7422
      %v7425 = vlaneseq
      %v7426 = vshrl.u32 %v7425, 7
      %v7427 = vsub.s32 0, %v7426
      %v7428 = vrot.slane %v7421, %v7427
      %v7430 = vmul.f32 %v6533, %v7428
      %v7432 = vlaneseq
      %v7433 = vshrl.u32 %v7432, 7
      %v7434 = vsub.s32 0, %v7433
      %v7435 = vrot.slane %v7423, %v7434
      %v7437 = vadd.f32 %v7430, %v7435
      %v7438 = vmul.f32 %v6717, %v7428
      %v7439 = vmul.f32 %v6718, %v7428
      %v7440 = vadd.f32 %v7438, %v7435
      %v7441 = vadd.f32 %v7439, %v7435
      %v7442 = vmul.f32 %v6931, %v7428
      %v7443 = vmul.f32 %v6932, %v7428
      %v7444 = vadd.f32 %v7442, %v7435
      %v7445 = vadd.f32 %v7443, %v7435
      %v7446 = vmul.f32 %v7060, %v7428
      %v7447 = vadd.f32 %v7446, %v7435
      %v7448 = vmul.f32 %v7180, %v7428
      %v7449 = vmul.f32 %v7181, %v7428
      %v7450 = vadd.f32 %v7448, %v7435
      %v7451 = vadd.f32 %v7449, %v7435
      %v7452 = vmul.f32 %v7267, %v7428
      %v7453 = vmul.f32 %v7268, %v7428
      %v7454 = vadd.f32 %v7452, %v7435
      %v7455 = vadd.f32 %v7453, %v7435
      %v7456 = vmul.f32 %v7299, %v7428
      %v7457 = vmul.f32 %v7300, %v7428
      %v7458 = vadd.f32 %v7456, %v7435
      %v7459 = vadd.f32 %v7457, %v7435
      %v7462 = vrot.slane %v7440, 4
      %v7463 = vrot.slane %v7441, 4
      %v7464 = vsel %vm1308, %v7462, %v7463
      %v7468 = vrot.slane %v7447, 4
      %v7472 = vrot.slane %v7454, 4
      %v7473 = vrot.slane %v7455, 4
      %v7474 = vsel %vm1308, %v7472, %v7473
      %v7477 = vsel %vm1333, %v7437, %v7462
      %v7478 = vsel %vm1280, %v7464, %v7444
      %v7479 = vsel %vm1294, %v7445, %v7468
      %v7480 = vsel %vm1308, %v7468, %v7450
      %v7481 = vsel %vm1370, %v7451, %v7474
      %v7482 = vsel %vm1392, %v7473, %v7458
      %v7483 = vsel %vm1414, %v7459, 0.0
      %7484 = vxpose.xlu0.b32.start [1/16] %v7477, 128
      %7485 = vxpose.xlu0.b32.cont [2/16] %v7478, 128
      %7486 = vxpose.xlu0.b32.cont [3/16] %v7479, 128
      %7487 = vxpose.xlu0.b32.cont [4/16] %v7480, 128
      %7488 = vxpose.xlu0.b32.cont [5/16] %v7481, 128
      %7489 = vxpose.xlu0.b32.cont [6/16] %v7482, 128
      %7490 = vxpose.xlu0.b32.cont [7/16] %v7483, 128
      %7491 = vxpose.xlu0.b32.cont [8/16] 0.0, 128
      %7492 = vxpose.xlu0.b32.cont [9/16] 0.0, 128
      %7493 = vxpose.xlu0.b32.cont [10/16] 0.0, 128
      %7494 = vxpose.xlu0.b32.cont [11/16] 0.0, 128
      %7495 = vxpose.xlu0.b32.cont [12/16] 0.0, 128
      %7496 = vxpose.xlu0.b32.cont [13/16] 0.0, 128
      %7497 = vxpose.xlu0.b32.cont [14/16] 0.0, 128
      %7498 = vxpose.xlu0.b32.cont [15/16] 0.0, 128
      %7499 = vxpose.xlu0.b32.end [16/16] 0.0, 128
      %v7500 = vpop.trf.xlu0
      %v7501 = vpop.trf.xlu0
      %v7502 = vpop.trf.xlu0
      %v7503 = vpop.trf.xlu0
      %v7504 = vpop.trf.xlu0
      %v7505 = vpop.trf.xlu0
      %v7506 = vpop.trf.xlu0
      %v7507 = vpop.trf.xlu0
      %v7508 = vpop.trf.xlu0
      %v7509 = vpop.trf.xlu0
      %v7510 = vpop.trf.xlu0
      %v7511 = vpop.trf.xlu0
      %v7512 = vpop.trf.xlu0
      %v7513 = vpop.trf.xlu0
      %v7514 = vpop.trf.xlu0
      %v7515 = vpop.trf.xlu0
      %7516 = vst.msk [vmem:[%s432 + $0x100] sm:$0xff] %vm571, %v7500
      %7517 = vst.msk [vmem:[%s432 + $0x108] sm:$0xff] %vm571, %v7501
      %7518 = vst.msk [vmem:[%s432 + $0x110] sm:$0xff] %vm571, %v7502
      %7519 = vst.msk [vmem:[%s432 + $0x118] sm:$0xff] %vm571, %v7503
      %7520 = vst.msk [vmem:[%s432 + $0x120] sm:$0xff] %vm571, %v7504
      %7521 = vst.msk [vmem:[%s432 + $0x128] sm:$0xff] %vm571, %v7505
      %7522 = vst.msk [vmem:[%s432 + $0x130] sm:$0xff] %vm571, %v7506
      %7523 = vst.msk [vmem:[%s432 + $0x138] sm:$0xff] %vm571, %v7507
      %7524 = vst.msk [vmem:[%s432 + $0x140] sm:$0xff] %vm571, %v7508
      %7525 = vst.msk [vmem:[%s432 + $0x148] sm:$0xff] %vm571, %v7509
      %7526 = vst.msk [vmem:[%s432 + $0x150] sm:$0xff] %vm571, %v7510
      %7527 = vst.msk [vmem:[%s432 + $0x158] sm:$0xff] %vm571, %v7511
      %7528 = vst.msk [vmem:[%s432 + $0x160] sm:$0xff] %vm571, %v7512
      %7529 = vst.msk [vmem:[%s432 + $0x168] sm:$0xff] %vm571, %v7513
      %7530 = vst.msk [vmem:[%s432 + $0x170] sm:$0xff] %vm571, %v7514
      %7531 = vst.msk [vmem:[%s432 + $0x178] sm:$0xff] %vm571, %v7515
      %s7532 = smul.u32 48, %s20
      %p7533 = scmp.lt.s32.totalorder %s7532, 143
      %s7534 = scalar_select %p7533, %s7532, 143
      %s7535 = smul.addr %s7534, 8
      %s7536 = scalar_lea.vmem %s9, %s7535
      // Predicated region
      $region57: #{module_forward.1} parent=55 // pred_check
        %p7537 = pneg %p257
      $region58: #{module_forward.1} parent=55 // pred_check_branch
        %7539 = sbr.rel (%p7537) target = $region60
      $region59: #{module_forward.1} parent=55 // pred_region
        %s7540 = smul.u32 48, %s20
      $region60: #{module_forward.1} parent=55 // pred_fallthru
        _
    $region56: #{module_forward.1} parent=5 // pred_fallthru
      _
    %p7541 = scmp.le.s32.totalorder 2, %s15
    // Predicated region
    $region61: #{module_forward.1} parent=5 // pred_check
      %p7542 = pneg %p7541
    $region62: #{module_forward.1} parent=5 // pred_check_branch
      %7544 = sbr.rel (%p7542) target = $region64
    $region63: #{module_forward.1} parent=5 // pred_region
      %s7545 = ssub.s32 %s15, 2
      // Predicated region
      $region65: #{module_forward.1} parent=63 // pred_check
        %p7546 = pneg %p263
      $region66: #{module_forward.1} parent=63 // pred_check_branch
        %7548 = sbr.rel (%p7546) target = $region68
      $region67: #{module_forward.1} parent=63 // pred_region
        %s7549 = smul.u32 48, %s21
        %p7550 = scmp.lt.s32.totalorder %s7549, 143
        %s7551 = scalar_select %p7550, %s7549, 143
        %s7552 = smul.addr %s7551, 8
        %s7553 = scalar_lea.vmem %s9, %s7552
      $region68: #{module_forward.1} parent=63 // pred_fallthru
        _
    $region64: #{module_forward.1} parent=5 // pred_fallthru
      _
  $region6: #{module_forward.1} parent=0 // loop_footer
    %s19 = sadd.s32 1, %s15
  $region7: #{module_forward.1} parent=0 // loop_footer_branch
    %14 = sbr.rel target = $region3
  $region8: #{module_forward.1} parent=0 // loop_exit
    _

</llo_original>
